<compile_context>
chip_gen: v7x
topology: tpu7x:2x2x1
jax: 0.10.0
libtpu: 0.0.40
codegen_flags: <defaults>
</compile_context>

<pallas_src>
import jax
import jax.numpy as jnp
from jax.experimental import pallas as pl
from jax.experimental.pallas import tpu as pltpu

OUT_CHANNELS = 16
EPS = 1e-5
B_TILE = 128                      # images per grid step == lane width of all work
KP = OUT_CHANNELS * 14 * 16       # 3584: pooled 14x14 map, only px padded 14 -> 16


def _elu_f32(a):
    # ELU(alpha=1); a is f32.  exp()-1 (not expm1) to keep lowering maximally portable;
    # at the bf16/f32 precisions used downstream the difference is below rounding.
    return jnp.where(a > 0, a, jnp.exp(jnp.minimum(a, 0.0)) - 1.0)


def fused_forward_kernel(x_ref, wsh_ref, w1_ref, t1_ref, w2_ref, b2_ref, o_ref, feat_s):
    # x_ref : (4, 2, 15, 14, B_TILE) bf16 VMEM   width-only im2col of the padded image:
    #         x_ref[cw, rh, i, px, b] = xpad[b, 2*i + rh, 2*px + cw]
    # wsh_ref:(16, 10) f32 SMEM                  per channel: 9 BN-folded conv taps + shift
    # w1_ref :(NHp, 3584) bf16 VMEM              fc1 weight (BN1-folded), K = c*224+py*16+px
    # t1_ref :(NHp, B_TILE) f32                  folded fc1 bias + BN1 shift (lane-broadcast)
    # w2_ref :(NOp, NHp) bf16
    # b2_ref :(NOp, B_TILE) f32
    # o_ref  :(NOp, B_TILE) f32                  logits, batch in lanes
    # feat_s :(16, 14, 16, B_TILE) bf16 scratch  pooled+ELU features (c, py, px_pad, b)

    # The px padding columns (14, 15) feed zero-weight fc1 K rows; zero them once.
    @pl.when(pl.program_id(0) == 0)
    def _():
        feat_s[:, :, 14:, :] = jnp.zeros((OUT_CHANNELS, 14, 2, B_TILE), feat_s.dtype)

    # conv3x3 (BN2d folded) + 2x2 max-pool, one output channel per loop step.
    # All reads are aligned (14, 14, B_TILE) bf16 slabs; MACs run on the bf16 VALU.
    @pl.loop(0, OUT_CHANNELS)
    def _(c):
        pooled = None
        for hi in range(2):                     # 2x2 pool sub-position
            for wi in range(2):
                acc = None
                for dh in range(3):             # 3x3 conv taps
                    for dw in range(3):
                        a = hi + dh             # padded-row index parity/offset
                        cw = wi + dw            # width shift handled by the im2col
                        patch = x_ref[cw, a % 2, a // 2:a // 2 + 14, :, :]  # (14,14,B)
                        w = wsh_ref[c, dh * 3 + dw].astype(jnp.bfloat16)
                        term = patch * w
                        acc = term if acc is None else acc + term
                pooled = acc if pooled is None else jnp.maximum(pooled, acc)
        # shift is channel-constant, so max(acc)+shift == max(acc+shift); ELU is monotone,
        # so ELU(max(.)) == max(ELU(.)).  Finish in f32 for accuracy, store bf16.
        z = pooled.astype(jnp.float32) + wsh_ref[c, 9]
        feat_s[c, :, :14, :] = _elu_f32(z).astype(feat_s.dtype)

    # fc1 (+ folded BN1) -> ELU -> (dropout = identity in eval) -> fc2, batch in lanes.
    feat = feat_s[...].reshape(KP, B_TILE)      # layout-free merge (sublane dim 16 | 8)
    h = jnp.dot(w1_ref[...], feat, preferred_element_type=jnp.float32) + t1_ref[...]
    h = _elu_f32(h)
    # TODO(synk): nn.Dropout(0.3) is identity in inference mode; train-mode masking not implemented.
    out = jnp.dot(w2_ref[...], h.astype(jnp.bfloat16),
                  preferred_element_type=jnp.float32) + b2_ref[...]
    o_ref[...] = out.astype(o_ref.dtype)


def _round_up(x, m):
    return (x + m - 1) // m * m


def neural_net_forward(x, params):
    """x: (B, 784) -> (B, num_output) float32 logits (inference semantics)."""
    B = x.shape[0]
    num_hidden = params["fc1_w"].shape[0]
    num_output = params["fc2_w"].shape[0]
    NHp = _round_up(num_hidden, 128)
    NOp = _round_up(num_output, 128)
    BP = _round_up(B, B_TILE)

    # ---- input: pad 28x28 -> 30x30, batch -> lanes, width-only im2col ------------------
    img = x.reshape(B, 28, 28).astype(jnp.float32)
    img = jnp.pad(img, ((0, BP - B), (1, 1), (1, 1)))                 # (BP, 30, 30)
    imgT = img.transpose(1, 2, 0)                                     # (30, 30, BP)
    cols = []
    for cw in range(4):                                               # wi + dw  in 0..3
        rows = []
        for rh in range(2):                                           # row parity
            rows.append(imgT[rh:rh + 29:2, cw:cw + 27:2, :])          # (15, 14, BP)
        cols.append(jnp.stack(rows, axis=0))                          # (2, 15, 14, BP)
    x_im2 = jnp.stack(cols, axis=0).astype(jnp.bfloat16)              # (4, 2, 15, 14, BP)

    # ---- fold conv bias + BatchNorm2d (running stats) into taps + shift ----------------
    inv_c = params["bn_conv_gamma"] / jnp.sqrt(params["bn_conv_var"] + EPS)
    w9 = params["conv_w"].reshape(OUT_CHANNELS, 9) * inv_c[:, None]
    shift_c = params["bn_conv_beta"] + (params["conv_b"] - params["bn_conv_mean"]) * inv_c
    wsh = jnp.concatenate([w9, shift_c[:, None]], axis=1).astype(jnp.float32)   # (16, 10)

    # ---- fold fc1 bias + BatchNorm1d into fc1; pad only px 14 -> 16 and N -> NHp -------
    inv1 = params["bn1_gamma"] / jnp.sqrt(params["bn1_var"] + EPS)
    w1 = (params["fc1_w"] * inv1[:, None]).reshape(num_hidden, OUT_CHANNELS, 14, 14)
    w1 = jnp.pad(w1, ((0, NHp - num_hidden), (0, 0), (0, 0), (0, 2)))           # px -> 16
    w1 = w1.reshape(NHp, KP).astype(jnp.bfloat16)                               # (NHp, 3584)
    t1 = inv1 * (params["fc1_b"] - params["bn1_mean"]) + params["bn1_beta"]
    t1 = jnp.pad(t1, (0, NHp - num_hidden))
    t1b = jnp.broadcast_to(t1[:, None], (NHp, B_TILE)).astype(jnp.float32)

    w2 = jnp.pad(params["fc2_w"], ((0, NOp - num_output), (0, NHp - num_hidden)))
    w2 = w2.astype(jnp.bfloat16)                                                # (NOp, NHp)
    b2 = jnp.pad(params["fc2_b"], (0, NOp - num_output))
    b2b = jnp.broadcast_to(b2[:, None], (NOp, B_TILE)).astype(jnp.float32)

    out_t = pl.pallas_call(
        fused_forward_kernel,
        out_shape=jax.ShapeDtypeStruct((NOp, BP), jnp.float32),
        grid=(BP // B_TILE,),
        in_specs=[
            pl.BlockSpec((4, 2, 15, 14, B_TILE), lambda b: (0, 0, 0, 0, b)),
            pl.BlockSpec(memory_space=pltpu.MemorySpace.SMEM),      # conv taps/shift table
            pl.BlockSpec((NHp, KP), lambda b: (0, 0)),              # w1 (pinned)
            pl.BlockSpec((NHp, B_TILE), lambda b: (0, 0)),          # t1 (pinned)
            pl.BlockSpec((NOp, NHp), lambda b: (0, 0)),             # w2 (pinned)
            pl.BlockSpec((NOp, B_TILE), lambda b: (0, 0)),          # b2 (pinned)
        ],
        out_specs=pl.BlockSpec((NOp, B_TILE), lambda b: (0, b)),
        scratch_shapes=[pltpu.VMEM((OUT_CHANNELS, 14, 16, B_TILE), jnp.bfloat16)],
        compiler_params=pltpu.CompilerParams(
            dimension_semantics=("parallel",),
        ),
    )(x_im2, wsh, w1, t1b, w2, b2b)

    # kernel output is (NOp, BP) with batch in lanes; restore (B, num_output).
    return out_t.T[:B, :num_output]


if __name__ == "__main__":
    B, num_hidden, num_output = 2, 32, 10
    key = jax.random.PRNGKey(0)
    keys = jax.random.split(key, 16)

    params = {
        "conv_w": 0.1 * jax.random.normal(keys[0], (OUT_CHANNELS, 1, 3, 3), jnp.float32),
        "conv_b": 0.1 * jax.random.normal(keys[1], (OUT_CHANNELS,), jnp.float32),
        "bn_conv_gamma": 1.0 + 0.1 * jax.random.normal(keys[2], (OUT_CHANNELS,), jnp.float32),
        "bn_conv_beta": 0.1 * jax.random.normal(keys[3], (OUT_CHANNELS,), jnp.float32),
        "bn_conv_mean": 0.1 * jax.random.normal(keys[4], (OUT_CHANNELS,), jnp.float32),
        "bn_conv_var": jnp.abs(1.0 + 0.1 * jax.random.normal(keys[5], (OUT_CHANNELS,), jnp.float32)),
        "fc1_w": 0.02 * jax.random.normal(keys[6], (num_hidden, OUT_CHANNELS * 14 * 14), jnp.float32),
        "fc1_b": 0.1 * jax.random.normal(keys[7], (num_hidden,), jnp.float32),
        "bn1_gamma": 1.0 + 0.1 * jax.random.normal(keys[8], (num_hidden,), jnp.float32),
        "bn1_beta": 0.1 * jax.random.normal(keys[9], (num_hidden,), jnp.float32),
        "bn1_mean": 0.1 * jax.random.normal(keys[10], (num_hidden,), jnp.float32),
        "bn1_var": jnp.abs(1.0 + 0.1 * jax.random.normal(keys[11], (num_hidden,), jnp.float32)),
        "fc2_w": 0.1 * jax.random.normal(keys[12], (num_output, num_hidden), jnp.float32),
        "fc2_b": 0.1 * jax.random.normal(keys[13], (num_output,), jnp.float32),
    }

    x = jax.random.normal(keys[14], (B, 28 * 28), jnp.float32)
    out = neural_net_forward(x, params)
    jax.block_until_ready(out)
    assert out.shape == (B, num_output) and out.dtype == jnp.float32
    assert bool(jnp.isfinite(out).all())
    print("KERNEL_OK")
</pallas_src>

<mosaic_0001>
module attributes {stable_mosaic.version = 11 : i64} {
  func.func @fused_forward_kernel(%arg0: i32, %arg1: memref<4x2x15x14x128xbf16, #tpu.memory_space<vmem>>, %arg2: memref<16x10xf32, #tpu.memory_space<smem>>, %arg3: memref<128x3584xbf16, #tpu.memory_space<vmem>>, %arg4: memref<128x128xf32, #tpu.memory_space<vmem>>, %arg5: memref<128x128xbf16, #tpu.memory_space<vmem>>, %arg6: memref<128x128xf32, #tpu.memory_space<vmem>>, %arg7: memref<128x128xf32, #tpu.memory_space<vmem>>, %arg8: memref<16x14x16x128xbf16, #tpu.memory_space<vmem>>) attributes {dimension_semantics = [#tpu.dimension_semantics<parallel>], iteration_bounds = array<i64: 1>, scalar_prefetch = 0 : i64, scratch_operands = 1 : i64, tpu.core_type = #tpu.core_type<tc>, window_params = [{transform_indices = @transform_0, window_bounds = array<i64: 4, 2, 15, 14, 128>}, {transform_indices = @transform_1, window_bounds = array<i64: 16, 10>}, {pipeline_mode = #tpu.pipeline_mode<synchronous>, transform_indices = @transform_2, window_bounds = array<i64: 128, 3584>}, {pipeline_mode = #tpu.pipeline_mode<synchronous>, transform_indices = @transform_3, window_bounds = array<i64: 128, 128>}, {pipeline_mode = #tpu.pipeline_mode<synchronous>, transform_indices = @transform_4, window_bounds = array<i64: 128, 128>}, {pipeline_mode = #tpu.pipeline_mode<synchronous>, transform_indices = @transform_5, window_bounds = array<i64: 128, 128>}, {transform_indices = @transform_6, window_bounds = array<i64: 128, 128>}]} {
    %c0_i32 = arith.constant 0 : i32
    %0 = arith.cmpi eq, %arg0, %c0_i32 : i32
    %1 = arith.extui %0 : i1 to i32
    %c0_i32_0 = arith.constant 0 : i32
    %2 = arith.cmpi ne, %1, %c0_i32_0 : i32
    scf.if %2 {
      %cst_20 = arith.constant 0.000000e+00 : bf16
      %24 = vector.broadcast %cst_20 : bf16 to vector<16x14x2x128xbf16>
      %c0_21 = arith.constant 0 : index
      %c0_22 = arith.constant 0 : index
      %c14 = arith.constant 14 : index
      %c0_23 = arith.constant 0 : index
      %25 = vector.load %arg8[%c0_21, %c0_22, %c14, %c0_23] : memref<16x14x16x128xbf16, #tpu.memory_space<vmem>>, vector<16x14x2x128xbf16>
      tpu.vector_store %arg8[%c0_21, %c0_22, %c14, %c0_23], %24 {strides = array<i32>} : memref<16x14x16x128xbf16, #tpu.memory_space<vmem>>, vector<16x14x2x128xbf16>,
    } else {
    }
    %c0_i32_1 = arith.constant 0 : i32
    %c16_i32 = arith.constant 16 : i32
    %3 = arith.addi %c0_i32_1, %c16_i32 : i32
    %c1_i32 = arith.constant 1 : i32
    scf.for %arg9 = %c0_i32_1 to %3 step %c1_i32  : i32 {
      %c1_i32_20 = arith.constant 1 : i32
      %24 = arith.muli %arg9, %c1_i32_20 : i32
      %c0_i32_21 = arith.constant 0 : i32
      %25 = arith.addi %c0_i32_21, %24 : i32
      %c0_22 = arith.constant 0 : index
      %c0_23 = arith.constant 0 : index
      %c0_24 = arith.constant 0 : index
      %c0_25 = arith.constant 0 : index
      %c0_26 = arith.constant 0 : index
      %26 = vector.load %arg1[%c0_22, %c0_23, %c0_24, %c0_25, %c0_26] : memref<4x2x15x14x128xbf16, #tpu.memory_space<vmem>>, vector<1x1x14x14x128xbf16>
      %27 = vector.shape_cast %26 : vector<1x1x14x14x128xbf16> to vector<14x14x128xbf16>
      %28 = arith.index_cast %25 : i32 to index
      %c0_27 = arith.constant 0 : index
      %29 = memref.load %arg2[%28, %c0_27] : memref<16x10xf32, #tpu.memory_space<smem>>
      %30 = arith.truncf %29 : f32 to bf16
      %31 = vector.broadcast %30 : bf16 to vector<14x14x128xbf16>
      %32 = arith.mulf %27, %31 : vector<14x14x128xbf16>
      %c1 = arith.constant 1 : index
      %c0_28 = arith.constant 0 : index
      %c0_29 = arith.constant 0 : index
      %c0_30 = arith.constant 0 : index
      %c0_31 = arith.constant 0 : index
      %33 = vector.load %arg1[%c1, %c0_28, %c0_29, %c0_30, %c0_31] : memref<4x2x15x14x128xbf16, #tpu.memory_space<vmem>>, vector<1x1x14x14x128xbf16>
      %34 = vector.shape_cast %33 : vector<1x1x14x14x128xbf16> to vector<14x14x128xbf16>
      %35 = arith.index_cast %25 : i32 to index
      %c1_32 = arith.constant 1 : index
      %36 = memref.load %arg2[%35, %c1_32] : memref<16x10xf32, #tpu.memory_space<smem>>
      %37 = arith.truncf %36 : f32 to bf16
      %38 = vector.broadcast %37 : bf16 to vector<14x14x128xbf16>
      %39 = arith.mulf %34, %38 : vector<14x14x128xbf16>
      %40 = arith.addf %32, %39 : vector<14x14x128xbf16>
      %c2 = arith.constant 2 : index
      %c0_33 = arith.constant 0 : index
      %c0_34 = arith.constant 0 : index
      %c0_35 = arith.constant 0 : index
      %c0_36 = arith.constant 0 : index
      %41 = vector.load %arg1[%c2, %c0_33, %c0_34, %c0_35, %c0_36] : memref<4x2x15x14x128xbf16, #tpu.memory_space<vmem>>, vector<1x1x14x14x128xbf16>
      %42 = vector.shape_cast %41 : vector<1x1x14x14x128xbf16> to vector<14x14x128xbf16>
      %43 = arith.index_cast %25 : i32 to index
      %c2_37 = arith.constant 2 : index
      %44 = memref.load %arg2[%43, %c2_37] : memref<16x10xf32, #tpu.memory_space<smem>>
      %45 = arith.truncf %44 : f32 to bf16
      %46 = vector.broadcast %45 : bf16 to vector<14x14x128xbf16>
      %47 = arith.mulf %42, %46 : vector<14x14x128xbf16>
      %48 = arith.addf %40, %47 : vector<14x14x128xbf16>
      %c0_38 = arith.constant 0 : index
      %c1_39 = arith.constant 1 : index
      %c0_40 = arith.constant 0 : index
      %c0_41 = arith.constant 0 : index
      %c0_42 = arith.constant 0 : index
      %49 = vector.load %arg1[%c0_38, %c1_39, %c0_40, %c0_41, %c0_42] : memref<4x2x15x14x128xbf16, #tpu.memory_space<vmem>>, vector<1x1x14x14x128xbf16>
      %50 = vector.shape_cast %49 : vector<1x1x14x14x128xbf16> to vector<14x14x128xbf16>
      %51 = arith.index_cast %25 : i32 to index
      %c3 = arith.constant 3 : index
      %52 = memref.load %arg2[%51, %c3] : memref<16x10xf32, #tpu.memory_space<smem>>
      %53 = arith.truncf %52 : f32 to bf16
      %54 = vector.broadcast %53 : bf16 to vector<14x14x128xbf16>
      %55 = arith.mulf %50, %54 : vector<14x14x128xbf16>
      %56 = arith.addf %48, %55 : vector<14x14x128xbf16>
      %c1_43 = arith.constant 1 : index
      %c1_44 = arith.constant 1 : index
      %c0_45 = arith.constant 0 : index
      %c0_46 = arith.constant 0 : index
      %c0_47 = arith.constant 0 : index
      %57 = vector.load %arg1[%c1_43, %c1_44, %c0_45, %c0_46, %c0_47] : memref<4x2x15x14x128xbf16, #tpu.memory_space<vmem>>, vector<1x1x14x14x128xbf16>
      %58 = vector.shape_cast %57 : vector<1x1x14x14x128xbf16> to vector<14x14x128xbf16>
      %59 = arith.index_cast %25 : i32 to index
      %c4 = arith.constant 4 : index
      %60 = memref.load %arg2[%59, %c4] : memref<16x10xf32, #tpu.memory_space<smem>>
      %61 = arith.truncf %60 : f32 to bf16
      %62 = vector.broadcast %61 : bf16 to vector<14x14x128xbf16>
      %63 = arith.mulf %58, %62 : vector<14x14x128xbf16>
      %64 = arith.addf %56, %63 : vector<14x14x128xbf16>
      %c2_48 = arith.constant 2 : index
      %c1_49 = arith.constant 1 : index
      %c0_50 = arith.constant 0 : index
      %c0_51 = arith.constant 0 : index
      %c0_52 = arith.constant 0 : index
      %65 = vector.load %arg1[%c2_48, %c1_49, %c0_50, %c0_51, %c0_52] : memref<4x2x15x14x128xbf16, #tpu.memory_space<vmem>>, vector<1x1x14x14x128xbf16>
      %66 = vector.shape_cast %65 : vector<1x1x14x14x128xbf16> to vector<14x14x128xbf16>
      %67 = arith.index_cast %25 : i32 to index
      %c5 = arith.constant 5 : index
      %68 = memref.load %arg2[%67, %c5] : memref<16x10xf32, #tpu.memory_space<smem>>
      %69 = arith.truncf %68 : f32 to bf16
      %70 = vector.broadcast %69 : bf16 to vector<14x14x128xbf16>
      %71 = arith.mulf %66, %70 : vector<14x14x128xbf16>
      %72 = arith.addf %64, %71 : vector<14x14x128xbf16>
      %c0_53 = arith.constant 0 : index
      %c0_54 = arith.constant 0 : index
      %c1_55 = arith.constant 1 : index
      %c0_56 = arith.constant 0 : index
      %c0_57 = arith.constant 0 : index
      %73 = vector.load %arg1[%c0_53, %c0_54, %c1_55, %c0_56, %c0_57] : memref<4x2x15x14x128xbf16, #tpu.memory_space<vmem>>, vector<1x1x14x14x128xbf16>
      %74 = vector.shape_cast %73 : vector<1x1x14x14x128xbf16> to vector<14x14x128xbf16>
      %75 = arith.index_cast %25 : i32 to index
      %c6 = arith.constant 6 : index
      %76 = memref.load %arg2[%75, %c6] : memref<16x10xf32, #tpu.memory_space<smem>>
      %77 = arith.truncf %76 : f32 to bf16
      %78 = vector.broadcast %77 : bf16 to vector<14x14x128xbf16>
      %79 = arith.mulf %74, %78 : vector<14x14x128xbf16>
      %80 = arith.addf %72, %79 : vector<14x14x128xbf16>
      %c1_58 = arith.constant 1 : index
      %c0_59 = arith.constant 0 : index
      %c1_60 = arith.constant 1 : index
      %c0_61 = arith.constant 0 : index
      %c0_62 = arith.constant 0 : index
      %81 = vector.load %arg1[%c1_58, %c0_59, %c1_60, %c0_61, %c0_62] : memref<4x2x15x14x128xbf16, #tpu.memory_space<vmem>>, vector<1x1x14x14x128xbf16>
      %82 = vector.shape_cast %81 : vector<1x1x14x14x128xbf16> to vector<14x14x128xbf16>
      %83 = arith.index_cast %25 : i32 to index
      %c7 = arith.constant 7 : index
      %84 = memref.load %arg2[%83, %c7] : memref<16x10xf32, #tpu.memory_space<smem>>
      %85 = arith.truncf %84 : f32 to bf16
      %86 = vector.broadcast %85 : bf16 to vector<14x14x128xbf16>
      %87 = arith.mulf %82, %86 : vector<14x14x128xbf16>
      %88 = arith.addf %80, %87 : vector<14x14x128xbf16>
      %c2_63 = arith.constant 2 : index
      %c0_64 = arith.constant 0 : index
      %c1_65 = arith.constant 1 : index
      %c0_66 = arith.constant 0 : index
      %c0_67 = arith.constant 0 : index
      %89 = vector.load %arg1[%c2_63, %c0_64, %c1_65, %c0_66, %c0_67] : memref<4x2x15x14x128xbf16, #tpu.memory_space<vmem>>, vector<1x1x14x14x128xbf16>
      %90 = vector.shape_cast %89 : vector<1x1x14x14x128xbf16> to vector<14x14x128xbf16>
      %91 = arith.index_cast %25 : i32 to index
      %c8 = arith.constant 8 : index
      %92 = memref.load %arg2[%91, %c8] : memref<16x10xf32, #tpu.memory_space<smem>>
      %93 = arith.truncf %92 : f32 to bf16
      %94 = vector.broadcast %93 : bf16 to vector<14x14x128xbf16>
      %95 = arith.mulf %90, %94 : vector<14x14x128xbf16>
      %96 = arith.addf %88, %95 : vector<14x14x128xbf16>
      %c1_68 = arith.constant 1 : index
      %c0_69 = arith.constant 0 : index
      %c0_70 = arith.constant 0 : index
      %c0_71 = arith.constant 0 : index
      %c0_72 = arith.constant 0 : index
      %97 = vector.load %arg1[%c1_68, %c0_69, %c0_70, %c0_71, %c0_72] : memref<4x2x15x14x128xbf16, #tpu.memory_space<vmem>>, vector<1x1x14x14x128xbf16>
      %98 = vector.shape_cast %97 : vector<1x1x14x14x128xbf16> to vector<14x14x128xbf16>
      %99 = arith.index_cast %25 : i32 to index
      %c0_73 = arith.constant 0 : index
      %100 = memref.load %arg2[%99, %c0_73] : memref<16x10xf32, #tpu.memory_space<smem>>
      %101 = arith.truncf %100 : f32 to bf16
      %102 = vector.broadcast %101 : bf16 to vector<14x14x128xbf16>
      %103 = arith.mulf %98, %102 : vector<14x14x128xbf16>
      %c2_74 = arith.constant 2 : index
      %c0_75 = arith.constant 0 : index
      %c0_76 = arith.constant 0 : index
      %c0_77 = arith.constant 0 : index
      %c0_78 = arith.constant 0 : index
      %104 = vector.load %arg1[%c2_74, %c0_75, %c0_76, %c0_77, %c0_78] : memref<4x2x15x14x128xbf16, #tpu.memory_space<vmem>>, vector<1x1x14x14x128xbf16>
      %105 = vector.shape_cast %104 : vector<1x1x14x14x128xbf16> to vector<14x14x128xbf16>
      %106 = arith.index_cast %25 : i32 to index
      %c1_79 = arith.constant 1 : index
      %107 = memref.load %arg2[%106, %c1_79] : memref<16x10xf32, #tpu.memory_space<smem>>
      %108 = arith.truncf %107 : f32 to bf16
      %109 = vector.broadcast %108 : bf16 to vector<14x14x128xbf16>
      %110 = arith.mulf %105, %109 : vector<14x14x128xbf16>
      %111 = arith.addf %103, %110 : vector<14x14x128xbf16>
      %c3_80 = arith.constant 3 : index
      %c0_81 = arith.constant 0 : index
      %c0_82 = arith.constant 0 : index
      %c0_83 = arith.constant 0 : index
      %c0_84 = arith.constant 0 : index
      %112 = vector.load %arg1[%c3_80, %c0_81, %c0_82, %c0_83, %c0_84] : memref<4x2x15x14x128xbf16, #tpu.memory_space<vmem>>, vector<1x1x14x14x128xbf16>
      %113 = vector.shape_cast %112 : vector<1x1x14x14x128xbf16> to vector<14x14x128xbf16>
      %114 = arith.index_cast %25 : i32 to index
      %c2_85 = arith.constant 2 : index
      %115 = memref.load %arg2[%114, %c2_85] : memref<16x10xf32, #tpu.memory_space<smem>>
      %116 = arith.truncf %115 : f32 to bf16
      %117 = vector.broadcast %116 : bf16 to vector<14x14x128xbf16>
      %118 = arith.mulf %113, %117 : vector<14x14x128xbf16>
      %119 = arith.addf %111, %118 : vector<14x14x128xbf16>
      %c1_86 = arith.constant 1 : index
      %c1_87 = arith.constant 1 : index
      %c0_88 = arith.constant 0 : index
      %c0_89 = arith.constant 0 : index
      %c0_90 = arith.constant 0 : index
      %120 = vector.load %arg1[%c1_86, %c1_87, %c0_88, %c0_89, %c0_90] : memref<4x2x15x14x128xbf16, #tpu.memory_space<vmem>>, vector<1x1x14x14x128xbf16>
      %121 = vector.shape_cast %120 : vector<1x1x14x14x128xbf16> to vector<14x14x128xbf16>
      %122 = arith.index_cast %25 : i32 to index
      %c3_91 = arith.constant 3 : index
      %123 = memref.load %arg2[%122, %c3_91] : memref<16x10xf32, #tpu.memory_space<smem>>
      %124 = arith.truncf %123 : f32 to bf16
      %125 = vector.broadcast %124 : bf16 to vector<14x14x128xbf16>
      %126 = arith.mulf %121, %125 : vector<14x14x128xbf16>
      %127 = arith.addf %119, %126 : vector<14x14x128xbf16>
      %c2_92 = arith.constant 2 : index
      %c1_93 = arith.constant 1 : index
      %c0_94 = arith.constant 0 : index
      %c0_95 = arith.constant 0 : index
      %c0_96 = arith.constant 0 : index
      %128 = vector.load %arg1[%c2_92, %c1_93, %c0_94, %c0_95, %c0_96] : memref<4x2x15x14x128xbf16, #tpu.memory_space<vmem>>, vector<1x1x14x14x128xbf16>
      %129 = vector.shape_cast %128 : vector<1x1x14x14x128xbf16> to vector<14x14x128xbf16>
      %130 = arith.index_cast %25 : i32 to index
      %c4_97 = arith.constant 4 : index
      %131 = memref.load %arg2[%130, %c4_97] : memref<16x10xf32, #tpu.memory_space<smem>>
      %132 = arith.truncf %131 : f32 to bf16
      %133 = vector.broadcast %132 : bf16 to vector<14x14x128xbf16>
      %134 = arith.mulf %129, %133 : vector<14x14x128xbf16>
      %135 = arith.addf %127, %134 : vector<14x14x128xbf16>
      %c3_98 = arith.constant 3 : index
      %c1_99 = arith.constant 1 : index
      %c0_100 = arith.constant 0 : index
      %c0_101 = arith.constant 0 : index
      %c0_102 = arith.constant 0 : index
      %136 = vector.load %arg1[%c3_98, %c1_99, %c0_100, %c0_101, %c0_102] : memref<4x2x15x14x128xbf16, #tpu.memory_space<vmem>>, vector<1x1x14x14x128xbf16>
      %137 = vector.shape_cast %136 : vector<1x1x14x14x128xbf16> to vector<14x14x128xbf16>
      %138 = arith.index_cast %25 : i32 to index
      %c5_103 = arith.constant 5 : index
      %139 = memref.load %arg2[%138, %c5_103] : memref<16x10xf32, #tpu.memory_space<smem>>
      %140 = arith.truncf %139 : f32 to bf16
      %141 = vector.broadcast %140 : bf16 to vector<14x14x128xbf16>
      %142 = arith.mulf %137, %141 : vector<14x14x128xbf16>
      %143 = arith.addf %135, %142 : vector<14x14x128xbf16>
      %c1_104 = arith.constant 1 : index
      %c0_105 = arith.constant 0 : index
      %c1_106 = arith.constant 1 : index
      %c0_107 = arith.constant 0 : index
      %c0_108 = arith.constant 0 : index
      %144 = vector.load %arg1[%c1_104, %c0_105, %c1_106, %c0_107, %c0_108] : memref<4x2x15x14x128xbf16, #tpu.memory_space<vmem>>, vector<1x1x14x14x128xbf16>
      %145 = vector.shape_cast %144 : vector<1x1x14x14x128xbf16> to vector<14x14x128xbf16>
      %146 = arith.index_cast %25 : i32 to index
      %c6_109 = arith.constant 6 : index
      %147 = memref.load %arg2[%146, %c6_109] : memref<16x10xf32, #tpu.memory_space<smem>>
      %148 = arith.truncf %147 : f32 to bf16
      %149 = vector.broadcast %148 : bf16 to vector<14x14x128xbf16>
      %150 = arith.mulf %145, %149 : vector<14x14x128xbf16>
      %151 = arith.addf %143, %150 : vector<14x14x128xbf16>
      %c2_110 = arith.constant 2 : index
      %c0_111 = arith.constant 0 : index
      %c1_112 = arith.constant 1 : index
      %c0_113 = arith.constant 0 : index
      %c0_114 = arith.constant 0 : index
      %152 = vector.load %arg1[%c2_110, %c0_111, %c1_112, %c0_113, %c0_114] : memref<4x2x15x14x128xbf16, #tpu.memory_space<vmem>>, vector<1x1x14x14x128xbf16>
      %153 = vector.shape_cast %152 : vector<1x1x14x14x128xbf16> to vector<14x14x128xbf16>
      %154 = arith.index_cast %25 : i32 to index
      %c7_115 = arith.constant 7 : index
      %155 = memref.load %arg2[%154, %c7_115] : memref<16x10xf32, #tpu.memory_space<smem>>
      %156 = arith.truncf %155 : f32 to bf16
      %157 = vector.broadcast %156 : bf16 to vector<14x14x128xbf16>
      %158 = arith.mulf %153, %157 : vector<14x14x128xbf16>
      %159 = arith.addf %151, %158 : vector<14x14x128xbf16>
      %c3_116 = arith.constant 3 : index
      %c0_117 = arith.constant 0 : index
      %c1_118 = arith.constant 1 : index
      %c0_119 = arith.constant 0 : index
      %c0_120 = arith.constant 0 : index
      %160 = vector.load %arg1[%c3_116, %c0_117, %c1_118, %c0_119, %c0_120] : memref<4x2x15x14x128xbf16, #tpu.memory_space<vmem>>, vector<1x1x14x14x128xbf16>
      %161 = vector.shape_cast %160 : vector<1x1x14x14x128xbf16> to vector<14x14x128xbf16>
      %162 = arith.index_cast %25 : i32 to index
      %c8_121 = arith.constant 8 : index
      %163 = memref.load %arg2[%162, %c8_121] : memref<16x10xf32, #tpu.memory_space<smem>>
      %164 = arith.truncf %163 : f32 to bf16
      %165 = vector.broadcast %164 : bf16 to vector<14x14x128xbf16>
      %166 = arith.mulf %161, %165 : vector<14x14x128xbf16>
      %167 = arith.addf %159, %166 : vector<14x14x128xbf16>
      %168 = arith.maximumf %96, %167 : vector<14x14x128xbf16>
      %c0_122 = arith.constant 0 : index
      %c1_123 = arith.constant 1 : index
      %c0_124 = arith.constant 0 : index
      %c0_125 = arith.constant 0 : index
      %c0_126 = arith.constant 0 : index
      %169 = vector.load %arg1[%c0_122, %c1_123, %c0_124, %c0_125, %c0_126] : memref<4x2x15x14x128xbf16, #tpu.memory_space<vmem>>, vector<1x1x14x14x128xbf16>
      %170 = vector.shape_cast %169 : vector<1x1x14x14x128xbf16> to vector<14x14x128xbf16>
      %171 = arith.index_cast %25 : i32 to index
      %c0_127 = arith.constant 0 : index
      %172 = memref.load %arg2[%171, %c0_127] : memref<16x10xf32, #tpu.memory_space<smem>>
      %173 = arith.truncf %172 : f32 to bf16
      %174 = vector.broadcast %173 : bf16 to vector<14x14x128xbf16>
      %175 = arith.mulf %170, %174 : vector<14x14x128xbf16>
      %c1_128 = arith.constant 1 : index
      %c1_129 = arith.constant 1 : index
      %c0_130 = arith.constant 0 : index
      %c0_131 = arith.constant 0 : index
      %c0_132 = arith.constant 0 : index
      %176 = vector.load %arg1[%c1_128, %c1_129, %c0_130, %c0_131, %c0_132] : memref<4x2x15x14x128xbf16, #tpu.memory_space<vmem>>, vector<1x1x14x14x128xbf16>
      %177 = vector.shape_cast %176 : vector<1x1x14x14x128xbf16> to vector<14x14x128xbf16>
      %178 = arith.index_cast %25 : i32 to index
      %c1_133 = arith.constant 1 : index
      %179 = memref.load %arg2[%178, %c1_133] : memref<16x10xf32, #tpu.memory_space<smem>>
      %180 = arith.truncf %179 : f32 to bf16
      %181 = vector.broadcast %180 : bf16 to vector<14x14x128xbf16>
      %182 = arith.mulf %177, %181 : vector<14x14x128xbf16>
      %183 = arith.addf %175, %182 : vector<14x14x128xbf16>
      %c2_134 = arith.constant 2 : index
      %c1_135 = arith.constant 1 : index
      %c0_136 = arith.constant 0 : index
      %c0_137 = arith.constant 0 : index
      %c0_138 = arith.constant 0 : index
      %184 = vector.load %arg1[%c2_134, %c1_135, %c0_136, %c0_137, %c0_138] : memref<4x2x15x14x128xbf16, #tpu.memory_space<vmem>>, vector<1x1x14x14x128xbf16>
      %185 = vector.shape_cast %184 : vector<1x1x14x14x128xbf16> to vector<14x14x128xbf16>
      %186 = arith.index_cast %25 : i32 to index
      %c2_139 = arith.constant 2 : index
      %187 = memref.load %arg2[%186, %c2_139] : memref<16x10xf32, #tpu.memory_space<smem>>
      %188 = arith.truncf %187 : f32 to bf16
      %189 = vector.broadcast %188 : bf16 to vector<14x14x128xbf16>
      %190 = arith.mulf %185, %189 : vector<14x14x128xbf16>
      %191 = arith.addf %183, %190 : vector<14x14x128xbf16>
      %c0_140 = arith.constant 0 : index
      %c0_141 = arith.constant 0 : index
      %c1_142 = arith.constant 1 : index
      %c0_143 = arith.constant 0 : index
      %c0_144 = arith.constant 0 : index
      %192 = vector.load %arg1[%c0_140, %c0_141, %c1_142, %c0_143, %c0_144] : memref<4x2x15x14x128xbf16, #tpu.memory_space<vmem>>, vector<1x1x14x14x128xbf16>
      %193 = vector.shape_cast %192 : vector<1x1x14x14x128xbf16> to vector<14x14x128xbf16>
      %194 = arith.index_cast %25 : i32 to index
      %c3_145 = arith.constant 3 : index
      %195 = memref.load %arg2[%194, %c3_145] : memref<16x10xf32, #tpu.memory_space<smem>>
      %196 = arith.truncf %195 : f32 to bf16
      %197 = vector.broadcast %196 : bf16 to vector<14x14x128xbf16>
      %198 = arith.mulf %193, %197 : vector<14x14x128xbf16>
      %199 = arith.addf %191, %198 : vector<14x14x128xbf16>
      %c1_146 = arith.constant 1 : index
      %c0_147 = arith.constant 0 : index
      %c1_148 = arith.constant 1 : index
      %c0_149 = arith.constant 0 : index
      %c0_150 = arith.constant 0 : index
      %200 = vector.load %arg1[%c1_146, %c0_147, %c1_148, %c0_149, %c0_150] : memref<4x2x15x14x128xbf16, #tpu.memory_space<vmem>>, vector<1x1x14x14x128xbf16>
      %201 = vector.shape_cast %200 : vector<1x1x14x14x128xbf16> to vector<14x14x128xbf16>
      %202 = arith.index_cast %25 : i32 to index
      %c4_151 = arith.constant 4 : index
      %203 = memref.load %arg2[%202, %c4_151] : memref<16x10xf32, #tpu.memory_space<smem>>
      %204 = arith.truncf %203 : f32 to bf16
      %205 = vector.broadcast %204 : bf16 to vector<14x14x128xbf16>
      %206 = arith.mulf %201, %205 : vector<14x14x128xbf16>
      %207 = arith.addf %199, %206 : vector<14x14x128xbf16>
      %c2_152 = arith.constant 2 : index
      %c0_153 = arith.constant 0 : index
      %c1_154 = arith.constant 1 : index
      %c0_155 = arith.constant 0 : index
      %c0_156 = arith.constant 0 : index
      %208 = vector.load %arg1[%c2_152, %c0_153, %c1_154, %c0_155, %c0_156] : memref<4x2x15x14x128xbf16, #tpu.memory_space<vmem>>, vector<1x1x14x14x128xbf16>
      %209 = vector.shape_cast %208 : vector<1x1x14x14x128xbf16> to vector<14x14x128xbf16>
      %210 = arith.index_cast %25 : i32 to index
      %c5_157 = arith.constant 5 : index
      %211 = memref.load %arg2[%210, %c5_157] : memref<16x10xf32, #tpu.memory_space<smem>>
      %212 = arith.truncf %211 : f32 to bf16
      %213 = vector.broadcast %212 : bf16 to vector<14x14x128xbf16>
      %214 = arith.mulf %209, %213 : vector<14x14x128xbf16>
      %215 = arith.addf %207, %214 : vector<14x14x128xbf16>
      %c0_158 = arith.constant 0 : index
      %c1_159 = arith.constant 1 : index
      %c1_160 = arith.constant 1 : index
      %c0_161 = arith.constant 0 : index
      %c0_162 = arith.constant 0 : index
      %216 = vector.load %arg1[%c0_158, %c1_159, %c1_160, %c0_161, %c0_162] : memref<4x2x15x14x128xbf16, #tpu.memory_space<vmem>>, vector<1x1x14x14x128xbf16>
      %217 = vector.shape_cast %216 : vector<1x1x14x14x128xbf16> to vector<14x14x128xbf16>
      %218 = arith.index_cast %25 : i32 to index
      %c6_163 = arith.constant 6 : index
      %219 = memref.load %arg2[%218, %c6_163] : memref<16x10xf32, #tpu.memory_space<smem>>
      %220 = arith.truncf %219 : f32 to bf16
      %221 = vector.broadcast %220 : bf16 to vector<14x14x128xbf16>
      %222 = arith.mulf %217, %221 : vector<14x14x128xbf16>
      %223 = arith.addf %215, %222 : vector<14x14x128xbf16>
      %c1_164 = arith.constant 1 : index
      %c1_165 = arith.constant 1 : index
      %c1_166 = arith.constant 1 : index
      %c0_167 = arith.constant 0 : index
      %c0_168 = arith.constant 0 : index
      %224 = vector.load %arg1[%c1_164, %c1_165, %c1_166, %c0_167, %c0_168] : memref<4x2x15x14x128xbf16, #tpu.memory_space<vmem>>, vector<1x1x14x14x128xbf16>
      %225 = vector.shape_cast %224 : vector<1x1x14x14x128xbf16> to vector<14x14x128xbf16>
      %226 = arith.index_cast %25 : i32 to index
      %c7_169 = arith.constant 7 : index
      %227 = memref.load %arg2[%226, %c7_169] : memref<16x10xf32, #tpu.memory_space<smem>>
      %228 = arith.truncf %227 : f32 to bf16
      %229 = vector.broadcast %228 : bf16 to vector<14x14x128xbf16>
      %230 = arith.mulf %225, %229 : vector<14x14x128xbf16>
      %231 = arith.addf %223, %230 : vector<14x14x128xbf16>
      %c2_170 = arith.constant 2 : index
      %c1_171 = arith.constant 1 : index
      %c1_172 = arith.constant 1 : index
      %c0_173 = arith.constant 0 : index
      %c0_174 = arith.constant 0 : index
      %232 = vector.load %arg1[%c2_170, %c1_171, %c1_172, %c0_173, %c0_174] : memref<4x2x15x14x128xbf16, #tpu.memory_space<vmem>>, vector<1x1x14x14x128xbf16>
      %233 = vector.shape_cast %232 : vector<1x1x14x14x128xbf16> to vector<14x14x128xbf16>
      %234 = arith.index_cast %25 : i32 to index
      %c8_175 = arith.constant 8 : index
      %235 = memref.load %arg2[%234, %c8_175] : memref<16x10xf32, #tpu.memory_space<smem>>
      %236 = arith.truncf %235 : f32 to bf16
      %237 = vector.broadcast %236 : bf16 to vector<14x14x128xbf16>
      %238 = arith.mulf %233, %237 : vector<14x14x128xbf16>
      %239 = arith.addf %231, %238 : vector<14x14x128xbf16>
      %240 = arith.maximumf %168, %239 : vector<14x14x128xbf16>
      %c1_176 = arith.constant 1 : index
      %c1_177 = arith.constant 1 : index
      %c0_178 = arith.constant 0 : index
      %c0_179 = arith.constant 0 : index
      %c0_180 = arith.constant 0 : index
      %241 = vector.load %arg1[%c1_176, %c1_177, %c0_178, %c0_179, %c0_180] : memref<4x2x15x14x128xbf16, #tpu.memory_space<vmem>>, vector<1x1x14x14x128xbf16>
      %242 = vector.shape_cast %241 : vector<1x1x14x14x128xbf16> to vector<14x14x128xbf16>
      %243 = arith.index_cast %25 : i32 to index
      %c0_181 = arith.constant 0 : index
      %244 = memref.load %arg2[%243, %c0_181] : memref<16x10xf32, #tpu.memory_space<smem>>
      %245 = arith.truncf %244 : f32 to bf16
      %246 = vector.broadcast %245 : bf16 to vector<14x14x128xbf16>
      %247 = arith.mulf %242, %246 : vector<14x14x128xbf16>
      %c2_182 = arith.constant 2 : index
      %c1_183 = arith.constant 1 : index
      %c0_184 = arith.constant 0 : index
      %c0_185 = arith.constant 0 : index
      %c0_186 = arith.constant 0 : index
      %248 = vector.load %arg1[%c2_182, %c1_183, %c0_184, %c0_185, %c0_186] : memref<4x2x15x14x128xbf16, #tpu.memory_space<vmem>>, vector<1x1x14x14x128xbf16>
      %249 = vector.shape_cast %248 : vector<1x1x14x14x128xbf16> to vector<14x14x128xbf16>
      %250 = arith.index_cast %25 : i32 to index
      %c1_187 = arith.constant 1 : index
      %251 = memref.load %arg2[%250, %c1_187] : memref<16x10xf32, #tpu.memory_space<smem>>
      %252 = arith.truncf %251 : f32 to bf16
      %253 = vector.broadcast %252 : bf16 to vector<14x14x128xbf16>
      %254 = arith.mulf %249, %253 : vector<14x14x128xbf16>
      %255 = arith.addf %247, %254 : vector<14x14x128xbf16>
      %c3_188 = arith.constant 3 : index
      %c1_189 = arith.constant 1 : index
      %c0_190 = arith.constant 0 : index
      %c0_191 = arith.constant 0 : index
      %c0_192 = arith.constant 0 : index
      %256 = vector.load %arg1[%c3_188, %c1_189, %c0_190, %c0_191, %c0_192] : memref<4x2x15x14x128xbf16, #tpu.memory_space<vmem>>, vector<1x1x14x14x128xbf16>
      %257 = vector.shape_cast %256 : vector<1x1x14x14x128xbf16> to vector<14x14x128xbf16>
      %258 = arith.index_cast %25 : i32 to index
      %c2_193 = arith.constant 2 : index
      %259 = memref.load %arg2[%258, %c2_193] : memref<16x10xf32, #tpu.memory_space<smem>>
      %260 = arith.truncf %259 : f32 to bf16
      %261 = vector.broadcast %260 : bf16 to vector<14x14x128xbf16>
      %262 = arith.mulf %257, %261 : vector<14x14x128xbf16>
      %263 = arith.addf %255, %262 : vector<14x14x128xbf16>
      %c1_194 = arith.constant 1 : index
      %c0_195 = arith.constant 0 : index
      %c1_196 = arith.constant 1 : index
      %c0_197 = arith.constant 0 : index
      %c0_198 = arith.constant 0 : index
      %264 = vector.load %arg1[%c1_194, %c0_195, %c1_196, %c0_197, %c0_198] : memref<4x2x15x14x128xbf16, #tpu.memory_space<vmem>>, vector<1x1x14x14x128xbf16>
      %265 = vector.shape_cast %264 : vector<1x1x14x14x128xbf16> to vector<14x14x128xbf16>
      %266 = arith.index_cast %25 : i32 to index
      %c3_199 = arith.constant 3 : index
      %267 = memref.load %arg2[%266, %c3_199] : memref<16x10xf32, #tpu.memory_space<smem>>
      %268 = arith.truncf %267 : f32 to bf16
      %269 = vector.broadcast %268 : bf16 to vector<14x14x128xbf16>
      %270 = arith.mulf %265, %269 : vector<14x14x128xbf16>
      %271 = arith.addf %263, %270 : vector<14x14x128xbf16>
      %c2_200 = arith.constant 2 : index
      %c0_201 = arith.constant 0 : index
      %c1_202 = arith.constant 1 : index
      %c0_203 = arith.constant 0 : index
      %c0_204 = arith.constant 0 : index
      %272 = vector.load %arg1[%c2_200, %c0_201, %c1_202, %c0_203, %c0_204] : memref<4x2x15x14x128xbf16, #tpu.memory_space<vmem>>, vector<1x1x14x14x128xbf16>
      %273 = vector.shape_cast %272 : vector<1x1x14x14x128xbf16> to vector<14x14x128xbf16>
      %274 = arith.index_cast %25 : i32 to index
      %c4_205 = arith.constant 4 : index
      %275 = memref.load %arg2[%274, %c4_205] : memref<16x10xf32, #tpu.memory_space<smem>>
      %276 = arith.truncf %275 : f32 to bf16
      %277 = vector.broadcast %276 : bf16 to vector<14x14x128xbf16>
      %278 = arith.mulf %273, %277 : vector<14x14x128xbf16>
      %279 = arith.addf %271, %278 : vector<14x14x128xbf16>
      %c3_206 = arith.constant 3 : index
      %c0_207 = arith.constant 0 : index
      %c1_208 = arith.constant 1 : index
      %c0_209 = arith.constant 0 : index
      %c0_210 = arith.constant 0 : index
      %280 = vector.load %arg1[%c3_206, %c0_207, %c1_208, %c0_209, %c0_210] : memref<4x2x15x14x128xbf16, #tpu.memory_space<vmem>>, vector<1x1x14x14x128xbf16>
      %281 = vector.shape_cast %280 : vector<1x1x14x14x128xbf16> to vector<14x14x128xbf16>
      %282 = arith.index_cast %25 : i32 to index
      %c5_211 = arith.constant 5 : index
      %283 = memref.load %arg2[%282, %c5_211] : memref<16x10xf32, #tpu.memory_space<smem>>
      %284 = arith.truncf %283 : f32 to bf16
      %285 = vector.broadcast %284 : bf16 to vector<14x14x128xbf16>
      %286 = arith.mulf %281, %285 : vector<14x14x128xbf16>
      %287 = arith.addf %279, %286 : vector<14x14x128xbf16>
      %c1_212 = arith.constant 1 : index
      %c1_213 = arith.constant 1 : index
      %c1_214 = arith.constant 1 : index
      %c0_215 = arith.constant 0 : index
      %c0_216 = arith.constant 0 : index
      %288 = vector.load %arg1[%c1_212, %c1_213, %c1_214, %c0_215, %c0_216] : memref<4x2x15x14x128xbf16, #tpu.memory_space<vmem>>, vector<1x1x14x14x128xbf16>
      %289 = vector.shape_cast %288 : vector<1x1x14x14x128xbf16> to vector<14x14x128xbf16>
      %290 = arith.index_cast %25 : i32 to index
      %c6_217 = arith.constant 6 : index
      %291 = memref.load %arg2[%290, %c6_217] : memref<16x10xf32, #tpu.memory_space<smem>>
      %292 = arith.truncf %291 : f32 to bf16
      %293 = vector.broadcast %292 : bf16 to vector<14x14x128xbf16>
      %294 = arith.mulf %289, %293 : vector<14x14x128xbf16>
      %295 = arith.addf %287, %294 : vector<14x14x128xbf16>
      %c2_218 = arith.constant 2 : index
      %c1_219 = arith.constant 1 : index
      %c1_220 = arith.constant 1 : index
      %c0_221 = arith.constant 0 : index
      %c0_222 = arith.constant 0 : index
      %296 = vector.load %arg1[%c2_218, %c1_219, %c1_220, %c0_221, %c0_222] : memref<4x2x15x14x128xbf16, #tpu.memory_space<vmem>>, vector<1x1x14x14x128xbf16>
      %297 = vector.shape_cast %296 : vector<1x1x14x14x128xbf16> to vector<14x14x128xbf16>
      %298 = arith.index_cast %25 : i32 to index
      %c7_223 = arith.constant 7 : index
      %299 = memref.load %arg2[%298, %c7_223] : memref<16x10xf32, #tpu.memory_space<smem>>
      %300 = arith.truncf %299 : f32 to bf16
      %301 = vector.broadcast %300 : bf16 to vector<14x14x128xbf16>
      %302 = arith.mulf %297, %301 : vector<14x14x128xbf16>
      %303 = arith.addf %295, %302 : vector<14x14x128xbf16>
      %c3_224 = arith.constant 3 : index
      %c1_225 = arith.constant 1 : index
      %c1_226 = arith.constant 1 : index
      %c0_227 = arith.constant 0 : index
      %c0_228 = arith.constant 0 : index
      %304 = vector.load %arg1[%c3_224, %c1_225, %c1_226, %c0_227, %c0_228] : memref<4x2x15x14x128xbf16, #tpu.memory_space<vmem>>, vector<1x1x14x14x128xbf16>
      %305 = vector.shape_cast %304 : vector<1x1x14x14x128xbf16> to vector<14x14x128xbf16>
      %306 = arith.index_cast %25 : i32 to index
      %c8_229 = arith.constant 8 : index
      %307 = memref.load %arg2[%306, %c8_229] : memref<16x10xf32, #tpu.memory_space<smem>>
      %308 = arith.truncf %307 : f32 to bf16
      %309 = vector.broadcast %308 : bf16 to vector<14x14x128xbf16>
      %310 = arith.mulf %305, %309 : vector<14x14x128xbf16>
      %311 = arith.addf %303, %310 : vector<14x14x128xbf16>
      %312 = arith.maximumf %240, %311 : vector<14x14x128xbf16>
      %313 = arith.extf %312 : vector<14x14x128xbf16> to vector<14x14x128xf32>
      %314 = arith.index_cast %25 : i32 to index
      %c9 = arith.constant 9 : index
      %315 = memref.load %arg2[%314, %c9] : memref<16x10xf32, #tpu.memory_space<smem>>
      %316 = vector.broadcast %315 : f32 to vector<14x14x128xf32>
      %317 = arith.addf %313, %316 : vector<14x14x128xf32>
      %cst_230 = arith.constant 0.000000e+00 : f32
      %318 = vector.broadcast %cst_230 : f32 to vector<14x14x128xf32>
      %319 = arith.cmpf ogt, %317, %318 : vector<14x14x128xf32>
      %cst_231 = arith.constant 0.000000e+00 : f32
      %320 = vector.broadcast %cst_231 : f32 to vector<14x14x128xf32>
      %321 = arith.minimumf %317, %320 : vector<14x14x128xf32>
      %322 = math.exp %321 : vector<14x14x128xf32>
      %cst_232 = arith.constant 1.000000e+00 : f32
      %323 = vector.broadcast %cst_232 : f32 to vector<14x14x128xf32>
      %324 = arith.subf %322, %323 : vector<14x14x128xf32>
      %325 = arith.select %319, %317, %324 : vector<14x14x128xi1>, vector<14x14x128xf32>
      %326 = arith.truncf %325 : vector<14x14x128xf32> to vector<14x14x128xbf16>
      %327 = arith.index_cast %25 : i32 to index
      %c0_233 = arith.constant 0 : index
      %c0_234 = arith.constant 0 : index
      %c0_235 = arith.constant 0 : index
      %328 = vector.load %arg8[%327, %c0_233, %c0_234, %c0_235] : memref<16x14x16x128xbf16, #tpu.memory_space<vmem>>, vector<1x14x14x128xbf16>
      %329 = vector.shape_cast %328 : vector<1x14x14x128xbf16> to vector<14x14x128xbf16>
      %330 = vector.shape_cast %326 : vector<14x14x128xbf16> to vector<1x14x14x128xbf16>
      tpu.vector_store %arg8[%327, %c0_233, %c0_234, %c0_235], %330 {strides = array<i32>} : memref<16x14x16x128xbf16, #tpu.memory_space<vmem>>, vector<1x14x14x128xbf16>,
    }
    %c16_i32_2 = arith.constant 16 : i32
    %c0 = arith.constant 0 : index
    %c0_3 = arith.constant 0 : index
    %c0_4 = arith.constant 0 : index
    %c0_5 = arith.constant 0 : index
    %4 = vector.load %arg8[%c0, %c0_3, %c0_4, %c0_5] : memref<16x14x16x128xbf16, #tpu.memory_space<vmem>>, vector<16x14x16x128xbf16>
    %5 = vector.shape_cast %4 : vector<16x14x16x128xbf16> to vector<3584x128xbf16>
    %c0_6 = arith.constant 0 : index
    %c0_7 = arith.constant 0 : index
    %6 = vector.load %arg3[%c0_6, %c0_7] : memref<128x3584xbf16, #tpu.memory_space<vmem>>, vector<128x3584xbf16>
    %cst = arith.constant dense<0.000000e+00> : vector<128x128xf32>
    %7 = tpu.matmul %6, %5, %cst {dimension_numbers = #tpu.dot_dimension_numbers<[1], [0], [0], [1], [0, 0, 1, 1], [], []>} : vector<128x3584xbf16>, vector<3584x128xbf16>, vector<128x128xf32> -> vector<128x128xf32>
    %c0_8 = arith.constant 0 : index
    %c0_9 = arith.constant 0 : index
    %8 = vector.load %arg4[%c0_8, %c0_9] : memref<128x128xf32, #tpu.memory_space<vmem>>, vector<128x128xf32>
    %9 = arith.addf %7, %8 : vector<128x128xf32>
    %cst_10 = arith.constant 0.000000e+00 : f32
    %10 = vector.broadcast %cst_10 : f32 to vector<128x128xf32>
    %11 = arith.cmpf ogt, %9, %10 : vector<128x128xf32>
    %cst_11 = arith.constant 0.000000e+00 : f32
    %12 = vector.broadcast %cst_11 : f32 to vector<128x128xf32>
    %13 = arith.minimumf %9, %12 : vector<128x128xf32>
    %14 = math.exp %13 : vector<128x128xf32>
    %cst_12 = arith.constant 1.000000e+00 : f32
    %15 = vector.broadcast %cst_12 : f32 to vector<128x128xf32>
    %16 = arith.subf %14, %15 : vector<128x128xf32>
    %17 = arith.select %11, %9, %16 : vector<128x128xi1>, vector<128x128xf32>
    %c0_13 = arith.constant 0 : index
    %c0_14 = arith.constant 0 : index
    %18 = vector.load %arg5[%c0_13, %c0_14] : memref<128x128xbf16, #tpu.memory_space<vmem>>, vector<128x128xbf16>
    %19 = arith.truncf %17 : vector<128x128xf32> to vector<128x128xbf16>
    %cst_15 = arith.constant dense<0.000000e+00> : vector<128x128xf32>
    %20 = tpu.matmul %18, %19, %cst_15 {dimension_numbers = #tpu.dot_dimension_numbers<[1], [0], [0], [1], [0, 0, 1, 1], [], []>} : vector<128x128xbf16>, vector<128x128xbf16>, vector<128x128xf32> -> vector<128x128xf32>
    %c0_16 = arith.constant 0 : index
    %c0_17 = arith.constant 0 : index
    %21 = vector.load %arg6[%c0_16, %c0_17] : memref<128x128xf32, #tpu.memory_space<vmem>>, vector<128x128xf32>
    %22 = arith.addf %20, %21 : vector<128x128xf32>
    %c0_18 = arith.constant 0 : index
    %c0_19 = arith.constant 0 : index
    %23 = vector.load %arg7[%c0_18, %c0_19] : memref<128x128xf32, #tpu.memory_space<vmem>>, vector<128x128xf32>
    tpu.vector_store %arg7[%c0_18, %c0_19], %22 {strides = array<i32>} : memref<128x128xf32, #tpu.memory_space<vmem>>, vector<128x128xf32>,
    return
  }
  func.func @transform_0(%arg0: i32) -> (i32, i32, i32, i32, i32) {
    %c0_i32 = arith.constant 0 : i32
    %c0_i32_0 = arith.constant 0 : i32
    %c0_i32_1 = arith.constant 0 : i32
    %c0_i32_2 = arith.constant 0 : i32
    %c0_i32_3 = arith.constant 0 : i32
    return %c0_i32, %c0_i32_0, %c0_i32_1, %c0_i32_2, %arg0 : i32, i32, i32, i32, i32
  }
  func.func @transform_1(%arg0: i32) -> (i32, i32) {
    %c0_i32 = arith.constant 0 : i32
    %c0_i32_0 = arith.constant 0 : i32
    %c0_i32_1 = arith.constant 0 : i32
    return %c0_i32, %c0_i32_0 : i32, i32
  }
  func.func @transform_2(%arg0: i32) -> (i32, i32) {
    %c0_i32 = arith.constant 0 : i32
    %c0_i32_0 = arith.constant 0 : i32
    %c0_i32_1 = arith.constant 0 : i32
    return %c0_i32, %c0_i32_0 : i32, i32
  }
  func.func @transform_3(%arg0: i32) -> (i32, i32) {
    %c0_i32 = arith.constant 0 : i32
    %c0_i32_0 = arith.constant 0 : i32
    %c0_i32_1 = arith.constant 0 : i32
    return %c0_i32, %c0_i32_0 : i32, i32
  }
  func.func @transform_4(%arg0: i32) -> (i32, i32) {
    %c0_i32 = arith.constant 0 : i32
    %c0_i32_0 = arith.constant 0 : i32
    %c0_i32_1 = arith.constant 0 : i32
    return %c0_i32, %c0_i32_0 : i32, i32
  }
  func.func @transform_5(%arg0: i32) -> (i32, i32) {
    %c0_i32 = arith.constant 0 : i32
    %c0_i32_0 = arith.constant 0 : i32
    %c0_i32_1 = arith.constant 0 : i32
    return %c0_i32, %c0_i32_0 : i32, i32
  }
  func.func @transform_6(%arg0: i32) -> (i32, i32) {
    %c0_i32 = arith.constant 0 : i32
    %c0_i32_0 = arith.constant 0 : i32
    return %c0_i32, %arg0 : i32, i32
  }
}

</mosaic_0001>

<llo_original>
// kernel: tpu_custom_call.1
$region0: #{tpu_custom_call.1}
  #allocation0 [shape = 'u32[]', space=smem, size = 0x4, offset = 0x4, fixed_abs, tag = 'smem constant byte address 0x4 - core index']
  #allocation1 [shape = 'u32[144,128]{1,0:T(1,128)}', space=vmem, size = 0x12000, scoped, tag = 'internal scratch']
  #allocation2 [shape = 'bf16[16,14,16,128]{3,2,1,0:T(16,128)(2,1)}', space=vmem, size = 0xe0000, scoped, tag = 'scratch operand']
  %s0 = inlined_call_operand.vmem [shape: bf16[4,2,15,14,128], index: 0, kind: input, shape index: {}]
  %s1 = inlined_call_operand.hbm [shape: f32[16,10], index: 1, kind: input, shape index: {}]
  %s2 = inlined_call_operand.vmem [shape: bf16[128,3584], index: 2, kind: input, shape index: {}]
  %s3 = inlined_call_operand.hbm [shape: f32[128,128], index: 3, kind: input, shape index: {}]
  %s4 = inlined_call_operand.hbm [shape: bf16[128,128], index: 4, kind: input, shape index: {}]
  %s5 = inlined_call_operand.hbm [shape: f32[128,128], index: 5, kind: input, shape index: {}]
  %s6 = inlined_call_operand.hbm [shape: f32[128,128], index: 6, kind: output, shape index: {}]
  %s7 = sld [smem:[#allocation0]]
  $region61: #{tpu_custom_call.1} parent=0
    _
  %s9 = ssub.s32 1, %s7
  %s10 = scalar_select 0, %s9, %s7
  $region1: #{tpu_custom_call.1} parent=0
    #allocation3 [shape = 'u8[8192]{0}', space=smem, size = 0x2000, scoped, tag = 'input window, operand 1, single buffered']
    #allocation4 [shape = 's32[1]{0}', space=sflag, size = 0x4, scoped, tag = 'scoped memory for tpu_custom_call.1']
    #allocation5 [shape = 's32[1]{0}', space=sflag, size = 0x4, scoped, tag = 'scoped memory for tpu_custom_call.1']
    #allocation6 [shape = 's32[1]{0}', space=sflag, size = 0x4, scoped, tag = 'scoped memory for tpu_custom_call.1']
    #allocation7 [shape = 'u8[65536]{0}', space=vmem, size = 0x10000, scoped, tag = 'input window, operand 3, single buffered']
    #allocation8 [shape = 'u8[32768]{0}', space=vmem, size = 0x8000, scoped, tag = 'input window, operand 4, single buffered']
    #allocation9 [shape = 's32[1]{0}', space=sflag, size = 0x4, scoped, tag = 'scoped memory for tpu_custom_call.1']
    #allocation10 [shape = 'u8[65536]{0}', space=vmem, size = 0x10000, scoped, tag = 'input window, operand 5, single buffered']
    #allocation11 [shape = 'u8[65536]{0}', space=vmem, size = 0x10000, scoped, tag = 'output window, operand 0, single buffered']
    %11 = vsyncpa [#allocation6], 0
    %12 = vsyncpa [#allocation4], 0
    %13 = vsyncpa [#allocation9], 0
    %14 = vsyncpa [#allocation5], 0
    // Predicated region
    $region2: #{tpu_custom_call.1} parent=1 // pred_check
      _
    $region3: #{tpu_custom_call.1} parent=1 // pred_check_branch
      %16 = sbr.rel (0) target = $region5
    $region4: #{tpu_custom_call.1} parent=1 // pred_region
      _
    $region5: #{tpu_custom_call.1} parent=1 // pred_fallthru
      _
    // Predicated region
    $region6: #{tpu_custom_call.1} parent=1 // pred_check
      _
    $region7: #{tpu_custom_call.1} parent=1 // pred_check_branch
      %18 = sbr.rel (0) target = $region9
    $region8: #{tpu_custom_call.1} parent=1 // pred_region
      %s20 = ssub.s32 256, 256
      %21 = vsyncadd [#allocation6], %s20
      %26 = dma.hbm_to_smem %s1, 256, [#allocation3], [#allocation6], 128, 128, 8
    $region9: #{tpu_custom_call.1} parent=1 // pred_fallthru
      _
    // Predicated region
    $region10: #{tpu_custom_call.1} parent=1 // pred_check
      _
    $region11: #{tpu_custom_call.1} parent=1 // pred_check_branch
      %28 = sbr.rel (0) target = $region13
    $region12: #{tpu_custom_call.1} parent=1 // pred_region
      _
    $region13: #{tpu_custom_call.1} parent=1 // pred_fallthru
      _
    // Predicated region
    $region14: #{tpu_custom_call.1} parent=1 // pred_check
      _
    $region15: #{tpu_custom_call.1} parent=1 // pred_check_branch
      %30 = sbr.rel (0) target = $region17
    $region16: #{tpu_custom_call.1} parent=1 // pred_region
      %s32 = ssub.s32 2048, 2048
      %33 = vsyncadd [#allocation4], %s32
      %s34 = sshll.u32 [#allocation7], 4
      %s35 = int_to_ptr.vmem [resolvable:$true] %s34
      %40 = dma.hbm_to_vmem [thread:$0]  %s3, 2048, %s35, [#allocation4], 128, 128, 8
    $region17: #{tpu_custom_call.1} parent=1 // pred_fallthru
      _
    // Predicated region
    $region18: #{tpu_custom_call.1} parent=1 // pred_check
      _
    $region19: #{tpu_custom_call.1} parent=1 // pred_check_branch
      %42 = sbr.rel (0) target = $region21
    $region20: #{tpu_custom_call.1} parent=1 // pred_region
      %s44 = ssub.s32 1024, 1024
      %45 = vsyncadd [#allocation9], %s44
      %s46 = sshll.u32 [#allocation8], 4
      %s47 = int_to_ptr.vmem [resolvable:$true] %s46
      %52 = dma.hbm_to_vmem [thread:$0]  %s4, 1024, %s47, [#allocation9], 64, 64, 4
    $region21: #{tpu_custom_call.1} parent=1 // pred_fallthru
      _
    // Predicated region
    $region22: #{tpu_custom_call.1} parent=1 // pred_check
      _
    $region23: #{tpu_custom_call.1} parent=1 // pred_check_branch
      %54 = sbr.rel (0) target = $region25
    $region24: #{tpu_custom_call.1} parent=1 // pred_region
      %s56 = ssub.s32 2048, 2048
      %57 = vsyncadd [#allocation9], %s56
      %s58 = sshll.u32 [#allocation10], 4
      %s59 = int_to_ptr.vmem [resolvable:$true] %s58
      %64 = dma.hbm_to_vmem [thread:$0]  %s5, 2048, %s59, [#allocation9], 128, 128, 8
    $region25: #{tpu_custom_call.1} parent=1 // pred_fallthru
      _
    // Predicated region
    $region26: #{tpu_custom_call.1} parent=1 // pred_check
      _
    $region27: #{tpu_custom_call.1} parent=1 // pred_check_branch
      %66 = sbr.rel (0) target = $region29
    $region28: #{tpu_custom_call.1} parent=1 // pred_region
      %67 = dma.done [#allocation6], 256
    $region29: #{tpu_custom_call.1} parent=1 // pred_fallthru
      _
    // Predicated region
    $region30: #{tpu_custom_call.1} parent=1 // pred_check
      _
    $region31: #{tpu_custom_call.1} parent=1 // pred_check_branch
      %69 = sbr.rel (0) target = $region33
    $region32: #{tpu_custom_call.1} parent=1 // pred_region
      %70 = dma.done [#allocation4], 2048
    $region33: #{tpu_custom_call.1} parent=1 // pred_fallthru
      _
    // Predicated region
    $region34: #{tpu_custom_call.1} parent=1 // pred_check
      _
    $region35: #{tpu_custom_call.1} parent=1 // pred_check_branch
      %72 = sbr.rel (0) target = $region37
    $region36: #{tpu_custom_call.1} parent=1 // pred_region
      %73 = dma.done [#allocation9], 1024
    $region37: #{tpu_custom_call.1} parent=1 // pred_fallthru
      _
    // Predicated region
    $region38: #{tpu_custom_call.1} parent=1 // pred_check
      _
    $region39: #{tpu_custom_call.1} parent=1 // pred_check_branch
      %75 = sbr.rel (0) target = $region41
    $region40: #{tpu_custom_call.1} parent=1 // pred_region
      %76 = dma.done [#allocation9], 2048
    $region41: #{tpu_custom_call.1} parent=1 // pred_fallthru
      _
    %77 = sfence
    %p79 = scmp.eq.s32.totalorder 0, 0
    // Predicated region
    $region42: #{tpu_custom_call.1} parent=1 // pred_check
      %p80 = pneg %p79
    $region43: #{tpu_custom_call.1} parent=1 // pred_check_branch
      %82 = sbr.rel (%p80) target = $region45
    $region44: #{tpu_custom_call.1} parent=1 // pred_region
      %83 = vst [vmem:[#allocation2] sm:$0x80] 0
      %84 = vst [vmem:[#allocation2 + $0x8] sm:$0x80] 0
      %85 = vst [vmem:[#allocation2 + $0x10] sm:$0x80] 0
      %86 = vst [vmem:[#allocation2 + $0x18] sm:$0x80] 0
      %87 = vst [vmem:[#allocation2 + $0x20] sm:$0x80] 0
      %88 = vst [vmem:[#allocation2 + $0x28] sm:$0x80] 0
      %89 = vst [vmem:[#allocation2 + $0x30] sm:$0x80] 0
      %90 = vst [vmem:[#allocation2 + $0x38] sm:$0x80] 0
      %91 = vst [vmem:[#allocation2 + $0x40] sm:$0x80] 0
      %92 = vst [vmem:[#allocation2 + $0x48] sm:$0x80] 0
      %93 = vst [vmem:[#allocation2 + $0x50] sm:$0x80] 0
      %94 = vst [vmem:[#allocation2 + $0x58] sm:$0x80] 0
      %95 = vst [vmem:[#allocation2 + $0x60] sm:$0x80] 0
      %96 = vst [vmem:[#allocation2 + $0x68] sm:$0x80] 0
      %97 = vst [vmem:[#allocation2 + $0x70] sm:$0x80] 0
      %98 = vst [vmem:[#allocation2 + $0x78] sm:$0x80] 0
      %99 = vst [vmem:[#allocation2 + $0x80] sm:$0x80] 0
      %100 = vst [vmem:[#allocation2 + $0x88] sm:$0x80] 0
      %101 = vst [vmem:[#allocation2 + $0x90] sm:$0x80] 0
      %102 = vst [vmem:[#allocation2 + $0x98] sm:$0x80] 0
      %103 = vst [vmem:[#allocation2 + $0xa0] sm:$0x80] 0
      %104 = vst [vmem:[#allocation2 + $0xa8] sm:$0x80] 0
      %105 = vst [vmem:[#allocation2 + $0xb0] sm:$0x80] 0
      %106 = vst [vmem:[#allocation2 + $0xb8] sm:$0x80] 0
      %107 = vst [vmem:[#allocation2 + $0xc0] sm:$0x80] 0
      %108 = vst [vmem:[#allocation2 + $0xc8] sm:$0x80] 0
      %109 = vst [vmem:[#allocation2 + $0xd0] sm:$0x80] 0
      %110 = vst [vmem:[#allocation2 + $0xd8] sm:$0x80] 0
      %111 = vst [vmem:[#allocation2 + $0xe0] sm:$0x80] 0
      %112 = vst [vmem:[#allocation2 + $0xe8] sm:$0x80] 0
      %113 = vst [vmem:[#allocation2 + $0xf0] sm:$0x80] 0
      %114 = vst [vmem:[#allocation2 + $0xf8] sm:$0x80] 0
      %115 = vst [vmem:[#allocation2 + $0x100] sm:$0x80] 0
      %116 = vst [vmem:[#allocation2 + $0x108] sm:$0x80] 0
      %117 = vst [vmem:[#allocation2 + $0x110] sm:$0x80] 0
      %118 = vst [vmem:[#allocation2 + $0x118] sm:$0x80] 0
      %119 = vst [vmem:[#allocation2 + $0x120] sm:$0x80] 0
      %120 = vst [vmem:[#allocation2 + $0x128] sm:$0x80] 0
      %121 = vst [vmem:[#allocation2 + $0x130] sm:$0x80] 0
      %122 = vst [vmem:[#allocation2 + $0x138] sm:$0x80] 0
      %123 = vst [vmem:[#allocation2 + $0x140] sm:$0x80] 0
      %124 = vst [vmem:[#allocation2 + $0x148] sm:$0x80] 0
      %125 = vst [vmem:[#allocation2 + $0x150] sm:$0x80] 0
      %126 = vst [vmem:[#allocation2 + $0x158] sm:$0x80] 0
      %127 = vst [vmem:[#allocation2 + $0x160] sm:$0x80] 0
      %128 = vst [vmem:[#allocation2 + $0x168] sm:$0x80] 0
      %129 = vst [vmem:[#allocation2 + $0x170] sm:$0x80] 0
      %130 = vst [vmem:[#allocation2 + $0x178] sm:$0x80] 0
      %131 = vst [vmem:[#allocation2 + $0x180] sm:$0x80] 0
      %132 = vst [vmem:[#allocation2 + $0x188] sm:$0x80] 0
      %133 = vst [vmem:[#allocation2 + $0x190] sm:$0x80] 0
      %134 = vst [vmem:[#allocation2 + $0x198] sm:$0x80] 0
      %135 = vst [vmem:[#allocation2 + $0x1a0] sm:$0x80] 0
      %136 = vst [vmem:[#allocation2 + $0x1a8] sm:$0x80] 0
      %137 = vst [vmem:[#allocation2 + $0x1b0] sm:$0x80] 0
      %138 = vst [vmem:[#allocation2 + $0x1b8] sm:$0x80] 0
      %139 = vst [vmem:[#allocation2 + $0x1c0] sm:$0x80] 0
      %140 = vst [vmem:[#allocation2 + $0x1c8] sm:$0x80] 0
      %141 = vst [vmem:[#allocation2 + $0x1d0] sm:$0x80] 0
      %142 = vst [vmem:[#allocation2 + $0x1d8] sm:$0x80] 0
      %143 = vst [vmem:[#allocation2 + $0x1e0] sm:$0x80] 0
      %144 = vst [vmem:[#allocation2 + $0x1e8] sm:$0x80] 0
      %145 = vst [vmem:[#allocation2 + $0x1f0] sm:$0x80] 0
      %146 = vst [vmem:[#allocation2 + $0x1f8] sm:$0x80] 0
      %147 = vst [vmem:[#allocation2 + $0x200] sm:$0x80] 0
      %148 = vst [vmem:[#allocation2 + $0x208] sm:$0x80] 0
      %149 = vst [vmem:[#allocation2 + $0x210] sm:$0x80] 0
      %150 = vst [vmem:[#allocation2 + $0x218] sm:$0x80] 0
      %151 = vst [vmem:[#allocation2 + $0x220] sm:$0x80] 0
      %152 = vst [vmem:[#allocation2 + $0x228] sm:$0x80] 0
      %153 = vst [vmem:[#allocation2 + $0x230] sm:$0x80] 0
      %154 = vst [vmem:[#allocation2 + $0x238] sm:$0x80] 0
      %155 = vst [vmem:[#allocation2 + $0x240] sm:$0x80] 0
      %156 = vst [vmem:[#allocation2 + $0x248] sm:$0x80] 0
      %157 = vst [vmem:[#allocation2 + $0x250] sm:$0x80] 0
      %158 = vst [vmem:[#allocation2 + $0x258] sm:$0x80] 0
      %159 = vst [vmem:[#allocation2 + $0x260] sm:$0x80] 0
      %160 = vst [vmem:[#allocation2 + $0x268] sm:$0x80] 0
      %161 = vst [vmem:[#allocation2 + $0x270] sm:$0x80] 0
      %162 = vst [vmem:[#allocation2 + $0x278] sm:$0x80] 0
      %163 = vst [vmem:[#allocation2 + $0x280] sm:$0x80] 0
      %164 = vst [vmem:[#allocation2 + $0x288] sm:$0x80] 0
      %165 = vst [vmem:[#allocation2 + $0x290] sm:$0x80] 0
      %166 = vst [vmem:[#allocation2 + $0x298] sm:$0x80] 0
      %167 = vst [vmem:[#allocation2 + $0x2a0] sm:$0x80] 0
      %168 = vst [vmem:[#allocation2 + $0x2a8] sm:$0x80] 0
      %169 = vst [vmem:[#allocation2 + $0x2b0] sm:$0x80] 0
      %170 = vst [vmem:[#allocation2 + $0x2b8] sm:$0x80] 0
      %171 = vst [vmem:[#allocation2 + $0x2c0] sm:$0x80] 0
      %172 = vst [vmem:[#allocation2 + $0x2c8] sm:$0x80] 0
      %173 = vst [vmem:[#allocation2 + $0x2d0] sm:$0x80] 0
      %174 = vst [vmem:[#allocation2 + $0x2d8] sm:$0x80] 0
      %175 = vst [vmem:[#allocation2 + $0x2e0] sm:$0x80] 0
      %176 = vst [vmem:[#allocation2 + $0x2e8] sm:$0x80] 0
      %177 = vst [vmem:[#allocation2 + $0x2f0] sm:$0x80] 0
      %178 = vst [vmem:[#allocation2 + $0x2f8] sm:$0x80] 0
      %179 = vst [vmem:[#allocation2 + $0x300] sm:$0x80] 0
      %180 = vst [vmem:[#allocation2 + $0x308] sm:$0x80] 0
      %181 = vst [vmem:[#allocation2 + $0x310] sm:$0x80] 0
      %182 = vst [vmem:[#allocation2 + $0x318] sm:$0x80] 0
      %183 = vst [vmem:[#allocation2 + $0x320] sm:$0x80] 0
      %184 = vst [vmem:[#allocation2 + $0x328] sm:$0x80] 0
      %185 = vst [vmem:[#allocation2 + $0x330] sm:$0x80] 0
      %186 = vst [vmem:[#allocation2 + $0x338] sm:$0x80] 0
      %187 = vst [vmem:[#allocation2 + $0x340] sm:$0x80] 0
      %188 = vst [vmem:[#allocation2 + $0x348] sm:$0x80] 0
      %189 = vst [vmem:[#allocation2 + $0x350] sm:$0x80] 0
      %190 = vst [vmem:[#allocation2 + $0x358] sm:$0x80] 0
      %191 = vst [vmem:[#allocation2 + $0x360] sm:$0x80] 0
      %192 = vst [vmem:[#allocation2 + $0x368] sm:$0x80] 0
      %193 = vst [vmem:[#allocation2 + $0x370] sm:$0x80] 0
      %194 = vst [vmem:[#allocation2 + $0x378] sm:$0x80] 0
      %195 = vst [vmem:[#allocation2 + $0x380] sm:$0x80] 0
      %196 = vst [vmem:[#allocation2 + $0x388] sm:$0x80] 0
      %197 = vst [vmem:[#allocation2 + $0x390] sm:$0x80] 0
      %198 = vst [vmem:[#allocation2 + $0x398] sm:$0x80] 0
      %199 = vst [vmem:[#allocation2 + $0x3a0] sm:$0x80] 0
      %200 = vst [vmem:[#allocation2 + $0x3a8] sm:$0x80] 0
      %201 = vst [vmem:[#allocation2 + $0x3b0] sm:$0x80] 0
      %202 = vst [vmem:[#allocation2 + $0x3b8] sm:$0x80] 0
      %203 = vst [vmem:[#allocation2 + $0x3c0] sm:$0x80] 0
      %204 = vst [vmem:[#allocation2 + $0x3c8] sm:$0x80] 0
      %205 = vst [vmem:[#allocation2 + $0x3d0] sm:$0x80] 0
      %206 = vst [vmem:[#allocation2 + $0x3d8] sm:$0x80] 0
      %207 = vst [vmem:[#allocation2 + $0x3e0] sm:$0x80] 0
      %208 = vst [vmem:[#allocation2 + $0x3e8] sm:$0x80] 0
      %209 = vst [vmem:[#allocation2 + $0x3f0] sm:$0x80] 0
      %210 = vst [vmem:[#allocation2 + $0x3f8] sm:$0x80] 0
      %211 = vst [vmem:[#allocation2 + $0x400] sm:$0x80] 0
      %212 = vst [vmem:[#allocation2 + $0x408] sm:$0x80] 0
      %213 = vst [vmem:[#allocation2 + $0x410] sm:$0x80] 0
      %214 = vst [vmem:[#allocation2 + $0x418] sm:$0x80] 0
      %215 = vst [vmem:[#allocation2 + $0x420] sm:$0x80] 0
      %216 = vst [vmem:[#allocation2 + $0x428] sm:$0x80] 0
      %217 = vst [vmem:[#allocation2 + $0x430] sm:$0x80] 0
      %218 = vst [vmem:[#allocation2 + $0x438] sm:$0x80] 0
      %219 = vst [vmem:[#allocation2 + $0x440] sm:$0x80] 0
      %220 = vst [vmem:[#allocation2 + $0x448] sm:$0x80] 0
      %221 = vst [vmem:[#allocation2 + $0x450] sm:$0x80] 0
      %222 = vst [vmem:[#allocation2 + $0x458] sm:$0x80] 0
      %223 = vst [vmem:[#allocation2 + $0x460] sm:$0x80] 0
      %224 = vst [vmem:[#allocation2 + $0x468] sm:$0x80] 0
      %225 = vst [vmem:[#allocation2 + $0x470] sm:$0x80] 0
      %226 = vst [vmem:[#allocation2 + $0x478] sm:$0x80] 0
      %227 = vst [vmem:[#allocation2 + $0x480] sm:$0x80] 0
      %228 = vst [vmem:[#allocation2 + $0x488] sm:$0x80] 0
      %229 = vst [vmem:[#allocation2 + $0x490] sm:$0x80] 0
      %230 = vst [vmem:[#allocation2 + $0x498] sm:$0x80] 0
      %231 = vst [vmem:[#allocation2 + $0x4a0] sm:$0x80] 0
      %232 = vst [vmem:[#allocation2 + $0x4a8] sm:$0x80] 0
      %233 = vst [vmem:[#allocation2 + $0x4b0] sm:$0x80] 0
      %234 = vst [vmem:[#allocation2 + $0x4b8] sm:$0x80] 0
      %235 = vst [vmem:[#allocation2 + $0x4c0] sm:$0x80] 0
      %236 = vst [vmem:[#allocation2 + $0x4c8] sm:$0x80] 0
      %237 = vst [vmem:[#allocation2 + $0x4d0] sm:$0x80] 0
      %238 = vst [vmem:[#allocation2 + $0x4d8] sm:$0x80] 0
      %239 = vst [vmem:[#allocation2 + $0x4e0] sm:$0x80] 0
      %240 = vst [vmem:[#allocation2 + $0x4e8] sm:$0x80] 0
      %241 = vst [vmem:[#allocation2 + $0x4f0] sm:$0x80] 0
      %242 = vst [vmem:[#allocation2 + $0x4f8] sm:$0x80] 0
      %243 = vst [vmem:[#allocation2 + $0x500] sm:$0x80] 0
      %244 = vst [vmem:[#allocation2 + $0x508] sm:$0x80] 0
      %245 = vst [vmem:[#allocation2 + $0x510] sm:$0x80] 0
      %246 = vst [vmem:[#allocation2 + $0x518] sm:$0x80] 0
      %247 = vst [vmem:[#allocation2 + $0x520] sm:$0x80] 0
      %248 = vst [vmem:[#allocation2 + $0x528] sm:$0x80] 0
      %249 = vst [vmem:[#allocation2 + $0x530] sm:$0x80] 0
      %250 = vst [vmem:[#allocation2 + $0x538] sm:$0x80] 0
      %251 = vst [vmem:[#allocation2 + $0x540] sm:$0x80] 0
      %252 = vst [vmem:[#allocation2 + $0x548] sm:$0x80] 0
      %253 = vst [vmem:[#allocation2 + $0x550] sm:$0x80] 0
      %254 = vst [vmem:[#allocation2 + $0x558] sm:$0x80] 0
      %255 = vst [vmem:[#allocation2 + $0x560] sm:$0x80] 0
      %256 = vst [vmem:[#allocation2 + $0x568] sm:$0x80] 0
      %257 = vst [vmem:[#allocation2 + $0x570] sm:$0x80] 0
      %258 = vst [vmem:[#allocation2 + $0x578] sm:$0x80] 0
      %259 = vst [vmem:[#allocation2 + $0x580] sm:$0x80] 0
      %260 = vst [vmem:[#allocation2 + $0x588] sm:$0x80] 0
      %261 = vst [vmem:[#allocation2 + $0x590] sm:$0x80] 0
      %262 = vst [vmem:[#allocation2 + $0x598] sm:$0x80] 0
      %263 = vst [vmem:[#allocation2 + $0x5a0] sm:$0x80] 0
      %264 = vst [vmem:[#allocation2 + $0x5a8] sm:$0x80] 0
      %265 = vst [vmem:[#allocation2 + $0x5b0] sm:$0x80] 0
      %266 = vst [vmem:[#allocation2 + $0x5b8] sm:$0x80] 0
      %267 = vst [vmem:[#allocation2 + $0x5c0] sm:$0x80] 0
      %268 = vst [vmem:[#allocation2 + $0x5c8] sm:$0x80] 0
      %269 = vst [vmem:[#allocation2 + $0x5d0] sm:$0x80] 0
      %270 = vst [vmem:[#allocation2 + $0x5d8] sm:$0x80] 0
      %271 = vst [vmem:[#allocation2 + $0x5e0] sm:$0x80] 0
      %272 = vst [vmem:[#allocation2 + $0x5e8] sm:$0x80] 0
      %273 = vst [vmem:[#allocation2 + $0x5f0] sm:$0x80] 0
      %274 = vst [vmem:[#allocation2 + $0x5f8] sm:$0x80] 0
      %275 = vst [vmem:[#allocation2 + $0x600] sm:$0x80] 0
      %276 = vst [vmem:[#allocation2 + $0x608] sm:$0x80] 0
      %277 = vst [vmem:[#allocation2 + $0x610] sm:$0x80] 0
      %278 = vst [vmem:[#allocation2 + $0x618] sm:$0x80] 0
      %279 = vst [vmem:[#allocation2 + $0x620] sm:$0x80] 0
      %280 = vst [vmem:[#allocation2 + $0x628] sm:$0x80] 0
      %281 = vst [vmem:[#allocation2 + $0x630] sm:$0x80] 0
      %282 = vst [vmem:[#allocation2 + $0x638] sm:$0x80] 0
      %283 = vst [vmem:[#allocation2 + $0x640] sm:$0x80] 0
      %284 = vst [vmem:[#allocation2 + $0x648] sm:$0x80] 0
      %285 = vst [vmem:[#allocation2 + $0x650] sm:$0x80] 0
      %286 = vst [vmem:[#allocation2 + $0x658] sm:$0x80] 0
      %287 = vst [vmem:[#allocation2 + $0x660] sm:$0x80] 0
      %288 = vst [vmem:[#allocation2 + $0x668] sm:$0x80] 0
      %289 = vst [vmem:[#allocation2 + $0x670] sm:$0x80] 0
      %290 = vst [vmem:[#allocation2 + $0x678] sm:$0x80] 0
      %291 = vst [vmem:[#allocation2 + $0x680] sm:$0x80] 0
      %292 = vst [vmem:[#allocation2 + $0x688] sm:$0x80] 0
      %293 = vst [vmem:[#allocation2 + $0x690] sm:$0x80] 0
      %294 = vst [vmem:[#allocation2 + $0x698] sm:$0x80] 0
      %295 = vst [vmem:[#allocation2 + $0x6a0] sm:$0x80] 0
      %296 = vst [vmem:[#allocation2 + $0x6a8] sm:$0x80] 0
      %297 = vst [vmem:[#allocation2 + $0x6b0] sm:$0x80] 0
      %298 = vst [vmem:[#allocation2 + $0x6b8] sm:$0x80] 0
      %299 = vst [vmem:[#allocation2 + $0x6c0] sm:$0x80] 0
      %300 = vst [vmem:[#allocation2 + $0x6c8] sm:$0x80] 0
      %301 = vst [vmem:[#allocation2 + $0x6d0] sm:$0x80] 0
      %302 = vst [vmem:[#allocation2 + $0x6d8] sm:$0x80] 0
      %303 = vst [vmem:[#allocation2 + $0x6e0] sm:$0x80] 0
      %304 = vst [vmem:[#allocation2 + $0x6e8] sm:$0x80] 0
      %305 = vst [vmem:[#allocation2 + $0x6f0] sm:$0x80] 0
      %306 = vst [vmem:[#allocation2 + $0x6f8] sm:$0x80] 0
    $region45: #{tpu_custom_call.1} parent=1 // pred_fallthru
      _
    loop: start=0, step=1, limit=16
    $region46: #{tpu_custom_call.1} parent=1 // loop_pre_header
      _
    $region47: #{tpu_custom_call.1} parent=1 // loop_header
      %s308 = sphi 0, %s312
      %p309 = scmp.ge.s32.totalorder %s308, 16
    $region48: #{tpu_custom_call.1} parent=1 // loop_header_branch
      %311 = sbr.rel (%p309) target = $region52
    $region49: #{tpu_custom_call.1} parent=1 // loop_body
      %v313 = vld [vmem:[%s0] sm:$0xf]
      %v314 = vld [vmem:[%s0 + $0x4] sm:$0x7]
      %v315 = vld [vmem:[%s0 + $0x8] sm:$0xf]
      %v316 = vld [vmem:[%s0 + $0xc] sm:$0x7]
      %v317 = vld [vmem:[%s0 + $0x10] sm:$0xf]
      %v318 = vld [vmem:[%s0 + $0x14] sm:$0x7]
      %v319 = vld [vmem:[%s0 + $0x18] sm:$0xf]
      %v320 = vld [vmem:[%s0 + $0x1c] sm:$0x7]
      %v321 = vld [vmem:[%s0 + $0x20] sm:$0xf]
      %v322 = vld [vmem:[%s0 + $0x24] sm:$0x7]
      %v323 = vld [vmem:[%s0 + $0x28] sm:$0xf]
      %v324 = vld [vmem:[%s0 + $0x2c] sm:$0x7]
      %v325 = vld [vmem:[%s0 + $0x30] sm:$0xf]
      %v326 = vld [vmem:[%s0 + $0x34] sm:$0x7]
      %v327 = vld [vmem:[%s0 + $0x38] sm:$0xf]
      %v328 = vld [vmem:[%s0 + $0x3c] sm:$0x7]
      %v329 = vld [vmem:[%s0 + $0x40] sm:$0xf]
      %v330 = vld [vmem:[%s0 + $0x44] sm:$0x7]
      %v331 = vld [vmem:[%s0 + $0x48] sm:$0xf]
      %v332 = vld [vmem:[%s0 + $0x4c] sm:$0x7]
      %v333 = vld [vmem:[%s0 + $0x50] sm:$0xf]
      %v334 = vld [vmem:[%s0 + $0x54] sm:$0x7]
      %v335 = vld [vmem:[%s0 + $0x58] sm:$0xf]
      %v336 = vld [vmem:[%s0 + $0x5c] sm:$0x7]
      %v337 = vld [vmem:[%s0 + $0x60] sm:$0xf]
      %v338 = vld [vmem:[%s0 + $0x64] sm:$0x7]
      %v339 = vld [vmem:[%s0 + $0x68] sm:$0xf]
      %v340 = vld [vmem:[%s0 + $0x6c] sm:$0x7]
      %s341 = smul.u32 %s308, 128
      %s342 = sld [smem:[#allocation3 + %s341]]
      %p344 = scmp.ne.f32.partialorder %s342, %s342
      %s345 = sshrl.u32 %s342, 16
      %s346 = sand.u32 %s345, 1
      %s347 = sadd.s32 32767, %s346
      %s348 = sadd.s32 %s342, %s347
      %s349 = sand.u32 %s348, 4294901760
      %s350 = scalar_select %p344, 2143289344, %s349
      %s352 = sshrl.u32 %s350, 16
      %s353 = sshll.u32 %s352, 16
      %s354 = sor.u32 %s352, %s353
      %v355 = vstv %s354
      %v357 = vmul.bf16 %v313, %v355
      %v358 = vmul.bf16 %v314, %v355
      %v359 = vmul.bf16 %v315, %v355
      %v360 = vmul.bf16 %v316, %v355
      %v361 = vmul.bf16 %v317, %v355
      %v362 = vmul.bf16 %v318, %v355
      %v363 = vmul.bf16 %v319, %v355
      %v364 = vmul.bf16 %v320, %v355
      %v365 = vmul.bf16 %v321, %v355
      %v366 = vmul.bf16 %v322, %v355
      %v367 = vmul.bf16 %v323, %v355
      %v368 = vmul.bf16 %v324, %v355
      %v369 = vmul.bf16 %v325, %v355
      %v370 = vmul.bf16 %v326, %v355
      %v371 = vmul.bf16 %v327, %v355
      %v372 = vmul.bf16 %v328, %v355
      %v373 = vmul.bf16 %v329, %v355
      %v374 = vmul.bf16 %v330, %v355
      %v375 = vmul.bf16 %v331, %v355
      %v376 = vmul.bf16 %v332, %v355
      %v377 = vmul.bf16 %v333, %v355
      %v378 = vmul.bf16 %v334, %v355
      %v379 = vmul.bf16 %v335, %v355
      %v380 = vmul.bf16 %v336, %v355
      %v381 = vmul.bf16 %v337, %v355
      %v382 = vmul.bf16 %v338, %v355
      %v383 = vmul.bf16 %v339, %v355
      %v384 = vmul.bf16 %v340, %v355
      %s385 = scalar_lea.vmem %s0, 240
      %v386 = vld [vmem:[%s385] sm:$0xf]
      %v387 = vld [vmem:[%s385 + $0x4] sm:$0x7]
      %v388 = vld [vmem:[%s385 + $0x8] sm:$0xf]
      %v389 = vld [vmem:[%s385 + $0xc] sm:$0x7]
      %v390 = vld [vmem:[%s385 + $0x10] sm:$0xf]
      %v391 = vld [vmem:[%s385 + $0x14] sm:$0x7]
      %v392 = vld [vmem:[%s385 + $0x18] sm:$0xf]
      %v393 = vld [vmem:[%s385 + $0x1c] sm:$0x7]
      %v394 = vld [vmem:[%s385 + $0x20] sm:$0xf]
      %v395 = vld [vmem:[%s385 + $0x24] sm:$0x7]
      %v396 = vld [vmem:[%s385 + $0x28] sm:$0xf]
      %v397 = vld [vmem:[%s385 + $0x2c] sm:$0x7]
      %v398 = vld [vmem:[%s385 + $0x30] sm:$0xf]
      %v399 = vld [vmem:[%s385 + $0x34] sm:$0x7]
      %v400 = vld [vmem:[%s385 + $0x38] sm:$0xf]
      %v401 = vld [vmem:[%s385 + $0x3c] sm:$0x7]
      %v402 = vld [vmem:[%s385 + $0x40] sm:$0xf]
      %v403 = vld [vmem:[%s385 + $0x44] sm:$0x7]
      %v404 = vld [vmem:[%s385 + $0x48] sm:$0xf]
      %v405 = vld [vmem:[%s385 + $0x4c] sm:$0x7]
      %v406 = vld [vmem:[%s385 + $0x50] sm:$0xf]
      %v407 = vld [vmem:[%s385 + $0x54] sm:$0x7]
      %v408 = vld [vmem:[%s385 + $0x58] sm:$0xf]
      %v409 = vld [vmem:[%s385 + $0x5c] sm:$0x7]
      %v410 = vld [vmem:[%s385 + $0x60] sm:$0xf]
      %v411 = vld [vmem:[%s385 + $0x64] sm:$0x7]
      %v412 = vld [vmem:[%s385 + $0x68] sm:$0xf]
      %v413 = vld [vmem:[%s385 + $0x6c] sm:$0x7]
      %s414 = sadd.s32 %s341, 1
      %s415 = sld [smem:[#allocation3 + %s414]]
      %p417 = scmp.ne.f32.partialorder %s415, %s415
      %s418 = sshrl.u32 %s415, 16
      %s419 = sand.u32 %s418, 1
      %s420 = sadd.s32 32767, %s419
      %s421 = sadd.s32 %s415, %s420
      %s422 = sand.u32 %s421, 4294901760
      %s423 = scalar_select %p417, 2143289344, %s422
      %s425 = sshrl.u32 %s423, 16
      %s426 = sshll.u32 %s425, 16
      %s427 = sor.u32 %s425, %s426
      %v428 = vstv %s427
      %v430 = vmul.bf16 %v386, %v428
      %v431 = vmul.bf16 %v387, %v428
      %v432 = vmul.bf16 %v388, %v428
      %v433 = vmul.bf16 %v389, %v428
      %v434 = vmul.bf16 %v390, %v428
      %v435 = vmul.bf16 %v391, %v428
      %v436 = vmul.bf16 %v392, %v428
      %v437 = vmul.bf16 %v393, %v428
      %v438 = vmul.bf16 %v394, %v428
      %v439 = vmul.bf16 %v395, %v428
      %v440 = vmul.bf16 %v396, %v428
      %v441 = vmul.bf16 %v397, %v428
      %v442 = vmul.bf16 %v398, %v428
      %v443 = vmul.bf16 %v399, %v428
      %v444 = vmul.bf16 %v400, %v428
      %v445 = vmul.bf16 %v401, %v428
      %v446 = vmul.bf16 %v402, %v428
      %v447 = vmul.bf16 %v403, %v428
      %v448 = vmul.bf16 %v404, %v428
      %v449 = vmul.bf16 %v405, %v428
      %v450 = vmul.bf16 %v406, %v428
      %v451 = vmul.bf16 %v407, %v428
      %v452 = vmul.bf16 %v408, %v428
      %v453 = vmul.bf16 %v409, %v428
      %v454 = vmul.bf16 %v410, %v428
      %v455 = vmul.bf16 %v411, %v428
      %v456 = vmul.bf16 %v412, %v428
      %v457 = vmul.bf16 %v413, %v428
      %v458 = vadd.bf16 %v357, %v430
      %v459 = vadd.bf16 %v358, %v431
      %v460 = vadd.bf16 %v359, %v432
      %v461 = vadd.bf16 %v360, %v433
      %v462 = vadd.bf16 %v361, %v434
      %v463 = vadd.bf16 %v362, %v435
      %v464 = vadd.bf16 %v363, %v436
      %v465 = vadd.bf16 %v364, %v437
      %v466 = vadd.bf16 %v365, %v438
      %v467 = vadd.bf16 %v366, %v439
      %v468 = vadd.bf16 %v367, %v440
      %v469 = vadd.bf16 %v368, %v441
      %v470 = vadd.bf16 %v369, %v442
      %v471 = vadd.bf16 %v370, %v443
      %v472 = vadd.bf16 %v371, %v444
      %v473 = vadd.bf16 %v372, %v445
      %v474 = vadd.bf16 %v373, %v446
      %v475 = vadd.bf16 %v374, %v447
      %v476 = vadd.bf16 %v375, %v448
      %v477 = vadd.bf16 %v376, %v449
      %v478 = vadd.bf16 %v377, %v450
      %v479 = vadd.bf16 %v378, %v451
      %v480 = vadd.bf16 %v379, %v452
      %v481 = vadd.bf16 %v380, %v453
      %v482 = vadd.bf16 %v381, %v454
      %v483 = vadd.bf16 %v382, %v455
      %v484 = vadd.bf16 %v383, %v456
      %v485 = vadd.bf16 %v384, %v457
      %s486 = scalar_lea.vmem %s0, 480
      %v487 = vld [vmem:[%s486] sm:$0xf]
      %v488 = vld [vmem:[%s486 + $0x4] sm:$0x7]
      %v489 = vld [vmem:[%s486 + $0x8] sm:$0xf]
      %v490 = vld [vmem:[%s486 + $0xc] sm:$0x7]
      %v491 = vld [vmem:[%s486 + $0x10] sm:$0xf]
      %v492 = vld [vmem:[%s486 + $0x14] sm:$0x7]
      %v493 = vld [vmem:[%s486 + $0x18] sm:$0xf]
      %v494 = vld [vmem:[%s486 + $0x1c] sm:$0x7]
      %v495 = vld [vmem:[%s486 + $0x20] sm:$0xf]
      %v496 = vld [vmem:[%s486 + $0x24] sm:$0x7]
      %v497 = vld [vmem:[%s486 + $0x28] sm:$0xf]
      %v498 = vld [vmem:[%s486 + $0x2c] sm:$0x7]
      %v499 = vld [vmem:[%s486 + $0x30] sm:$0xf]
      %v500 = vld [vmem:[%s486 + $0x34] sm:$0x7]
      %v501 = vld [vmem:[%s486 + $0x38] sm:$0xf]
      %v502 = vld [vmem:[%s486 + $0x3c] sm:$0x7]
      %v503 = vld [vmem:[%s486 + $0x40] sm:$0xf]
      %v504 = vld [vmem:[%s486 + $0x44] sm:$0x7]
      %v505 = vld [vmem:[%s486 + $0x48] sm:$0xf]
      %v506 = vld [vmem:[%s486 + $0x4c] sm:$0x7]
      %v507 = vld [vmem:[%s486 + $0x50] sm:$0xf]
      %v508 = vld [vmem:[%s486 + $0x54] sm:$0x7]
      %v509 = vld [vmem:[%s486 + $0x58] sm:$0xf]
      %v510 = vld [vmem:[%s486 + $0x5c] sm:$0x7]
      %v511 = vld [vmem:[%s486 + $0x60] sm:$0xf]
      %v512 = vld [vmem:[%s486 + $0x64] sm:$0x7]
      %v513 = vld [vmem:[%s486 + $0x68] sm:$0xf]
      %v514 = vld [vmem:[%s486 + $0x6c] sm:$0x7]
      %s515 = sadd.s32 %s341, 2
      %s516 = sld [smem:[#allocation3 + %s515]]
      %p518 = scmp.ne.f32.partialorder %s516, %s516
      %s519 = sshrl.u32 %s516, 16
      %s520 = sand.u32 %s519, 1
      %s521 = sadd.s32 32767, %s520
      %s522 = sadd.s32 %s516, %s521
      %s523 = sand.u32 %s522, 4294901760
      %s524 = scalar_select %p518, 2143289344, %s523
      %s526 = sshrl.u32 %s524, 16
      %s527 = sshll.u32 %s526, 16
      %s528 = sor.u32 %s526, %s527
      %v529 = vstv %s528
      %v531 = vmul.bf16 %v487, %v529
      %v532 = vmul.bf16 %v488, %v529
      %v533 = vmul.bf16 %v489, %v529
      %v534 = vmul.bf16 %v490, %v529
      %v535 = vmul.bf16 %v491, %v529
      %v536 = vmul.bf16 %v492, %v529
      %v537 = vmul.bf16 %v493, %v529
      %v538 = vmul.bf16 %v494, %v529
      %v539 = vmul.bf16 %v495, %v529
      %v540 = vmul.bf16 %v496, %v529
      %v541 = vmul.bf16 %v497, %v529
      %v542 = vmul.bf16 %v498, %v529
      %v543 = vmul.bf16 %v499, %v529
      %v544 = vmul.bf16 %v500, %v529
      %v545 = vmul.bf16 %v501, %v529
      %v546 = vmul.bf16 %v502, %v529
      %v547 = vmul.bf16 %v503, %v529
      %v548 = vmul.bf16 %v504, %v529
      %v549 = vmul.bf16 %v505, %v529
      %v550 = vmul.bf16 %v506, %v529
      %v551 = vmul.bf16 %v507, %v529
      %v552 = vmul.bf16 %v508, %v529
      %v553 = vmul.bf16 %v509, %v529
      %v554 = vmul.bf16 %v510, %v529
      %v555 = vmul.bf16 %v511, %v529
      %v556 = vmul.bf16 %v512, %v529
      %v557 = vmul.bf16 %v513, %v529
      %v558 = vmul.bf16 %v514, %v529
      %v559 = vadd.bf16 %v458, %v531
      %v560 = vadd.bf16 %v459, %v532
      %v561 = vadd.bf16 %v460, %v533
      %v562 = vadd.bf16 %v461, %v534
      %v563 = vadd.bf16 %v462, %v535
      %v564 = vadd.bf16 %v463, %v536
      %v565 = vadd.bf16 %v464, %v537
      %v566 = vadd.bf16 %v465, %v538
      %v567 = vadd.bf16 %v466, %v539
      %v568 = vadd.bf16 %v467, %v540
      %v569 = vadd.bf16 %v468, %v541
      %v570 = vadd.bf16 %v469, %v542
      %v571 = vadd.bf16 %v470, %v543
      %v572 = vadd.bf16 %v471, %v544
      %v573 = vadd.bf16 %v472, %v545
      %v574 = vadd.bf16 %v473, %v546
      %v575 = vadd.bf16 %v474, %v547
      %v576 = vadd.bf16 %v475, %v548
      %v577 = vadd.bf16 %v476, %v549
      %v578 = vadd.bf16 %v477, %v550
      %v579 = vadd.bf16 %v478, %v551
      %v580 = vadd.bf16 %v479, %v552
      %v581 = vadd.bf16 %v480, %v553
      %v582 = vadd.bf16 %v481, %v554
      %v583 = vadd.bf16 %v482, %v555
      %v584 = vadd.bf16 %v483, %v556
      %v585 = vadd.bf16 %v484, %v557
      %v586 = vadd.bf16 %v485, %v558
      %s587 = scalar_lea.vmem %s0, 120
      %v588 = vld [vmem:[%s587] sm:$0xf]
      %v589 = vld [vmem:[%s587 + $0x4] sm:$0x7]
      %v590 = vld [vmem:[%s587 + $0x8] sm:$0xf]
      %v591 = vld [vmem:[%s587 + $0xc] sm:$0x7]
      %v592 = vld [vmem:[%s587 + $0x10] sm:$0xf]
      %v593 = vld [vmem:[%s587 + $0x14] sm:$0x7]
      %v594 = vld [vmem:[%s587 + $0x18] sm:$0xf]
      %v595 = vld [vmem:[%s587 + $0x1c] sm:$0x7]
      %v596 = vld [vmem:[%s587 + $0x20] sm:$0xf]
      %v597 = vld [vmem:[%s587 + $0x24] sm:$0x7]
      %v598 = vld [vmem:[%s587 + $0x28] sm:$0xf]
      %v599 = vld [vmem:[%s587 + $0x2c] sm:$0x7]
      %v600 = vld [vmem:[%s587 + $0x30] sm:$0xf]
      %v601 = vld [vmem:[%s587 + $0x34] sm:$0x7]
      %v602 = vld [vmem:[%s587 + $0x38] sm:$0xf]
      %v603 = vld [vmem:[%s587 + $0x3c] sm:$0x7]
      %v604 = vld [vmem:[%s587 + $0x40] sm:$0xf]
      %v605 = vld [vmem:[%s587 + $0x44] sm:$0x7]
      %v606 = vld [vmem:[%s587 + $0x48] sm:$0xf]
      %v607 = vld [vmem:[%s587 + $0x4c] sm:$0x7]
      %v608 = vld [vmem:[%s587 + $0x50] sm:$0xf]
      %v609 = vld [vmem:[%s587 + $0x54] sm:$0x7]
      %v610 = vld [vmem:[%s587 + $0x58] sm:$0xf]
      %v611 = vld [vmem:[%s587 + $0x5c] sm:$0x7]
      %v612 = vld [vmem:[%s587 + $0x60] sm:$0xf]
      %v613 = vld [vmem:[%s587 + $0x64] sm:$0x7]
      %v614 = vld [vmem:[%s587 + $0x68] sm:$0xf]
      %v615 = vld [vmem:[%s587 + $0x6c] sm:$0x7]
      %s616 = sadd.s32 %s341, 3
      %s617 = sld [smem:[#allocation3 + %s616]]
      %p619 = scmp.ne.f32.partialorder %s617, %s617
      %s620 = sshrl.u32 %s617, 16
      %s621 = sand.u32 %s620, 1
      %s622 = sadd.s32 32767, %s621
      %s623 = sadd.s32 %s617, %s622
      %s624 = sand.u32 %s623, 4294901760
      %s625 = scalar_select %p619, 2143289344, %s624
      %s627 = sshrl.u32 %s625, 16
      %s628 = sshll.u32 %s627, 16
      %s629 = sor.u32 %s627, %s628
      %v630 = vstv %s629
      %v632 = vmul.bf16 %v588, %v630
      %v633 = vmul.bf16 %v589, %v630
      %v634 = vmul.bf16 %v590, %v630
      %v635 = vmul.bf16 %v591, %v630
      %v636 = vmul.bf16 %v592, %v630
      %v637 = vmul.bf16 %v593, %v630
      %v638 = vmul.bf16 %v594, %v630
      %v639 = vmul.bf16 %v595, %v630
      %v640 = vmul.bf16 %v596, %v630
      %v641 = vmul.bf16 %v597, %v630
      %v642 = vmul.bf16 %v598, %v630
      %v643 = vmul.bf16 %v599, %v630
      %v644 = vmul.bf16 %v600, %v630
      %v645 = vmul.bf16 %v601, %v630
      %v646 = vmul.bf16 %v602, %v630
      %v647 = vmul.bf16 %v603, %v630
      %v648 = vmul.bf16 %v604, %v630
      %v649 = vmul.bf16 %v605, %v630
      %v650 = vmul.bf16 %v606, %v630
      %v651 = vmul.bf16 %v607, %v630
      %v652 = vmul.bf16 %v608, %v630
      %v653 = vmul.bf16 %v609, %v630
      %v654 = vmul.bf16 %v610, %v630
      %v655 = vmul.bf16 %v611, %v630
      %v656 = vmul.bf16 %v612, %v630
      %v657 = vmul.bf16 %v613, %v630
      %v658 = vmul.bf16 %v614, %v630
      %v659 = vmul.bf16 %v615, %v630
      %v660 = vadd.bf16 %v559, %v632
      %v661 = vadd.bf16 %v560, %v633
      %v662 = vadd.bf16 %v561, %v634
      %v663 = vadd.bf16 %v562, %v635
      %v664 = vadd.bf16 %v563, %v636
      %v665 = vadd.bf16 %v564, %v637
      %v666 = vadd.bf16 %v565, %v638
      %v667 = vadd.bf16 %v566, %v639
      %v668 = vadd.bf16 %v567, %v640
      %v669 = vadd.bf16 %v568, %v641
      %v670 = vadd.bf16 %v569, %v642
      %v671 = vadd.bf16 %v570, %v643
      %v672 = vadd.bf16 %v571, %v644
      %v673 = vadd.bf16 %v572, %v645
      %v674 = vadd.bf16 %v573, %v646
      %v675 = vadd.bf16 %v574, %v647
      %v676 = vadd.bf16 %v575, %v648
      %v677 = vadd.bf16 %v576, %v649
      %v678 = vadd.bf16 %v577, %v650
      %v679 = vadd.bf16 %v578, %v651
      %v680 = vadd.bf16 %v579, %v652
      %v681 = vadd.bf16 %v580, %v653
      %v682 = vadd.bf16 %v581, %v654
      %v683 = vadd.bf16 %v582, %v655
      %v684 = vadd.bf16 %v583, %v656
      %v685 = vadd.bf16 %v584, %v657
      %v686 = vadd.bf16 %v585, %v658
      %v687 = vadd.bf16 %v586, %v659
      %s688 = scalar_lea.vmem %s0, 360
      %v689 = vld [vmem:[%s688] sm:$0xf]
      %v690 = vld [vmem:[%s688 + $0x4] sm:$0x7]
      %v691 = vld [vmem:[%s688 + $0x8] sm:$0xf]
      %v692 = vld [vmem:[%s688 + $0xc] sm:$0x7]
      %v693 = vld [vmem:[%s688 + $0x10] sm:$0xf]
      %v694 = vld [vmem:[%s688 + $0x14] sm:$0x7]
      %v695 = vld [vmem:[%s688 + $0x18] sm:$0xf]
      %v696 = vld [vmem:[%s688 + $0x1c] sm:$0x7]
      %v697 = vld [vmem:[%s688 + $0x20] sm:$0xf]
      %v698 = vld [vmem:[%s688 + $0x24] sm:$0x7]
      %v699 = vld [vmem:[%s688 + $0x28] sm:$0xf]
      %v700 = vld [vmem:[%s688 + $0x2c] sm:$0x7]
      %v701 = vld [vmem:[%s688 + $0x30] sm:$0xf]
      %v702 = vld [vmem:[%s688 + $0x34] sm:$0x7]
      %v703 = vld [vmem:[%s688 + $0x38] sm:$0xf]
      %v704 = vld [vmem:[%s688 + $0x3c] sm:$0x7]
      %v705 = vld [vmem:[%s688 + $0x40] sm:$0xf]
      %v706 = vld [vmem:[%s688 + $0x44] sm:$0x7]
      %v707 = vld [vmem:[%s688 + $0x48] sm:$0xf]
      %v708 = vld [vmem:[%s688 + $0x4c] sm:$0x7]
      %v709 = vld [vmem:[%s688 + $0x50] sm:$0xf]
      %v710 = vld [vmem:[%s688 + $0x54] sm:$0x7]
      %v711 = vld [vmem:[%s688 + $0x58] sm:$0xf]
      %v712 = vld [vmem:[%s688 + $0x5c] sm:$0x7]
      %v713 = vld [vmem:[%s688 + $0x60] sm:$0xf]
      %v714 = vld [vmem:[%s688 + $0x64] sm:$0x7]
      %v715 = vld [vmem:[%s688 + $0x68] sm:$0xf]
      %v716 = vld [vmem:[%s688 + $0x6c] sm:$0x7]
      %s717 = sadd.s32 %s341, 4
      %s718 = sld [smem:[#allocation3 + %s717]]
      %p720 = scmp.ne.f32.partialorder %s718, %s718
      %s721 = sshrl.u32 %s718, 16
      %s722 = sand.u32 %s721, 1
      %s723 = sadd.s32 32767, %s722
      %s724 = sadd.s32 %s718, %s723
      %s725 = sand.u32 %s724, 4294901760
      %s726 = scalar_select %p720, 2143289344, %s725
      %s728 = sshrl.u32 %s726, 16
      %s729 = sshll.u32 %s728, 16
      %s730 = sor.u32 %s728, %s729
      %v731 = vstv %s730
      %v733 = vmul.bf16 %v689, %v731
      %v734 = vmul.bf16 %v690, %v731
      %v735 = vmul.bf16 %v691, %v731
      %v736 = vmul.bf16 %v692, %v731
      %v737 = vmul.bf16 %v693, %v731
      %v738 = vmul.bf16 %v694, %v731
      %v739 = vmul.bf16 %v695, %v731
      %v740 = vmul.bf16 %v696, %v731
      %v741 = vmul.bf16 %v697, %v731
      %v742 = vmul.bf16 %v698, %v731
      %v743 = vmul.bf16 %v699, %v731
      %v744 = vmul.bf16 %v700, %v731
      %v745 = vmul.bf16 %v701, %v731
      %v746 = vmul.bf16 %v702, %v731
      %v747 = vmul.bf16 %v703, %v731
      %v748 = vmul.bf16 %v704, %v731
      %v749 = vmul.bf16 %v705, %v731
      %v750 = vmul.bf16 %v706, %v731
      %v751 = vmul.bf16 %v707, %v731
      %v752 = vmul.bf16 %v708, %v731
      %v753 = vmul.bf16 %v709, %v731
      %v754 = vmul.bf16 %v710, %v731
      %v755 = vmul.bf16 %v711, %v731
      %v756 = vmul.bf16 %v712, %v731
      %v757 = vmul.bf16 %v713, %v731
      %v758 = vmul.bf16 %v714, %v731
      %v759 = vmul.bf16 %v715, %v731
      %v760 = vmul.bf16 %v716, %v731
      %v761 = vadd.bf16 %v660, %v733
      %v762 = vadd.bf16 %v661, %v734
      %v763 = vadd.bf16 %v662, %v735
      %v764 = vadd.bf16 %v663, %v736
      %v765 = vadd.bf16 %v664, %v737
      %v766 = vadd.bf16 %v665, %v738
      %v767 = vadd.bf16 %v666, %v739
      %v768 = vadd.bf16 %v667, %v740
      %v769 = vadd.bf16 %v668, %v741
      %v770 = vadd.bf16 %v669, %v742
      %v771 = vadd.bf16 %v670, %v743
      %v772 = vadd.bf16 %v671, %v744
      %v773 = vadd.bf16 %v672, %v745
      %v774 = vadd.bf16 %v673, %v746
      %v775 = vadd.bf16 %v674, %v747
      %v776 = vadd.bf16 %v675, %v748
      %v777 = vadd.bf16 %v676, %v749
      %v778 = vadd.bf16 %v677, %v750
      %v779 = vadd.bf16 %v678, %v751
      %v780 = vadd.bf16 %v679, %v752
      %v781 = vadd.bf16 %v680, %v753
      %v782 = vadd.bf16 %v681, %v754
      %v783 = vadd.bf16 %v682, %v755
      %v784 = vadd.bf16 %v683, %v756
      %v785 = vadd.bf16 %v684, %v757
      %v786 = vadd.bf16 %v685, %v758
      %v787 = vadd.bf16 %v686, %v759
      %v788 = vadd.bf16 %v687, %v760
      %s789 = scalar_lea.vmem %s0, 600
      %v790 = vld [vmem:[%s789] sm:$0xf]
      %v791 = vld [vmem:[%s789 + $0x4] sm:$0x7]
      %v792 = vld [vmem:[%s789 + $0x8] sm:$0xf]
      %v793 = vld [vmem:[%s789 + $0xc] sm:$0x7]
      %v794 = vld [vmem:[%s789 + $0x10] sm:$0xf]
      %v795 = vld [vmem:[%s789 + $0x14] sm:$0x7]
      %v796 = vld [vmem:[%s789 + $0x18] sm:$0xf]
      %v797 = vld [vmem:[%s789 + $0x1c] sm:$0x7]
      %v798 = vld [vmem:[%s789 + $0x20] sm:$0xf]
      %v799 = vld [vmem:[%s789 + $0x24] sm:$0x7]
      %v800 = vld [vmem:[%s789 + $0x28] sm:$0xf]
      %v801 = vld [vmem:[%s789 + $0x2c] sm:$0x7]
      %v802 = vld [vmem:[%s789 + $0x30] sm:$0xf]
      %v803 = vld [vmem:[%s789 + $0x34] sm:$0x7]
      %v804 = vld [vmem:[%s789 + $0x38] sm:$0xf]
      %v805 = vld [vmem:[%s789 + $0x3c] sm:$0x7]
      %v806 = vld [vmem:[%s789 + $0x40] sm:$0xf]
      %v807 = vld [vmem:[%s789 + $0x44] sm:$0x7]
      %v808 = vld [vmem:[%s789 + $0x48] sm:$0xf]
      %v809 = vld [vmem:[%s789 + $0x4c] sm:$0x7]
      %v810 = vld [vmem:[%s789 + $0x50] sm:$0xf]
      %v811 = vld [vmem:[%s789 + $0x54] sm:$0x7]
      %v812 = vld [vmem:[%s789 + $0x58] sm:$0xf]
      %v813 = vld [vmem:[%s789 + $0x5c] sm:$0x7]
      %v814 = vld [vmem:[%s789 + $0x60] sm:$0xf]
      %v815 = vld [vmem:[%s789 + $0x64] sm:$0x7]
      %v816 = vld [vmem:[%s789 + $0x68] sm:$0xf]
      %v817 = vld [vmem:[%s789 + $0x6c] sm:$0x7]
      %s818 = sadd.s32 %s341, 5
      %s819 = sld [smem:[#allocation3 + %s818]]
      %p821 = scmp.ne.f32.partialorder %s819, %s819
      %s822 = sshrl.u32 %s819, 16
      %s823 = sand.u32 %s822, 1
      %s824 = sadd.s32 32767, %s823
      %s825 = sadd.s32 %s819, %s824
      %s826 = sand.u32 %s825, 4294901760
      %s827 = scalar_select %p821, 2143289344, %s826
      %s829 = sshrl.u32 %s827, 16
      %s830 = sshll.u32 %s829, 16
      %s831 = sor.u32 %s829, %s830
      %v832 = vstv %s831
      %v834 = vmul.bf16 %v790, %v832
      %v835 = vmul.bf16 %v791, %v832
      %v836 = vmul.bf16 %v792, %v832
      %v837 = vmul.bf16 %v793, %v832
      %v838 = vmul.bf16 %v794, %v832
      %v839 = vmul.bf16 %v795, %v832
      %v840 = vmul.bf16 %v796, %v832
      %v841 = vmul.bf16 %v797, %v832
      %v842 = vmul.bf16 %v798, %v832
      %v843 = vmul.bf16 %v799, %v832
      %v844 = vmul.bf16 %v800, %v832
      %v845 = vmul.bf16 %v801, %v832
      %v846 = vmul.bf16 %v802, %v832
      %v847 = vmul.bf16 %v803, %v832
      %v848 = vmul.bf16 %v804, %v832
      %v849 = vmul.bf16 %v805, %v832
      %v850 = vmul.bf16 %v806, %v832
      %v851 = vmul.bf16 %v807, %v832
      %v852 = vmul.bf16 %v808, %v832
      %v853 = vmul.bf16 %v809, %v832
      %v854 = vmul.bf16 %v810, %v832
      %v855 = vmul.bf16 %v811, %v832
      %v856 = vmul.bf16 %v812, %v832
      %v857 = vmul.bf16 %v813, %v832
      %v858 = vmul.bf16 %v814, %v832
      %v859 = vmul.bf16 %v815, %v832
      %v860 = vmul.bf16 %v816, %v832
      %v861 = vmul.bf16 %v817, %v832
      %v862 = vadd.bf16 %v761, %v834
      %v863 = vadd.bf16 %v762, %v835
      %v864 = vadd.bf16 %v763, %v836
      %v865 = vadd.bf16 %v764, %v837
      %v866 = vadd.bf16 %v765, %v838
      %v867 = vadd.bf16 %v766, %v839
      %v868 = vadd.bf16 %v767, %v840
      %v869 = vadd.bf16 %v768, %v841
      %v870 = vadd.bf16 %v769, %v842
      %v871 = vadd.bf16 %v770, %v843
      %v872 = vadd.bf16 %v771, %v844
      %v873 = vadd.bf16 %v772, %v845
      %v874 = vadd.bf16 %v773, %v846
      %v875 = vadd.bf16 %v774, %v847
      %v876 = vadd.bf16 %v775, %v848
      %v877 = vadd.bf16 %v776, %v849
      %v878 = vadd.bf16 %v777, %v850
      %v879 = vadd.bf16 %v778, %v851
      %v880 = vadd.bf16 %v779, %v852
      %v881 = vadd.bf16 %v780, %v853
      %v882 = vadd.bf16 %v781, %v854
      %v883 = vadd.bf16 %v782, %v855
      %v884 = vadd.bf16 %v783, %v856
      %v885 = vadd.bf16 %v784, %v857
      %v886 = vadd.bf16 %v785, %v858
      %v887 = vadd.bf16 %v786, %v859
      %v888 = vadd.bf16 %v787, %v860
      %v889 = vadd.bf16 %v788, %v861
      %s890 = scalar_lea.vmem %s0, 8
      %v891 = vld [vmem:[%s890] sm:$0xf]
      %v892 = vld [vmem:[%s890 + $0x4] sm:$0x7]
      %v893 = vld [vmem:[%s890 + $0x8] sm:$0xf]
      %v894 = vld [vmem:[%s890 + $0xc] sm:$0x7]
      %v895 = vld [vmem:[%s890 + $0x10] sm:$0xf]
      %v896 = vld [vmem:[%s890 + $0x14] sm:$0x7]
      %v897 = vld [vmem:[%s890 + $0x18] sm:$0xf]
      %v898 = vld [vmem:[%s890 + $0x1c] sm:$0x7]
      %v899 = vld [vmem:[%s890 + $0x20] sm:$0xf]
      %v900 = vld [vmem:[%s890 + $0x24] sm:$0x7]
      %v901 = vld [vmem:[%s890 + $0x28] sm:$0xf]
      %v902 = vld [vmem:[%s890 + $0x2c] sm:$0x7]
      %v903 = vld [vmem:[%s890 + $0x30] sm:$0xf]
      %v904 = vld [vmem:[%s890 + $0x34] sm:$0x7]
      %v905 = vld [vmem:[%s890 + $0x38] sm:$0xf]
      %v906 = vld [vmem:[%s890 + $0x3c] sm:$0x7]
      %v907 = vld [vmem:[%s890 + $0x40] sm:$0xf]
      %v908 = vld [vmem:[%s890 + $0x44] sm:$0x7]
      %v909 = vld [vmem:[%s890 + $0x48] sm:$0xf]
      %v910 = vld [vmem:[%s890 + $0x4c] sm:$0x7]
      %v911 = vld [vmem:[%s890 + $0x50] sm:$0xf]
      %v912 = vld [vmem:[%s890 + $0x54] sm:$0x7]
      %v913 = vld [vmem:[%s890 + $0x58] sm:$0xf]
      %v914 = vld [vmem:[%s890 + $0x5c] sm:$0x7]
      %v915 = vld [vmem:[%s890 + $0x60] sm:$0xf]
      %v916 = vld [vmem:[%s890 + $0x64] sm:$0x7]
      %v917 = vld [vmem:[%s890 + $0x68] sm:$0xf]
      %v918 = vld [vmem:[%s890 + $0x6c] sm:$0x7]
      %s919 = sadd.s32 %s341, 6
      %s920 = sld [smem:[#allocation3 + %s919]]
      %p922 = scmp.ne.f32.partialorder %s920, %s920
      %s923 = sshrl.u32 %s920, 16
      %s924 = sand.u32 %s923, 1
      %s925 = sadd.s32 32767, %s924
      %s926 = sadd.s32 %s920, %s925
      %s927 = sand.u32 %s926, 4294901760
      %s928 = scalar_select %p922, 2143289344, %s927
      %s930 = sshrl.u32 %s928, 16
      %s931 = sshll.u32 %s930, 16
      %s932 = sor.u32 %s930, %s931
      %v933 = vstv %s932
      %v935 = vmul.bf16 %v891, %v933
      %v936 = vmul.bf16 %v892, %v933
      %v937 = vmul.bf16 %v893, %v933
      %v938 = vmul.bf16 %v894, %v933
      %v939 = vmul.bf16 %v895, %v933
      %v940 = vmul.bf16 %v896, %v933
      %v941 = vmul.bf16 %v897, %v933
      %v942 = vmul.bf16 %v898, %v933
      %v943 = vmul.bf16 %v899, %v933
      %v944 = vmul.bf16 %v900, %v933
      %v945 = vmul.bf16 %v901, %v933
      %v946 = vmul.bf16 %v902, %v933
      %v947 = vmul.bf16 %v903, %v933
      %v948 = vmul.bf16 %v904, %v933
      %v949 = vmul.bf16 %v905, %v933
      %v950 = vmul.bf16 %v906, %v933
      %v951 = vmul.bf16 %v907, %v933
      %v952 = vmul.bf16 %v908, %v933
      %v953 = vmul.bf16 %v909, %v933
      %v954 = vmul.bf16 %v910, %v933
      %v955 = vmul.bf16 %v911, %v933
      %v956 = vmul.bf16 %v912, %v933
      %v957 = vmul.bf16 %v913, %v933
      %v958 = vmul.bf16 %v914, %v933
      %v959 = vmul.bf16 %v915, %v933
      %v960 = vmul.bf16 %v916, %v933
      %v961 = vmul.bf16 %v917, %v933
      %v962 = vmul.bf16 %v918, %v933
      %v963 = vadd.bf16 %v862, %v935
      %v964 = vadd.bf16 %v863, %v936
      %v965 = vadd.bf16 %v864, %v937
      %v966 = vadd.bf16 %v865, %v938
      %v967 = vadd.bf16 %v866, %v939
      %v968 = vadd.bf16 %v867, %v940
      %v969 = vadd.bf16 %v868, %v941
      %v970 = vadd.bf16 %v869, %v942
      %v971 = vadd.bf16 %v870, %v943
      %v972 = vadd.bf16 %v871, %v944
      %v973 = vadd.bf16 %v872, %v945
      %v974 = vadd.bf16 %v873, %v946
      %v975 = vadd.bf16 %v874, %v947
      %v976 = vadd.bf16 %v875, %v948
      %v977 = vadd.bf16 %v876, %v949
      %v978 = vadd.bf16 %v877, %v950
      %v979 = vadd.bf16 %v878, %v951
      %v980 = vadd.bf16 %v879, %v952
      %v981 = vadd.bf16 %v880, %v953
      %v982 = vadd.bf16 %v881, %v954
      %v983 = vadd.bf16 %v882, %v955
      %v984 = vadd.bf16 %v883, %v956
      %v985 = vadd.bf16 %v884, %v957
      %v986 = vadd.bf16 %v885, %v958
      %v987 = vadd.bf16 %v886, %v959
      %v988 = vadd.bf16 %v887, %v960
      %v989 = vadd.bf16 %v888, %v961
      %v990 = vadd.bf16 %v889, %v962
      %s991 = scalar_lea.vmem %s0, 248
      %v992 = vld [vmem:[%s991] sm:$0xf]
      %v993 = vld [vmem:[%s991 + $0x4] sm:$0x7]
      %v994 = vld [vmem:[%s991 + $0x8] sm:$0xf]
      %v995 = vld [vmem:[%s991 + $0xc] sm:$0x7]
      %v996 = vld [vmem:[%s991 + $0x10] sm:$0xf]
      %v997 = vld [vmem:[%s991 + $0x14] sm:$0x7]
      %v998 = vld [vmem:[%s991 + $0x18] sm:$0xf]
      %v999 = vld [vmem:[%s991 + $0x1c] sm:$0x7]
      %v1000 = vld [vmem:[%s991 + $0x20] sm:$0xf]
      %v1001 = vld [vmem:[%s991 + $0x24] sm:$0x7]
      %v1002 = vld [vmem:[%s991 + $0x28] sm:$0xf]
      %v1003 = vld [vmem:[%s991 + $0x2c] sm:$0x7]
      %v1004 = vld [vmem:[%s991 + $0x30] sm:$0xf]
      %v1005 = vld [vmem:[%s991 + $0x34] sm:$0x7]
      %v1006 = vld [vmem:[%s991 + $0x38] sm:$0xf]
      %v1007 = vld [vmem:[%s991 + $0x3c] sm:$0x7]
      %v1008 = vld [vmem:[%s991 + $0x40] sm:$0xf]
      %v1009 = vld [vmem:[%s991 + $0x44] sm:$0x7]
      %v1010 = vld [vmem:[%s991 + $0x48] sm:$0xf]
      %v1011 = vld [vmem:[%s991 + $0x4c] sm:$0x7]
      %v1012 = vld [vmem:[%s991 + $0x50] sm:$0xf]
      %v1013 = vld [vmem:[%s991 + $0x54] sm:$0x7]
      %v1014 = vld [vmem:[%s991 + $0x58] sm:$0xf]
      %v1015 = vld [vmem:[%s991 + $0x5c] sm:$0x7]
      %v1016 = vld [vmem:[%s991 + $0x60] sm:$0xf]
      %v1017 = vld [vmem:[%s991 + $0x64] sm:$0x7]
      %v1018 = vld [vmem:[%s991 + $0x68] sm:$0xf]
      %v1019 = vld [vmem:[%s991 + $0x6c] sm:$0x7]
      %s1020 = sadd.s32 %s341, 7
      %s1021 = sld [smem:[#allocation3 + %s1020]]
      %p1023 = scmp.ne.f32.partialorder %s1021, %s1021
      %s1024 = sshrl.u32 %s1021, 16
      %s1025 = sand.u32 %s1024, 1
      %s1026 = sadd.s32 32767, %s1025
      %s1027 = sadd.s32 %s1021, %s1026
      %s1028 = sand.u32 %s1027, 4294901760
      %s1029 = scalar_select %p1023, 2143289344, %s1028
      %s1031 = sshrl.u32 %s1029, 16
      %s1032 = sshll.u32 %s1031, 16
      %s1033 = sor.u32 %s1031, %s1032
      %v1034 = vstv %s1033
      %v1036 = vmul.bf16 %v992, %v1034
      %v1037 = vmul.bf16 %v993, %v1034
      %v1038 = vmul.bf16 %v994, %v1034
      %v1039 = vmul.bf16 %v995, %v1034
      %v1040 = vmul.bf16 %v996, %v1034
      %v1041 = vmul.bf16 %v997, %v1034
      %v1042 = vmul.bf16 %v998, %v1034
      %v1043 = vmul.bf16 %v999, %v1034
      %v1044 = vmul.bf16 %v1000, %v1034
      %v1045 = vmul.bf16 %v1001, %v1034
      %v1046 = vmul.bf16 %v1002, %v1034
      %v1047 = vmul.bf16 %v1003, %v1034
      %v1048 = vmul.bf16 %v1004, %v1034
      %v1049 = vmul.bf16 %v1005, %v1034
      %v1050 = vmul.bf16 %v1006, %v1034
      %v1051 = vmul.bf16 %v1007, %v1034
      %v1052 = vmul.bf16 %v1008, %v1034
      %v1053 = vmul.bf16 %v1009, %v1034
      %v1054 = vmul.bf16 %v1010, %v1034
      %v1055 = vmul.bf16 %v1011, %v1034
      %v1056 = vmul.bf16 %v1012, %v1034
      %v1057 = vmul.bf16 %v1013, %v1034
      %v1058 = vmul.bf16 %v1014, %v1034
      %v1059 = vmul.bf16 %v1015, %v1034
      %v1060 = vmul.bf16 %v1016, %v1034
      %v1061 = vmul.bf16 %v1017, %v1034
      %v1062 = vmul.bf16 %v1018, %v1034
      %v1063 = vmul.bf16 %v1019, %v1034
      %v1064 = vadd.bf16 %v963, %v1036
      %v1065 = vadd.bf16 %v964, %v1037
      %v1066 = vadd.bf16 %v965, %v1038
      %v1067 = vadd.bf16 %v966, %v1039
      %v1068 = vadd.bf16 %v967, %v1040
      %v1069 = vadd.bf16 %v968, %v1041
      %v1070 = vadd.bf16 %v969, %v1042
      %v1071 = vadd.bf16 %v970, %v1043
      %v1072 = vadd.bf16 %v971, %v1044
      %v1073 = vadd.bf16 %v972, %v1045
      %v1074 = vadd.bf16 %v973, %v1046
      %v1075 = vadd.bf16 %v974, %v1047
      %v1076 = vadd.bf16 %v975, %v1048
      %v1077 = vadd.bf16 %v976, %v1049
      %v1078 = vadd.bf16 %v977, %v1050
      %v1079 = vadd.bf16 %v978, %v1051
      %v1080 = vadd.bf16 %v979, %v1052
      %v1081 = vadd.bf16 %v980, %v1053
      %v1082 = vadd.bf16 %v981, %v1054
      %v1083 = vadd.bf16 %v982, %v1055
      %v1084 = vadd.bf16 %v983, %v1056
      %v1085 = vadd.bf16 %v984, %v1057
      %v1086 = vadd.bf16 %v985, %v1058
      %v1087 = vadd.bf16 %v986, %v1059
      %v1088 = vadd.bf16 %v987, %v1060
      %v1089 = vadd.bf16 %v988, %v1061
      %v1090 = vadd.bf16 %v989, %v1062
      %v1091 = vadd.bf16 %v990, %v1063
      %s1092 = scalar_lea.vmem %s0, 488
      %v1093 = vld [vmem:[%s1092] sm:$0xf]
      %v1094 = vld [vmem:[%s1092 + $0x4] sm:$0x7]
      %v1095 = vld [vmem:[%s1092 + $0x8] sm:$0xf]
      %v1096 = vld [vmem:[%s1092 + $0xc] sm:$0x7]
      %v1097 = vld [vmem:[%s1092 + $0x10] sm:$0xf]
      %v1098 = vld [vmem:[%s1092 + $0x14] sm:$0x7]
      %v1099 = vld [vmem:[%s1092 + $0x18] sm:$0xf]
      %v1100 = vld [vmem:[%s1092 + $0x1c] sm:$0x7]
      %v1101 = vld [vmem:[%s1092 + $0x20] sm:$0xf]
      %v1102 = vld [vmem:[%s1092 + $0x24] sm:$0x7]
      %v1103 = vld [vmem:[%s1092 + $0x28] sm:$0xf]
      %v1104 = vld [vmem:[%s1092 + $0x2c] sm:$0x7]
      %v1105 = vld [vmem:[%s1092 + $0x30] sm:$0xf]
      %v1106 = vld [vmem:[%s1092 + $0x34] sm:$0x7]
      %v1107 = vld [vmem:[%s1092 + $0x38] sm:$0xf]
      %v1108 = vld [vmem:[%s1092 + $0x3c] sm:$0x7]
      %v1109 = vld [vmem:[%s1092 + $0x40] sm:$0xf]
      %v1110 = vld [vmem:[%s1092 + $0x44] sm:$0x7]
      %v1111 = vld [vmem:[%s1092 + $0x48] sm:$0xf]
      %v1112 = vld [vmem:[%s1092 + $0x4c] sm:$0x7]
      %v1113 = vld [vmem:[%s1092 + $0x50] sm:$0xf]
      %v1114 = vld [vmem:[%s1092 + $0x54] sm:$0x7]
      %v1115 = vld [vmem:[%s1092 + $0x58] sm:$0xf]
      %v1116 = vld [vmem:[%s1092 + $0x5c] sm:$0x7]
      %v1117 = vld [vmem:[%s1092 + $0x60] sm:$0xf]
      %v1118 = vld [vmem:[%s1092 + $0x64] sm:$0x7]
      %v1119 = vld [vmem:[%s1092 + $0x68] sm:$0xf]
      %v1120 = vld [vmem:[%s1092 + $0x6c] sm:$0x7]
      %s1121 = sadd.s32 %s341, 8
      %s1122 = sld [smem:[#allocation3 + %s1121]]
      %p1124 = scmp.ne.f32.partialorder %s1122, %s1122
      %s1125 = sshrl.u32 %s1122, 16
      %s1126 = sand.u32 %s1125, 1
      %s1127 = sadd.s32 32767, %s1126
      %s1128 = sadd.s32 %s1122, %s1127
      %s1129 = sand.u32 %s1128, 4294901760
      %s1130 = scalar_select %p1124, 2143289344, %s1129
      %s1132 = sshrl.u32 %s1130, 16
      %s1133 = sshll.u32 %s1132, 16
      %s1134 = sor.u32 %s1132, %s1133
      %v1135 = vstv %s1134
      %v1137 = vmul.bf16 %v1093, %v1135
      %v1138 = vmul.bf16 %v1094, %v1135
      %v1139 = vmul.bf16 %v1095, %v1135
      %v1140 = vmul.bf16 %v1096, %v1135
      %v1141 = vmul.bf16 %v1097, %v1135
      %v1142 = vmul.bf16 %v1098, %v1135
      %v1143 = vmul.bf16 %v1099, %v1135
      %v1144 = vmul.bf16 %v1100, %v1135
      %v1145 = vmul.bf16 %v1101, %v1135
      %v1146 = vmul.bf16 %v1102, %v1135
      %v1147 = vmul.bf16 %v1103, %v1135
      %v1148 = vmul.bf16 %v1104, %v1135
      %v1149 = vmul.bf16 %v1105, %v1135
      %v1150 = vmul.bf16 %v1106, %v1135
      %v1151 = vmul.bf16 %v1107, %v1135
      %v1152 = vmul.bf16 %v1108, %v1135
      %v1153 = vmul.bf16 %v1109, %v1135
      %v1154 = vmul.bf16 %v1110, %v1135
      %v1155 = vmul.bf16 %v1111, %v1135
      %v1156 = vmul.bf16 %v1112, %v1135
      %v1157 = vmul.bf16 %v1113, %v1135
      %v1158 = vmul.bf16 %v1114, %v1135
      %v1159 = vmul.bf16 %v1115, %v1135
      %v1160 = vmul.bf16 %v1116, %v1135
      %v1161 = vmul.bf16 %v1117, %v1135
      %v1162 = vmul.bf16 %v1118, %v1135
      %v1163 = vmul.bf16 %v1119, %v1135
      %v1164 = vmul.bf16 %v1120, %v1135
      %v1165 = vadd.bf16 %v1064, %v1137
      %v1166 = vadd.bf16 %v1065, %v1138
      %v1167 = vadd.bf16 %v1066, %v1139
      %v1168 = vadd.bf16 %v1067, %v1140
      %v1169 = vadd.bf16 %v1068, %v1141
      %v1170 = vadd.bf16 %v1069, %v1142
      %v1171 = vadd.bf16 %v1070, %v1143
      %v1172 = vadd.bf16 %v1071, %v1144
      %v1173 = vadd.bf16 %v1072, %v1145
      %v1174 = vadd.bf16 %v1073, %v1146
      %v1175 = vadd.bf16 %v1074, %v1147
      %v1176 = vadd.bf16 %v1075, %v1148
      %v1177 = vadd.bf16 %v1076, %v1149
      %v1178 = vadd.bf16 %v1077, %v1150
      %v1179 = vadd.bf16 %v1078, %v1151
      %v1180 = vadd.bf16 %v1079, %v1152
      %v1181 = vadd.bf16 %v1080, %v1153
      %v1182 = vadd.bf16 %v1081, %v1154
      %v1183 = vadd.bf16 %v1082, %v1155
      %v1184 = vadd.bf16 %v1083, %v1156
      %v1185 = vadd.bf16 %v1084, %v1157
      %v1186 = vadd.bf16 %v1085, %v1158
      %v1187 = vadd.bf16 %v1086, %v1159
      %v1188 = vadd.bf16 %v1087, %v1160
      %v1189 = vadd.bf16 %v1088, %v1161
      %v1190 = vadd.bf16 %v1089, %v1162
      %v1191 = vadd.bf16 %v1090, %v1163
      %v1192 = vadd.bf16 %v1091, %v1164
      %v1193 = vmul.bf16 %v386, %v355
      %v1194 = vmul.bf16 %v387, %v355
      %v1195 = vmul.bf16 %v388, %v355
      %v1196 = vmul.bf16 %v389, %v355
      %v1197 = vmul.bf16 %v390, %v355
      %v1198 = vmul.bf16 %v391, %v355
      %v1199 = vmul.bf16 %v392, %v355
      %v1200 = vmul.bf16 %v393, %v355
      %v1201 = vmul.bf16 %v394, %v355
      %v1202 = vmul.bf16 %v395, %v355
      %v1203 = vmul.bf16 %v396, %v355
      %v1204 = vmul.bf16 %v397, %v355
      %v1205 = vmul.bf16 %v398, %v355
      %v1206 = vmul.bf16 %v399, %v355
      %v1207 = vmul.bf16 %v400, %v355
      %v1208 = vmul.bf16 %v401, %v355
      %v1209 = vmul.bf16 %v402, %v355
      %v1210 = vmul.bf16 %v403, %v355
      %v1211 = vmul.bf16 %v404, %v355
      %v1212 = vmul.bf16 %v405, %v355
      %v1213 = vmul.bf16 %v406, %v355
      %v1214 = vmul.bf16 %v407, %v355
      %v1215 = vmul.bf16 %v408, %v355
      %v1216 = vmul.bf16 %v409, %v355
      %v1217 = vmul.bf16 %v410, %v355
      %v1218 = vmul.bf16 %v411, %v355
      %v1219 = vmul.bf16 %v412, %v355
      %v1220 = vmul.bf16 %v413, %v355
      %v1221 = vmul.bf16 %v487, %v428
      %v1222 = vmul.bf16 %v488, %v428
      %v1223 = vmul.bf16 %v489, %v428
      %v1224 = vmul.bf16 %v490, %v428
      %v1225 = vmul.bf16 %v491, %v428
      %v1226 = vmul.bf16 %v492, %v428
      %v1227 = vmul.bf16 %v493, %v428
      %v1228 = vmul.bf16 %v494, %v428
      %v1229 = vmul.bf16 %v495, %v428
      %v1230 = vmul.bf16 %v496, %v428
      %v1231 = vmul.bf16 %v497, %v428
      %v1232 = vmul.bf16 %v498, %v428
      %v1233 = vmul.bf16 %v499, %v428
      %v1234 = vmul.bf16 %v500, %v428
      %v1235 = vmul.bf16 %v501, %v428
      %v1236 = vmul.bf16 %v502, %v428
      %v1237 = vmul.bf16 %v503, %v428
      %v1238 = vmul.bf16 %v504, %v428
      %v1239 = vmul.bf16 %v505, %v428
      %v1240 = vmul.bf16 %v506, %v428
      %v1241 = vmul.bf16 %v507, %v428
      %v1242 = vmul.bf16 %v508, %v428
      %v1243 = vmul.bf16 %v509, %v428
      %v1244 = vmul.bf16 %v510, %v428
      %v1245 = vmul.bf16 %v511, %v428
      %v1246 = vmul.bf16 %v512, %v428
      %v1247 = vmul.bf16 %v513, %v428
      %v1248 = vmul.bf16 %v514, %v428
      %v1249 = vadd.bf16 %v1193, %v1221
      %v1250 = vadd.bf16 %v1194, %v1222
      %v1251 = vadd.bf16 %v1195, %v1223
      %v1252 = vadd.bf16 %v1196, %v1224
      %v1253 = vadd.bf16 %v1197, %v1225
      %v1254 = vadd.bf16 %v1198, %v1226
      %v1255 = vadd.bf16 %v1199, %v1227
      %v1256 = vadd.bf16 %v1200, %v1228
      %v1257 = vadd.bf16 %v1201, %v1229
      %v1258 = vadd.bf16 %v1202, %v1230
      %v1259 = vadd.bf16 %v1203, %v1231
      %v1260 = vadd.bf16 %v1204, %v1232
      %v1261 = vadd.bf16 %v1205, %v1233
      %v1262 = vadd.bf16 %v1206, %v1234
      %v1263 = vadd.bf16 %v1207, %v1235
      %v1264 = vadd.bf16 %v1208, %v1236
      %v1265 = vadd.bf16 %v1209, %v1237
      %v1266 = vadd.bf16 %v1210, %v1238
      %v1267 = vadd.bf16 %v1211, %v1239
      %v1268 = vadd.bf16 %v1212, %v1240
      %v1269 = vadd.bf16 %v1213, %v1241
      %v1270 = vadd.bf16 %v1214, %v1242
      %v1271 = vadd.bf16 %v1215, %v1243
      %v1272 = vadd.bf16 %v1216, %v1244
      %v1273 = vadd.bf16 %v1217, %v1245
      %v1274 = vadd.bf16 %v1218, %v1246
      %v1275 = vadd.bf16 %v1219, %v1247
      %v1276 = vadd.bf16 %v1220, %v1248
      %s1277 = scalar_lea.vmem %s0, 720
      %v1278 = vld [vmem:[%s1277] sm:$0xf]
      %v1279 = vld [vmem:[%s1277 + $0x4] sm:$0x7]
      %v1280 = vld [vmem:[%s1277 + $0x8] sm:$0xf]
      %v1281 = vld [vmem:[%s1277 + $0xc] sm:$0x7]
      %v1282 = vld [vmem:[%s1277 + $0x10] sm:$0xf]
      %v1283 = vld [vmem:[%s1277 + $0x14] sm:$0x7]
      %v1284 = vld [vmem:[%s1277 + $0x18] sm:$0xf]
      %v1285 = vld [vmem:[%s1277 + $0x1c] sm:$0x7]
      %v1286 = vld [vmem:[%s1277 + $0x20] sm:$0xf]
      %v1287 = vld [vmem:[%s1277 + $0x24] sm:$0x7]
      %v1288 = vld [vmem:[%s1277 + $0x28] sm:$0xf]
      %v1289 = vld [vmem:[%s1277 + $0x2c] sm:$0x7]
      %v1290 = vld [vmem:[%s1277 + $0x30] sm:$0xf]
      %v1291 = vld [vmem:[%s1277 + $0x34] sm:$0x7]
      %v1292 = vld [vmem:[%s1277 + $0x38] sm:$0xf]
      %v1293 = vld [vmem:[%s1277 + $0x3c] sm:$0x7]
      %v1294 = vld [vmem:[%s1277 + $0x40] sm:$0xf]
      %v1295 = vld [vmem:[%s1277 + $0x44] sm:$0x7]
      %v1296 = vld [vmem:[%s1277 + $0x48] sm:$0xf]
      %v1297 = vld [vmem:[%s1277 + $0x4c] sm:$0x7]
      %v1298 = vld [vmem:[%s1277 + $0x50] sm:$0xf]
      %v1299 = vld [vmem:[%s1277 + $0x54] sm:$0x7]
      %v1300 = vld [vmem:[%s1277 + $0x58] sm:$0xf]
      %v1301 = vld [vmem:[%s1277 + $0x5c] sm:$0x7]
      %v1302 = vld [vmem:[%s1277 + $0x60] sm:$0xf]
      %v1303 = vld [vmem:[%s1277 + $0x64] sm:$0x7]
      %v1304 = vld [vmem:[%s1277 + $0x68] sm:$0xf]
      %v1305 = vld [vmem:[%s1277 + $0x6c] sm:$0x7]
      %v1306 = vmul.bf16 %v1278, %v529
      %v1307 = vmul.bf16 %v1279, %v529
      %v1308 = vmul.bf16 %v1280, %v529
      %v1309 = vmul.bf16 %v1281, %v529
      %v1310 = vmul.bf16 %v1282, %v529
      %v1311 = vmul.bf16 %v1283, %v529
      %v1312 = vmul.bf16 %v1284, %v529
      %v1313 = vmul.bf16 %v1285, %v529
      %v1314 = vmul.bf16 %v1286, %v529
      %v1315 = vmul.bf16 %v1287, %v529
      %v1316 = vmul.bf16 %v1288, %v529
      %v1317 = vmul.bf16 %v1289, %v529
      %v1318 = vmul.bf16 %v1290, %v529
      %v1319 = vmul.bf16 %v1291, %v529
      %v1320 = vmul.bf16 %v1292, %v529
      %v1321 = vmul.bf16 %v1293, %v529
      %v1322 = vmul.bf16 %v1294, %v529
      %v1323 = vmul.bf16 %v1295, %v529
      %v1324 = vmul.bf16 %v1296, %v529
      %v1325 = vmul.bf16 %v1297, %v529
      %v1326 = vmul.bf16 %v1298, %v529
      %v1327 = vmul.bf16 %v1299, %v529
      %v1328 = vmul.bf16 %v1300, %v529
      %v1329 = vmul.bf16 %v1301, %v529
      %v1330 = vmul.bf16 %v1302, %v529
      %v1331 = vmul.bf16 %v1303, %v529
      %v1332 = vmul.bf16 %v1304, %v529
      %v1333 = vmul.bf16 %v1305, %v529
      %v1334 = vadd.bf16 %v1249, %v1306
      %v1335 = vadd.bf16 %v1250, %v1307
      %v1336 = vadd.bf16 %v1251, %v1308
      %v1337 = vadd.bf16 %v1252, %v1309
      %v1338 = vadd.bf16 %v1253, %v1310
      %v1339 = vadd.bf16 %v1254, %v1311
      %v1340 = vadd.bf16 %v1255, %v1312
      %v1341 = vadd.bf16 %v1256, %v1313
      %v1342 = vadd.bf16 %v1257, %v1314
      %v1343 = vadd.bf16 %v1258, %v1315
      %v1344 = vadd.bf16 %v1259, %v1316
      %v1345 = vadd.bf16 %v1260, %v1317
      %v1346 = vadd.bf16 %v1261, %v1318
      %v1347 = vadd.bf16 %v1262, %v1319
      %v1348 = vadd.bf16 %v1263, %v1320
      %v1349 = vadd.bf16 %v1264, %v1321
      %v1350 = vadd.bf16 %v1265, %v1322
      %v1351 = vadd.bf16 %v1266, %v1323
      %v1352 = vadd.bf16 %v1267, %v1324
      %v1353 = vadd.bf16 %v1268, %v1325
      %v1354 = vadd.bf16 %v1269, %v1326
      %v1355 = vadd.bf16 %v1270, %v1327
      %v1356 = vadd.bf16 %v1271, %v1328
      %v1357 = vadd.bf16 %v1272, %v1329
      %v1358 = vadd.bf16 %v1273, %v1330
      %v1359 = vadd.bf16 %v1274, %v1331
      %v1360 = vadd.bf16 %v1275, %v1332
      %v1361 = vadd.bf16 %v1276, %v1333
      %v1362 = vmul.bf16 %v689, %v630
      %v1363 = vmul.bf16 %v690, %v630
      %v1364 = vmul.bf16 %v691, %v630
      %v1365 = vmul.bf16 %v692, %v630
      %v1366 = vmul.bf16 %v693, %v630
      %v1367 = vmul.bf16 %v694, %v630
      %v1368 = vmul.bf16 %v695, %v630
      %v1369 = vmul.bf16 %v696, %v630
      %v1370 = vmul.bf16 %v697, %v630
      %v1371 = vmul.bf16 %v698, %v630
      %v1372 = vmul.bf16 %v699, %v630
      %v1373 = vmul.bf16 %v700, %v630
      %v1374 = vmul.bf16 %v701, %v630
      %v1375 = vmul.bf16 %v702, %v630
      %v1376 = vmul.bf16 %v703, %v630
      %v1377 = vmul.bf16 %v704, %v630
      %v1378 = vmul.bf16 %v705, %v630
      %v1379 = vmul.bf16 %v706, %v630
      %v1380 = vmul.bf16 %v707, %v630
      %v1381 = vmul.bf16 %v708, %v630
      %v1382 = vmul.bf16 %v709, %v630
      %v1383 = vmul.bf16 %v710, %v630
      %v1384 = vmul.bf16 %v711, %v630
      %v1385 = vmul.bf16 %v712, %v630
      %v1386 = vmul.bf16 %v713, %v630
      %v1387 = vmul.bf16 %v714, %v630
      %v1388 = vmul.bf16 %v715, %v630
      %v1389 = vmul.bf16 %v716, %v630
      %v1390 = vadd.bf16 %v1334, %v1362
      %v1391 = vadd.bf16 %v1335, %v1363
      %v1392 = vadd.bf16 %v1336, %v1364
      %v1393 = vadd.bf16 %v1337, %v1365
      %v1394 = vadd.bf16 %v1338, %v1366
      %v1395 = vadd.bf16 %v1339, %v1367
      %v1396 = vadd.bf16 %v1340, %v1368
      %v1397 = vadd.bf16 %v1341, %v1369
      %v1398 = vadd.bf16 %v1342, %v1370
      %v1399 = vadd.bf16 %v1343, %v1371
      %v1400 = vadd.bf16 %v1344, %v1372
      %v1401 = vadd.bf16 %v1345, %v1373
      %v1402 = vadd.bf16 %v1346, %v1374
      %v1403 = vadd.bf16 %v1347, %v1375
      %v1404 = vadd.bf16 %v1348, %v1376
      %v1405 = vadd.bf16 %v1349, %v1377
      %v1406 = vadd.bf16 %v1350, %v1378
      %v1407 = vadd.bf16 %v1351, %v1379
      %v1408 = vadd.bf16 %v1352, %v1380
      %v1409 = vadd.bf16 %v1353, %v1381
      %v1410 = vadd.bf16 %v1354, %v1382
      %v1411 = vadd.bf16 %v1355, %v1383
      %v1412 = vadd.bf16 %v1356, %v1384
      %v1413 = vadd.bf16 %v1357, %v1385
      %v1414 = vadd.bf16 %v1358, %v1386
      %v1415 = vadd.bf16 %v1359, %v1387
      %v1416 = vadd.bf16 %v1360, %v1388
      %v1417 = vadd.bf16 %v1361, %v1389
      %v1418 = vmul.bf16 %v790, %v731
      %v1419 = vmul.bf16 %v791, %v731
      %v1420 = vmul.bf16 %v792, %v731
      %v1421 = vmul.bf16 %v793, %v731
      %v1422 = vmul.bf16 %v794, %v731
      %v1423 = vmul.bf16 %v795, %v731
      %v1424 = vmul.bf16 %v796, %v731
      %v1425 = vmul.bf16 %v797, %v731
      %v1426 = vmul.bf16 %v798, %v731
      %v1427 = vmul.bf16 %v799, %v731
      %v1428 = vmul.bf16 %v800, %v731
      %v1429 = vmul.bf16 %v801, %v731
      %v1430 = vmul.bf16 %v802, %v731
      %v1431 = vmul.bf16 %v803, %v731
      %v1432 = vmul.bf16 %v804, %v731
      %v1433 = vmul.bf16 %v805, %v731
      %v1434 = vmul.bf16 %v806, %v731
      %v1435 = vmul.bf16 %v807, %v731
      %v1436 = vmul.bf16 %v808, %v731
      %v1437 = vmul.bf16 %v809, %v731
      %v1438 = vmul.bf16 %v810, %v731
      %v1439 = vmul.bf16 %v811, %v731
      %v1440 = vmul.bf16 %v812, %v731
      %v1441 = vmul.bf16 %v813, %v731
      %v1442 = vmul.bf16 %v814, %v731
      %v1443 = vmul.bf16 %v815, %v731
      %v1444 = vmul.bf16 %v816, %v731
      %v1445 = vmul.bf16 %v817, %v731
      %v1446 = vadd.bf16 %v1390, %v1418
      %v1447 = vadd.bf16 %v1391, %v1419
      %v1448 = vadd.bf16 %v1392, %v1420
      %v1449 = vadd.bf16 %v1393, %v1421
      %v1450 = vadd.bf16 %v1394, %v1422
      %v1451 = vadd.bf16 %v1395, %v1423
      %v1452 = vadd.bf16 %v1396, %v1424
      %v1453 = vadd.bf16 %v1397, %v1425
      %v1454 = vadd.bf16 %v1398, %v1426
      %v1455 = vadd.bf16 %v1399, %v1427
      %v1456 = vadd.bf16 %v1400, %v1428
      %v1457 = vadd.bf16 %v1401, %v1429
      %v1458 = vadd.bf16 %v1402, %v1430
      %v1459 = vadd.bf16 %v1403, %v1431
      %v1460 = vadd.bf16 %v1404, %v1432
      %v1461 = vadd.bf16 %v1405, %v1433
      %v1462 = vadd.bf16 %v1406, %v1434
      %v1463 = vadd.bf16 %v1407, %v1435
      %v1464 = vadd.bf16 %v1408, %v1436
      %v1465 = vadd.bf16 %v1409, %v1437
      %v1466 = vadd.bf16 %v1410, %v1438
      %v1467 = vadd.bf16 %v1411, %v1439
      %v1468 = vadd.bf16 %v1412, %v1440
      %v1469 = vadd.bf16 %v1413, %v1441
      %v1470 = vadd.bf16 %v1414, %v1442
      %v1471 = vadd.bf16 %v1415, %v1443
      %v1472 = vadd.bf16 %v1416, %v1444
      %v1473 = vadd.bf16 %v1417, %v1445
      %s1474 = scalar_lea.vmem %s0, 840
      %v1475 = vld [vmem:[%s1474] sm:$0xf]
      %v1476 = vld [vmem:[%s1474 + $0x4] sm:$0x7]
      %v1477 = vld [vmem:[%s1474 + $0x8] sm:$0xf]
      %v1478 = vld [vmem:[%s1474 + $0xc] sm:$0x7]
      %v1479 = vld [vmem:[%s1474 + $0x10] sm:$0xf]
      %v1480 = vld [vmem:[%s1474 + $0x14] sm:$0x7]
      %v1481 = vld [vmem:[%s1474 + $0x18] sm:$0xf]
      %v1482 = vld [vmem:[%s1474 + $0x1c] sm:$0x7]
      %v1483 = vld [vmem:[%s1474 + $0x20] sm:$0xf]
      %v1484 = vld [vmem:[%s1474 + $0x24] sm:$0x7]
      %v1485 = vld [vmem:[%s1474 + $0x28] sm:$0xf]
      %v1486 = vld [vmem:[%s1474 + $0x2c] sm:$0x7]
      %v1487 = vld [vmem:[%s1474 + $0x30] sm:$0xf]
      %v1488 = vld [vmem:[%s1474 + $0x34] sm:$0x7]
      %v1489 = vld [vmem:[%s1474 + $0x38] sm:$0xf]
      %v1490 = vld [vmem:[%s1474 + $0x3c] sm:$0x7]
      %v1491 = vld [vmem:[%s1474 + $0x40] sm:$0xf]
      %v1492 = vld [vmem:[%s1474 + $0x44] sm:$0x7]
      %v1493 = vld [vmem:[%s1474 + $0x48] sm:$0xf]
      %v1494 = vld [vmem:[%s1474 + $0x4c] sm:$0x7]
      %v1495 = vld [vmem:[%s1474 + $0x50] sm:$0xf]
      %v1496 = vld [vmem:[%s1474 + $0x54] sm:$0x7]
      %v1497 = vld [vmem:[%s1474 + $0x58] sm:$0xf]
      %v1498 = vld [vmem:[%s1474 + $0x5c] sm:$0x7]
      %v1499 = vld [vmem:[%s1474 + $0x60] sm:$0xf]
      %v1500 = vld [vmem:[%s1474 + $0x64] sm:$0x7]
      %v1501 = vld [vmem:[%s1474 + $0x68] sm:$0xf]
      %v1502 = vld [vmem:[%s1474 + $0x6c] sm:$0x7]
      %v1503 = vmul.bf16 %v1475, %v832
      %v1504 = vmul.bf16 %v1476, %v832
      %v1505 = vmul.bf16 %v1477, %v832
      %v1506 = vmul.bf16 %v1478, %v832
      %v1507 = vmul.bf16 %v1479, %v832
      %v1508 = vmul.bf16 %v1480, %v832
      %v1509 = vmul.bf16 %v1481, %v832
      %v1510 = vmul.bf16 %v1482, %v832
      %v1511 = vmul.bf16 %v1483, %v832
      %v1512 = vmul.bf16 %v1484, %v832
      %v1513 = vmul.bf16 %v1485, %v832
      %v1514 = vmul.bf16 %v1486, %v832
      %v1515 = vmul.bf16 %v1487, %v832
      %v1516 = vmul.bf16 %v1488, %v832
      %v1517 = vmul.bf16 %v1489, %v832
      %v1518 = vmul.bf16 %v1490, %v832
      %v1519 = vmul.bf16 %v1491, %v832
      %v1520 = vmul.bf16 %v1492, %v832
      %v1521 = vmul.bf16 %v1493, %v832
      %v1522 = vmul.bf16 %v1494, %v832
      %v1523 = vmul.bf16 %v1495, %v832
      %v1524 = vmul.bf16 %v1496, %v832
      %v1525 = vmul.bf16 %v1497, %v832
      %v1526 = vmul.bf16 %v1498, %v832
      %v1527 = vmul.bf16 %v1499, %v832
      %v1528 = vmul.bf16 %v1500, %v832
      %v1529 = vmul.bf16 %v1501, %v832
      %v1530 = vmul.bf16 %v1502, %v832
      %v1531 = vadd.bf16 %v1446, %v1503
      %v1532 = vadd.bf16 %v1447, %v1504
      %v1533 = vadd.bf16 %v1448, %v1505
      %v1534 = vadd.bf16 %v1449, %v1506
      %v1535 = vadd.bf16 %v1450, %v1507
      %v1536 = vadd.bf16 %v1451, %v1508
      %v1537 = vadd.bf16 %v1452, %v1509
      %v1538 = vadd.bf16 %v1453, %v1510
      %v1539 = vadd.bf16 %v1454, %v1511
      %v1540 = vadd.bf16 %v1455, %v1512
      %v1541 = vadd.bf16 %v1456, %v1513
      %v1542 = vadd.bf16 %v1457, %v1514
      %v1543 = vadd.bf16 %v1458, %v1515
      %v1544 = vadd.bf16 %v1459, %v1516
      %v1545 = vadd.bf16 %v1460, %v1517
      %v1546 = vadd.bf16 %v1461, %v1518
      %v1547 = vadd.bf16 %v1462, %v1519
      %v1548 = vadd.bf16 %v1463, %v1520
      %v1549 = vadd.bf16 %v1464, %v1521
      %v1550 = vadd.bf16 %v1465, %v1522
      %v1551 = vadd.bf16 %v1466, %v1523
      %v1552 = vadd.bf16 %v1467, %v1524
      %v1553 = vadd.bf16 %v1468, %v1525
      %v1554 = vadd.bf16 %v1469, %v1526
      %v1555 = vadd.bf16 %v1470, %v1527
      %v1556 = vadd.bf16 %v1471, %v1528
      %v1557 = vadd.bf16 %v1472, %v1529
      %v1558 = vadd.bf16 %v1473, %v1530
      %v1559 = vmul.bf16 %v992, %v933
      %v1560 = vmul.bf16 %v993, %v933
      %v1561 = vmul.bf16 %v994, %v933
      %v1562 = vmul.bf16 %v995, %v933
      %v1563 = vmul.bf16 %v996, %v933
      %v1564 = vmul.bf16 %v997, %v933
      %v1565 = vmul.bf16 %v998, %v933
      %v1566 = vmul.bf16 %v999, %v933
      %v1567 = vmul.bf16 %v1000, %v933
      %v1568 = vmul.bf16 %v1001, %v933
      %v1569 = vmul.bf16 %v1002, %v933
      %v1570 = vmul.bf16 %v1003, %v933
      %v1571 = vmul.bf16 %v1004, %v933
      %v1572 = vmul.bf16 %v1005, %v933
      %v1573 = vmul.bf16 %v1006, %v933
      %v1574 = vmul.bf16 %v1007, %v933
      %v1575 = vmul.bf16 %v1008, %v933
      %v1576 = vmul.bf16 %v1009, %v933
      %v1577 = vmul.bf16 %v1010, %v933
      %v1578 = vmul.bf16 %v1011, %v933
      %v1579 = vmul.bf16 %v1012, %v933
      %v1580 = vmul.bf16 %v1013, %v933
      %v1581 = vmul.bf16 %v1014, %v933
      %v1582 = vmul.bf16 %v1015, %v933
      %v1583 = vmul.bf16 %v1016, %v933
      %v1584 = vmul.bf16 %v1017, %v933
      %v1585 = vmul.bf16 %v1018, %v933
      %v1586 = vmul.bf16 %v1019, %v933
      %v1587 = vadd.bf16 %v1531, %v1559
      %v1588 = vadd.bf16 %v1532, %v1560
      %v1589 = vadd.bf16 %v1533, %v1561
      %v1590 = vadd.bf16 %v1534, %v1562
      %v1591 = vadd.bf16 %v1535, %v1563
      %v1592 = vadd.bf16 %v1536, %v1564
      %v1593 = vadd.bf16 %v1537, %v1565
      %v1594 = vadd.bf16 %v1538, %v1566
      %v1595 = vadd.bf16 %v1539, %v1567
      %v1596 = vadd.bf16 %v1540, %v1568
      %v1597 = vadd.bf16 %v1541, %v1569
      %v1598 = vadd.bf16 %v1542, %v1570
      %v1599 = vadd.bf16 %v1543, %v1571
      %v1600 = vadd.bf16 %v1544, %v1572
      %v1601 = vadd.bf16 %v1545, %v1573
      %v1602 = vadd.bf16 %v1546, %v1574
      %v1603 = vadd.bf16 %v1547, %v1575
      %v1604 = vadd.bf16 %v1548, %v1576
      %v1605 = vadd.bf16 %v1549, %v1577
      %v1606 = vadd.bf16 %v1550, %v1578
      %v1607 = vadd.bf16 %v1551, %v1579
      %v1608 = vadd.bf16 %v1552, %v1580
      %v1609 = vadd.bf16 %v1553, %v1581
      %v1610 = vadd.bf16 %v1554, %v1582
      %v1611 = vadd.bf16 %v1555, %v1583
      %v1612 = vadd.bf16 %v1556, %v1584
      %v1613 = vadd.bf16 %v1557, %v1585
      %v1614 = vadd.bf16 %v1558, %v1586
      %v1615 = vmul.bf16 %v1093, %v1034
      %v1616 = vmul.bf16 %v1094, %v1034
      %v1617 = vmul.bf16 %v1095, %v1034
      %v1618 = vmul.bf16 %v1096, %v1034
      %v1619 = vmul.bf16 %v1097, %v1034
      %v1620 = vmul.bf16 %v1098, %v1034
      %v1621 = vmul.bf16 %v1099, %v1034
      %v1622 = vmul.bf16 %v1100, %v1034
      %v1623 = vmul.bf16 %v1101, %v1034
      %v1624 = vmul.bf16 %v1102, %v1034
      %v1625 = vmul.bf16 %v1103, %v1034
      %v1626 = vmul.bf16 %v1104, %v1034
      %v1627 = vmul.bf16 %v1105, %v1034
      %v1628 = vmul.bf16 %v1106, %v1034
      %v1629 = vmul.bf16 %v1107, %v1034
      %v1630 = vmul.bf16 %v1108, %v1034
      %v1631 = vmul.bf16 %v1109, %v1034
      %v1632 = vmul.bf16 %v1110, %v1034
      %v1633 = vmul.bf16 %v1111, %v1034
      %v1634 = vmul.bf16 %v1112, %v1034
      %v1635 = vmul.bf16 %v1113, %v1034
      %v1636 = vmul.bf16 %v1114, %v1034
      %v1637 = vmul.bf16 %v1115, %v1034
      %v1638 = vmul.bf16 %v1116, %v1034
      %v1639 = vmul.bf16 %v1117, %v1034
      %v1640 = vmul.bf16 %v1118, %v1034
      %v1641 = vmul.bf16 %v1119, %v1034
      %v1642 = vmul.bf16 %v1120, %v1034
      %v1643 = vadd.bf16 %v1587, %v1615
      %v1644 = vadd.bf16 %v1588, %v1616
      %v1645 = vadd.bf16 %v1589, %v1617
      %v1646 = vadd.bf16 %v1590, %v1618
      %v1647 = vadd.bf16 %v1591, %v1619
      %v1648 = vadd.bf16 %v1592, %v1620
      %v1649 = vadd.bf16 %v1593, %v1621
      %v1650 = vadd.bf16 %v1594, %v1622
      %v1651 = vadd.bf16 %v1595, %v1623
      %v1652 = vadd.bf16 %v1596, %v1624
      %v1653 = vadd.bf16 %v1597, %v1625
      %v1654 = vadd.bf16 %v1598, %v1626
      %v1655 = vadd.bf16 %v1599, %v1627
      %v1656 = vadd.bf16 %v1600, %v1628
      %v1657 = vadd.bf16 %v1601, %v1629
      %v1658 = vadd.bf16 %v1602, %v1630
      %v1659 = vadd.bf16 %v1603, %v1631
      %v1660 = vadd.bf16 %v1604, %v1632
      %v1661 = vadd.bf16 %v1605, %v1633
      %v1662 = vadd.bf16 %v1606, %v1634
      %v1663 = vadd.bf16 %v1607, %v1635
      %v1664 = vadd.bf16 %v1608, %v1636
      %v1665 = vadd.bf16 %v1609, %v1637
      %v1666 = vadd.bf16 %v1610, %v1638
      %v1667 = vadd.bf16 %v1611, %v1639
      %v1668 = vadd.bf16 %v1612, %v1640
      %v1669 = vadd.bf16 %v1613, %v1641
      %v1670 = vadd.bf16 %v1614, %v1642
      %s1671 = scalar_lea.vmem %s0, 728
      %v1672 = vld [vmem:[%s1671] sm:$0xf]
      %v1673 = vld [vmem:[%s1671 + $0x4] sm:$0x7]
      %v1674 = vld [vmem:[%s1671 + $0x8] sm:$0xf]
      %v1675 = vld [vmem:[%s1671 + $0xc] sm:$0x7]
      %v1676 = vld [vmem:[%s1671 + $0x10] sm:$0xf]
      %v1677 = vld [vmem:[%s1671 + $0x14] sm:$0x7]
      %v1678 = vld [vmem:[%s1671 + $0x18] sm:$0xf]
      %v1679 = vld [vmem:[%s1671 + $0x1c] sm:$0x7]
      %v1680 = vld [vmem:[%s1671 + $0x20] sm:$0xf]
      %v1681 = vld [vmem:[%s1671 + $0x24] sm:$0x7]
      %v1682 = vld [vmem:[%s1671 + $0x28] sm:$0xf]
      %v1683 = vld [vmem:[%s1671 + $0x2c] sm:$0x7]
      %v1684 = vld [vmem:[%s1671 + $0x30] sm:$0xf]
      %v1685 = vld [vmem:[%s1671 + $0x34] sm:$0x7]
      %v1686 = vld [vmem:[%s1671 + $0x38] sm:$0xf]
      %v1687 = vld [vmem:[%s1671 + $0x3c] sm:$0x7]
      %v1688 = vld [vmem:[%s1671 + $0x40] sm:$0xf]
      %v1689 = vld [vmem:[%s1671 + $0x44] sm:$0x7]
      %v1690 = vld [vmem:[%s1671 + $0x48] sm:$0xf]
      %v1691 = vld [vmem:[%s1671 + $0x4c] sm:$0x7]
      %v1692 = vld [vmem:[%s1671 + $0x50] sm:$0xf]
      %v1693 = vld [vmem:[%s1671 + $0x54] sm:$0x7]
      %v1694 = vld [vmem:[%s1671 + $0x58] sm:$0xf]
      %v1695 = vld [vmem:[%s1671 + $0x5c] sm:$0x7]
      %v1696 = vld [vmem:[%s1671 + $0x60] sm:$0xf]
      %v1697 = vld [vmem:[%s1671 + $0x64] sm:$0x7]
      %v1698 = vld [vmem:[%s1671 + $0x68] sm:$0xf]
      %v1699 = vld [vmem:[%s1671 + $0x6c] sm:$0x7]
      %v1700 = vmul.bf16 %v1672, %v1135
      %v1701 = vmul.bf16 %v1673, %v1135
      %v1702 = vmul.bf16 %v1674, %v1135
      %v1703 = vmul.bf16 %v1675, %v1135
      %v1704 = vmul.bf16 %v1676, %v1135
      %v1705 = vmul.bf16 %v1677, %v1135
      %v1706 = vmul.bf16 %v1678, %v1135
      %v1707 = vmul.bf16 %v1679, %v1135
      %v1708 = vmul.bf16 %v1680, %v1135
      %v1709 = vmul.bf16 %v1681, %v1135
      %v1710 = vmul.bf16 %v1682, %v1135
      %v1711 = vmul.bf16 %v1683, %v1135
      %v1712 = vmul.bf16 %v1684, %v1135
      %v1713 = vmul.bf16 %v1685, %v1135
      %v1714 = vmul.bf16 %v1686, %v1135
      %v1715 = vmul.bf16 %v1687, %v1135
      %v1716 = vmul.bf16 %v1688, %v1135
      %v1717 = vmul.bf16 %v1689, %v1135
      %v1718 = vmul.bf16 %v1690, %v1135
      %v1719 = vmul.bf16 %v1691, %v1135
      %v1720 = vmul.bf16 %v1692, %v1135
      %v1721 = vmul.bf16 %v1693, %v1135
      %v1722 = vmul.bf16 %v1694, %v1135
      %v1723 = vmul.bf16 %v1695, %v1135
      %v1724 = vmul.bf16 %v1696, %v1135
      %v1725 = vmul.bf16 %v1697, %v1135
      %v1726 = vmul.bf16 %v1698, %v1135
      %v1727 = vmul.bf16 %v1699, %v1135
      %v1728 = vadd.bf16 %v1643, %v1700
      %v1729 = vadd.bf16 %v1644, %v1701
      %v1730 = vadd.bf16 %v1645, %v1702
      %v1731 = vadd.bf16 %v1646, %v1703
      %v1732 = vadd.bf16 %v1647, %v1704
      %v1733 = vadd.bf16 %v1648, %v1705
      %v1734 = vadd.bf16 %v1649, %v1706
      %v1735 = vadd.bf16 %v1650, %v1707
      %v1736 = vadd.bf16 %v1651, %v1708
      %v1737 = vadd.bf16 %v1652, %v1709
      %v1738 = vadd.bf16 %v1653, %v1710
      %v1739 = vadd.bf16 %v1654, %v1711
      %v1740 = vadd.bf16 %v1655, %v1712
      %v1741 = vadd.bf16 %v1656, %v1713
      %v1742 = vadd.bf16 %v1657, %v1714
      %v1743 = vadd.bf16 %v1658, %v1715
      %v1744 = vadd.bf16 %v1659, %v1716
      %v1745 = vadd.bf16 %v1660, %v1717
      %v1746 = vadd.bf16 %v1661, %v1718
      %v1747 = vadd.bf16 %v1662, %v1719
      %v1748 = vadd.bf16 %v1663, %v1720
      %v1749 = vadd.bf16 %v1664, %v1721
      %v1750 = vadd.bf16 %v1665, %v1722
      %v1751 = vadd.bf16 %v1666, %v1723
      %v1752 = vadd.bf16 %v1667, %v1724
      %v1753 = vadd.bf16 %v1668, %v1725
      %v1754 = vadd.bf16 %v1669, %v1726
      %v1755 = vadd.bf16 %v1670, %v1727
      %v1756 = vmax.bf16 %v1165, %v1728
      %v1757 = vmax.bf16 %v1166, %v1729
      %v1758 = vmax.bf16 %v1167, %v1730
      %v1759 = vmax.bf16 %v1168, %v1731
      %v1760 = vmax.bf16 %v1169, %v1732
      %v1761 = vmax.bf16 %v1170, %v1733
      %v1762 = vmax.bf16 %v1171, %v1734
      %v1763 = vmax.bf16 %v1172, %v1735
      %v1764 = vmax.bf16 %v1173, %v1736
      %v1765 = vmax.bf16 %v1174, %v1737
      %v1766 = vmax.bf16 %v1175, %v1738
      %v1767 = vmax.bf16 %v1176, %v1739
      %v1768 = vmax.bf16 %v1177, %v1740
      %v1769 = vmax.bf16 %v1178, %v1741
      %v1770 = vmax.bf16 %v1179, %v1742
      %v1771 = vmax.bf16 %v1180, %v1743
      %v1772 = vmax.bf16 %v1181, %v1744
      %v1773 = vmax.bf16 %v1182, %v1745
      %v1774 = vmax.bf16 %v1183, %v1746
      %v1775 = vmax.bf16 %v1184, %v1747
      %v1776 = vmax.bf16 %v1185, %v1748
      %v1777 = vmax.bf16 %v1186, %v1749
      %v1778 = vmax.bf16 %v1187, %v1750
      %v1779 = vmax.bf16 %v1188, %v1751
      %v1780 = vmax.bf16 %v1189, %v1752
      %v1781 = vmax.bf16 %v1190, %v1753
      %v1782 = vmax.bf16 %v1191, %v1754
      %v1783 = vmax.bf16 %v1192, %v1755
      %v1784 = vmul.bf16 %v588, %v355
      %v1785 = vmul.bf16 %v589, %v355
      %v1786 = vmul.bf16 %v590, %v355
      %v1787 = vmul.bf16 %v591, %v355
      %v1788 = vmul.bf16 %v592, %v355
      %v1789 = vmul.bf16 %v593, %v355
      %v1790 = vmul.bf16 %v594, %v355
      %v1791 = vmul.bf16 %v595, %v355
      %v1792 = vmul.bf16 %v596, %v355
      %v1793 = vmul.bf16 %v597, %v355
      %v1794 = vmul.bf16 %v598, %v355
      %v1795 = vmul.bf16 %v599, %v355
      %v1796 = vmul.bf16 %v600, %v355
      %v1797 = vmul.bf16 %v601, %v355
      %v1798 = vmul.bf16 %v602, %v355
      %v1799 = vmul.bf16 %v603, %v355
      %v1800 = vmul.bf16 %v604, %v355
      %v1801 = vmul.bf16 %v605, %v355
      %v1802 = vmul.bf16 %v606, %v355
      %v1803 = vmul.bf16 %v607, %v355
      %v1804 = vmul.bf16 %v608, %v355
      %v1805 = vmul.bf16 %v609, %v355
      %v1806 = vmul.bf16 %v610, %v355
      %v1807 = vmul.bf16 %v611, %v355
      %v1808 = vmul.bf16 %v612, %v355
      %v1809 = vmul.bf16 %v613, %v355
      %v1810 = vmul.bf16 %v614, %v355
      %v1811 = vmul.bf16 %v615, %v355
      %v1812 = vmul.bf16 %v689, %v428
      %v1813 = vmul.bf16 %v690, %v428
      %v1814 = vmul.bf16 %v691, %v428
      %v1815 = vmul.bf16 %v692, %v428
      %v1816 = vmul.bf16 %v693, %v428
      %v1817 = vmul.bf16 %v694, %v428
      %v1818 = vmul.bf16 %v695, %v428
      %v1819 = vmul.bf16 %v696, %v428
      %v1820 = vmul.bf16 %v697, %v428
      %v1821 = vmul.bf16 %v698, %v428
      %v1822 = vmul.bf16 %v699, %v428
      %v1823 = vmul.bf16 %v700, %v428
      %v1824 = vmul.bf16 %v701, %v428
      %v1825 = vmul.bf16 %v702, %v428
      %v1826 = vmul.bf16 %v703, %v428
      %v1827 = vmul.bf16 %v704, %v428
      %v1828 = vmul.bf16 %v705, %v428
      %v1829 = vmul.bf16 %v706, %v428
      %v1830 = vmul.bf16 %v707, %v428
      %v1831 = vmul.bf16 %v708, %v428
      %v1832 = vmul.bf16 %v709, %v428
      %v1833 = vmul.bf16 %v710, %v428
      %v1834 = vmul.bf16 %v711, %v428
      %v1835 = vmul.bf16 %v712, %v428
      %v1836 = vmul.bf16 %v713, %v428
      %v1837 = vmul.bf16 %v714, %v428
      %v1838 = vmul.bf16 %v715, %v428
      %v1839 = vmul.bf16 %v716, %v428
      %v1840 = vadd.bf16 %v1784, %v1812
      %v1841 = vadd.bf16 %v1785, %v1813
      %v1842 = vadd.bf16 %v1786, %v1814
      %v1843 = vadd.bf16 %v1787, %v1815
      %v1844 = vadd.bf16 %v1788, %v1816
      %v1845 = vadd.bf16 %v1789, %v1817
      %v1846 = vadd.bf16 %v1790, %v1818
      %v1847 = vadd.bf16 %v1791, %v1819
      %v1848 = vadd.bf16 %v1792, %v1820
      %v1849 = vadd.bf16 %v1793, %v1821
      %v1850 = vadd.bf16 %v1794, %v1822
      %v1851 = vadd.bf16 %v1795, %v1823
      %v1852 = vadd.bf16 %v1796, %v1824
      %v1853 = vadd.bf16 %v1797, %v1825
      %v1854 = vadd.bf16 %v1798, %v1826
      %v1855 = vadd.bf16 %v1799, %v1827
      %v1856 = vadd.bf16 %v1800, %v1828
      %v1857 = vadd.bf16 %v1801, %v1829
      %v1858 = vadd.bf16 %v1802, %v1830
      %v1859 = vadd.bf16 %v1803, %v1831
      %v1860 = vadd.bf16 %v1804, %v1832
      %v1861 = vadd.bf16 %v1805, %v1833
      %v1862 = vadd.bf16 %v1806, %v1834
      %v1863 = vadd.bf16 %v1807, %v1835
      %v1864 = vadd.bf16 %v1808, %v1836
      %v1865 = vadd.bf16 %v1809, %v1837
      %v1866 = vadd.bf16 %v1810, %v1838
      %v1867 = vadd.bf16 %v1811, %v1839
      %v1868 = vmul.bf16 %v790, %v529
      %v1869 = vmul.bf16 %v791, %v529
      %v1870 = vmul.bf16 %v792, %v529
      %v1871 = vmul.bf16 %v793, %v529
      %v1872 = vmul.bf16 %v794, %v529
      %v1873 = vmul.bf16 %v795, %v529
      %v1874 = vmul.bf16 %v796, %v529
      %v1875 = vmul.bf16 %v797, %v529
      %v1876 = vmul.bf16 %v798, %v529
      %v1877 = vmul.bf16 %v799, %v529
      %v1878 = vmul.bf16 %v800, %v529
      %v1879 = vmul.bf16 %v801, %v529
      %v1880 = vmul.bf16 %v802, %v529
      %v1881 = vmul.bf16 %v803, %v529
      %v1882 = vmul.bf16 %v804, %v529
      %v1883 = vmul.bf16 %v805, %v529
      %v1884 = vmul.bf16 %v806, %v529
      %v1885 = vmul.bf16 %v807, %v529
      %v1886 = vmul.bf16 %v808, %v529
      %v1887 = vmul.bf16 %v809, %v529
      %v1888 = vmul.bf16 %v810, %v529
      %v1889 = vmul.bf16 %v811, %v529
      %v1890 = vmul.bf16 %v812, %v529
      %v1891 = vmul.bf16 %v813, %v529
      %v1892 = vmul.bf16 %v814, %v529
      %v1893 = vmul.bf16 %v815, %v529
      %v1894 = vmul.bf16 %v816, %v529
      %v1895 = vmul.bf16 %v817, %v529
      %v1896 = vadd.bf16 %v1840, %v1868
      %v1897 = vadd.bf16 %v1841, %v1869
      %v1898 = vadd.bf16 %v1842, %v1870
      %v1899 = vadd.bf16 %v1843, %v1871
      %v1900 = vadd.bf16 %v1844, %v1872
      %v1901 = vadd.bf16 %v1845, %v1873
      %v1902 = vadd.bf16 %v1846, %v1874
      %v1903 = vadd.bf16 %v1847, %v1875
      %v1904 = vadd.bf16 %v1848, %v1876
      %v1905 = vadd.bf16 %v1849, %v1877
      %v1906 = vadd.bf16 %v1850, %v1878
      %v1907 = vadd.bf16 %v1851, %v1879
      %v1908 = vadd.bf16 %v1852, %v1880
      %v1909 = vadd.bf16 %v1853, %v1881
      %v1910 = vadd.bf16 %v1854, %v1882
      %v1911 = vadd.bf16 %v1855, %v1883
      %v1912 = vadd.bf16 %v1856, %v1884
      %v1913 = vadd.bf16 %v1857, %v1885
      %v1914 = vadd.bf16 %v1858, %v1886
      %v1915 = vadd.bf16 %v1859, %v1887
      %v1916 = vadd.bf16 %v1860, %v1888
      %v1917 = vadd.bf16 %v1861, %v1889
      %v1918 = vadd.bf16 %v1862, %v1890
      %v1919 = vadd.bf16 %v1863, %v1891
      %v1920 = vadd.bf16 %v1864, %v1892
      %v1921 = vadd.bf16 %v1865, %v1893
      %v1922 = vadd.bf16 %v1866, %v1894
      %v1923 = vadd.bf16 %v1867, %v1895
      %v1924 = vmul.bf16 %v891, %v630
      %v1925 = vmul.bf16 %v892, %v630
      %v1926 = vmul.bf16 %v893, %v630
      %v1927 = vmul.bf16 %v894, %v630
      %v1928 = vmul.bf16 %v895, %v630
      %v1929 = vmul.bf16 %v896, %v630
      %v1930 = vmul.bf16 %v897, %v630
      %v1931 = vmul.bf16 %v898, %v630
      %v1932 = vmul.bf16 %v899, %v630
      %v1933 = vmul.bf16 %v900, %v630
      %v1934 = vmul.bf16 %v901, %v630
      %v1935 = vmul.bf16 %v902, %v630
      %v1936 = vmul.bf16 %v903, %v630
      %v1937 = vmul.bf16 %v904, %v630
      %v1938 = vmul.bf16 %v905, %v630
      %v1939 = vmul.bf16 %v906, %v630
      %v1940 = vmul.bf16 %v907, %v630
      %v1941 = vmul.bf16 %v908, %v630
      %v1942 = vmul.bf16 %v909, %v630
      %v1943 = vmul.bf16 %v910, %v630
      %v1944 = vmul.bf16 %v911, %v630
      %v1945 = vmul.bf16 %v912, %v630
      %v1946 = vmul.bf16 %v913, %v630
      %v1947 = vmul.bf16 %v914, %v630
      %v1948 = vmul.bf16 %v915, %v630
      %v1949 = vmul.bf16 %v916, %v630
      %v1950 = vmul.bf16 %v917, %v630
      %v1951 = vmul.bf16 %v918, %v630
      %v1952 = vadd.bf16 %v1896, %v1924
      %v1953 = vadd.bf16 %v1897, %v1925
      %v1954 = vadd.bf16 %v1898, %v1926
      %v1955 = vadd.bf16 %v1899, %v1927
      %v1956 = vadd.bf16 %v1900, %v1928
      %v1957 = vadd.bf16 %v1901, %v1929
      %v1958 = vadd.bf16 %v1902, %v1930
      %v1959 = vadd.bf16 %v1903, %v1931
      %v1960 = vadd.bf16 %v1904, %v1932
      %v1961 = vadd.bf16 %v1905, %v1933
      %v1962 = vadd.bf16 %v1906, %v1934
      %v1963 = vadd.bf16 %v1907, %v1935
      %v1964 = vadd.bf16 %v1908, %v1936
      %v1965 = vadd.bf16 %v1909, %v1937
      %v1966 = vadd.bf16 %v1910, %v1938
      %v1967 = vadd.bf16 %v1911, %v1939
      %v1968 = vadd.bf16 %v1912, %v1940
      %v1969 = vadd.bf16 %v1913, %v1941
      %v1970 = vadd.bf16 %v1914, %v1942
      %v1971 = vadd.bf16 %v1915, %v1943
      %v1972 = vadd.bf16 %v1916, %v1944
      %v1973 = vadd.bf16 %v1917, %v1945
      %v1974 = vadd.bf16 %v1918, %v1946
      %v1975 = vadd.bf16 %v1919, %v1947
      %v1976 = vadd.bf16 %v1920, %v1948
      %v1977 = vadd.bf16 %v1921, %v1949
      %v1978 = vadd.bf16 %v1922, %v1950
      %v1979 = vadd.bf16 %v1923, %v1951
      %v1980 = vmul.bf16 %v992, %v731
      %v1981 = vmul.bf16 %v993, %v731
      %v1982 = vmul.bf16 %v994, %v731
      %v1983 = vmul.bf16 %v995, %v731
      %v1984 = vmul.bf16 %v996, %v731
      %v1985 = vmul.bf16 %v997, %v731
      %v1986 = vmul.bf16 %v998, %v731
      %v1987 = vmul.bf16 %v999, %v731
      %v1988 = vmul.bf16 %v1000, %v731
      %v1989 = vmul.bf16 %v1001, %v731
      %v1990 = vmul.bf16 %v1002, %v731
      %v1991 = vmul.bf16 %v1003, %v731
      %v1992 = vmul.bf16 %v1004, %v731
      %v1993 = vmul.bf16 %v1005, %v731
      %v1994 = vmul.bf16 %v1006, %v731
      %v1995 = vmul.bf16 %v1007, %v731
      %v1996 = vmul.bf16 %v1008, %v731
      %v1997 = vmul.bf16 %v1009, %v731
      %v1998 = vmul.bf16 %v1010, %v731
      %v1999 = vmul.bf16 %v1011, %v731
      %v2000 = vmul.bf16 %v1012, %v731
      %v2001 = vmul.bf16 %v1013, %v731
      %v2002 = vmul.bf16 %v1014, %v731
      %v2003 = vmul.bf16 %v1015, %v731
      %v2004 = vmul.bf16 %v1016, %v731
      %v2005 = vmul.bf16 %v1017, %v731
      %v2006 = vmul.bf16 %v1018, %v731
      %v2007 = vmul.bf16 %v1019, %v731
      %v2008 = vadd.bf16 %v1952, %v1980
      %v2009 = vadd.bf16 %v1953, %v1981
      %v2010 = vadd.bf16 %v1954, %v1982
      %v2011 = vadd.bf16 %v1955, %v1983
      %v2012 = vadd.bf16 %v1956, %v1984
      %v2013 = vadd.bf16 %v1957, %v1985
      %v2014 = vadd.bf16 %v1958, %v1986
      %v2015 = vadd.bf16 %v1959, %v1987
      %v2016 = vadd.bf16 %v1960, %v1988
      %v2017 = vadd.bf16 %v1961, %v1989
      %v2018 = vadd.bf16 %v1962, %v1990
      %v2019 = vadd.bf16 %v1963, %v1991
      %v2020 = vadd.bf16 %v1964, %v1992
      %v2021 = vadd.bf16 %v1965, %v1993
      %v2022 = vadd.bf16 %v1966, %v1994
      %v2023 = vadd.bf16 %v1967, %v1995
      %v2024 = vadd.bf16 %v1968, %v1996
      %v2025 = vadd.bf16 %v1969, %v1997
      %v2026 = vadd.bf16 %v1970, %v1998
      %v2027 = vadd.bf16 %v1971, %v1999
      %v2028 = vadd.bf16 %v1972, %v2000
      %v2029 = vadd.bf16 %v1973, %v2001
      %v2030 = vadd.bf16 %v1974, %v2002
      %v2031 = vadd.bf16 %v1975, %v2003
      %v2032 = vadd.bf16 %v1976, %v2004
      %v2033 = vadd.bf16 %v1977, %v2005
      %v2034 = vadd.bf16 %v1978, %v2006
      %v2035 = vadd.bf16 %v1979, %v2007
      %v2036 = vmul.bf16 %v1093, %v832
      %v2037 = vmul.bf16 %v1094, %v832
      %v2038 = vmul.bf16 %v1095, %v832
      %v2039 = vmul.bf16 %v1096, %v832
      %v2040 = vmul.bf16 %v1097, %v832
      %v2041 = vmul.bf16 %v1098, %v832
      %v2042 = vmul.bf16 %v1099, %v832
      %v2043 = vmul.bf16 %v1100, %v832
      %v2044 = vmul.bf16 %v1101, %v832
      %v2045 = vmul.bf16 %v1102, %v832
      %v2046 = vmul.bf16 %v1103, %v832
      %v2047 = vmul.bf16 %v1104, %v832
      %v2048 = vmul.bf16 %v1105, %v832
      %v2049 = vmul.bf16 %v1106, %v832
      %v2050 = vmul.bf16 %v1107, %v832
      %v2051 = vmul.bf16 %v1108, %v832
      %v2052 = vmul.bf16 %v1109, %v832
      %v2053 = vmul.bf16 %v1110, %v832
      %v2054 = vmul.bf16 %v1111, %v832
      %v2055 = vmul.bf16 %v1112, %v832
      %v2056 = vmul.bf16 %v1113, %v832
      %v2057 = vmul.bf16 %v1114, %v832
      %v2058 = vmul.bf16 %v1115, %v832
      %v2059 = vmul.bf16 %v1116, %v832
      %v2060 = vmul.bf16 %v1117, %v832
      %v2061 = vmul.bf16 %v1118, %v832
      %v2062 = vmul.bf16 %v1119, %v832
      %v2063 = vmul.bf16 %v1120, %v832
      %v2064 = vadd.bf16 %v2008, %v2036
      %v2065 = vadd.bf16 %v2009, %v2037
      %v2066 = vadd.bf16 %v2010, %v2038
      %v2067 = vadd.bf16 %v2011, %v2039
      %v2068 = vadd.bf16 %v2012, %v2040
      %v2069 = vadd.bf16 %v2013, %v2041
      %v2070 = vadd.bf16 %v2014, %v2042
      %v2071 = vadd.bf16 %v2015, %v2043
      %v2072 = vadd.bf16 %v2016, %v2044
      %v2073 = vadd.bf16 %v2017, %v2045
      %v2074 = vadd.bf16 %v2018, %v2046
      %v2075 = vadd.bf16 %v2019, %v2047
      %v2076 = vadd.bf16 %v2020, %v2048
      %v2077 = vadd.bf16 %v2021, %v2049
      %v2078 = vadd.bf16 %v2022, %v2050
      %v2079 = vadd.bf16 %v2023, %v2051
      %v2080 = vadd.bf16 %v2024, %v2052
      %v2081 = vadd.bf16 %v2025, %v2053
      %v2082 = vadd.bf16 %v2026, %v2054
      %v2083 = vadd.bf16 %v2027, %v2055
      %v2084 = vadd.bf16 %v2028, %v2056
      %v2085 = vadd.bf16 %v2029, %v2057
      %v2086 = vadd.bf16 %v2030, %v2058
      %v2087 = vadd.bf16 %v2031, %v2059
      %v2088 = vadd.bf16 %v2032, %v2060
      %v2089 = vadd.bf16 %v2033, %v2061
      %v2090 = vadd.bf16 %v2034, %v2062
      %v2091 = vadd.bf16 %v2035, %v2063
      %s2092 = scalar_lea.vmem %s0, 128
      %v2093 = vld [vmem:[%s2092] sm:$0xf]
      %v2094 = vld [vmem:[%s2092 + $0x4] sm:$0x7]
      %v2095 = vld [vmem:[%s2092 + $0x8] sm:$0xf]
      %v2096 = vld [vmem:[%s2092 + $0xc] sm:$0x7]
      %v2097 = vld [vmem:[%s2092 + $0x10] sm:$0xf]
      %v2098 = vld [vmem:[%s2092 + $0x14] sm:$0x7]
      %v2099 = vld [vmem:[%s2092 + $0x18] sm:$0xf]
      %v2100 = vld [vmem:[%s2092 + $0x1c] sm:$0x7]
      %v2101 = vld [vmem:[%s2092 + $0x20] sm:$0xf]
      %v2102 = vld [vmem:[%s2092 + $0x24] sm:$0x7]
      %v2103 = vld [vmem:[%s2092 + $0x28] sm:$0xf]
      %v2104 = vld [vmem:[%s2092 + $0x2c] sm:$0x7]
      %v2105 = vld [vmem:[%s2092 + $0x30] sm:$0xf]
      %v2106 = vld [vmem:[%s2092 + $0x34] sm:$0x7]
      %v2107 = vld [vmem:[%s2092 + $0x38] sm:$0xf]
      %v2108 = vld [vmem:[%s2092 + $0x3c] sm:$0x7]
      %v2109 = vld [vmem:[%s2092 + $0x40] sm:$0xf]
      %v2110 = vld [vmem:[%s2092 + $0x44] sm:$0x7]
      %v2111 = vld [vmem:[%s2092 + $0x48] sm:$0xf]
      %v2112 = vld [vmem:[%s2092 + $0x4c] sm:$0x7]
      %v2113 = vld [vmem:[%s2092 + $0x50] sm:$0xf]
      %v2114 = vld [vmem:[%s2092 + $0x54] sm:$0x7]
      %v2115 = vld [vmem:[%s2092 + $0x58] sm:$0xf]
      %v2116 = vld [vmem:[%s2092 + $0x5c] sm:$0x7]
      %v2117 = vld [vmem:[%s2092 + $0x60] sm:$0xf]
      %v2118 = vld [vmem:[%s2092 + $0x64] sm:$0x7]
      %v2119 = vld [vmem:[%s2092 + $0x68] sm:$0xf]
      %v2120 = vld [vmem:[%s2092 + $0x6c] sm:$0x7]
      %v2121 = vmul.bf16 %v2093, %v933
      %v2122 = vmul.bf16 %v2094, %v933
      %v2123 = vmul.bf16 %v2095, %v933
      %v2124 = vmul.bf16 %v2096, %v933
      %v2125 = vmul.bf16 %v2097, %v933
      %v2126 = vmul.bf16 %v2098, %v933
      %v2127 = vmul.bf16 %v2099, %v933
      %v2128 = vmul.bf16 %v2100, %v933
      %v2129 = vmul.bf16 %v2101, %v933
      %v2130 = vmul.bf16 %v2102, %v933
      %v2131 = vmul.bf16 %v2103, %v933
      %v2132 = vmul.bf16 %v2104, %v933
      %v2133 = vmul.bf16 %v2105, %v933
      %v2134 = vmul.bf16 %v2106, %v933
      %v2135 = vmul.bf16 %v2107, %v933
      %v2136 = vmul.bf16 %v2108, %v933
      %v2137 = vmul.bf16 %v2109, %v933
      %v2138 = vmul.bf16 %v2110, %v933
      %v2139 = vmul.bf16 %v2111, %v933
      %v2140 = vmul.bf16 %v2112, %v933
      %v2141 = vmul.bf16 %v2113, %v933
      %v2142 = vmul.bf16 %v2114, %v933
      %v2143 = vmul.bf16 %v2115, %v933
      %v2144 = vmul.bf16 %v2116, %v933
      %v2145 = vmul.bf16 %v2117, %v933
      %v2146 = vmul.bf16 %v2118, %v933
      %v2147 = vmul.bf16 %v2119, %v933
      %v2148 = vmul.bf16 %v2120, %v933
      %v2149 = vadd.bf16 %v2064, %v2121
      %v2150 = vadd.bf16 %v2065, %v2122
      %v2151 = vadd.bf16 %v2066, %v2123
      %v2152 = vadd.bf16 %v2067, %v2124
      %v2153 = vadd.bf16 %v2068, %v2125
      %v2154 = vadd.bf16 %v2069, %v2126
      %v2155 = vadd.bf16 %v2070, %v2127
      %v2156 = vadd.bf16 %v2071, %v2128
      %v2157 = vadd.bf16 %v2072, %v2129
      %v2158 = vadd.bf16 %v2073, %v2130
      %v2159 = vadd.bf16 %v2074, %v2131
      %v2160 = vadd.bf16 %v2075, %v2132
      %v2161 = vadd.bf16 %v2076, %v2133
      %v2162 = vadd.bf16 %v2077, %v2134
      %v2163 = vadd.bf16 %v2078, %v2135
      %v2164 = vadd.bf16 %v2079, %v2136
      %v2165 = vadd.bf16 %v2080, %v2137
      %v2166 = vadd.bf16 %v2081, %v2138
      %v2167 = vadd.bf16 %v2082, %v2139
      %v2168 = vadd.bf16 %v2083, %v2140
      %v2169 = vadd.bf16 %v2084, %v2141
      %v2170 = vadd.bf16 %v2085, %v2142
      %v2171 = vadd.bf16 %v2086, %v2143
      %v2172 = vadd.bf16 %v2087, %v2144
      %v2173 = vadd.bf16 %v2088, %v2145
      %v2174 = vadd.bf16 %v2089, %v2146
      %v2175 = vadd.bf16 %v2090, %v2147
      %v2176 = vadd.bf16 %v2091, %v2148
      %s2177 = scalar_lea.vmem %s0, 368
      %v2178 = vld [vmem:[%s2177] sm:$0xf]
      %v2179 = vld [vmem:[%s2177 + $0x4] sm:$0x7]
      %v2180 = vld [vmem:[%s2177 + $0x8] sm:$0xf]
      %v2181 = vld [vmem:[%s2177 + $0xc] sm:$0x7]
      %v2182 = vld [vmem:[%s2177 + $0x10] sm:$0xf]
      %v2183 = vld [vmem:[%s2177 + $0x14] sm:$0x7]
      %v2184 = vld [vmem:[%s2177 + $0x18] sm:$0xf]
      %v2185 = vld [vmem:[%s2177 + $0x1c] sm:$0x7]
      %v2186 = vld [vmem:[%s2177 + $0x20] sm:$0xf]
      %v2187 = vld [vmem:[%s2177 + $0x24] sm:$0x7]
      %v2188 = vld [vmem:[%s2177 + $0x28] sm:$0xf]
      %v2189 = vld [vmem:[%s2177 + $0x2c] sm:$0x7]
      %v2190 = vld [vmem:[%s2177 + $0x30] sm:$0xf]
      %v2191 = vld [vmem:[%s2177 + $0x34] sm:$0x7]
      %v2192 = vld [vmem:[%s2177 + $0x38] sm:$0xf]
      %v2193 = vld [vmem:[%s2177 + $0x3c] sm:$0x7]
      %v2194 = vld [vmem:[%s2177 + $0x40] sm:$0xf]
      %v2195 = vld [vmem:[%s2177 + $0x44] sm:$0x7]
      %v2196 = vld [vmem:[%s2177 + $0x48] sm:$0xf]
      %v2197 = vld [vmem:[%s2177 + $0x4c] sm:$0x7]
      %v2198 = vld [vmem:[%s2177 + $0x50] sm:$0xf]
      %v2199 = vld [vmem:[%s2177 + $0x54] sm:$0x7]
      %v2200 = vld [vmem:[%s2177 + $0x58] sm:$0xf]
      %v2201 = vld [vmem:[%s2177 + $0x5c] sm:$0x7]
      %v2202 = vld [vmem:[%s2177 + $0x60] sm:$0xf]
      %v2203 = vld [vmem:[%s2177 + $0x64] sm:$0x7]
      %v2204 = vld [vmem:[%s2177 + $0x68] sm:$0xf]
      %v2205 = vld [vmem:[%s2177 + $0x6c] sm:$0x7]
      %v2206 = vmul.bf16 %v2178, %v1034
      %v2207 = vmul.bf16 %v2179, %v1034
      %v2208 = vmul.bf16 %v2180, %v1034
      %v2209 = vmul.bf16 %v2181, %v1034
      %v2210 = vmul.bf16 %v2182, %v1034
      %v2211 = vmul.bf16 %v2183, %v1034
      %v2212 = vmul.bf16 %v2184, %v1034
      %v2213 = vmul.bf16 %v2185, %v1034
      %v2214 = vmul.bf16 %v2186, %v1034
      %v2215 = vmul.bf16 %v2187, %v1034
      %v2216 = vmul.bf16 %v2188, %v1034
      %v2217 = vmul.bf16 %v2189, %v1034
      %v2218 = vmul.bf16 %v2190, %v1034
      %v2219 = vmul.bf16 %v2191, %v1034
      %v2220 = vmul.bf16 %v2192, %v1034
      %v2221 = vmul.bf16 %v2193, %v1034
      %v2222 = vmul.bf16 %v2194, %v1034
      %v2223 = vmul.bf16 %v2195, %v1034
      %v2224 = vmul.bf16 %v2196, %v1034
      %v2225 = vmul.bf16 %v2197, %v1034
      %v2226 = vmul.bf16 %v2198, %v1034
      %v2227 = vmul.bf16 %v2199, %v1034
      %v2228 = vmul.bf16 %v2200, %v1034
      %v2229 = vmul.bf16 %v2201, %v1034
      %v2230 = vmul.bf16 %v2202, %v1034
      %v2231 = vmul.bf16 %v2203, %v1034
      %v2232 = vmul.bf16 %v2204, %v1034
      %v2233 = vmul.bf16 %v2205, %v1034
      %v2234 = vadd.bf16 %v2149, %v2206
      %v2235 = vadd.bf16 %v2150, %v2207
      %v2236 = vadd.bf16 %v2151, %v2208
      %v2237 = vadd.bf16 %v2152, %v2209
      %v2238 = vadd.bf16 %v2153, %v2210
      %v2239 = vadd.bf16 %v2154, %v2211
      %v2240 = vadd.bf16 %v2155, %v2212
      %v2241 = vadd.bf16 %v2156, %v2213
      %v2242 = vadd.bf16 %v2157, %v2214
      %v2243 = vadd.bf16 %v2158, %v2215
      %v2244 = vadd.bf16 %v2159, %v2216
      %v2245 = vadd.bf16 %v2160, %v2217
      %v2246 = vadd.bf16 %v2161, %v2218
      %v2247 = vadd.bf16 %v2162, %v2219
      %v2248 = vadd.bf16 %v2163, %v2220
      %v2249 = vadd.bf16 %v2164, %v2221
      %v2250 = vadd.bf16 %v2165, %v2222
      %v2251 = vadd.bf16 %v2166, %v2223
      %v2252 = vadd.bf16 %v2167, %v2224
      %v2253 = vadd.bf16 %v2168, %v2225
      %v2254 = vadd.bf16 %v2169, %v2226
      %v2255 = vadd.bf16 %v2170, %v2227
      %v2256 = vadd.bf16 %v2171, %v2228
      %v2257 = vadd.bf16 %v2172, %v2229
      %v2258 = vadd.bf16 %v2173, %v2230
      %v2259 = vadd.bf16 %v2174, %v2231
      %v2260 = vadd.bf16 %v2175, %v2232
      %v2261 = vadd.bf16 %v2176, %v2233
      %s2262 = scalar_lea.vmem %s0, 608
      %v2263 = vld [vmem:[%s2262] sm:$0xf]
      %v2264 = vld [vmem:[%s2262 + $0x4] sm:$0x7]
      %v2265 = vld [vmem:[%s2262 + $0x8] sm:$0xf]
      %v2266 = vld [vmem:[%s2262 + $0xc] sm:$0x7]
      %v2267 = vld [vmem:[%s2262 + $0x10] sm:$0xf]
      %v2268 = vld [vmem:[%s2262 + $0x14] sm:$0x7]
      %v2269 = vld [vmem:[%s2262 + $0x18] sm:$0xf]
      %v2270 = vld [vmem:[%s2262 + $0x1c] sm:$0x7]
      %v2271 = vld [vmem:[%s2262 + $0x20] sm:$0xf]
      %v2272 = vld [vmem:[%s2262 + $0x24] sm:$0x7]
      %v2273 = vld [vmem:[%s2262 + $0x28] sm:$0xf]
      %v2274 = vld [vmem:[%s2262 + $0x2c] sm:$0x7]
      %v2275 = vld [vmem:[%s2262 + $0x30] sm:$0xf]
      %v2276 = vld [vmem:[%s2262 + $0x34] sm:$0x7]
      %v2277 = vld [vmem:[%s2262 + $0x38] sm:$0xf]
      %v2278 = vld [vmem:[%s2262 + $0x3c] sm:$0x7]
      %v2279 = vld [vmem:[%s2262 + $0x40] sm:$0xf]
      %v2280 = vld [vmem:[%s2262 + $0x44] sm:$0x7]
      %v2281 = vld [vmem:[%s2262 + $0x48] sm:$0xf]
      %v2282 = vld [vmem:[%s2262 + $0x4c] sm:$0x7]
      %v2283 = vld [vmem:[%s2262 + $0x50] sm:$0xf]
      %v2284 = vld [vmem:[%s2262 + $0x54] sm:$0x7]
      %v2285 = vld [vmem:[%s2262 + $0x58] sm:$0xf]
      %v2286 = vld [vmem:[%s2262 + $0x5c] sm:$0x7]
      %v2287 = vld [vmem:[%s2262 + $0x60] sm:$0xf]
      %v2288 = vld [vmem:[%s2262 + $0x64] sm:$0x7]
      %v2289 = vld [vmem:[%s2262 + $0x68] sm:$0xf]
      %v2290 = vld [vmem:[%s2262 + $0x6c] sm:$0x7]
      %v2291 = vmul.bf16 %v2263, %v1135
      %v2292 = vmul.bf16 %v2264, %v1135
      %v2293 = vmul.bf16 %v2265, %v1135
      %v2294 = vmul.bf16 %v2266, %v1135
      %v2295 = vmul.bf16 %v2267, %v1135
      %v2296 = vmul.bf16 %v2268, %v1135
      %v2297 = vmul.bf16 %v2269, %v1135
      %v2298 = vmul.bf16 %v2270, %v1135
      %v2299 = vmul.bf16 %v2271, %v1135
      %v2300 = vmul.bf16 %v2272, %v1135
      %v2301 = vmul.bf16 %v2273, %v1135
      %v2302 = vmul.bf16 %v2274, %v1135
      %v2303 = vmul.bf16 %v2275, %v1135
      %v2304 = vmul.bf16 %v2276, %v1135
      %v2305 = vmul.bf16 %v2277, %v1135
      %v2306 = vmul.bf16 %v2278, %v1135
      %v2307 = vmul.bf16 %v2279, %v1135
      %v2308 = vmul.bf16 %v2280, %v1135
      %v2309 = vmul.bf16 %v2281, %v1135
      %v2310 = vmul.bf16 %v2282, %v1135
      %v2311 = vmul.bf16 %v2283, %v1135
      %v2312 = vmul.bf16 %v2284, %v1135
      %v2313 = vmul.bf16 %v2285, %v1135
      %v2314 = vmul.bf16 %v2286, %v1135
      %v2315 = vmul.bf16 %v2287, %v1135
      %v2316 = vmul.bf16 %v2288, %v1135
      %v2317 = vmul.bf16 %v2289, %v1135
      %v2318 = vmul.bf16 %v2290, %v1135
      %v2319 = vadd.bf16 %v2234, %v2291
      %v2320 = vadd.bf16 %v2235, %v2292
      %v2321 = vadd.bf16 %v2236, %v2293
      %v2322 = vadd.bf16 %v2237, %v2294
      %v2323 = vadd.bf16 %v2238, %v2295
      %v2324 = vadd.bf16 %v2239, %v2296
      %v2325 = vadd.bf16 %v2240, %v2297
      %v2326 = vadd.bf16 %v2241, %v2298
      %v2327 = vadd.bf16 %v2242, %v2299
      %v2328 = vadd.bf16 %v2243, %v2300
      %v2329 = vadd.bf16 %v2244, %v2301
      %v2330 = vadd.bf16 %v2245, %v2302
      %v2331 = vadd.bf16 %v2246, %v2303
      %v2332 = vadd.bf16 %v2247, %v2304
      %v2333 = vadd.bf16 %v2248, %v2305
      %v2334 = vadd.bf16 %v2249, %v2306
      %v2335 = vadd.bf16 %v2250, %v2307
      %v2336 = vadd.bf16 %v2251, %v2308
      %v2337 = vadd.bf16 %v2252, %v2309
      %v2338 = vadd.bf16 %v2253, %v2310
      %v2339 = vadd.bf16 %v2254, %v2311
      %v2340 = vadd.bf16 %v2255, %v2312
      %v2341 = vadd.bf16 %v2256, %v2313
      %v2342 = vadd.bf16 %v2257, %v2314
      %v2343 = vadd.bf16 %v2258, %v2315
      %v2344 = vadd.bf16 %v2259, %v2316
      %v2345 = vadd.bf16 %v2260, %v2317
      %v2346 = vadd.bf16 %v2261, %v2318
      %v2347 = vmax.bf16 %v1756, %v2319
      %v2348 = vmax.bf16 %v1757, %v2320
      %v2349 = vmax.bf16 %v1758, %v2321
      %v2350 = vmax.bf16 %v1759, %v2322
      %v2351 = vmax.bf16 %v1760, %v2323
      %v2352 = vmax.bf16 %v1761, %v2324
      %v2353 = vmax.bf16 %v1762, %v2325
      %v2354 = vmax.bf16 %v1763, %v2326
      %v2355 = vmax.bf16 %v1764, %v2327
      %v2356 = vmax.bf16 %v1765, %v2328
      %v2357 = vmax.bf16 %v1766, %v2329
      %v2358 = vmax.bf16 %v1767, %v2330
      %v2359 = vmax.bf16 %v1768, %v2331
      %v2360 = vmax.bf16 %v1769, %v2332
      %v2361 = vmax.bf16 %v1770, %v2333
      %v2362 = vmax.bf16 %v1771, %v2334
      %v2363 = vmax.bf16 %v1772, %v2335
      %v2364 = vmax.bf16 %v1773, %v2336
      %v2365 = vmax.bf16 %v1774, %v2337
      %v2366 = vmax.bf16 %v1775, %v2338
      %v2367 = vmax.bf16 %v1776, %v2339
      %v2368 = vmax.bf16 %v1777, %v2340
      %v2369 = vmax.bf16 %v1778, %v2341
      %v2370 = vmax.bf16 %v1779, %v2342
      %v2371 = vmax.bf16 %v1780, %v2343
      %v2372 = vmax.bf16 %v1781, %v2344
      %v2373 = vmax.bf16 %v1782, %v2345
      %v2374 = vmax.bf16 %v1783, %v2346
      %v2375 = vmul.bf16 %v689, %v355
      %v2376 = vmul.bf16 %v690, %v355
      %v2377 = vmul.bf16 %v691, %v355
      %v2378 = vmul.bf16 %v692, %v355
      %v2379 = vmul.bf16 %v693, %v355
      %v2380 = vmul.bf16 %v694, %v355
      %v2381 = vmul.bf16 %v695, %v355
      %v2382 = vmul.bf16 %v696, %v355
      %v2383 = vmul.bf16 %v697, %v355
      %v2384 = vmul.bf16 %v698, %v355
      %v2385 = vmul.bf16 %v699, %v355
      %v2386 = vmul.bf16 %v700, %v355
      %v2387 = vmul.bf16 %v701, %v355
      %v2388 = vmul.bf16 %v702, %v355
      %v2389 = vmul.bf16 %v703, %v355
      %v2390 = vmul.bf16 %v704, %v355
      %v2391 = vmul.bf16 %v705, %v355
      %v2392 = vmul.bf16 %v706, %v355
      %v2393 = vmul.bf16 %v707, %v355
      %v2394 = vmul.bf16 %v708, %v355
      %v2395 = vmul.bf16 %v709, %v355
      %v2396 = vmul.bf16 %v710, %v355
      %v2397 = vmul.bf16 %v711, %v355
      %v2398 = vmul.bf16 %v712, %v355
      %v2399 = vmul.bf16 %v713, %v355
      %v2400 = vmul.bf16 %v714, %v355
      %v2401 = vmul.bf16 %v715, %v355
      %v2402 = vmul.bf16 %v716, %v355
      %v2403 = vmul.bf16 %v790, %v428
      %v2404 = vmul.bf16 %v791, %v428
      %v2405 = vmul.bf16 %v792, %v428
      %v2406 = vmul.bf16 %v793, %v428
      %v2407 = vmul.bf16 %v794, %v428
      %v2408 = vmul.bf16 %v795, %v428
      %v2409 = vmul.bf16 %v796, %v428
      %v2410 = vmul.bf16 %v797, %v428
      %v2411 = vmul.bf16 %v798, %v428
      %v2412 = vmul.bf16 %v799, %v428
      %v2413 = vmul.bf16 %v800, %v428
      %v2414 = vmul.bf16 %v801, %v428
      %v2415 = vmul.bf16 %v802, %v428
      %v2416 = vmul.bf16 %v803, %v428
      %v2417 = vmul.bf16 %v804, %v428
      %v2418 = vmul.bf16 %v805, %v428
      %v2419 = vmul.bf16 %v806, %v428
      %v2420 = vmul.bf16 %v807, %v428
      %v2421 = vmul.bf16 %v808, %v428
      %v2422 = vmul.bf16 %v809, %v428
      %v2423 = vmul.bf16 %v810, %v428
      %v2424 = vmul.bf16 %v811, %v428
      %v2425 = vmul.bf16 %v812, %v428
      %v2426 = vmul.bf16 %v813, %v428
      %v2427 = vmul.bf16 %v814, %v428
      %v2428 = vmul.bf16 %v815, %v428
      %v2429 = vmul.bf16 %v816, %v428
      %v2430 = vmul.bf16 %v817, %v428
      %v2431 = vadd.bf16 %v2375, %v2403
      %v2432 = vadd.bf16 %v2376, %v2404
      %v2433 = vadd.bf16 %v2377, %v2405
      %v2434 = vadd.bf16 %v2378, %v2406
      %v2435 = vadd.bf16 %v2379, %v2407
      %v2436 = vadd.bf16 %v2380, %v2408
      %v2437 = vadd.bf16 %v2381, %v2409
      %v2438 = vadd.bf16 %v2382, %v2410
      %v2439 = vadd.bf16 %v2383, %v2411
      %v2440 = vadd.bf16 %v2384, %v2412
      %v2441 = vadd.bf16 %v2385, %v2413
      %v2442 = vadd.bf16 %v2386, %v2414
      %v2443 = vadd.bf16 %v2387, %v2415
      %v2444 = vadd.bf16 %v2388, %v2416
      %v2445 = vadd.bf16 %v2389, %v2417
      %v2446 = vadd.bf16 %v2390, %v2418
      %v2447 = vadd.bf16 %v2391, %v2419
      %v2448 = vadd.bf16 %v2392, %v2420
      %v2449 = vadd.bf16 %v2393, %v2421
      %v2450 = vadd.bf16 %v2394, %v2422
      %v2451 = vadd.bf16 %v2395, %v2423
      %v2452 = vadd.bf16 %v2396, %v2424
      %v2453 = vadd.bf16 %v2397, %v2425
      %v2454 = vadd.bf16 %v2398, %v2426
      %v2455 = vadd.bf16 %v2399, %v2427
      %v2456 = vadd.bf16 %v2400, %v2428
      %v2457 = vadd.bf16 %v2401, %v2429
      %v2458 = vadd.bf16 %v2402, %v2430
      %v2459 = vmul.bf16 %v1475, %v529
      %v2460 = vmul.bf16 %v1476, %v529
      %v2461 = vmul.bf16 %v1477, %v529
      %v2462 = vmul.bf16 %v1478, %v529
      %v2463 = vmul.bf16 %v1479, %v529
      %v2464 = vmul.bf16 %v1480, %v529
      %v2465 = vmul.bf16 %v1481, %v529
      %v2466 = vmul.bf16 %v1482, %v529
      %v2467 = vmul.bf16 %v1483, %v529
      %v2468 = vmul.bf16 %v1484, %v529
      %v2469 = vmul.bf16 %v1485, %v529
      %v2470 = vmul.bf16 %v1486, %v529
      %v2471 = vmul.bf16 %v1487, %v529
      %v2472 = vmul.bf16 %v1488, %v529
      %v2473 = vmul.bf16 %v1489, %v529
      %v2474 = vmul.bf16 %v1490, %v529
      %v2475 = vmul.bf16 %v1491, %v529
      %v2476 = vmul.bf16 %v1492, %v529
      %v2477 = vmul.bf16 %v1493, %v529
      %v2478 = vmul.bf16 %v1494, %v529
      %v2479 = vmul.bf16 %v1495, %v529
      %v2480 = vmul.bf16 %v1496, %v529
      %v2481 = vmul.bf16 %v1497, %v529
      %v2482 = vmul.bf16 %v1498, %v529
      %v2483 = vmul.bf16 %v1499, %v529
      %v2484 = vmul.bf16 %v1500, %v529
      %v2485 = vmul.bf16 %v1501, %v529
      %v2486 = vmul.bf16 %v1502, %v529
      %v2487 = vadd.bf16 %v2431, %v2459
      %v2488 = vadd.bf16 %v2432, %v2460
      %v2489 = vadd.bf16 %v2433, %v2461
      %v2490 = vadd.bf16 %v2434, %v2462
      %v2491 = vadd.bf16 %v2435, %v2463
      %v2492 = vadd.bf16 %v2436, %v2464
      %v2493 = vadd.bf16 %v2437, %v2465
      %v2494 = vadd.bf16 %v2438, %v2466
      %v2495 = vadd.bf16 %v2439, %v2467
      %v2496 = vadd.bf16 %v2440, %v2468
      %v2497 = vadd.bf16 %v2441, %v2469
      %v2498 = vadd.bf16 %v2442, %v2470
      %v2499 = vadd.bf16 %v2443, %v2471
      %v2500 = vadd.bf16 %v2444, %v2472
      %v2501 = vadd.bf16 %v2445, %v2473
      %v2502 = vadd.bf16 %v2446, %v2474
      %v2503 = vadd.bf16 %v2447, %v2475
      %v2504 = vadd.bf16 %v2448, %v2476
      %v2505 = vadd.bf16 %v2449, %v2477
      %v2506 = vadd.bf16 %v2450, %v2478
      %v2507 = vadd.bf16 %v2451, %v2479
      %v2508 = vadd.bf16 %v2452, %v2480
      %v2509 = vadd.bf16 %v2453, %v2481
      %v2510 = vadd.bf16 %v2454, %v2482
      %v2511 = vadd.bf16 %v2455, %v2483
      %v2512 = vadd.bf16 %v2456, %v2484
      %v2513 = vadd.bf16 %v2457, %v2485
      %v2514 = vadd.bf16 %v2458, %v2486
      %v2515 = vmul.bf16 %v992, %v630
      %v2516 = vmul.bf16 %v993, %v630
      %v2517 = vmul.bf16 %v994, %v630
      %v2518 = vmul.bf16 %v995, %v630
      %v2519 = vmul.bf16 %v996, %v630
      %v2520 = vmul.bf16 %v997, %v630
      %v2521 = vmul.bf16 %v998, %v630
      %v2522 = vmul.bf16 %v999, %v630
      %v2523 = vmul.bf16 %v1000, %v630
      %v2524 = vmul.bf16 %v1001, %v630
      %v2525 = vmul.bf16 %v1002, %v630
      %v2526 = vmul.bf16 %v1003, %v630
      %v2527 = vmul.bf16 %v1004, %v630
      %v2528 = vmul.bf16 %v1005, %v630
      %v2529 = vmul.bf16 %v1006, %v630
      %v2530 = vmul.bf16 %v1007, %v630
      %v2531 = vmul.bf16 %v1008, %v630
      %v2532 = vmul.bf16 %v1009, %v630
      %v2533 = vmul.bf16 %v1010, %v630
      %v2534 = vmul.bf16 %v1011, %v630
      %v2535 = vmul.bf16 %v1012, %v630
      %v2536 = vmul.bf16 %v1013, %v630
      %v2537 = vmul.bf16 %v1014, %v630
      %v2538 = vmul.bf16 %v1015, %v630
      %v2539 = vmul.bf16 %v1016, %v630
      %v2540 = vmul.bf16 %v1017, %v630
      %v2541 = vmul.bf16 %v1018, %v630
      %v2542 = vmul.bf16 %v1019, %v630
      %v2543 = vadd.bf16 %v2487, %v2515
      %v2544 = vadd.bf16 %v2488, %v2516
      %v2545 = vadd.bf16 %v2489, %v2517
      %v2546 = vadd.bf16 %v2490, %v2518
      %v2547 = vadd.bf16 %v2491, %v2519
      %v2548 = vadd.bf16 %v2492, %v2520
      %v2549 = vadd.bf16 %v2493, %v2521
      %v2550 = vadd.bf16 %v2494, %v2522
      %v2551 = vadd.bf16 %v2495, %v2523
      %v2552 = vadd.bf16 %v2496, %v2524
      %v2553 = vadd.bf16 %v2497, %v2525
      %v2554 = vadd.bf16 %v2498, %v2526
      %v2555 = vadd.bf16 %v2499, %v2527
      %v2556 = vadd.bf16 %v2500, %v2528
      %v2557 = vadd.bf16 %v2501, %v2529
      %v2558 = vadd.bf16 %v2502, %v2530
      %v2559 = vadd.bf16 %v2503, %v2531
      %v2560 = vadd.bf16 %v2504, %v2532
      %v2561 = vadd.bf16 %v2505, %v2533
      %v2562 = vadd.bf16 %v2506, %v2534
      %v2563 = vadd.bf16 %v2507, %v2535
      %v2564 = vadd.bf16 %v2508, %v2536
      %v2565 = vadd.bf16 %v2509, %v2537
      %v2566 = vadd.bf16 %v2510, %v2538
      %v2567 = vadd.bf16 %v2511, %v2539
      %v2568 = vadd.bf16 %v2512, %v2540
      %v2569 = vadd.bf16 %v2513, %v2541
      %v2570 = vadd.bf16 %v2514, %v2542
      %v2571 = vmul.bf16 %v1093, %v731
      %v2572 = vmul.bf16 %v1094, %v731
      %v2573 = vmul.bf16 %v1095, %v731
      %v2574 = vmul.bf16 %v1096, %v731
      %v2575 = vmul.bf16 %v1097, %v731
      %v2576 = vmul.bf16 %v1098, %v731
      %v2577 = vmul.bf16 %v1099, %v731
      %v2578 = vmul.bf16 %v1100, %v731
      %v2579 = vmul.bf16 %v1101, %v731
      %v2580 = vmul.bf16 %v1102, %v731
      %v2581 = vmul.bf16 %v1103, %v731
      %v2582 = vmul.bf16 %v1104, %v731
      %v2583 = vmul.bf16 %v1105, %v731
      %v2584 = vmul.bf16 %v1106, %v731
      %v2585 = vmul.bf16 %v1107, %v731
      %v2586 = vmul.bf16 %v1108, %v731
      %v2587 = vmul.bf16 %v1109, %v731
      %v2588 = vmul.bf16 %v1110, %v731
      %v2589 = vmul.bf16 %v1111, %v731
      %v2590 = vmul.bf16 %v1112, %v731
      %v2591 = vmul.bf16 %v1113, %v731
      %v2592 = vmul.bf16 %v1114, %v731
      %v2593 = vmul.bf16 %v1115, %v731
      %v2594 = vmul.bf16 %v1116, %v731
      %v2595 = vmul.bf16 %v1117, %v731
      %v2596 = vmul.bf16 %v1118, %v731
      %v2597 = vmul.bf16 %v1119, %v731
      %v2598 = vmul.bf16 %v1120, %v731
      %v2599 = vadd.bf16 %v2543, %v2571
      %v2600 = vadd.bf16 %v2544, %v2572
      %v2601 = vadd.bf16 %v2545, %v2573
      %v2602 = vadd.bf16 %v2546, %v2574
      %v2603 = vadd.bf16 %v2547, %v2575
      %v2604 = vadd.bf16 %v2548, %v2576
      %v2605 = vadd.bf16 %v2549, %v2577
      %v2606 = vadd.bf16 %v2550, %v2578
      %v2607 = vadd.bf16 %v2551, %v2579
      %v2608 = vadd.bf16 %v2552, %v2580
      %v2609 = vadd.bf16 %v2553, %v2581
      %v2610 = vadd.bf16 %v2554, %v2582
      %v2611 = vadd.bf16 %v2555, %v2583
      %v2612 = vadd.bf16 %v2556, %v2584
      %v2613 = vadd.bf16 %v2557, %v2585
      %v2614 = vadd.bf16 %v2558, %v2586
      %v2615 = vadd.bf16 %v2559, %v2587
      %v2616 = vadd.bf16 %v2560, %v2588
      %v2617 = vadd.bf16 %v2561, %v2589
      %v2618 = vadd.bf16 %v2562, %v2590
      %v2619 = vadd.bf16 %v2563, %v2591
      %v2620 = vadd.bf16 %v2564, %v2592
      %v2621 = vadd.bf16 %v2565, %v2593
      %v2622 = vadd.bf16 %v2566, %v2594
      %v2623 = vadd.bf16 %v2567, %v2595
      %v2624 = vadd.bf16 %v2568, %v2596
      %v2625 = vadd.bf16 %v2569, %v2597
      %v2626 = vadd.bf16 %v2570, %v2598
      %v2627 = vmul.bf16 %v1672, %v832
      %v2628 = vmul.bf16 %v1673, %v832
      %v2629 = vmul.bf16 %v1674, %v832
      %v2630 = vmul.bf16 %v1675, %v832
      %v2631 = vmul.bf16 %v1676, %v832
      %v2632 = vmul.bf16 %v1677, %v832
      %v2633 = vmul.bf16 %v1678, %v832
      %v2634 = vmul.bf16 %v1679, %v832
      %v2635 = vmul.bf16 %v1680, %v832
      %v2636 = vmul.bf16 %v1681, %v832
      %v2637 = vmul.bf16 %v1682, %v832
      %v2638 = vmul.bf16 %v1683, %v832
      %v2639 = vmul.bf16 %v1684, %v832
      %v2640 = vmul.bf16 %v1685, %v832
      %v2641 = vmul.bf16 %v1686, %v832
      %v2642 = vmul.bf16 %v1687, %v832
      %v2643 = vmul.bf16 %v1688, %v832
      %v2644 = vmul.bf16 %v1689, %v832
      %v2645 = vmul.bf16 %v1690, %v832
      %v2646 = vmul.bf16 %v1691, %v832
      %v2647 = vmul.bf16 %v1692, %v832
      %v2648 = vmul.bf16 %v1693, %v832
      %v2649 = vmul.bf16 %v1694, %v832
      %v2650 = vmul.bf16 %v1695, %v832
      %v2651 = vmul.bf16 %v1696, %v832
      %v2652 = vmul.bf16 %v1697, %v832
      %v2653 = vmul.bf16 %v1698, %v832
      %v2654 = vmul.bf16 %v1699, %v832
      %v2655 = vadd.bf16 %v2599, %v2627
      %v2656 = vadd.bf16 %v2600, %v2628
      %v2657 = vadd.bf16 %v2601, %v2629
      %v2658 = vadd.bf16 %v2602, %v2630
      %v2659 = vadd.bf16 %v2603, %v2631
      %v2660 = vadd.bf16 %v2604, %v2632
      %v2661 = vadd.bf16 %v2605, %v2633
      %v2662 = vadd.bf16 %v2606, %v2634
      %v2663 = vadd.bf16 %v2607, %v2635
      %v2664 = vadd.bf16 %v2608, %v2636
      %v2665 = vadd.bf16 %v2609, %v2637
      %v2666 = vadd.bf16 %v2610, %v2638
      %v2667 = vadd.bf16 %v2611, %v2639
      %v2668 = vadd.bf16 %v2612, %v2640
      %v2669 = vadd.bf16 %v2613, %v2641
      %v2670 = vadd.bf16 %v2614, %v2642
      %v2671 = vadd.bf16 %v2615, %v2643
      %v2672 = vadd.bf16 %v2616, %v2644
      %v2673 = vadd.bf16 %v2617, %v2645
      %v2674 = vadd.bf16 %v2618, %v2646
      %v2675 = vadd.bf16 %v2619, %v2647
      %v2676 = vadd.bf16 %v2620, %v2648
      %v2677 = vadd.bf16 %v2621, %v2649
      %v2678 = vadd.bf16 %v2622, %v2650
      %v2679 = vadd.bf16 %v2623, %v2651
      %v2680 = vadd.bf16 %v2624, %v2652
      %v2681 = vadd.bf16 %v2625, %v2653
      %v2682 = vadd.bf16 %v2626, %v2654
      %v2683 = vmul.bf16 %v2178, %v933
      %v2684 = vmul.bf16 %v2179, %v933
      %v2685 = vmul.bf16 %v2180, %v933
      %v2686 = vmul.bf16 %v2181, %v933
      %v2687 = vmul.bf16 %v2182, %v933
      %v2688 = vmul.bf16 %v2183, %v933
      %v2689 = vmul.bf16 %v2184, %v933
      %v2690 = vmul.bf16 %v2185, %v933
      %v2691 = vmul.bf16 %v2186, %v933
      %v2692 = vmul.bf16 %v2187, %v933
      %v2693 = vmul.bf16 %v2188, %v933
      %v2694 = vmul.bf16 %v2189, %v933
      %v2695 = vmul.bf16 %v2190, %v933
      %v2696 = vmul.bf16 %v2191, %v933
      %v2697 = vmul.bf16 %v2192, %v933
      %v2698 = vmul.bf16 %v2193, %v933
      %v2699 = vmul.bf16 %v2194, %v933
      %v2700 = vmul.bf16 %v2195, %v933
      %v2701 = vmul.bf16 %v2196, %v933
      %v2702 = vmul.bf16 %v2197, %v933
      %v2703 = vmul.bf16 %v2198, %v933
      %v2704 = vmul.bf16 %v2199, %v933
      %v2705 = vmul.bf16 %v2200, %v933
      %v2706 = vmul.bf16 %v2201, %v933
      %v2707 = vmul.bf16 %v2202, %v933
      %v2708 = vmul.bf16 %v2203, %v933
      %v2709 = vmul.bf16 %v2204, %v933
      %v2710 = vmul.bf16 %v2205, %v933
      %v2711 = vadd.bf16 %v2655, %v2683
      %v2712 = vadd.bf16 %v2656, %v2684
      %v2713 = vadd.bf16 %v2657, %v2685
      %v2714 = vadd.bf16 %v2658, %v2686
      %v2715 = vadd.bf16 %v2659, %v2687
      %v2716 = vadd.bf16 %v2660, %v2688
      %v2717 = vadd.bf16 %v2661, %v2689
      %v2718 = vadd.bf16 %v2662, %v2690
      %v2719 = vadd.bf16 %v2663, %v2691
      %v2720 = vadd.bf16 %v2664, %v2692
      %v2721 = vadd.bf16 %v2665, %v2693
      %v2722 = vadd.bf16 %v2666, %v2694
      %v2723 = vadd.bf16 %v2667, %v2695
      %v2724 = vadd.bf16 %v2668, %v2696
      %v2725 = vadd.bf16 %v2669, %v2697
      %v2726 = vadd.bf16 %v2670, %v2698
      %v2727 = vadd.bf16 %v2671, %v2699
      %v2728 = vadd.bf16 %v2672, %v2700
      %v2729 = vadd.bf16 %v2673, %v2701
      %v2730 = vadd.bf16 %v2674, %v2702
      %v2731 = vadd.bf16 %v2675, %v2703
      %v2732 = vadd.bf16 %v2676, %v2704
      %v2733 = vadd.bf16 %v2677, %v2705
      %v2734 = vadd.bf16 %v2678, %v2706
      %v2735 = vadd.bf16 %v2679, %v2707
      %v2736 = vadd.bf16 %v2680, %v2708
      %v2737 = vadd.bf16 %v2681, %v2709
      %v2738 = vadd.bf16 %v2682, %v2710
      %v2739 = vmul.bf16 %v2263, %v1034
      %v2740 = vmul.bf16 %v2264, %v1034
      %v2741 = vmul.bf16 %v2265, %v1034
      %v2742 = vmul.bf16 %v2266, %v1034
      %v2743 = vmul.bf16 %v2267, %v1034
      %v2744 = vmul.bf16 %v2268, %v1034
      %v2745 = vmul.bf16 %v2269, %v1034
      %v2746 = vmul.bf16 %v2270, %v1034
      %v2747 = vmul.bf16 %v2271, %v1034
      %v2748 = vmul.bf16 %v2272, %v1034
      %v2749 = vmul.bf16 %v2273, %v1034
      %v2750 = vmul.bf16 %v2274, %v1034
      %v2751 = vmul.bf16 %v2275, %v1034
      %v2752 = vmul.bf16 %v2276, %v1034
      %v2753 = vmul.bf16 %v2277, %v1034
      %v2754 = vmul.bf16 %v2278, %v1034
      %v2755 = vmul.bf16 %v2279, %v1034
      %v2756 = vmul.bf16 %v2280, %v1034
      %v2757 = vmul.bf16 %v2281, %v1034
      %v2758 = vmul.bf16 %v2282, %v1034
      %v2759 = vmul.bf16 %v2283, %v1034
      %v2760 = vmul.bf16 %v2284, %v1034
      %v2761 = vmul.bf16 %v2285, %v1034
      %v2762 = vmul.bf16 %v2286, %v1034
      %v2763 = vmul.bf16 %v2287, %v1034
      %v2764 = vmul.bf16 %v2288, %v1034
      %v2765 = vmul.bf16 %v2289, %v1034
      %v2766 = vmul.bf16 %v2290, %v1034
      %v2767 = vadd.bf16 %v2711, %v2739
      %v2768 = vadd.bf16 %v2712, %v2740
      %v2769 = vadd.bf16 %v2713, %v2741
      %v2770 = vadd.bf16 %v2714, %v2742
      %v2771 = vadd.bf16 %v2715, %v2743
      %v2772 = vadd.bf16 %v2716, %v2744
      %v2773 = vadd.bf16 %v2717, %v2745
      %v2774 = vadd.bf16 %v2718, %v2746
      %v2775 = vadd.bf16 %v2719, %v2747
      %v2776 = vadd.bf16 %v2720, %v2748
      %v2777 = vadd.bf16 %v2721, %v2749
      %v2778 = vadd.bf16 %v2722, %v2750
      %v2779 = vadd.bf16 %v2723, %v2751
      %v2780 = vadd.bf16 %v2724, %v2752
      %v2781 = vadd.bf16 %v2725, %v2753
      %v2782 = vadd.bf16 %v2726, %v2754
      %v2783 = vadd.bf16 %v2727, %v2755
      %v2784 = vadd.bf16 %v2728, %v2756
      %v2785 = vadd.bf16 %v2729, %v2757
      %v2786 = vadd.bf16 %v2730, %v2758
      %v2787 = vadd.bf16 %v2731, %v2759
      %v2788 = vadd.bf16 %v2732, %v2760
      %v2789 = vadd.bf16 %v2733, %v2761
      %v2790 = vadd.bf16 %v2734, %v2762
      %v2791 = vadd.bf16 %v2735, %v2763
      %v2792 = vadd.bf16 %v2736, %v2764
      %v2793 = vadd.bf16 %v2737, %v2765
      %v2794 = vadd.bf16 %v2738, %v2766
      %s2795 = scalar_lea.vmem %s0, 848
      %v2796 = vld [vmem:[%s2795] sm:$0xf]
      %v2797 = vld [vmem:[%s2795 + $0x4] sm:$0x7]
      %v2798 = vld [vmem:[%s2795 + $0x8] sm:$0xf]
      %v2799 = vld [vmem:[%s2795 + $0xc] sm:$0x7]
      %v2800 = vld [vmem:[%s2795 + $0x10] sm:$0xf]
      %v2801 = vld [vmem:[%s2795 + $0x14] sm:$0x7]
      %v2802 = vld [vmem:[%s2795 + $0x18] sm:$0xf]
      %v2803 = vld [vmem:[%s2795 + $0x1c] sm:$0x7]
      %v2804 = vld [vmem:[%s2795 + $0x20] sm:$0xf]
      %v2805 = vld [vmem:[%s2795 + $0x24] sm:$0x7]
      %v2806 = vld [vmem:[%s2795 + $0x28] sm:$0xf]
      %v2807 = vld [vmem:[%s2795 + $0x2c] sm:$0x7]
      %v2808 = vld [vmem:[%s2795 + $0x30] sm:$0xf]
      %v2809 = vld [vmem:[%s2795 + $0x34] sm:$0x7]
      %v2810 = vld [vmem:[%s2795 + $0x38] sm:$0xf]
      %v2811 = vld [vmem:[%s2795 + $0x3c] sm:$0x7]
      %v2812 = vld [vmem:[%s2795 + $0x40] sm:$0xf]
      %v2813 = vld [vmem:[%s2795 + $0x44] sm:$0x7]
      %v2814 = vld [vmem:[%s2795 + $0x48] sm:$0xf]
      %v2815 = vld [vmem:[%s2795 + $0x4c] sm:$0x7]
      %v2816 = vld [vmem:[%s2795 + $0x50] sm:$0xf]
      %v2817 = vld [vmem:[%s2795 + $0x54] sm:$0x7]
      %v2818 = vld [vmem:[%s2795 + $0x58] sm:$0xf]
      %v2819 = vld [vmem:[%s2795 + $0x5c] sm:$0x7]
      %v2820 = vld [vmem:[%s2795 + $0x60] sm:$0xf]
      %v2821 = vld [vmem:[%s2795 + $0x64] sm:$0x7]
      %v2822 = vld [vmem:[%s2795 + $0x68] sm:$0xf]
      %v2823 = vld [vmem:[%s2795 + $0x6c] sm:$0x7]
      %v2824 = vmul.bf16 %v2796, %v1135
      %v2825 = vmul.bf16 %v2797, %v1135
      %v2826 = vmul.bf16 %v2798, %v1135
      %v2827 = vmul.bf16 %v2799, %v1135
      %v2828 = vmul.bf16 %v2800, %v1135
      %v2829 = vmul.bf16 %v2801, %v1135
      %v2830 = vmul.bf16 %v2802, %v1135
      %v2831 = vmul.bf16 %v2803, %v1135
      %v2832 = vmul.bf16 %v2804, %v1135
      %v2833 = vmul.bf16 %v2805, %v1135
      %v2834 = vmul.bf16 %v2806, %v1135
      %v2835 = vmul.bf16 %v2807, %v1135
      %v2836 = vmul.bf16 %v2808, %v1135
      %v2837 = vmul.bf16 %v2809, %v1135
      %v2838 = vmul.bf16 %v2810, %v1135
      %v2839 = vmul.bf16 %v2811, %v1135
      %v2840 = vmul.bf16 %v2812, %v1135
      %v2841 = vmul.bf16 %v2813, %v1135
      %v2842 = vmul.bf16 %v2814, %v1135
      %v2843 = vmul.bf16 %v2815, %v1135
      %v2844 = vmul.bf16 %v2816, %v1135
      %v2845 = vmul.bf16 %v2817, %v1135
      %v2846 = vmul.bf16 %v2818, %v1135
      %v2847 = vmul.bf16 %v2819, %v1135
      %v2848 = vmul.bf16 %v2820, %v1135
      %v2849 = vmul.bf16 %v2821, %v1135
      %v2850 = vmul.bf16 %v2822, %v1135
      %v2851 = vmul.bf16 %v2823, %v1135
      %v2852 = vadd.bf16 %v2767, %v2824
      %v2853 = vadd.bf16 %v2768, %v2825
      %v2854 = vadd.bf16 %v2769, %v2826
      %v2855 = vadd.bf16 %v2770, %v2827
      %v2856 = vadd.bf16 %v2771, %v2828
      %v2857 = vadd.bf16 %v2772, %v2829
      %v2858 = vadd.bf16 %v2773, %v2830
      %v2859 = vadd.bf16 %v2774, %v2831
      %v2860 = vadd.bf16 %v2775, %v2832
      %v2861 = vadd.bf16 %v2776, %v2833
      %v2862 = vadd.bf16 %v2777, %v2834
      %v2863 = vadd.bf16 %v2778, %v2835
      %v2864 = vadd.bf16 %v2779, %v2836
      %v2865 = vadd.bf16 %v2780, %v2837
      %v2866 = vadd.bf16 %v2781, %v2838
      %v2867 = vadd.bf16 %v2782, %v2839
      %v2868 = vadd.bf16 %v2783, %v2840
      %v2869 = vadd.bf16 %v2784, %v2841
      %v2870 = vadd.bf16 %v2785, %v2842
      %v2871 = vadd.bf16 %v2786, %v2843
      %v2872 = vadd.bf16 %v2787, %v2844
      %v2873 = vadd.bf16 %v2788, %v2845
      %v2874 = vadd.bf16 %v2789, %v2846
      %v2875 = vadd.bf16 %v2790, %v2847
      %v2876 = vadd.bf16 %v2791, %v2848
      %v2877 = vadd.bf16 %v2792, %v2849
      %v2878 = vadd.bf16 %v2793, %v2850
      %v2879 = vadd.bf16 %v2794, %v2851
      %v2880 = vmax.bf16 %v2347, %v2852
      %v2881 = vmax.bf16 %v2348, %v2853
      %v2882 = vmax.bf16 %v2349, %v2854
      %v2883 = vmax.bf16 %v2350, %v2855
      %v2884 = vmax.bf16 %v2351, %v2856
      %v2885 = vmax.bf16 %v2352, %v2857
      %v2886 = vmax.bf16 %v2353, %v2858
      %v2887 = vmax.bf16 %v2354, %v2859
      %v2888 = vmax.bf16 %v2355, %v2860
      %v2889 = vmax.bf16 %v2356, %v2861
      %v2890 = vmax.bf16 %v2357, %v2862
      %v2891 = vmax.bf16 %v2358, %v2863
      %v2892 = vmax.bf16 %v2359, %v2864
      %v2893 = vmax.bf16 %v2360, %v2865
      %v2894 = vmax.bf16 %v2361, %v2866
      %v2895 = vmax.bf16 %v2362, %v2867
      %v2896 = vmax.bf16 %v2363, %v2868
      %v2897 = vmax.bf16 %v2364, %v2869
      %v2898 = vmax.bf16 %v2365, %v2870
      %v2899 = vmax.bf16 %v2366, %v2871
      %v2900 = vmax.bf16 %v2367, %v2872
      %v2901 = vmax.bf16 %v2368, %v2873
      %v2902 = vmax.bf16 %v2369, %v2874
      %v2903 = vmax.bf16 %v2370, %v2875
      %v2904 = vmax.bf16 %v2371, %v2876
      %v2905 = vmax.bf16 %v2372, %v2877
      %v2906 = vmax.bf16 %v2373, %v2878
      %v2907 = vmax.bf16 %v2374, %v2879
      %v2908 = vunpack.c.l.bf16 %v2880
      %v2909 = vunpack.c.l.bf16 %v2881
      %v2910 = vunpack.c.l.bf16 %v2882
      %v2911 = vunpack.c.l.bf16 %v2883
      %v2912 = vunpack.c.l.bf16 %v2884
      %v2913 = vunpack.c.l.bf16 %v2885
      %v2914 = vunpack.c.l.bf16 %v2886
      %v2915 = vunpack.c.l.bf16 %v2887
      %v2916 = vunpack.c.l.bf16 %v2888
      %v2917 = vunpack.c.l.bf16 %v2889
      %v2918 = vunpack.c.l.bf16 %v2890
      %v2919 = vunpack.c.l.bf16 %v2891
      %v2920 = vunpack.c.l.bf16 %v2892
      %v2921 = vunpack.c.l.bf16 %v2893
      %v2922 = vunpack.c.l.bf16 %v2894
      %v2923 = vunpack.c.l.bf16 %v2895
      %v2924 = vunpack.c.l.bf16 %v2896
      %v2925 = vunpack.c.l.bf16 %v2897
      %v2926 = vunpack.c.l.bf16 %v2898
      %v2927 = vunpack.c.l.bf16 %v2899
      %v2928 = vunpack.c.l.bf16 %v2900
      %v2929 = vunpack.c.l.bf16 %v2901
      %v2930 = vunpack.c.l.bf16 %v2902
      %v2931 = vunpack.c.l.bf16 %v2903
      %v2932 = vunpack.c.l.bf16 %v2904
      %v2933 = vunpack.c.l.bf16 %v2905
      %v2934 = vunpack.c.l.bf16 %v2906
      %v2935 = vunpack.c.l.bf16 %v2907
      %s2936 = sadd.s32 %s341, 9
      %s2937 = sld [smem:[#allocation3 + %s2936]]
      %v2938 = vstv %s2937
      %v2939 = vadd.f32 %v2908, %v2938
      %v2940 = vadd.f32 %v2909, %v2938
      %v2941 = vadd.f32 %v2910, %v2938
      %v2942 = vadd.f32 %v2911, %v2938
      %v2943 = vadd.f32 %v2912, %v2938
      %v2944 = vadd.f32 %v2913, %v2938
      %v2945 = vadd.f32 %v2914, %v2938
      %v2946 = vadd.f32 %v2915, %v2938
      %v2947 = vadd.f32 %v2916, %v2938
      %v2948 = vadd.f32 %v2917, %v2938
      %v2949 = vadd.f32 %v2918, %v2938
      %v2950 = vadd.f32 %v2919, %v2938
      %v2951 = vadd.f32 %v2920, %v2938
      %v2952 = vadd.f32 %v2921, %v2938
      %v2953 = vadd.f32 %v2922, %v2938
      %v2954 = vadd.f32 %v2923, %v2938
      %v2955 = vadd.f32 %v2924, %v2938
      %v2956 = vadd.f32 %v2925, %v2938
      %v2957 = vadd.f32 %v2926, %v2938
      %v2958 = vadd.f32 %v2927, %v2938
      %v2959 = vadd.f32 %v2928, %v2938
      %v2960 = vadd.f32 %v2929, %v2938
      %v2961 = vadd.f32 %v2930, %v2938
      %v2962 = vadd.f32 %v2931, %v2938
      %v2963 = vadd.f32 %v2932, %v2938
      %v2964 = vadd.f32 %v2933, %v2938
      %v2965 = vadd.f32 %v2934, %v2938
      %v2966 = vadd.f32 %v2935, %v2938
      %vm2967 = vcmp.gt.f32.partialorder %v2939, 0.0
      %vm2968 = vcmp.gt.f32.partialorder %v2940, 0.0
      %vm2969 = vcmp.gt.f32.partialorder %v2941, 0.0
      %vm2970 = vcmp.gt.f32.partialorder %v2942, 0.0
      %vm2971 = vcmp.gt.f32.partialorder %v2943, 0.0
      %vm2972 = vcmp.gt.f32.partialorder %v2944, 0.0
      %vm2973 = vcmp.gt.f32.partialorder %v2945, 0.0
      %vm2974 = vcmp.gt.f32.partialorder %v2946, 0.0
      %vm2975 = vcmp.gt.f32.partialorder %v2947, 0.0
      %vm2976 = vcmp.gt.f32.partialorder %v2948, 0.0
      %vm2977 = vcmp.gt.f32.partialorder %v2949, 0.0
      %vm2978 = vcmp.gt.f32.partialorder %v2950, 0.0
      %vm2979 = vcmp.gt.f32.partialorder %v2951, 0.0
      %vm2980 = vcmp.gt.f32.partialorder %v2952, 0.0
      %vm2981 = vcmp.gt.f32.partialorder %v2953, 0.0
      %vm2982 = vcmp.gt.f32.partialorder %v2954, 0.0
      %vm2983 = vcmp.gt.f32.partialorder %v2955, 0.0
      %vm2984 = vcmp.gt.f32.partialorder %v2956, 0.0
      %vm2985 = vcmp.gt.f32.partialorder %v2957, 0.0
      %vm2986 = vcmp.gt.f32.partialorder %v2958, 0.0
      %vm2987 = vcmp.gt.f32.partialorder %v2959, 0.0
      %vm2988 = vcmp.gt.f32.partialorder %v2960, 0.0
      %vm2989 = vcmp.gt.f32.partialorder %v2961, 0.0
      %vm2990 = vcmp.gt.f32.partialorder %v2962, 0.0
      %vm2991 = vcmp.gt.f32.partialorder %v2963, 0.0
      %vm2992 = vcmp.gt.f32.partialorder %v2964, 0.0
      %vm2993 = vcmp.gt.f32.partialorder %v2965, 0.0
      %vm2994 = vcmp.gt.f32.partialorder %v2966, 0.0
      %v2995 = vmin.f32 %v2939, 0.0
      %v2996 = vmin.f32 %v2940, 0.0
      %v2997 = vmin.f32 %v2941, 0.0
      %v2998 = vmin.f32 %v2942, 0.0
      %v2999 = vmin.f32 %v2943, 0.0
      %v3000 = vmin.f32 %v2944, 0.0
      %v3001 = vmin.f32 %v2945, 0.0
      %v3002 = vmin.f32 %v2946, 0.0
      %v3003 = vmin.f32 %v2947, 0.0
      %v3004 = vmin.f32 %v2948, 0.0
      %v3005 = vmin.f32 %v2949, 0.0
      %v3006 = vmin.f32 %v2950, 0.0
      %v3007 = vmin.f32 %v2951, 0.0
      %v3008 = vmin.f32 %v2952, 0.0
      %v3009 = vmin.f32 %v2953, 0.0
      %v3010 = vmin.f32 %v2954, 0.0
      %v3011 = vmin.f32 %v2955, 0.0
      %v3012 = vmin.f32 %v2956, 0.0
      %v3013 = vmin.f32 %v2957, 0.0
      %v3014 = vmin.f32 %v2958, 0.0
      %v3015 = vmin.f32 %v2959, 0.0
      %v3016 = vmin.f32 %v2960, 0.0
      %v3017 = vmin.f32 %v2961, 0.0
      %v3018 = vmin.f32 %v2962, 0.0
      %v3019 = vmin.f32 %v2963, 0.0
      %v3020 = vmin.f32 %v2964, 0.0
      %v3021 = vmin.f32 %v2965, 0.0
      %v3022 = vmin.f32 %v2966, 0.0
      %v3023 = vmul.f32 %v2995, 1.442695
      %v3024 = vpow.pop %v3023
      %v3025 = vmul.f32 %v2996, 1.442695
      %v3026 = vpow.pop %v3025
      %v3027 = vmul.f32 %v2997, 1.442695
      %v3028 = vpow.pop %v3027
      %v3029 = vmul.f32 %v2998, 1.442695
      %v3030 = vpow.pop %v3029
      %v3031 = vmul.f32 %v2999, 1.442695
      %v3032 = vpow.pop %v3031
      %v3033 = vmul.f32 %v3000, 1.442695
      %v3034 = vpow.pop %v3033
      %v3035 = vmul.f32 %v3001, 1.442695
      %v3036 = vpow.pop %v3035
      %v3037 = vmul.f32 %v3002, 1.442695
      %v3038 = vpow.pop %v3037
      %v3039 = vmul.f32 %v3003, 1.442695
      %v3040 = vpow.pop %v3039
      %v3041 = vmul.f32 %v3004, 1.442695
      %v3042 = vpow.pop %v3041
      %v3043 = vmul.f32 %v3005, 1.442695
      %v3044 = vpow.pop %v3043
      %v3045 = vmul.f32 %v3006, 1.442695
      %v3046 = vpow.pop %v3045
      %v3047 = vmul.f32 %v3007, 1.442695
      %v3048 = vpow.pop %v3047
      %v3049 = vmul.f32 %v3008, 1.442695
      %v3050 = vpow.pop %v3049
      %v3051 = vmul.f32 %v3009, 1.442695
      %v3052 = vpow.pop %v3051
      %v3053 = vmul.f32 %v3010, 1.442695
      %v3054 = vpow.pop %v3053
      %v3055 = vmul.f32 %v3011, 1.442695
      %v3056 = vpow.pop %v3055
      %v3057 = vmul.f32 %v3012, 1.442695
      %v3058 = vpow.pop %v3057
      %v3059 = vmul.f32 %v3013, 1.442695
      %v3060 = vpow.pop %v3059
      %v3061 = vmul.f32 %v3014, 1.442695
      %v3062 = vpow.pop %v3061
      %v3063 = vmul.f32 %v3015, 1.442695
      %v3064 = vpow.pop %v3063
      %v3065 = vmul.f32 %v3016, 1.442695
      %v3066 = vpow.pop %v3065
      %v3067 = vmul.f32 %v3017, 1.442695
      %v3068 = vpow.pop %v3067
      %v3069 = vmul.f32 %v3018, 1.442695
      %v3070 = vpow.pop %v3069
      %v3071 = vmul.f32 %v3019, 1.442695
      %v3072 = vpow.pop %v3071
      %v3073 = vmul.f32 %v3020, 1.442695
      %v3074 = vpow.pop %v3073
      %v3075 = vmul.f32 %v3021, 1.442695
      %v3076 = vpow.pop %v3075
      %v3077 = vmul.f32 %v3022, 1.442695
      %v3078 = vpow.pop %v3077
      %v3079 = vsub.f32 %v3024, 1.0
      %v3080 = vsub.f32 %v3026, 1.0
      %v3081 = vsub.f32 %v3028, 1.0
      %v3082 = vsub.f32 %v3030, 1.0
      %v3083 = vsub.f32 %v3032, 1.0
      %v3084 = vsub.f32 %v3034, 1.0
      %v3085 = vsub.f32 %v3036, 1.0
      %v3086 = vsub.f32 %v3038, 1.0
      %v3087 = vsub.f32 %v3040, 1.0
      %v3088 = vsub.f32 %v3042, 1.0
      %v3089 = vsub.f32 %v3044, 1.0
      %v3090 = vsub.f32 %v3046, 1.0
      %v3091 = vsub.f32 %v3048, 1.0
      %v3092 = vsub.f32 %v3050, 1.0
      %v3093 = vsub.f32 %v3052, 1.0
      %v3094 = vsub.f32 %v3054, 1.0
      %v3095 = vsub.f32 %v3056, 1.0
      %v3096 = vsub.f32 %v3058, 1.0
      %v3097 = vsub.f32 %v3060, 1.0
      %v3098 = vsub.f32 %v3062, 1.0
      %v3099 = vsub.f32 %v3064, 1.0
      %v3100 = vsub.f32 %v3066, 1.0
      %v3101 = vsub.f32 %v3068, 1.0
      %v3102 = vsub.f32 %v3070, 1.0
      %v3103 = vsub.f32 %v3072, 1.0
      %v3104 = vsub.f32 %v3074, 1.0
      %v3105 = vsub.f32 %v3076, 1.0
      %v3106 = vsub.f32 %v3078, 1.0
      %v3107 = vsel %vm2967, %v2939, %v3079
      %v3108 = vsel %vm2968, %v2940, %v3080
      %v3109 = vsel %vm2969, %v2941, %v3081
      %v3110 = vsel %vm2970, %v2942, %v3082
      %v3111 = vsel %vm2971, %v2943, %v3083
      %v3112 = vsel %vm2972, %v2944, %v3084
      %v3113 = vsel %vm2973, %v2945, %v3085
      %v3114 = vsel %vm2974, %v2946, %v3086
      %v3115 = vsel %vm2975, %v2947, %v3087
      %v3116 = vsel %vm2976, %v2948, %v3088
      %v3117 = vsel %vm2977, %v2949, %v3089
      %v3118 = vsel %vm2978, %v2950, %v3090
      %v3119 = vsel %vm2979, %v2951, %v3091
      %v3120 = vsel %vm2980, %v2952, %v3092
      %v3121 = vsel %vm2981, %v2953, %v3093
      %v3122 = vsel %vm2982, %v2954, %v3094
      %v3123 = vsel %vm2983, %v2955, %v3095
      %v3124 = vsel %vm2984, %v2956, %v3096
      %v3125 = vsel %vm2985, %v2957, %v3097
      %v3126 = vsel %vm2986, %v2958, %v3098
      %v3127 = vsel %vm2987, %v2959, %v3099
      %v3128 = vsel %vm2988, %v2960, %v3100
      %v3129 = vsel %vm2989, %v2961, %v3101
      %v3130 = vsel %vm2990, %v2962, %v3102
      %v3131 = vsel %vm2991, %v2963, %v3103
      %v3132 = vsel %vm2992, %v2964, %v3104
      %v3133 = vsel %vm2993, %v2965, %v3105
      %v3134 = vsel %vm2994, %v2966, %v3106
      %v3135 = vpack.c.bf16 %v3108, %v3107
      %v3136 = vpack.c.bf16 %v3110, %v3109
      %v3137 = vpack.c.bf16 %v3112, %v3111
      %v3138 = vpack.c.bf16 %v3114, %v3113
      %v3139 = vpack.c.bf16 %v3116, %v3115
      %v3140 = vpack.c.bf16 %v3118, %v3117
      %v3141 = vpack.c.bf16 %v3120, %v3119
      %v3142 = vpack.c.bf16 %v3122, %v3121
      %v3143 = vpack.c.bf16 %v3124, %v3123
      %v3144 = vpack.c.bf16 %v3126, %v3125
      %v3145 = vpack.c.bf16 %v3128, %v3127
      %v3146 = vpack.c.bf16 %v3130, %v3129
      %v3147 = vpack.c.bf16 %v3132, %v3131
      %v3148 = vpack.c.bf16 %v3134, %v3133
      %s3149 = smul.u32 %s308, 14
      %s3150 = smul.addr %s3149, 8
      %s3151 = scalar_lea.vmem [#allocation2], %s3150
      %3152 = vst [vmem:[%s3151] sm:$0x7f] %v3135
      %3153 = vst [vmem:[%s3151 + $0x8] sm:$0x7f] %v3136
      %3154 = vst [vmem:[%s3151 + $0x10] sm:$0x7f] %v3137
      %3155 = vst [vmem:[%s3151 + $0x18] sm:$0x7f] %v3138
      %3156 = vst [vmem:[%s3151 + $0x20] sm:$0x7f] %v3139
      %3157 = vst [vmem:[%s3151 + $0x28] sm:$0x7f] %v3140
      %3158 = vst [vmem:[%s3151 + $0x30] sm:$0x7f] %v3141
      %3159 = vst [vmem:[%s3151 + $0x38] sm:$0x7f] %v3142
      %3160 = vst [vmem:[%s3151 + $0x40] sm:$0x7f] %v3143
      %3161 = vst [vmem:[%s3151 + $0x48] sm:$0x7f] %v3144
      %3162 = vst [vmem:[%s3151 + $0x50] sm:$0x7f] %v3145
      %3163 = vst [vmem:[%s3151 + $0x58] sm:$0x7f] %v3146
      %3164 = vst [vmem:[%s3151 + $0x60] sm:$0x7f] %v3147
      %3165 = vst [vmem:[%s3151 + $0x68] sm:$0x7f] %v3148
    $region50: #{tpu_custom_call.1} parent=1 // loop_footer
      %s312 = sadd.s32 1, %s308
    $region51: #{tpu_custom_call.1} parent=1 // loop_footer_branch
      %307 = sbr.rel target = $region47
    $region52: #{tpu_custom_call.1} parent=1 // loop_exit
      _
    %v3166 = vld [vmem:[#allocation2] sm:$0xff]
    %v3167 = vld [vmem:[#allocation2 + $0x8] sm:$0xff]
    %v3168 = vld [vmem:[#allocation2 + $0x10] sm:$0xff]
    %v3169 = vld [vmem:[#allocation2 + $0x18] sm:$0xff]
    %v3170 = vld [vmem:[#allocation2 + $0x20] sm:$0xff]
    %v3171 = vld [vmem:[#allocation2 + $0x28] sm:$0xff]
    %v3172 = vld [vmem:[#allocation2 + $0x30] sm:$0xff]
    %v3173 = vld [vmem:[#allocation2 + $0x38] sm:$0xff]
    %v3174 = vld [vmem:[#allocation2 + $0x40] sm:$0xff]
    %v3175 = vld [vmem:[#allocation2 + $0x48] sm:$0xff]
    %v3176 = vld [vmem:[#allocation2 + $0x50] sm:$0xff]
    %v3177 = vld [vmem:[#allocation2 + $0x58] sm:$0xff]
    %v3178 = vld [vmem:[#allocation2 + $0x60] sm:$0xff]
    %v3179 = vld [vmem:[#allocation2 + $0x68] sm:$0xff]
    %v3180 = vld [vmem:[#allocation2 + $0x70] sm:$0xff]
    %v3181 = vld [vmem:[#allocation2 + $0x78] sm:$0xff]
    %v3182 = vld [vmem:[#allocation2 + $0x80] sm:$0xff]
    %v3183 = vld [vmem:[#allocation2 + $0x88] sm:$0xff]
    %v3184 = vld [vmem:[#allocation2 + $0x90] sm:$0xff]
    %v3185 = vld [vmem:[#allocation2 + $0x98] sm:$0xff]
    %v3186 = vld [vmem:[#allocation2 + $0xa0] sm:$0xff]
    %v3187 = vld [vmem:[#allocation2 + $0xa8] sm:$0xff]
    %v3188 = vld [vmem:[#allocation2 + $0xb0] sm:$0xff]
    %v3189 = vld [vmem:[#allocation2 + $0xb8] sm:$0xff]
    %v3190 = vld [vmem:[#allocation2 + $0xc0] sm:$0xff]
    %v3191 = vld [vmem:[#allocation2 + $0xc8] sm:$0xff]
    %v3192 = vld [vmem:[#allocation2 + $0xd0] sm:$0xff]
    %v3193 = vld [vmem:[#allocation2 + $0xd8] sm:$0xff]
    %v3194 = vld [vmem:[#allocation2 + $0xe0] sm:$0xff]
    %v3195 = vld [vmem:[#allocation2 + $0xe8] sm:$0xff]
    %v3196 = vld [vmem:[#allocation2 + $0xf0] sm:$0xff]
    %v3197 = vld [vmem:[#allocation2 + $0xf8] sm:$0xff]
    %v3198 = vld [vmem:[#allocation2 + $0x100] sm:$0xff]
    %v3199 = vld [vmem:[#allocation2 + $0x108] sm:$0xff]
    %v3200 = vld [vmem:[#allocation2 + $0x110] sm:$0xff]
    %v3201 = vld [vmem:[#allocation2 + $0x118] sm:$0xff]
    %v3202 = vld [vmem:[#allocation2 + $0x120] sm:$0xff]
    %v3203 = vld [vmem:[#allocation2 + $0x128] sm:$0xff]
    %v3204 = vld [vmem:[#allocation2 + $0x130] sm:$0xff]
    %v3205 = vld [vmem:[#allocation2 + $0x138] sm:$0xff]
    %v3206 = vld [vmem:[#allocation2 + $0x140] sm:$0xff]
    %v3207 = vld [vmem:[#allocation2 + $0x148] sm:$0xff]
    %v3208 = vld [vmem:[#allocation2 + $0x150] sm:$0xff]
    %v3209 = vld [vmem:[#allocation2 + $0x158] sm:$0xff]
    %v3210 = vld [vmem:[#allocation2 + $0x160] sm:$0xff]
    %v3211 = vld [vmem:[#allocation2 + $0x168] sm:$0xff]
    %v3212 = vld [vmem:[#allocation2 + $0x170] sm:$0xff]
    %v3213 = vld [vmem:[#allocation2 + $0x178] sm:$0xff]
    %v3214 = vld [vmem:[#allocation2 + $0x180] sm:$0xff]
    %v3215 = vld [vmem:[#allocation2 + $0x188] sm:$0xff]
    %v3216 = vld [vmem:[#allocation2 + $0x190] sm:$0xff]
    %v3217 = vld [vmem:[#allocation2 + $0x198] sm:$0xff]
    %v3218 = vld [vmem:[#allocation2 + $0x1a0] sm:$0xff]
    %v3219 = vld [vmem:[#allocation2 + $0x1a8] sm:$0xff]
    %v3220 = vld [vmem:[#allocation2 + $0x1b0] sm:$0xff]
    %v3221 = vld [vmem:[#allocation2 + $0x1b8] sm:$0xff]
    %v3222 = vld [vmem:[#allocation2 + $0x1c0] sm:$0xff]
    %v3223 = vld [vmem:[#allocation2 + $0x1c8] sm:$0xff]
    %v3224 = vld [vmem:[#allocation2 + $0x1d0] sm:$0xff]
    %v3225 = vld [vmem:[#allocation2 + $0x1d8] sm:$0xff]
    %v3226 = vld [vmem:[#allocation2 + $0x1e0] sm:$0xff]
    %v3227 = vld [vmem:[#allocation2 + $0x1e8] sm:$0xff]
    %v3228 = vld [vmem:[#allocation2 + $0x1f0] sm:$0xff]
    %v3229 = vld [vmem:[#allocation2 + $0x1f8] sm:$0xff]
    %v3230 = vld [vmem:[#allocation2 + $0x200] sm:$0xff]
    %v3231 = vld [vmem:[#allocation2 + $0x208] sm:$0xff]
    %v3232 = vld [vmem:[#allocation2 + $0x210] sm:$0xff]
    %v3233 = vld [vmem:[#allocation2 + $0x218] sm:$0xff]
    %v3234 = vld [vmem:[#allocation2 + $0x220] sm:$0xff]
    %v3235 = vld [vmem:[#allocation2 + $0x228] sm:$0xff]
    %v3236 = vld [vmem:[#allocation2 + $0x230] sm:$0xff]
    %v3237 = vld [vmem:[#allocation2 + $0x238] sm:$0xff]
    %v3238 = vld [vmem:[#allocation2 + $0x240] sm:$0xff]
    %v3239 = vld [vmem:[#allocation2 + $0x248] sm:$0xff]
    %v3240 = vld [vmem:[#allocation2 + $0x250] sm:$0xff]
    %v3241 = vld [vmem:[#allocation2 + $0x258] sm:$0xff]
    %v3242 = vld [vmem:[#allocation2 + $0x260] sm:$0xff]
    %v3243 = vld [vmem:[#allocation2 + $0x268] sm:$0xff]
    %v3244 = vld [vmem:[#allocation2 + $0x270] sm:$0xff]
    %v3245 = vld [vmem:[#allocation2 + $0x278] sm:$0xff]
    %v3246 = vld [vmem:[#allocation2 + $0x280] sm:$0xff]
    %v3247 = vld [vmem:[#allocation2 + $0x288] sm:$0xff]
    %v3248 = vld [vmem:[#allocation2 + $0x290] sm:$0xff]
    %v3249 = vld [vmem:[#allocation2 + $0x298] sm:$0xff]
    %v3250 = vld [vmem:[#allocation2 + $0x2a0] sm:$0xff]
    %v3251 = vld [vmem:[#allocation2 + $0x2a8] sm:$0xff]
    %v3252 = vld [vmem:[#allocation2 + $0x2b0] sm:$0xff]
    %v3253 = vld [vmem:[#allocation2 + $0x2b8] sm:$0xff]
    %v3254 = vld [vmem:[#allocation2 + $0x2c0] sm:$0xff]
    %v3255 = vld [vmem:[#allocation2 + $0x2c8] sm:$0xff]
    %v3256 = vld [vmem:[#allocation2 + $0x2d0] sm:$0xff]
    %v3257 = vld [vmem:[#allocation2 + $0x2d8] sm:$0xff]
    %v3258 = vld [vmem:[#allocation2 + $0x2e0] sm:$0xff]
    %v3259 = vld [vmem:[#allocation2 + $0x2e8] sm:$0xff]
    %v3260 = vld [vmem:[#allocation2 + $0x2f0] sm:$0xff]
    %v3261 = vld [vmem:[#allocation2 + $0x2f8] sm:$0xff]
    %v3262 = vld [vmem:[#allocation2 + $0x300] sm:$0xff]
    %v3263 = vld [vmem:[#allocation2 + $0x308] sm:$0xff]
    %v3264 = vld [vmem:[#allocation2 + $0x310] sm:$0xff]
    %v3265 = vld [vmem:[#allocation2 + $0x318] sm:$0xff]
    %v3266 = vld [vmem:[#allocation2 + $0x320] sm:$0xff]
    %v3267 = vld [vmem:[#allocation2 + $0x328] sm:$0xff]
    %v3268 = vld [vmem:[#allocation2 + $0x330] sm:$0xff]
    %v3269 = vld [vmem:[#allocation2 + $0x338] sm:$0xff]
    %v3270 = vld [vmem:[#allocation2 + $0x340] sm:$0xff]
    %v3271 = vld [vmem:[#allocation2 + $0x348] sm:$0xff]
    %v3272 = vld [vmem:[#allocation2 + $0x350] sm:$0xff]
    %v3273 = vld [vmem:[#allocation2 + $0x358] sm:$0xff]
    %v3274 = vld [vmem:[#allocation2 + $0x360] sm:$0xff]
    %v3275 = vld [vmem:[#allocation2 + $0x368] sm:$0xff]
    %v3276 = vld [vmem:[#allocation2 + $0x370] sm:$0xff]
    %v3277 = vld [vmem:[#allocation2 + $0x378] sm:$0xff]
    %v3278 = vld [vmem:[#allocation2 + $0x380] sm:$0xff]
    %v3279 = vld [vmem:[#allocation2 + $0x388] sm:$0xff]
    %v3280 = vld [vmem:[#allocation2 + $0x390] sm:$0xff]
    %v3281 = vld [vmem:[#allocation2 + $0x398] sm:$0xff]
    %v3282 = vld [vmem:[#allocation2 + $0x3a0] sm:$0xff]
    %v3283 = vld [vmem:[#allocation2 + $0x3a8] sm:$0xff]
    %v3284 = vld [vmem:[#allocation2 + $0x3b0] sm:$0xff]
    %v3285 = vld [vmem:[#allocation2 + $0x3b8] sm:$0xff]
    %v3286 = vld [vmem:[#allocation2 + $0x3c0] sm:$0xff]
    %v3287 = vld [vmem:[#allocation2 + $0x3c8] sm:$0xff]
    %v3288 = vld [vmem:[#allocation2 + $0x3d0] sm:$0xff]
    %v3289 = vld [vmem:[#allocation2 + $0x3d8] sm:$0xff]
    %v3290 = vld [vmem:[#allocation2 + $0x3e0] sm:$0xff]
    %v3291 = vld [vmem:[#allocation2 + $0x3e8] sm:$0xff]
    %v3292 = vld [vmem:[#allocation2 + $0x3f0] sm:$0xff]
    %v3293 = vld [vmem:[#allocation2 + $0x3f8] sm:$0xff]
    %v3294 = vld [vmem:[#allocation2 + $0x400] sm:$0xff]
    %v3295 = vld [vmem:[#allocation2 + $0x408] sm:$0xff]
    %v3296 = vld [vmem:[#allocation2 + $0x410] sm:$0xff]
    %v3297 = vld [vmem:[#allocation2 + $0x418] sm:$0xff]
    %v3298 = vld [vmem:[#allocation2 + $0x420] sm:$0xff]
    %v3299 = vld [vmem:[#allocation2 + $0x428] sm:$0xff]
    %v3300 = vld [vmem:[#allocation2 + $0x430] sm:$0xff]
    %v3301 = vld [vmem:[#allocation2 + $0x438] sm:$0xff]
    %v3302 = vld [vmem:[#allocation2 + $0x440] sm:$0xff]
    %v3303 = vld [vmem:[#allocation2 + $0x448] sm:$0xff]
    %v3304 = vld [vmem:[#allocation2 + $0x450] sm:$0xff]
    %v3305 = vld [vmem:[#allocation2 + $0x458] sm:$0xff]
    %v3306 = vld [vmem:[#allocation2 + $0x460] sm:$0xff]
    %v3307 = vld [vmem:[#allocation2 + $0x468] sm:$0xff]
    %v3308 = vld [vmem:[#allocation2 + $0x470] sm:$0xff]
    %v3309 = vld [vmem:[#allocation2 + $0x478] sm:$0xff]
    %v3310 = vld [vmem:[#allocation2 + $0x480] sm:$0xff]
    %v3311 = vld [vmem:[#allocation2 + $0x488] sm:$0xff]
    %v3312 = vld [vmem:[#allocation2 + $0x490] sm:$0xff]
    %v3313 = vld [vmem:[#allocation2 + $0x498] sm:$0xff]
    %v3314 = vld [vmem:[#allocation2 + $0x4a0] sm:$0xff]
    %v3315 = vld [vmem:[#allocation2 + $0x4a8] sm:$0xff]
    %v3316 = vld [vmem:[#allocation2 + $0x4b0] sm:$0xff]
    %v3317 = vld [vmem:[#allocation2 + $0x4b8] sm:$0xff]
    %v3318 = vld [vmem:[#allocation2 + $0x4c0] sm:$0xff]
    %v3319 = vld [vmem:[#allocation2 + $0x4c8] sm:$0xff]
    %v3320 = vld [vmem:[#allocation2 + $0x4d0] sm:$0xff]
    %v3321 = vld [vmem:[#allocation2 + $0x4d8] sm:$0xff]
    %v3322 = vld [vmem:[#allocation2 + $0x4e0] sm:$0xff]
    %v3323 = vld [vmem:[#allocation2 + $0x4e8] sm:$0xff]
    %v3324 = vld [vmem:[#allocation2 + $0x4f0] sm:$0xff]
    %v3325 = vld [vmem:[#allocation2 + $0x4f8] sm:$0xff]
    %v3326 = vld [vmem:[#allocation2 + $0x500] sm:$0xff]
    %v3327 = vld [vmem:[#allocation2 + $0x508] sm:$0xff]
    %v3328 = vld [vmem:[#allocation2 + $0x510] sm:$0xff]
    %v3329 = vld [vmem:[#allocation2 + $0x518] sm:$0xff]
    %v3330 = vld [vmem:[#allocation2 + $0x520] sm:$0xff]
    %v3331 = vld [vmem:[#allocation2 + $0x528] sm:$0xff]
    %v3332 = vld [vmem:[#allocation2 + $0x530] sm:$0xff]
    %v3333 = vld [vmem:[#allocation2 + $0x538] sm:$0xff]
    %v3334 = vld [vmem:[#allocation2 + $0x540] sm:$0xff]
    %v3335 = vld [vmem:[#allocation2 + $0x548] sm:$0xff]
    %v3336 = vld [vmem:[#allocation2 + $0x550] sm:$0xff]
    %v3337 = vld [vmem:[#allocation2 + $0x558] sm:$0xff]
    %v3338 = vld [vmem:[#allocation2 + $0x560] sm:$0xff]
    %v3339 = vld [vmem:[#allocation2 + $0x568] sm:$0xff]
    %v3340 = vld [vmem:[#allocation2 + $0x570] sm:$0xff]
    %v3341 = vld [vmem:[#allocation2 + $0x578] sm:$0xff]
    %v3342 = vld [vmem:[#allocation2 + $0x580] sm:$0xff]
    %v3343 = vld [vmem:[#allocation2 + $0x588] sm:$0xff]
    %v3344 = vld [vmem:[#allocation2 + $0x590] sm:$0xff]
    %v3345 = vld [vmem:[#allocation2 + $0x598] sm:$0xff]
    %v3346 = vld [vmem:[#allocation2 + $0x5a0] sm:$0xff]
    %v3347 = vld [vmem:[#allocation2 + $0x5a8] sm:$0xff]
    %v3348 = vld [vmem:[#allocation2 + $0x5b0] sm:$0xff]
    %v3349 = vld [vmem:[#allocation2 + $0x5b8] sm:$0xff]
    %v3350 = vld [vmem:[#allocation2 + $0x5c0] sm:$0xff]
    %v3351 = vld [vmem:[#allocation2 + $0x5c8] sm:$0xff]
    %v3352 = vld [vmem:[#allocation2 + $0x5d0] sm:$0xff]
    %v3353 = vld [vmem:[#allocation2 + $0x5d8] sm:$0xff]
    %v3354 = vld [vmem:[#allocation2 + $0x5e0] sm:$0xff]
    %v3355 = vld [vmem:[#allocation2 + $0x5e8] sm:$0xff]
    %v3356 = vld [vmem:[#allocation2 + $0x5f0] sm:$0xff]
    %v3357 = vld [vmem:[#allocation2 + $0x5f8] sm:$0xff]
    %v3358 = vld [vmem:[#allocation2 + $0x600] sm:$0xff]
    %v3359 = vld [vmem:[#allocation2 + $0x608] sm:$0xff]
    %v3360 = vld [vmem:[#allocation2 + $0x610] sm:$0xff]
    %v3361 = vld [vmem:[#allocation2 + $0x618] sm:$0xff]
    %v3362 = vld [vmem:[#allocation2 + $0x620] sm:$0xff]
    %v3363 = vld [vmem:[#allocation2 + $0x628] sm:$0xff]
    %v3364 = vld [vmem:[#allocation2 + $0x630] sm:$0xff]
    %v3365 = vld [vmem:[#allocation2 + $0x638] sm:$0xff]
    %v3366 = vld [vmem:[#allocation2 + $0x640] sm:$0xff]
    %v3367 = vld [vmem:[#allocation2 + $0x648] sm:$0xff]
    %v3368 = vld [vmem:[#allocation2 + $0x650] sm:$0xff]
    %v3369 = vld [vmem:[#allocation2 + $0x658] sm:$0xff]
    %v3370 = vld [vmem:[#allocation2 + $0x660] sm:$0xff]
    %v3371 = vld [vmem:[#allocation2 + $0x668] sm:$0xff]
    %v3372 = vld [vmem:[#allocation2 + $0x670] sm:$0xff]
    %v3373 = vld [vmem:[#allocation2 + $0x678] sm:$0xff]
    %v3374 = vld [vmem:[#allocation2 + $0x680] sm:$0xff]
    %v3375 = vld [vmem:[#allocation2 + $0x688] sm:$0xff]
    %v3376 = vld [vmem:[#allocation2 + $0x690] sm:$0xff]
    %v3377 = vld [vmem:[#allocation2 + $0x698] sm:$0xff]
    %v3378 = vld [vmem:[#allocation2 + $0x6a0] sm:$0xff]
    %v3379 = vld [vmem:[#allocation2 + $0x6a8] sm:$0xff]
    %v3380 = vld [vmem:[#allocation2 + $0x6b0] sm:$0xff]
    %v3381 = vld [vmem:[#allocation2 + $0x6b8] sm:$0xff]
    %v3382 = vld [vmem:[#allocation2 + $0x6c0] sm:$0xff]
    %v3383 = vld [vmem:[#allocation2 + $0x6c8] sm:$0xff]
    %v3384 = vld [vmem:[#allocation2 + $0x6d0] sm:$0xff]
    %v3385 = vld [vmem:[#allocation2 + $0x6d8] sm:$0xff]
    %v3386 = vld [vmem:[#allocation2 + $0x6e0] sm:$0xff]
    %v3387 = vld [vmem:[#allocation2 + $0x6e8] sm:$0xff]
    %v3388 = vld [vmem:[#allocation2 + $0x6f0] sm:$0xff]
    %v3389 = vld [vmem:[#allocation2 + $0x6f8] sm:$0xff]
    %v3390 = vld [vmem:[%s2] sm:$0xff]
    %v3391 = vld [vmem:[%s2 + $0x8] sm:$0xff]
    %v3392 = vld [vmem:[%s2 + $0x10] sm:$0xff]
    %v3393 = vld [vmem:[%s2 + $0x18] sm:$0xff]
    %v3394 = vld [vmem:[%s2 + $0x20] sm:$0xff]
    %v3395 = vld [vmem:[%s2 + $0x28] sm:$0xff]
    %v3396 = vld [vmem:[%s2 + $0x30] sm:$0xff]
    %v3397 = vld [vmem:[%s2 + $0x38] sm:$0xff]
    %v3398 = vld [vmem:[%s2 + $0x40] sm:$0xff]
    %v3399 = vld [vmem:[%s2 + $0x48] sm:$0xff]
    %v3400 = vld [vmem:[%s2 + $0x50] sm:$0xff]
    %v3401 = vld [vmem:[%s2 + $0x58] sm:$0xff]
    %v3402 = vld [vmem:[%s2 + $0x60] sm:$0xff]
    %v3403 = vld [vmem:[%s2 + $0x68] sm:$0xff]
    %v3404 = vld [vmem:[%s2 + $0x70] sm:$0xff]
    %v3405 = vld [vmem:[%s2 + $0x78] sm:$0xff]
    %v3406 = vld [vmem:[%s2 + $0x80] sm:$0xff]
    %v3407 = vld [vmem:[%s2 + $0x88] sm:$0xff]
    %v3408 = vld [vmem:[%s2 + $0x90] sm:$0xff]
    %v3409 = vld [vmem:[%s2 + $0x98] sm:$0xff]
    %v3410 = vld [vmem:[%s2 + $0xa0] sm:$0xff]
    %v3411 = vld [vmem:[%s2 + $0xa8] sm:$0xff]
    %v3412 = vld [vmem:[%s2 + $0xb0] sm:$0xff]
    %v3413 = vld [vmem:[%s2 + $0xb8] sm:$0xff]
    %v3414 = vld [vmem:[%s2 + $0xc0] sm:$0xff]
    %v3415 = vld [vmem:[%s2 + $0xc8] sm:$0xff]
    %v3416 = vld [vmem:[%s2 + $0xd0] sm:$0xff]
    %v3417 = vld [vmem:[%s2 + $0xd8] sm:$0xff]
    %v3418 = vld [vmem:[%s2 + $0xe0] sm:$0xff]
    %v3419 = vld [vmem:[%s2 + $0xe8] sm:$0xff]
    %v3420 = vld [vmem:[%s2 + $0xf0] sm:$0xff]
    %v3421 = vld [vmem:[%s2 + $0xf8] sm:$0xff]
    %v3422 = vld [vmem:[%s2 + $0x100] sm:$0xff]
    %v3423 = vld [vmem:[%s2 + $0x108] sm:$0xff]
    %v3424 = vld [vmem:[%s2 + $0x110] sm:$0xff]
    %v3425 = vld [vmem:[%s2 + $0x118] sm:$0xff]
    %v3426 = vld [vmem:[%s2 + $0x120] sm:$0xff]
    %v3427 = vld [vmem:[%s2 + $0x128] sm:$0xff]
    %v3428 = vld [vmem:[%s2 + $0x130] sm:$0xff]
    %v3429 = vld [vmem:[%s2 + $0x138] sm:$0xff]
    %v3430 = vld [vmem:[%s2 + $0x140] sm:$0xff]
    %v3431 = vld [vmem:[%s2 + $0x148] sm:$0xff]
    %v3432 = vld [vmem:[%s2 + $0x150] sm:$0xff]
    %v3433 = vld [vmem:[%s2 + $0x158] sm:$0xff]
    %v3434 = vld [vmem:[%s2 + $0x160] sm:$0xff]
    %v3435 = vld [vmem:[%s2 + $0x168] sm:$0xff]
    %v3436 = vld [vmem:[%s2 + $0x170] sm:$0xff]
    %v3437 = vld [vmem:[%s2 + $0x178] sm:$0xff]
    %v3438 = vld [vmem:[%s2 + $0x180] sm:$0xff]
    %v3439 = vld [vmem:[%s2 + $0x188] sm:$0xff]
    %v3440 = vld [vmem:[%s2 + $0x190] sm:$0xff]
    %v3441 = vld [vmem:[%s2 + $0x198] sm:$0xff]
    %v3442 = vld [vmem:[%s2 + $0x1a0] sm:$0xff]
    %v3443 = vld [vmem:[%s2 + $0x1a8] sm:$0xff]
    %v3444 = vld [vmem:[%s2 + $0x1b0] sm:$0xff]
    %v3445 = vld [vmem:[%s2 + $0x1b8] sm:$0xff]
    %v3446 = vld [vmem:[%s2 + $0x1c0] sm:$0xff]
    %v3447 = vld [vmem:[%s2 + $0x1c8] sm:$0xff]
    %v3448 = vld [vmem:[%s2 + $0x1d0] sm:$0xff]
    %v3449 = vld [vmem:[%s2 + $0x1d8] sm:$0xff]
    %v3450 = vld [vmem:[%s2 + $0x1e0] sm:$0xff]
    %v3451 = vld [vmem:[%s2 + $0x1e8] sm:$0xff]
    %v3452 = vld [vmem:[%s2 + $0x1f0] sm:$0xff]
    %v3453 = vld [vmem:[%s2 + $0x1f8] sm:$0xff]
    %v3454 = vld [vmem:[%s2 + $0x200] sm:$0xff]
    %v3455 = vld [vmem:[%s2 + $0x208] sm:$0xff]
    %v3456 = vld [vmem:[%s2 + $0x210] sm:$0xff]
    %v3457 = vld [vmem:[%s2 + $0x218] sm:$0xff]
    %v3458 = vld [vmem:[%s2 + $0x220] sm:$0xff]
    %v3459 = vld [vmem:[%s2 + $0x228] sm:$0xff]
    %v3460 = vld [vmem:[%s2 + $0x230] sm:$0xff]
    %v3461 = vld [vmem:[%s2 + $0x238] sm:$0xff]
    %v3462 = vld [vmem:[%s2 + $0x240] sm:$0xff]
    %v3463 = vld [vmem:[%s2 + $0x248] sm:$0xff]
    %v3464 = vld [vmem:[%s2 + $0x250] sm:$0xff]
    %v3465 = vld [vmem:[%s2 + $0x258] sm:$0xff]
    %v3466 = vld [vmem:[%s2 + $0x260] sm:$0xff]
    %v3467 = vld [vmem:[%s2 + $0x268] sm:$0xff]
    %v3468 = vld [vmem:[%s2 + $0x270] sm:$0xff]
    %v3469 = vld [vmem:[%s2 + $0x278] sm:$0xff]
    %v3470 = vld [vmem:[%s2 + $0x280] sm:$0xff]
    %v3471 = vld [vmem:[%s2 + $0x288] sm:$0xff]
    %v3472 = vld [vmem:[%s2 + $0x290] sm:$0xff]
    %v3473 = vld [vmem:[%s2 + $0x298] sm:$0xff]
    %v3474 = vld [vmem:[%s2 + $0x2a0] sm:$0xff]
    %v3475 = vld [vmem:[%s2 + $0x2a8] sm:$0xff]
    %v3476 = vld [vmem:[%s2 + $0x2b0] sm:$0xff]
    %v3477 = vld [vmem:[%s2 + $0x2b8] sm:$0xff]
    %v3478 = vld [vmem:[%s2 + $0x2c0] sm:$0xff]
    %v3479 = vld [vmem:[%s2 + $0x2c8] sm:$0xff]
    %v3480 = vld [vmem:[%s2 + $0x2d0] sm:$0xff]
    %v3481 = vld [vmem:[%s2 + $0x2d8] sm:$0xff]
    %v3482 = vld [vmem:[%s2 + $0x2e0] sm:$0xff]
    %v3483 = vld [vmem:[%s2 + $0x2e8] sm:$0xff]
    %v3484 = vld [vmem:[%s2 + $0x2f0] sm:$0xff]
    %v3485 = vld [vmem:[%s2 + $0x2f8] sm:$0xff]
    %v3486 = vld [vmem:[%s2 + $0x300] sm:$0xff]
    %v3487 = vld [vmem:[%s2 + $0x308] sm:$0xff]
    %v3488 = vld [vmem:[%s2 + $0x310] sm:$0xff]
    %v3489 = vld [vmem:[%s2 + $0x318] sm:$0xff]
    %v3490 = vld [vmem:[%s2 + $0x320] sm:$0xff]
    %v3491 = vld [vmem:[%s2 + $0x328] sm:$0xff]
    %v3492 = vld [vmem:[%s2 + $0x330] sm:$0xff]
    %v3493 = vld [vmem:[%s2 + $0x338] sm:$0xff]
    %v3494 = vld [vmem:[%s2 + $0x340] sm:$0xff]
    %v3495 = vld [vmem:[%s2 + $0x348] sm:$0xff]
    %v3496 = vld [vmem:[%s2 + $0x350] sm:$0xff]
    %v3497 = vld [vmem:[%s2 + $0x358] sm:$0xff]
    %v3498 = vld [vmem:[%s2 + $0x360] sm:$0xff]
    %v3499 = vld [vmem:[%s2 + $0x368] sm:$0xff]
    %v3500 = vld [vmem:[%s2 + $0x370] sm:$0xff]
    %v3501 = vld [vmem:[%s2 + $0x378] sm:$0xff]
    %v3502 = vld [vmem:[%s2 + $0x380] sm:$0xff]
    %v3503 = vld [vmem:[%s2 + $0x388] sm:$0xff]
    %v3504 = vld [vmem:[%s2 + $0x390] sm:$0xff]
    %v3505 = vld [vmem:[%s2 + $0x398] sm:$0xff]
    %v3506 = vld [vmem:[%s2 + $0x3a0] sm:$0xff]
    %v3507 = vld [vmem:[%s2 + $0x3a8] sm:$0xff]
    %v3508 = vld [vmem:[%s2 + $0x3b0] sm:$0xff]
    %v3509 = vld [vmem:[%s2 + $0x3b8] sm:$0xff]
    %v3510 = vld [vmem:[%s2 + $0x3c0] sm:$0xff]
    %v3511 = vld [vmem:[%s2 + $0x3c8] sm:$0xff]
    %v3512 = vld [vmem:[%s2 + $0x3d0] sm:$0xff]
    %v3513 = vld [vmem:[%s2 + $0x3d8] sm:$0xff]
    %v3514 = vld [vmem:[%s2 + $0x3e0] sm:$0xff]
    %v3515 = vld [vmem:[%s2 + $0x3e8] sm:$0xff]
    %v3516 = vld [vmem:[%s2 + $0x3f0] sm:$0xff]
    %v3517 = vld [vmem:[%s2 + $0x3f8] sm:$0xff]
    %v3518 = vld [vmem:[%s2 + $0x400] sm:$0xff]
    %v3519 = vld [vmem:[%s2 + $0x408] sm:$0xff]
    %v3520 = vld [vmem:[%s2 + $0x410] sm:$0xff]
    %v3521 = vld [vmem:[%s2 + $0x418] sm:$0xff]
    %v3522 = vld [vmem:[%s2 + $0x420] sm:$0xff]
    %v3523 = vld [vmem:[%s2 + $0x428] sm:$0xff]
    %v3524 = vld [vmem:[%s2 + $0x430] sm:$0xff]
    %v3525 = vld [vmem:[%s2 + $0x438] sm:$0xff]
    %v3526 = vld [vmem:[%s2 + $0x440] sm:$0xff]
    %v3527 = vld [vmem:[%s2 + $0x448] sm:$0xff]
    %v3528 = vld [vmem:[%s2 + $0x450] sm:$0xff]
    %v3529 = vld [vmem:[%s2 + $0x458] sm:$0xff]
    %v3530 = vld [vmem:[%s2 + $0x460] sm:$0xff]
    %v3531 = vld [vmem:[%s2 + $0x468] sm:$0xff]
    %v3532 = vld [vmem:[%s2 + $0x470] sm:$0xff]
    %v3533 = vld [vmem:[%s2 + $0x478] sm:$0xff]
    %v3534 = vld [vmem:[%s2 + $0x480] sm:$0xff]
    %v3535 = vld [vmem:[%s2 + $0x488] sm:$0xff]
    %v3536 = vld [vmem:[%s2 + $0x490] sm:$0xff]
    %v3537 = vld [vmem:[%s2 + $0x498] sm:$0xff]
    %v3538 = vld [vmem:[%s2 + $0x4a0] sm:$0xff]
    %v3539 = vld [vmem:[%s2 + $0x4a8] sm:$0xff]
    %v3540 = vld [vmem:[%s2 + $0x4b0] sm:$0xff]
    %v3541 = vld [vmem:[%s2 + $0x4b8] sm:$0xff]
    %v3542 = vld [vmem:[%s2 + $0x4c0] sm:$0xff]
    %v3543 = vld [vmem:[%s2 + $0x4c8] sm:$0xff]
    %v3544 = vld [vmem:[%s2 + $0x4d0] sm:$0xff]
    %v3545 = vld [vmem:[%s2 + $0x4d8] sm:$0xff]
    %v3546 = vld [vmem:[%s2 + $0x4e0] sm:$0xff]
    %v3547 = vld [vmem:[%s2 + $0x4e8] sm:$0xff]
    %v3548 = vld [vmem:[%s2 + $0x4f0] sm:$0xff]
    %v3549 = vld [vmem:[%s2 + $0x4f8] sm:$0xff]
    %v3550 = vld [vmem:[%s2 + $0x500] sm:$0xff]
    %v3551 = vld [vmem:[%s2 + $0x508] sm:$0xff]
    %v3552 = vld [vmem:[%s2 + $0x510] sm:$0xff]
    %v3553 = vld [vmem:[%s2 + $0x518] sm:$0xff]
    %v3554 = vld [vmem:[%s2 + $0x520] sm:$0xff]
    %v3555 = vld [vmem:[%s2 + $0x528] sm:$0xff]
    %v3556 = vld [vmem:[%s2 + $0x530] sm:$0xff]
    %v3557 = vld [vmem:[%s2 + $0x538] sm:$0xff]
    %v3558 = vld [vmem:[%s2 + $0x540] sm:$0xff]
    %v3559 = vld [vmem:[%s2 + $0x548] sm:$0xff]
    %v3560 = vld [vmem:[%s2 + $0x550] sm:$0xff]
    %v3561 = vld [vmem:[%s2 + $0x558] sm:$0xff]
    %v3562 = vld [vmem:[%s2 + $0x560] sm:$0xff]
    %v3563 = vld [vmem:[%s2 + $0x568] sm:$0xff]
    %v3564 = vld [vmem:[%s2 + $0x570] sm:$0xff]
    %v3565 = vld [vmem:[%s2 + $0x578] sm:$0xff]
    %v3566 = vld [vmem:[%s2 + $0x580] sm:$0xff]
    %v3567 = vld [vmem:[%s2 + $0x588] sm:$0xff]
    %v3568 = vld [vmem:[%s2 + $0x590] sm:$0xff]
    %v3569 = vld [vmem:[%s2 + $0x598] sm:$0xff]
    %v3570 = vld [vmem:[%s2 + $0x5a0] sm:$0xff]
    %v3571 = vld [vmem:[%s2 + $0x5a8] sm:$0xff]
    %v3572 = vld [vmem:[%s2 + $0x5b0] sm:$0xff]
    %v3573 = vld [vmem:[%s2 + $0x5b8] sm:$0xff]
    %v3574 = vld [vmem:[%s2 + $0x5c0] sm:$0xff]
    %v3575 = vld [vmem:[%s2 + $0x5c8] sm:$0xff]
    %v3576 = vld [vmem:[%s2 + $0x5d0] sm:$0xff]
    %v3577 = vld [vmem:[%s2 + $0x5d8] sm:$0xff]
    %v3578 = vld [vmem:[%s2 + $0x5e0] sm:$0xff]
    %v3579 = vld [vmem:[%s2 + $0x5e8] sm:$0xff]
    %v3580 = vld [vmem:[%s2 + $0x5f0] sm:$0xff]
    %v3581 = vld [vmem:[%s2 + $0x5f8] sm:$0xff]
    %v3582 = vld [vmem:[%s2 + $0x600] sm:$0xff]
    %v3583 = vld [vmem:[%s2 + $0x608] sm:$0xff]
    %v3584 = vld [vmem:[%s2 + $0x610] sm:$0xff]
    %v3585 = vld [vmem:[%s2 + $0x618] sm:$0xff]
    %v3586 = vld [vmem:[%s2 + $0x620] sm:$0xff]
    %v3587 = vld [vmem:[%s2 + $0x628] sm:$0xff]
    %v3588 = vld [vmem:[%s2 + $0x630] sm:$0xff]
    %v3589 = vld [vmem:[%s2 + $0x638] sm:$0xff]
    %v3590 = vld [vmem:[%s2 + $0x640] sm:$0xff]
    %v3591 = vld [vmem:[%s2 + $0x648] sm:$0xff]
    %v3592 = vld [vmem:[%s2 + $0x650] sm:$0xff]
    %v3593 = vld [vmem:[%s2 + $0x658] sm:$0xff]
    %v3594 = vld [vmem:[%s2 + $0x660] sm:$0xff]
    %v3595 = vld [vmem:[%s2 + $0x668] sm:$0xff]
    %v3596 = vld [vmem:[%s2 + $0x670] sm:$0xff]
    %v3597 = vld [vmem:[%s2 + $0x678] sm:$0xff]
    %v3598 = vld [vmem:[%s2 + $0x680] sm:$0xff]
    %v3599 = vld [vmem:[%s2 + $0x688] sm:$0xff]
    %v3600 = vld [vmem:[%s2 + $0x690] sm:$0xff]
    %v3601 = vld [vmem:[%s2 + $0x698] sm:$0xff]
    %v3602 = vld [vmem:[%s2 + $0x6a0] sm:$0xff]
    %v3603 = vld [vmem:[%s2 + $0x6a8] sm:$0xff]
    %v3604 = vld [vmem:[%s2 + $0x6b0] sm:$0xff]
    %v3605 = vld [vmem:[%s2 + $0x6b8] sm:$0xff]
    %v3606 = vld [vmem:[%s2 + $0x6c0] sm:$0xff]
    %v3607 = vld [vmem:[%s2 + $0x6c8] sm:$0xff]
    %v3608 = vld [vmem:[%s2 + $0x6d0] sm:$0xff]
    %v3609 = vld [vmem:[%s2 + $0x6d8] sm:$0xff]
    %v3610 = vld [vmem:[%s2 + $0x6e0] sm:$0xff]
    %v3611 = vld [vmem:[%s2 + $0x6e8] sm:$0xff]
    %v3612 = vld [vmem:[%s2 + $0x6f0] sm:$0xff]
    %v3613 = vld [vmem:[%s2 + $0x6f8] sm:$0xff]
    %v3614 = vld [vmem:[#allocation7] sm:$0xff]
    %v3615 = vld [vmem:[#allocation7 + $0x8] sm:$0xff]
    %v3616 = vld [vmem:[#allocation7 + $0x10] sm:$0xff]
    %v3617 = vld [vmem:[#allocation7 + $0x18] sm:$0xff]
    %v3618 = vld [vmem:[#allocation7 + $0x20] sm:$0xff]
    %v3619 = vld [vmem:[#allocation7 + $0x28] sm:$0xff]
    %v3620 = vld [vmem:[#allocation7 + $0x30] sm:$0xff]
    %v3621 = vld [vmem:[#allocation7 + $0x38] sm:$0xff]
    %v3622 = vld [vmem:[#allocation7 + $0x40] sm:$0xff]
    %v3623 = vld [vmem:[#allocation7 + $0x48] sm:$0xff]
    %v3624 = vld [vmem:[#allocation7 + $0x50] sm:$0xff]
    %v3625 = vld [vmem:[#allocation7 + $0x58] sm:$0xff]
    %v3626 = vld [vmem:[#allocation7 + $0x60] sm:$0xff]
    %v3627 = vld [vmem:[#allocation7 + $0x68] sm:$0xff]
    %v3628 = vld [vmem:[#allocation7 + $0x70] sm:$0xff]
    %v3629 = vld [vmem:[#allocation7 + $0x78] sm:$0xff]
    %v3854 = vunpack.c.l.b16 %v3390
    %v3855 = vunpack.c.h.b16 %v3390
    %v3856 = vunpack.c.l.b16 %v3391
    %v3857 = vunpack.c.h.b16 %v3391
    %v3858 = vunpack.c.l.b16 %v3392
    %v3859 = vunpack.c.h.b16 %v3392
    %v3860 = vunpack.c.l.b16 %v3393
    %v3861 = vunpack.c.h.b16 %v3393
    %v3862 = vunpack.c.l.b16 %v3394
    %v3863 = vunpack.c.h.b16 %v3394
    %v3864 = vunpack.c.l.b16 %v3395
    %v3865 = vunpack.c.h.b16 %v3395
    %v3866 = vunpack.c.l.b16 %v3396
    %v3867 = vunpack.c.h.b16 %v3396
    %v3868 = vunpack.c.l.b16 %v3397
    %v3869 = vunpack.c.h.b16 %v3397
    %v3870 = vunpack.c.l.b16 %v3398
    %v3871 = vunpack.c.h.b16 %v3398
    %v3872 = vunpack.c.l.b16 %v3399
    %v3873 = vunpack.c.h.b16 %v3399
    %v3874 = vunpack.c.l.b16 %v3400
    %v3875 = vunpack.c.h.b16 %v3400
    %v3876 = vunpack.c.l.b16 %v3401
    %v3877 = vunpack.c.h.b16 %v3401
    %v3878 = vunpack.c.l.b16 %v3402
    %v3879 = vunpack.c.h.b16 %v3402
    %v3880 = vunpack.c.l.b16 %v3403
    %v3881 = vunpack.c.h.b16 %v3403
    %v3882 = vunpack.c.l.b16 %v3404
    %v3883 = vunpack.c.h.b16 %v3404
    %v3884 = vunpack.c.l.b16 %v3405
    %v3885 = vunpack.c.h.b16 %v3405
    %v3886 = vunpack.c.l.b16 %v3406
    %v3887 = vunpack.c.h.b16 %v3406
    %v3888 = vunpack.c.l.b16 %v3407
    %v3889 = vunpack.c.h.b16 %v3407
    %v3890 = vunpack.c.l.b16 %v3408
    %v3891 = vunpack.c.h.b16 %v3408
    %v3892 = vunpack.c.l.b16 %v3409
    %v3893 = vunpack.c.h.b16 %v3409
    %v3894 = vunpack.c.l.b16 %v3410
    %v3895 = vunpack.c.h.b16 %v3410
    %v3896 = vunpack.c.l.b16 %v3411
    %v3897 = vunpack.c.h.b16 %v3411
    %v3898 = vunpack.c.l.b16 %v3412
    %v3899 = vunpack.c.h.b16 %v3412
    %v3900 = vunpack.c.l.b16 %v3413
    %v3901 = vunpack.c.h.b16 %v3413
    %v3902 = vunpack.c.l.b16 %v3414
    %v3903 = vunpack.c.h.b16 %v3414
    %v3904 = vunpack.c.l.b16 %v3415
    %v3905 = vunpack.c.h.b16 %v3415
    %v3906 = vunpack.c.l.b16 %v3416
    %v3907 = vunpack.c.h.b16 %v3416
    %v3908 = vunpack.c.l.b16 %v3417
    %v3909 = vunpack.c.h.b16 %v3417
    %v3910 = vunpack.c.l.b16 %v3418
    %v3911 = vunpack.c.h.b16 %v3418
    %v3912 = vunpack.c.l.b16 %v3419
    %v3913 = vunpack.c.h.b16 %v3419
    %v3914 = vunpack.c.l.b16 %v3420
    %v3915 = vunpack.c.h.b16 %v3420
    %v3916 = vunpack.c.l.b16 %v3421
    %v3917 = vunpack.c.h.b16 %v3421
    %v3918 = vunpack.c.l.b16 %v3422
    %v3919 = vunpack.c.h.b16 %v3422
    %v3920 = vunpack.c.l.b16 %v3423
    %v3921 = vunpack.c.h.b16 %v3423
    %v3922 = vunpack.c.l.b16 %v3424
    %v3923 = vunpack.c.h.b16 %v3424
    %v3924 = vunpack.c.l.b16 %v3425
    %v3925 = vunpack.c.h.b16 %v3425
    %v3926 = vunpack.c.l.b16 %v3426
    %v3927 = vunpack.c.h.b16 %v3426
    %v3928 = vunpack.c.l.b16 %v3427
    %v3929 = vunpack.c.h.b16 %v3427
    %v3930 = vunpack.c.l.b16 %v3428
    %v3931 = vunpack.c.h.b16 %v3428
    %v3932 = vunpack.c.l.b16 %v3429
    %v3933 = vunpack.c.h.b16 %v3429
    %v3934 = vunpack.c.l.b16 %v3430
    %v3935 = vunpack.c.h.b16 %v3430
    %v3936 = vunpack.c.l.b16 %v3431
    %v3937 = vunpack.c.h.b16 %v3431
    %v3938 = vunpack.c.l.b16 %v3432
    %v3939 = vunpack.c.h.b16 %v3432
    %v3940 = vunpack.c.l.b16 %v3433
    %v3941 = vunpack.c.h.b16 %v3433
    %v3942 = vunpack.c.l.b16 %v3434
    %v3943 = vunpack.c.h.b16 %v3434
    %v3944 = vunpack.c.l.b16 %v3435
    %v3945 = vunpack.c.h.b16 %v3435
    %v3946 = vunpack.c.l.b16 %v3436
    %v3947 = vunpack.c.h.b16 %v3436
    %v3948 = vunpack.c.l.b16 %v3437
    %v3949 = vunpack.c.h.b16 %v3437
    %v3950 = vunpack.c.l.b16 %v3438
    %v3951 = vunpack.c.h.b16 %v3438
    %v3952 = vunpack.c.l.b16 %v3439
    %v3953 = vunpack.c.h.b16 %v3439
    %v3954 = vunpack.c.l.b16 %v3440
    %v3955 = vunpack.c.h.b16 %v3440
    %v3956 = vunpack.c.l.b16 %v3441
    %v3957 = vunpack.c.h.b16 %v3441
    %v3958 = vunpack.c.l.b16 %v3442
    %v3959 = vunpack.c.h.b16 %v3442
    %v3960 = vunpack.c.l.b16 %v3443
    %v3961 = vunpack.c.h.b16 %v3443
    %v3962 = vunpack.c.l.b16 %v3444
    %v3963 = vunpack.c.h.b16 %v3444
    %v3964 = vunpack.c.l.b16 %v3445
    %v3965 = vunpack.c.h.b16 %v3445
    %v3966 = vunpack.c.l.b16 %v3446
    %v3967 = vunpack.c.h.b16 %v3446
    %v3968 = vunpack.c.l.b16 %v3447
    %v3969 = vunpack.c.h.b16 %v3447
    %v3970 = vunpack.c.l.b16 %v3448
    %v3971 = vunpack.c.h.b16 %v3448
    %v3972 = vunpack.c.l.b16 %v3449
    %v3973 = vunpack.c.h.b16 %v3449
    %v3974 = vunpack.c.l.b16 %v3450
    %v3975 = vunpack.c.h.b16 %v3450
    %v3976 = vunpack.c.l.b16 %v3451
    %v3977 = vunpack.c.h.b16 %v3451
    %v3978 = vunpack.c.l.b16 %v3452
    %v3979 = vunpack.c.h.b16 %v3452
    %v3980 = vunpack.c.l.b16 %v3453
    %v3981 = vunpack.c.h.b16 %v3453
    %v3982 = vunpack.c.l.b16 %v3454
    %v3983 = vunpack.c.h.b16 %v3454
    %v3984 = vunpack.c.l.b16 %v3455
    %v3985 = vunpack.c.h.b16 %v3455
    %v3986 = vunpack.c.l.b16 %v3456
    %v3987 = vunpack.c.h.b16 %v3456
    %v3988 = vunpack.c.l.b16 %v3457
    %v3989 = vunpack.c.h.b16 %v3457
    %v3990 = vunpack.c.l.b16 %v3458
    %v3991 = vunpack.c.h.b16 %v3458
    %v3992 = vunpack.c.l.b16 %v3459
    %v3993 = vunpack.c.h.b16 %v3459
    %v3994 = vunpack.c.l.b16 %v3460
    %v3995 = vunpack.c.h.b16 %v3460
    %v3996 = vunpack.c.l.b16 %v3461
    %v3997 = vunpack.c.h.b16 %v3461
    %v3998 = vunpack.c.l.b16 %v3462
    %v3999 = vunpack.c.h.b16 %v3462
    %v4000 = vunpack.c.l.b16 %v3463
    %v4001 = vunpack.c.h.b16 %v3463
    %v4002 = vunpack.c.l.b16 %v3464
    %v4003 = vunpack.c.h.b16 %v3464
    %v4004 = vunpack.c.l.b16 %v3465
    %v4005 = vunpack.c.h.b16 %v3465
    %v4006 = vunpack.c.l.b16 %v3466
    %v4007 = vunpack.c.h.b16 %v3466
    %v4008 = vunpack.c.l.b16 %v3467
    %v4009 = vunpack.c.h.b16 %v3467
    %v4010 = vunpack.c.l.b16 %v3468
    %v4011 = vunpack.c.h.b16 %v3468
    %v4012 = vunpack.c.l.b16 %v3469
    %v4013 = vunpack.c.h.b16 %v3469
    %v4014 = vunpack.c.l.b16 %v3470
    %v4015 = vunpack.c.h.b16 %v3470
    %v4016 = vunpack.c.l.b16 %v3471
    %v4017 = vunpack.c.h.b16 %v3471
    %v4018 = vunpack.c.l.b16 %v3472
    %v4019 = vunpack.c.h.b16 %v3472
    %v4020 = vunpack.c.l.b16 %v3473
    %v4021 = vunpack.c.h.b16 %v3473
    %v4022 = vunpack.c.l.b16 %v3474
    %v4023 = vunpack.c.h.b16 %v3474
    %v4024 = vunpack.c.l.b16 %v3475
    %v4025 = vunpack.c.h.b16 %v3475
    %v4026 = vunpack.c.l.b16 %v3476
    %v4027 = vunpack.c.h.b16 %v3476
    %v4028 = vunpack.c.l.b16 %v3477
    %v4029 = vunpack.c.h.b16 %v3477
    %v4030 = vunpack.c.l.b16 %v3478
    %v4031 = vunpack.c.h.b16 %v3478
    %v4032 = vunpack.c.l.b16 %v3479
    %v4033 = vunpack.c.h.b16 %v3479
    %v4034 = vunpack.c.l.b16 %v3480
    %v4035 = vunpack.c.h.b16 %v3480
    %v4036 = vunpack.c.l.b16 %v3481
    %v4037 = vunpack.c.h.b16 %v3481
    %v4038 = vunpack.c.l.b16 %v3482
    %v4039 = vunpack.c.h.b16 %v3482
    %v4040 = vunpack.c.l.b16 %v3483
    %v4041 = vunpack.c.h.b16 %v3483
    %v4042 = vunpack.c.l.b16 %v3484
    %v4043 = vunpack.c.h.b16 %v3484
    %v4044 = vunpack.c.l.b16 %v3485
    %v4045 = vunpack.c.h.b16 %v3485
    %v4046 = vunpack.c.l.b16 %v3486
    %v4047 = vunpack.c.h.b16 %v3486
    %v4048 = vunpack.c.l.b16 %v3487
    %v4049 = vunpack.c.h.b16 %v3487
    %v4050 = vunpack.c.l.b16 %v3488
    %v4051 = vunpack.c.h.b16 %v3488
    %v4052 = vunpack.c.l.b16 %v3489
    %v4053 = vunpack.c.h.b16 %v3489
    %v4054 = vunpack.c.l.b16 %v3490
    %v4055 = vunpack.c.h.b16 %v3490
    %v4056 = vunpack.c.l.b16 %v3491
    %v4057 = vunpack.c.h.b16 %v3491
    %v4058 = vunpack.c.l.b16 %v3492
    %v4059 = vunpack.c.h.b16 %v3492
    %v4060 = vunpack.c.l.b16 %v3493
    %v4061 = vunpack.c.h.b16 %v3493
    %v4062 = vunpack.c.l.b16 %v3494
    %v4063 = vunpack.c.h.b16 %v3494
    %v4064 = vunpack.c.l.b16 %v3495
    %v4065 = vunpack.c.h.b16 %v3495
    %v4066 = vunpack.c.l.b16 %v3496
    %v4067 = vunpack.c.h.b16 %v3496
    %v4068 = vunpack.c.l.b16 %v3497
    %v4069 = vunpack.c.h.b16 %v3497
    %v4070 = vunpack.c.l.b16 %v3498
    %v4071 = vunpack.c.h.b16 %v3498
    %v4072 = vunpack.c.l.b16 %v3499
    %v4073 = vunpack.c.h.b16 %v3499
    %v4074 = vunpack.c.l.b16 %v3500
    %v4075 = vunpack.c.h.b16 %v3500
    %v4076 = vunpack.c.l.b16 %v3501
    %v4077 = vunpack.c.h.b16 %v3501
    %v4078 = vunpack.c.l.b16 %v3502
    %v4079 = vunpack.c.h.b16 %v3502
    %v4080 = vunpack.c.l.b16 %v3503
    %v4081 = vunpack.c.h.b16 %v3503
    %v4082 = vunpack.c.l.b16 %v3504
    %v4083 = vunpack.c.h.b16 %v3504
    %v4084 = vunpack.c.l.b16 %v3505
    %v4085 = vunpack.c.h.b16 %v3505
    %v4086 = vunpack.c.l.b16 %v3506
    %v4087 = vunpack.c.h.b16 %v3506
    %v4088 = vunpack.c.l.b16 %v3507
    %v4089 = vunpack.c.h.b16 %v3507
    %v4090 = vunpack.c.l.b16 %v3508
    %v4091 = vunpack.c.h.b16 %v3508
    %v4092 = vunpack.c.l.b16 %v3509
    %v4093 = vunpack.c.h.b16 %v3509
    %v4094 = vunpack.c.l.b16 %v3510
    %v4095 = vunpack.c.h.b16 %v3510
    %v4096 = vunpack.c.l.b16 %v3511
    %v4097 = vunpack.c.h.b16 %v3511
    %v4098 = vunpack.c.l.b16 %v3512
    %v4099 = vunpack.c.h.b16 %v3512
    %v4100 = vunpack.c.l.b16 %v3513
    %v4101 = vunpack.c.h.b16 %v3513
    %v4102 = vunpack.c.l.b16 %v3514
    %v4103 = vunpack.c.h.b16 %v3514
    %v4104 = vunpack.c.l.b16 %v3515
    %v4105 = vunpack.c.h.b16 %v3515
    %v4106 = vunpack.c.l.b16 %v3516
    %v4107 = vunpack.c.h.b16 %v3516
    %v4108 = vunpack.c.l.b16 %v3517
    %v4109 = vunpack.c.h.b16 %v3517
    %v4110 = vunpack.c.l.b16 %v3518
    %v4111 = vunpack.c.h.b16 %v3518
    %v4112 = vunpack.c.l.b16 %v3519
    %v4113 = vunpack.c.h.b16 %v3519
    %v4114 = vunpack.c.l.b16 %v3520
    %v4115 = vunpack.c.h.b16 %v3520
    %v4116 = vunpack.c.l.b16 %v3521
    %v4117 = vunpack.c.h.b16 %v3521
    %v4118 = vunpack.c.l.b16 %v3522
    %v4119 = vunpack.c.h.b16 %v3522
    %v4120 = vunpack.c.l.b16 %v3523
    %v4121 = vunpack.c.h.b16 %v3523
    %v4122 = vunpack.c.l.b16 %v3524
    %v4123 = vunpack.c.h.b16 %v3524
    %v4124 = vunpack.c.l.b16 %v3525
    %v4125 = vunpack.c.h.b16 %v3525
    %v4126 = vunpack.c.l.b16 %v3526
    %v4127 = vunpack.c.h.b16 %v3526
    %v4128 = vunpack.c.l.b16 %v3527
    %v4129 = vunpack.c.h.b16 %v3527
    %v4130 = vunpack.c.l.b16 %v3528
    %v4131 = vunpack.c.h.b16 %v3528
    %v4132 = vunpack.c.l.b16 %v3529
    %v4133 = vunpack.c.h.b16 %v3529
    %v4134 = vunpack.c.l.b16 %v3530
    %v4135 = vunpack.c.h.b16 %v3530
    %v4136 = vunpack.c.l.b16 %v3531
    %v4137 = vunpack.c.h.b16 %v3531
    %v4138 = vunpack.c.l.b16 %v3532
    %v4139 = vunpack.c.h.b16 %v3532
    %v4140 = vunpack.c.l.b16 %v3533
    %v4141 = vunpack.c.h.b16 %v3533
    %v4142 = vunpack.c.l.b16 %v3534
    %v4143 = vunpack.c.h.b16 %v3534
    %v4144 = vunpack.c.l.b16 %v3535
    %v4145 = vunpack.c.h.b16 %v3535
    %v4146 = vunpack.c.l.b16 %v3536
    %v4147 = vunpack.c.h.b16 %v3536
    %v4148 = vunpack.c.l.b16 %v3537
    %v4149 = vunpack.c.h.b16 %v3537
    %v4150 = vunpack.c.l.b16 %v3538
    %v4151 = vunpack.c.h.b16 %v3538
    %v4152 = vunpack.c.l.b16 %v3539
    %v4153 = vunpack.c.h.b16 %v3539
    %v4154 = vunpack.c.l.b16 %v3540
    %v4155 = vunpack.c.h.b16 %v3540
    %v4156 = vunpack.c.l.b16 %v3541
    %v4157 = vunpack.c.h.b16 %v3541
    %v4158 = vunpack.c.l.b16 %v3542
    %v4159 = vunpack.c.h.b16 %v3542
    %v4160 = vunpack.c.l.b16 %v3543
    %v4161 = vunpack.c.h.b16 %v3543
    %v4162 = vunpack.c.l.b16 %v3544
    %v4163 = vunpack.c.h.b16 %v3544
    %v4164 = vunpack.c.l.b16 %v3545
    %v4165 = vunpack.c.h.b16 %v3545
    %v4166 = vunpack.c.l.b16 %v3546
    %v4167 = vunpack.c.h.b16 %v3546
    %v4168 = vunpack.c.l.b16 %v3547
    %v4169 = vunpack.c.h.b16 %v3547
    %v4170 = vunpack.c.l.b16 %v3548
    %v4171 = vunpack.c.h.b16 %v3548
    %v4172 = vunpack.c.l.b16 %v3549
    %v4173 = vunpack.c.h.b16 %v3549
    %v4174 = vunpack.c.l.b16 %v3550
    %v4175 = vunpack.c.h.b16 %v3550
    %v4176 = vunpack.c.l.b16 %v3551
    %v4177 = vunpack.c.h.b16 %v3551
    %v4178 = vunpack.c.l.b16 %v3552
    %v4179 = vunpack.c.h.b16 %v3552
    %v4180 = vunpack.c.l.b16 %v3553
    %v4181 = vunpack.c.h.b16 %v3553
    %v4182 = vunpack.c.l.b16 %v3554
    %v4183 = vunpack.c.h.b16 %v3554
    %v4184 = vunpack.c.l.b16 %v3555
    %v4185 = vunpack.c.h.b16 %v3555
    %v4186 = vunpack.c.l.b16 %v3556
    %v4187 = vunpack.c.h.b16 %v3556
    %v4188 = vunpack.c.l.b16 %v3557
    %v4189 = vunpack.c.h.b16 %v3557
    %v4190 = vunpack.c.l.b16 %v3558
    %v4191 = vunpack.c.h.b16 %v3558
    %v4192 = vunpack.c.l.b16 %v3559
    %v4193 = vunpack.c.h.b16 %v3559
    %v4194 = vunpack.c.l.b16 %v3560
    %v4195 = vunpack.c.h.b16 %v3560
    %v4196 = vunpack.c.l.b16 %v3561
    %v4197 = vunpack.c.h.b16 %v3561
    %v4198 = vunpack.c.l.b16 %v3562
    %v4199 = vunpack.c.h.b16 %v3562
    %v4200 = vunpack.c.l.b16 %v3563
    %v4201 = vunpack.c.h.b16 %v3563
    %v4202 = vunpack.c.l.b16 %v3564
    %v4203 = vunpack.c.h.b16 %v3564
    %v4204 = vunpack.c.l.b16 %v3565
    %v4205 = vunpack.c.h.b16 %v3565
    %v4206 = vunpack.c.l.b16 %v3566
    %v4207 = vunpack.c.h.b16 %v3566
    %v4208 = vunpack.c.l.b16 %v3567
    %v4209 = vunpack.c.h.b16 %v3567
    %v4210 = vunpack.c.l.b16 %v3568
    %v4211 = vunpack.c.h.b16 %v3568
    %v4212 = vunpack.c.l.b16 %v3569
    %v4213 = vunpack.c.h.b16 %v3569
    %v4214 = vunpack.c.l.b16 %v3570
    %v4215 = vunpack.c.h.b16 %v3570
    %v4216 = vunpack.c.l.b16 %v3571
    %v4217 = vunpack.c.h.b16 %v3571
    %v4218 = vunpack.c.l.b16 %v3572
    %v4219 = vunpack.c.h.b16 %v3572
    %v4220 = vunpack.c.l.b16 %v3573
    %v4221 = vunpack.c.h.b16 %v3573
    %v4222 = vunpack.c.l.b16 %v3574
    %v4223 = vunpack.c.h.b16 %v3574
    %v4224 = vunpack.c.l.b16 %v3575
    %v4225 = vunpack.c.h.b16 %v3575
    %v4226 = vunpack.c.l.b16 %v3576
    %v4227 = vunpack.c.h.b16 %v3576
    %v4228 = vunpack.c.l.b16 %v3577
    %v4229 = vunpack.c.h.b16 %v3577
    %v4230 = vunpack.c.l.b16 %v3578
    %v4231 = vunpack.c.h.b16 %v3578
    %v4232 = vunpack.c.l.b16 %v3579
    %v4233 = vunpack.c.h.b16 %v3579
    %v4234 = vunpack.c.l.b16 %v3580
    %v4235 = vunpack.c.h.b16 %v3580
    %v4236 = vunpack.c.l.b16 %v3581
    %v4237 = vunpack.c.h.b16 %v3581
    %v4238 = vunpack.c.l.b16 %v3582
    %v4239 = vunpack.c.h.b16 %v3582
    %v4240 = vunpack.c.l.b16 %v3583
    %v4241 = vunpack.c.h.b16 %v3583
    %v4242 = vunpack.c.l.b16 %v3584
    %v4243 = vunpack.c.h.b16 %v3584
    %v4244 = vunpack.c.l.b16 %v3585
    %v4245 = vunpack.c.h.b16 %v3585
    %v4246 = vunpack.c.l.b16 %v3586
    %v4247 = vunpack.c.h.b16 %v3586
    %v4248 = vunpack.c.l.b16 %v3587
    %v4249 = vunpack.c.h.b16 %v3587
    %v4250 = vunpack.c.l.b16 %v3588
    %v4251 = vunpack.c.h.b16 %v3588
    %v4252 = vunpack.c.l.b16 %v3589
    %v4253 = vunpack.c.h.b16 %v3589
    %v4254 = vunpack.c.l.b16 %v3590
    %v4255 = vunpack.c.h.b16 %v3590
    %v4256 = vunpack.c.l.b16 %v3591
    %v4257 = vunpack.c.h.b16 %v3591
    %v4258 = vunpack.c.l.b16 %v3592
    %v4259 = vunpack.c.h.b16 %v3592
    %v4260 = vunpack.c.l.b16 %v3593
    %v4261 = vunpack.c.h.b16 %v3593
    %v4262 = vunpack.c.l.b16 %v3594
    %v4263 = vunpack.c.h.b16 %v3594
    %v4264 = vunpack.c.l.b16 %v3595
    %v4265 = vunpack.c.h.b16 %v3595
    %v4266 = vunpack.c.l.b16 %v3596
    %v4267 = vunpack.c.h.b16 %v3596
    %v4268 = vunpack.c.l.b16 %v3597
    %v4269 = vunpack.c.h.b16 %v3597
    %v4270 = vunpack.c.l.b16 %v3598
    %v4271 = vunpack.c.h.b16 %v3598
    %v4272 = vunpack.c.l.b16 %v3599
    %v4273 = vunpack.c.h.b16 %v3599
    %v4274 = vunpack.c.l.b16 %v3600
    %v4275 = vunpack.c.h.b16 %v3600
    %v4276 = vunpack.c.l.b16 %v3601
    %v4277 = vunpack.c.h.b16 %v3601
    %v4278 = vunpack.c.l.b16 %v3602
    %v4279 = vunpack.c.h.b16 %v3602
    %v4280 = vunpack.c.l.b16 %v3603
    %v4281 = vunpack.c.h.b16 %v3603
    %v4282 = vunpack.c.l.b16 %v3604
    %v4283 = vunpack.c.h.b16 %v3604
    %v4284 = vunpack.c.l.b16 %v3605
    %v4285 = vunpack.c.h.b16 %v3605
    %v4286 = vunpack.c.l.b16 %v3606
    %v4287 = vunpack.c.h.b16 %v3606
    %v4288 = vunpack.c.l.b16 %v3607
    %v4289 = vunpack.c.h.b16 %v3607
    %v4290 = vunpack.c.l.b16 %v3608
    %v4291 = vunpack.c.h.b16 %v3608
    %v4292 = vunpack.c.l.b16 %v3609
    %v4293 = vunpack.c.h.b16 %v3609
    %v4294 = vunpack.c.l.b16 %v3610
    %v4295 = vunpack.c.h.b16 %v3610
    %v4296 = vunpack.c.l.b16 %v3611
    %v4297 = vunpack.c.h.b16 %v3611
    %v4298 = vunpack.c.l.b16 %v3612
    %v4299 = vunpack.c.h.b16 %v3612
    %v4300 = vunpack.c.l.b16 %v3613
    %v4301 = vunpack.c.h.b16 %v3613
    %v4302 = vpack.c.b16 %v3882, %v3854
    %v4303 = vpack.c.b16 %v3883, %v3855
    %v4304 = vpack.c.b16 %v3884, %v3856
    %v4305 = vpack.c.b16 %v3885, %v3857
    %v4306 = vpack.c.b16 %v3886, %v3858
    %v4307 = vpack.c.b16 %v3887, %v3859
    %v4308 = vpack.c.b16 %v3888, %v3860
    %v4309 = vpack.c.b16 %v3889, %v3861
    %v4310 = vpack.c.b16 %v3890, %v3862
    %v4311 = vpack.c.b16 %v3891, %v3863
    %v4312 = vpack.c.b16 %v3892, %v3864
    %v4313 = vpack.c.b16 %v3893, %v3865
    %v4314 = vpack.c.b16 %v3894, %v3866
    %v4315 = vpack.c.b16 %v3895, %v3867
    %v4316 = vpack.c.b16 %v3896, %v3868
    %v4317 = vpack.c.b16 %v3897, %v3869
    %v4318 = vpack.c.b16 %v3898, %v3870
    %v4319 = vpack.c.b16 %v3899, %v3871
    %v4320 = vpack.c.b16 %v3900, %v3872
    %v4321 = vpack.c.b16 %v3901, %v3873
    %v4322 = vpack.c.b16 %v3902, %v3874
    %v4323 = vpack.c.b16 %v3903, %v3875
    %v4324 = vpack.c.b16 %v3904, %v3876
    %v4325 = vpack.c.b16 %v3905, %v3877
    %v4326 = vpack.c.b16 %v3906, %v3878
    %v4327 = vpack.c.b16 %v3907, %v3879
    %v4328 = vpack.c.b16 %v3908, %v3880
    %v4329 = vpack.c.b16 %v3909, %v3881
    %v4330 = vpack.c.b16 %v3938, %v3910
    %v4331 = vpack.c.b16 %v3939, %v3911
    %v4332 = vpack.c.b16 %v3940, %v3912
    %v4333 = vpack.c.b16 %v3941, %v3913
    %v4334 = vpack.c.b16 %v3942, %v3914
    %v4335 = vpack.c.b16 %v3943, %v3915
    %v4336 = vpack.c.b16 %v3944, %v3916
    %v4337 = vpack.c.b16 %v3945, %v3917
    %v4338 = vpack.c.b16 %v3946, %v3918
    %v4339 = vpack.c.b16 %v3947, %v3919
    %v4340 = vpack.c.b16 %v3948, %v3920
    %v4341 = vpack.c.b16 %v3949, %v3921
    %v4342 = vpack.c.b16 %v3950, %v3922
    %v4343 = vpack.c.b16 %v3951, %v3923
    %v4344 = vpack.c.b16 %v3952, %v3924
    %v4345 = vpack.c.b16 %v3953, %v3925
    %v4346 = vpack.c.b16 %v3954, %v3926
    %v4347 = vpack.c.b16 %v3955, %v3927
    %v4348 = vpack.c.b16 %v3956, %v3928
    %v4349 = vpack.c.b16 %v3957, %v3929
    %v4350 = vpack.c.b16 %v3958, %v3930
    %v4351 = vpack.c.b16 %v3959, %v3931
    %v4352 = vpack.c.b16 %v3960, %v3932
    %v4353 = vpack.c.b16 %v3961, %v3933
    %v4354 = vpack.c.b16 %v3962, %v3934
    %v4355 = vpack.c.b16 %v3963, %v3935
    %v4356 = vpack.c.b16 %v3964, %v3936
    %v4357 = vpack.c.b16 %v3965, %v3937
    %v4358 = vpack.c.b16 %v3994, %v3966
    %v4359 = vpack.c.b16 %v3995, %v3967
    %v4360 = vpack.c.b16 %v3996, %v3968
    %v4361 = vpack.c.b16 %v3997, %v3969
    %v4362 = vpack.c.b16 %v3998, %v3970
    %v4363 = vpack.c.b16 %v3999, %v3971
    %v4364 = vpack.c.b16 %v4000, %v3972
    %v4365 = vpack.c.b16 %v4001, %v3973
    %v4366 = vpack.c.b16 %v4002, %v3974
    %v4367 = vpack.c.b16 %v4003, %v3975
    %v4368 = vpack.c.b16 %v4004, %v3976
    %v4369 = vpack.c.b16 %v4005, %v3977
    %v4370 = vpack.c.b16 %v4006, %v3978
    %v4371 = vpack.c.b16 %v4007, %v3979
    %v4372 = vpack.c.b16 %v4008, %v3980
    %v4373 = vpack.c.b16 %v4009, %v3981
    %v4374 = vpack.c.b16 %v4010, %v3982
    %v4375 = vpack.c.b16 %v4011, %v3983
    %v4376 = vpack.c.b16 %v4012, %v3984
    %v4377 = vpack.c.b16 %v4013, %v3985
    %v4378 = vpack.c.b16 %v4014, %v3986
    %v4379 = vpack.c.b16 %v4015, %v3987
    %v4380 = vpack.c.b16 %v4016, %v3988
    %v4381 = vpack.c.b16 %v4017, %v3989
    %v4382 = vpack.c.b16 %v4018, %v3990
    %v4383 = vpack.c.b16 %v4019, %v3991
    %v4384 = vpack.c.b16 %v4020, %v3992
    %v4385 = vpack.c.b16 %v4021, %v3993
    %v4386 = vpack.c.b16 %v4050, %v4022
    %v4387 = vpack.c.b16 %v4051, %v4023
    %v4388 = vpack.c.b16 %v4052, %v4024
    %v4389 = vpack.c.b16 %v4053, %v4025
    %v4390 = vpack.c.b16 %v4054, %v4026
    %v4391 = vpack.c.b16 %v4055, %v4027
    %v4392 = vpack.c.b16 %v4056, %v4028
    %v4393 = vpack.c.b16 %v4057, %v4029
    %v4394 = vpack.c.b16 %v4058, %v4030
    %v4395 = vpack.c.b16 %v4059, %v4031
    %v4396 = vpack.c.b16 %v4060, %v4032
    %v4397 = vpack.c.b16 %v4061, %v4033
    %v4398 = vpack.c.b16 %v4062, %v4034
    %v4399 = vpack.c.b16 %v4063, %v4035
    %v4400 = vpack.c.b16 %v4064, %v4036
    %v4401 = vpack.c.b16 %v4065, %v4037
    %v4402 = vpack.c.b16 %v4066, %v4038
    %v4403 = vpack.c.b16 %v4067, %v4039
    %v4404 = vpack.c.b16 %v4068, %v4040
    %v4405 = vpack.c.b16 %v4069, %v4041
    %v4406 = vpack.c.b16 %v4070, %v4042
    %v4407 = vpack.c.b16 %v4071, %v4043
    %v4408 = vpack.c.b16 %v4072, %v4044
    %v4409 = vpack.c.b16 %v4073, %v4045
    %v4410 = vpack.c.b16 %v4074, %v4046
    %v4411 = vpack.c.b16 %v4075, %v4047
    %v4412 = vpack.c.b16 %v4076, %v4048
    %v4413 = vpack.c.b16 %v4077, %v4049
    %v4414 = vpack.c.b16 %v4106, %v4078
    %v4415 = vpack.c.b16 %v4107, %v4079
    %v4416 = vpack.c.b16 %v4108, %v4080
    %v4417 = vpack.c.b16 %v4109, %v4081
    %v4418 = vpack.c.b16 %v4110, %v4082
    %v4419 = vpack.c.b16 %v4111, %v4083
    %v4420 = vpack.c.b16 %v4112, %v4084
    %v4421 = vpack.c.b16 %v4113, %v4085
    %v4422 = vpack.c.b16 %v4114, %v4086
    %v4423 = vpack.c.b16 %v4115, %v4087
    %v4424 = vpack.c.b16 %v4116, %v4088
    %v4425 = vpack.c.b16 %v4117, %v4089
    %v4426 = vpack.c.b16 %v4118, %v4090
    %v4427 = vpack.c.b16 %v4119, %v4091
    %v4428 = vpack.c.b16 %v4120, %v4092
    %v4429 = vpack.c.b16 %v4121, %v4093
    %v4430 = vpack.c.b16 %v4122, %v4094
    %v4431 = vpack.c.b16 %v4123, %v4095
    %v4432 = vpack.c.b16 %v4124, %v4096
    %v4433 = vpack.c.b16 %v4125, %v4097
    %v4434 = vpack.c.b16 %v4126, %v4098
    %v4435 = vpack.c.b16 %v4127, %v4099
    %v4436 = vpack.c.b16 %v4128, %v4100
    %v4437 = vpack.c.b16 %v4129, %v4101
    %v4438 = vpack.c.b16 %v4130, %v4102
    %v4439 = vpack.c.b16 %v4131, %v4103
    %v4440 = vpack.c.b16 %v4132, %v4104
    %v4441 = vpack.c.b16 %v4133, %v4105
    %v4442 = vpack.c.b16 %v4162, %v4134
    %v4443 = vpack.c.b16 %v4163, %v4135
    %v4444 = vpack.c.b16 %v4164, %v4136
    %v4445 = vpack.c.b16 %v4165, %v4137
    %v4446 = vpack.c.b16 %v4166, %v4138
    %v4447 = vpack.c.b16 %v4167, %v4139
    %v4448 = vpack.c.b16 %v4168, %v4140
    %v4449 = vpack.c.b16 %v4169, %v4141
    %v4450 = vpack.c.b16 %v4170, %v4142
    %v4451 = vpack.c.b16 %v4171, %v4143
    %v4452 = vpack.c.b16 %v4172, %v4144
    %v4453 = vpack.c.b16 %v4173, %v4145
    %v4454 = vpack.c.b16 %v4174, %v4146
    %v4455 = vpack.c.b16 %v4175, %v4147
    %v4456 = vpack.c.b16 %v4176, %v4148
    %v4457 = vpack.c.b16 %v4177, %v4149
    %v4458 = vpack.c.b16 %v4178, %v4150
    %v4459 = vpack.c.b16 %v4179, %v4151
    %v4460 = vpack.c.b16 %v4180, %v4152
    %v4461 = vpack.c.b16 %v4181, %v4153
    %v4462 = vpack.c.b16 %v4182, %v4154
    %v4463 = vpack.c.b16 %v4183, %v4155
    %v4464 = vpack.c.b16 %v4184, %v4156
    %v4465 = vpack.c.b16 %v4185, %v4157
    %v4466 = vpack.c.b16 %v4186, %v4158
    %v4467 = vpack.c.b16 %v4187, %v4159
    %v4468 = vpack.c.b16 %v4188, %v4160
    %v4469 = vpack.c.b16 %v4189, %v4161
    %v4470 = vpack.c.b16 %v4218, %v4190
    %v4471 = vpack.c.b16 %v4219, %v4191
    %v4472 = vpack.c.b16 %v4220, %v4192
    %v4473 = vpack.c.b16 %v4221, %v4193
    %v4474 = vpack.c.b16 %v4222, %v4194
    %v4475 = vpack.c.b16 %v4223, %v4195
    %v4476 = vpack.c.b16 %v4224, %v4196
    %v4477 = vpack.c.b16 %v4225, %v4197
    %v4478 = vpack.c.b16 %v4226, %v4198
    %v4479 = vpack.c.b16 %v4227, %v4199
    %v4480 = vpack.c.b16 %v4228, %v4200
    %v4481 = vpack.c.b16 %v4229, %v4201
    %v4482 = vpack.c.b16 %v4230, %v4202
    %v4483 = vpack.c.b16 %v4231, %v4203
    %v4484 = vpack.c.b16 %v4232, %v4204
    %v4485 = vpack.c.b16 %v4233, %v4205
    %v4486 = vpack.c.b16 %v4234, %v4206
    %v4487 = vpack.c.b16 %v4235, %v4207
    %v4488 = vpack.c.b16 %v4236, %v4208
    %v4489 = vpack.c.b16 %v4237, %v4209
    %v4490 = vpack.c.b16 %v4238, %v4210
    %v4491 = vpack.c.b16 %v4239, %v4211
    %v4492 = vpack.c.b16 %v4240, %v4212
    %v4493 = vpack.c.b16 %v4241, %v4213
    %v4494 = vpack.c.b16 %v4242, %v4214
    %v4495 = vpack.c.b16 %v4243, %v4215
    %v4496 = vpack.c.b16 %v4244, %v4216
    %v4497 = vpack.c.b16 %v4245, %v4217
    %v4498 = vpack.c.b16 %v4274, %v4246
    %v4499 = vpack.c.b16 %v4275, %v4247
    %v4500 = vpack.c.b16 %v4276, %v4248
    %v4501 = vpack.c.b16 %v4277, %v4249
    %v4502 = vpack.c.b16 %v4278, %v4250
    %v4503 = vpack.c.b16 %v4279, %v4251
    %v4504 = vpack.c.b16 %v4280, %v4252
    %v4505 = vpack.c.b16 %v4281, %v4253
    %v4506 = vpack.c.b16 %v4282, %v4254
    %v4507 = vpack.c.b16 %v4283, %v4255
    %v4508 = vpack.c.b16 %v4284, %v4256
    %v4509 = vpack.c.b16 %v4285, %v4257
    %v4510 = vpack.c.b16 %v4286, %v4258
    %v4511 = vpack.c.b16 %v4287, %v4259
    %v4512 = vpack.c.b16 %v4288, %v4260
    %v4513 = vpack.c.b16 %v4289, %v4261
    %v4514 = vpack.c.b16 %v4290, %v4262
    %v4515 = vpack.c.b16 %v4291, %v4263
    %v4516 = vpack.c.b16 %v4292, %v4264
    %v4517 = vpack.c.b16 %v4293, %v4265
    %v4518 = vpack.c.b16 %v4294, %v4266
    %v4519 = vpack.c.b16 %v4295, %v4267
    %v4520 = vpack.c.b16 %v4296, %v4268
    %v4521 = vpack.c.b16 %v4297, %v4269
    %v4522 = vpack.c.b16 %v4298, %v4270
    %v4523 = vpack.c.b16 %v4299, %v4271
    %v4524 = vpack.c.b16 %v4300, %v4272
    %v4525 = vpack.c.b16 %v4301, %v4273
    %4750 = vmatprep.subr.bf16.mxu0 0
    %4751 = vmatpush1.bf16.msra.mxu0 %v3166
    %4752 = vmatprep.subr.bf16.mxu0 0
    %4753 = vmatpush1.bf16.msra.mxu0 %v3167
    %4754 = vmatprep.subr.bf16.mxu0 0
    %4755 = vmatpush1.bf16.msra.mxu0 %v3168
    %4756 = vmatprep.subr.bf16.mxu0 0
    %4757 = vmatpush1.bf16.msra.mxu0 %v3169
    %4758 = vmatprep.subr.bf16.mxu0 0
    %4759 = vmatpush1.bf16.msra.mxu0 %v3170
    %4760 = vmatprep.subr.bf16.mxu0 0
    %4761 = vmatpush1.bf16.msra.mxu0 %v3171
    %4762 = vmatprep.subr.bf16.mxu0 0
    %4763 = vmatpush1.bf16.msra.mxu0 %v3172
    %4764 = vmatprep.subr.bf16.mxu0 0
    %4765 = vmatpush1.bf16.msra.mxu0 %v3173
    %4766 = vmatprep.subr.bf16.mxu0 0
    %4767 = vmatpush1.bf16.msra.mxu0 %v3174
    %4768 = vmatprep.subr.bf16.mxu0 0
    %4769 = vmatpush1.bf16.msra.mxu0 %v3175
    %4770 = vmatprep.subr.bf16.mxu0 0
    %4771 = vmatpush1.bf16.msra.mxu0 %v3176
    %4772 = vmatprep.subr.bf16.mxu0 0
    %4773 = vmatpush1.bf16.msra.mxu0 %v3177
    %4774 = vmatprep.subr.bf16.mxu0 0
    %4775 = vmatpush1.bf16.msra.mxu0 %v3178
    %4776 = vmatprep.subr.bf16.mxu0 0
    %4777 = vmatpush1.bf16.msra.mxu0 %v3179
    %4778 = vmatprep.subr.bf16.mxu0 0
    %4779 = vmatpush1.bf16.msra.mxu0 %v3180
    %4780 = vmatprep.subr.bf16.mxu0 0
    %4781 = vmatpush1.bf16.msra.mxu0 %v3181
    %4782 = vmatprep.mubr.bf16.mxu0 %v4303
    %4783 = vmatmul.mubr.bf16.gmra.mrb[0].mxu0 %v4302
    %v4784 = vpop.f32.mrb[0].mxu0
    %v4785 = vadd.f32 %v3614, %v4784
    %v4786 = vpop.f32.mrb[0].mxu0
    %v4787 = vpop.f32.mrb[0].mxu0
    %v4788 = vadd.f32 %v3615, %v4787
    %v4789 = vpop.f32.mrb[0].mxu0
    %4790 = vmatprep.mubr.bf16.mxu0 %v4331
    %4791 = vmatmul.mubr.bf16.gmra.mrb[0].mxu0 %v4330
    %v4792 = vpop.f32.mrb[0].mxu0
    %v4793 = vadd.f32 %v3616, %v4792
    %v4794 = vpop.f32.mrb[0].mxu0
    %v4795 = vpop.f32.mrb[0].mxu0
    %v4796 = vadd.f32 %v3617, %v4795
    %v4797 = vpop.f32.mrb[0].mxu0
    %4798 = vmatprep.mubr.bf16.mxu0 %v4359
    %4799 = vmatmul.mubr.bf16.gmra.mrb[0].mxu0 %v4358
    %v4800 = vpop.f32.mrb[0].mxu0
    %v4801 = vadd.f32 %v3618, %v4800
    %v4802 = vpop.f32.mrb[0].mxu0
    %v4803 = vpop.f32.mrb[0].mxu0
    %v4804 = vadd.f32 %v3619, %v4803
    %v4805 = vpop.f32.mrb[0].mxu0
    %4806 = vmatprep.mubr.bf16.mxu0 %v4387
    %4807 = vmatmul.mubr.bf16.gmra.mrb[0].mxu0 %v4386
    %v4808 = vpop.f32.mrb[0].mxu0
    %v4809 = vadd.f32 %v3620, %v4808
    %v4810 = vpop.f32.mrb[0].mxu0
    %v4811 = vpop.f32.mrb[0].mxu0
    %v4812 = vadd.f32 %v3621, %v4811
    %v4813 = vpop.f32.mrb[0].mxu0
    %4814 = vmatprep.mubr.bf16.mxu0 %v4415
    %4815 = vmatmul.mubr.bf16.gmra.mrb[0].mxu0 %v4414
    %v4816 = vpop.f32.mrb[0].mxu0
    %v4817 = vadd.f32 %v3622, %v4816
    %v4818 = vpop.f32.mrb[0].mxu0
    %v4819 = vpop.f32.mrb[0].mxu0
    %v4820 = vadd.f32 %v3623, %v4819
    %v4821 = vpop.f32.mrb[0].mxu0
    %4822 = vmatprep.mubr.bf16.mxu0 %v4443
    %4823 = vmatmul.mubr.bf16.gmra.mrb[0].mxu0 %v4442
    %v4824 = vpop.f32.mrb[0].mxu0
    %v4825 = vadd.f32 %v3624, %v4824
    %v4826 = vpop.f32.mrb[0].mxu0
    %v4827 = vpop.f32.mrb[0].mxu0
    %v4828 = vadd.f32 %v3625, %v4827
    %v4829 = vpop.f32.mrb[0].mxu0
    %4830 = vmatprep.mubr.bf16.mxu0 %v4471
    %4831 = vmatmul.mubr.bf16.gmra.mrb[0].mxu0 %v4470
    %v4832 = vpop.f32.mrb[0].mxu0
    %v4833 = vadd.f32 %v3626, %v4832
    %v4834 = vpop.f32.mrb[0].mxu0
    %v4835 = vpop.f32.mrb[0].mxu0
    %v4836 = vadd.f32 %v3627, %v4835
    %v4837 = vpop.f32.mrb[0].mxu0
    %4838 = vmatprep.mubr.bf16.mxu0 %v4499
    %4839 = vmatmul.mubr.bf16.gmra.mrb[0].mxu0 %v4498
    %v4840 = vpop.f32.mrb[0].mxu0
    %v4841 = vadd.f32 %v3628, %v4840
    %v4842 = vpop.f32.mrb[0].mxu0
    %v4843 = vpop.f32.mrb[0].mxu0
    %v4844 = vadd.f32 %v3629, %v4843
    %v4845 = vpop.f32.mrb[0].mxu0
    %4846 = vdwg.mxu0
    %4847 = vmatprep.subr.bf16.mxu0 0
    %4848 = vmatpush1.bf16.msra.mxu0 %v3182
    %4849 = vmatprep.subr.bf16.mxu0 0
    %4850 = vmatpush1.bf16.msra.mxu0 %v3183
    %4851 = vmatprep.subr.bf16.mxu0 0
    %4852 = vmatpush1.bf16.msra.mxu0 %v3184
    %4853 = vmatprep.subr.bf16.mxu0 0
    %4854 = vmatpush1.bf16.msra.mxu0 %v3185
    %4855 = vmatprep.subr.bf16.mxu0 0
    %4856 = vmatpush1.bf16.msra.mxu0 %v3186
    %4857 = vmatprep.subr.bf16.mxu0 0
    %4858 = vmatpush1.bf16.msra.mxu0 %v3187
    %4859 = vmatprep.subr.bf16.mxu0 0
    %4860 = vmatpush1.bf16.msra.mxu0 %v3188
    %4861 = vmatprep.subr.bf16.mxu0 0
    %4862 = vmatpush1.bf16.msra.mxu0 %v3189
    %4863 = vmatprep.subr.bf16.mxu0 0
    %4864 = vmatpush1.bf16.msra.mxu0 %v3190
    %4865 = vmatprep.subr.bf16.mxu0 0
    %4866 = vmatpush1.bf16.msra.mxu0 %v3191
    %4867 = vmatprep.subr.bf16.mxu0 0
    %4868 = vmatpush1.bf16.msra.mxu0 %v3192
    %4869 = vmatprep.subr.bf16.mxu0 0
    %4870 = vmatpush1.bf16.msra.mxu0 %v3193
    %4871 = vmatprep.subr.bf16.mxu0 0
    %4872 = vmatpush1.bf16.msra.mxu0 %v3194
    %4873 = vmatprep.subr.bf16.mxu0 0
    %4874 = vmatpush1.bf16.msra.mxu0 %v3195
    %4875 = vmatprep.subr.bf16.mxu0 0
    %4876 = vmatpush1.bf16.msra.mxu0 %v3196
    %4877 = vmatprep.subr.bf16.mxu0 0
    %4878 = vmatpush1.bf16.msra.mxu0 %v3197
    %4879 = vmatprep.mubr.bf16.mxu0 %v4305
    %4880 = vmatmul.mubr.bf16.gmra.mrb[0].mxu0 %v4304
    %v4881 = vpop.f32.mrb[0].mxu0
    %v4882 = vadd.f32 %v4785, %v4881
    %v4883 = vpop.f32.mrb[0].mxu0
    %v4884 = vpop.f32.mrb[0].mxu0
    %v4885 = vadd.f32 %v4788, %v4884
    %v4886 = vpop.f32.mrb[0].mxu0
    %4887 = vmatprep.mubr.bf16.mxu0 %v4333
    %4888 = vmatmul.mubr.bf16.gmra.mrb[0].mxu0 %v4332
    %v4889 = vpop.f32.mrb[0].mxu0
    %v4890 = vadd.f32 %v4793, %v4889
    %v4891 = vpop.f32.mrb[0].mxu0
    %v4892 = vpop.f32.mrb[0].mxu0
    %v4893 = vadd.f32 %v4796, %v4892
    %v4894 = vpop.f32.mrb[0].mxu0
    %4895 = vmatprep.mubr.bf16.mxu0 %v4361
    %4896 = vmatmul.mubr.bf16.gmra.mrb[0].mxu0 %v4360
    %v4897 = vpop.f32.mrb[0].mxu0
    %v4898 = vadd.f32 %v4801, %v4897
    %v4899 = vpop.f32.mrb[0].mxu0
    %v4900 = vpop.f32.mrb[0].mxu0
    %v4901 = vadd.f32 %v4804, %v4900
    %v4902 = vpop.f32.mrb[0].mxu0
    %4903 = vmatprep.mubr.bf16.mxu0 %v4389
    %4904 = vmatmul.mubr.bf16.gmra.mrb[0].mxu0 %v4388
    %v4905 = vpop.f32.mrb[0].mxu0
    %v4906 = vadd.f32 %v4809, %v4905
    %v4907 = vpop.f32.mrb[0].mxu0
    %v4908 = vpop.f32.mrb[0].mxu0
    %v4909 = vadd.f32 %v4812, %v4908
    %v4910 = vpop.f32.mrb[0].mxu0
    %4911 = vmatprep.mubr.bf16.mxu0 %v4417
    %4912 = vmatmul.mubr.bf16.gmra.mrb[0].mxu0 %v4416
    %v4913 = vpop.f32.mrb[0].mxu0
    %v4914 = vadd.f32 %v4817, %v4913
    %v4915 = vpop.f32.mrb[0].mxu0
    %v4916 = vpop.f32.mrb[0].mxu0
    %v4917 = vadd.f32 %v4820, %v4916
    %v4918 = vpop.f32.mrb[0].mxu0
    %4919 = vmatprep.mubr.bf16.mxu0 %v4445
    %4920 = vmatmul.mubr.bf16.gmra.mrb[0].mxu0 %v4444
    %v4921 = vpop.f32.mrb[0].mxu0
    %v4922 = vadd.f32 %v4825, %v4921
    %v4923 = vpop.f32.mrb[0].mxu0
    %v4924 = vpop.f32.mrb[0].mxu0
    %v4925 = vadd.f32 %v4828, %v4924
    %v4926 = vpop.f32.mrb[0].mxu0
    %4927 = vmatprep.mubr.bf16.mxu0 %v4473
    %4928 = vmatmul.mubr.bf16.gmra.mrb[0].mxu0 %v4472
    %v4929 = vpop.f32.mrb[0].mxu0
    %v4930 = vadd.f32 %v4833, %v4929
    %v4931 = vpop.f32.mrb[0].mxu0
    %v4932 = vpop.f32.mrb[0].mxu0
    %v4933 = vadd.f32 %v4836, %v4932
    %v4934 = vpop.f32.mrb[0].mxu0
    %4935 = vmatprep.mubr.bf16.mxu0 %v4501
    %4936 = vmatmul.mubr.bf16.gmra.mrb[0].mxu0 %v4500
    %v4937 = vpop.f32.mrb[0].mxu0
    %v4938 = vadd.f32 %v4841, %v4937
    %v4939 = vpop.f32.mrb[0].mxu0
    %v4940 = vpop.f32.mrb[0].mxu0
    %v4941 = vadd.f32 %v4844, %v4940
    %v4942 = vpop.f32.mrb[0].mxu0
    %4943 = vdwg.mxu0
    %4944 = vmatprep.subr.bf16.mxu0 0
    %4945 = vmatpush1.bf16.msra.mxu0 %v3198
    %4946 = vmatprep.subr.bf16.mxu0 0
    %4947 = vmatpush1.bf16.msra.mxu0 %v3199
    %4948 = vmatprep.subr.bf16.mxu0 0
    %4949 = vmatpush1.bf16.msra.mxu0 %v3200
    %4950 = vmatprep.subr.bf16.mxu0 0
    %4951 = vmatpush1.bf16.msra.mxu0 %v3201
    %4952 = vmatprep.subr.bf16.mxu0 0
    %4953 = vmatpush1.bf16.msra.mxu0 %v3202
    %4954 = vmatprep.subr.bf16.mxu0 0
    %4955 = vmatpush1.bf16.msra.mxu0 %v3203
    %4956 = vmatprep.subr.bf16.mxu0 0
    %4957 = vmatpush1.bf16.msra.mxu0 %v3204
    %4958 = vmatprep.subr.bf16.mxu0 0
    %4959 = vmatpush1.bf16.msra.mxu0 %v3205
    %4960 = vmatprep.subr.bf16.mxu0 0
    %4961 = vmatpush1.bf16.msra.mxu0 %v3206
    %4962 = vmatprep.subr.bf16.mxu0 0
    %4963 = vmatpush1.bf16.msra.mxu0 %v3207
    %4964 = vmatprep.subr.bf16.mxu0 0
    %4965 = vmatpush1.bf16.msra.mxu0 %v3208
    %4966 = vmatprep.subr.bf16.mxu0 0
    %4967 = vmatpush1.bf16.msra.mxu0 %v3209
    %4968 = vmatprep.subr.bf16.mxu0 0
    %4969 = vmatpush1.bf16.msra.mxu0 %v3210
    %4970 = vmatprep.subr.bf16.mxu0 0
    %4971 = vmatpush1.bf16.msra.mxu0 %v3211
    %4972 = vmatprep.subr.bf16.mxu0 0
    %4973 = vmatpush1.bf16.msra.mxu0 %v3212
    %4974 = vmatprep.subr.bf16.mxu0 0
    %4975 = vmatpush1.bf16.msra.mxu0 %v3213
    %4976 = vmatprep.mubr.bf16.mxu0 %v4307
    %4977 = vmatmul.mubr.bf16.gmra.mrb[0].mxu0 %v4306
    %v4978 = vpop.f32.mrb[0].mxu0
    %v4979 = vadd.f32 %v4882, %v4978
    %v4980 = vpop.f32.mrb[0].mxu0
    %v4981 = vpop.f32.mrb[0].mxu0
    %v4982 = vadd.f32 %v4885, %v4981
    %v4983 = vpop.f32.mrb[0].mxu0
    %4984 = vmatprep.mubr.bf16.mxu0 %v4335
    %4985 = vmatmul.mubr.bf16.gmra.mrb[0].mxu0 %v4334
    %v4986 = vpop.f32.mrb[0].mxu0
    %v4987 = vadd.f32 %v4890, %v4986
    %v4988 = vpop.f32.mrb[0].mxu0
    %v4989 = vpop.f32.mrb[0].mxu0
    %v4990 = vadd.f32 %v4893, %v4989
    %v4991 = vpop.f32.mrb[0].mxu0
    %4992 = vmatprep.mubr.bf16.mxu0 %v4363
    %4993 = vmatmul.mubr.bf16.gmra.mrb[0].mxu0 %v4362
    %v4994 = vpop.f32.mrb[0].mxu0
    %v4995 = vadd.f32 %v4898, %v4994
    %v4996 = vpop.f32.mrb[0].mxu0
    %v4997 = vpop.f32.mrb[0].mxu0
    %v4998 = vadd.f32 %v4901, %v4997
    %v4999 = vpop.f32.mrb[0].mxu0
    %5000 = vmatprep.mubr.bf16.mxu0 %v4391
    %5001 = vmatmul.mubr.bf16.gmra.mrb[0].mxu0 %v4390
    %v5002 = vpop.f32.mrb[0].mxu0
    %v5003 = vadd.f32 %v4906, %v5002
    %v5004 = vpop.f32.mrb[0].mxu0
    %v5005 = vpop.f32.mrb[0].mxu0
    %v5006 = vadd.f32 %v4909, %v5005
    %v5007 = vpop.f32.mrb[0].mxu0
    %5008 = vmatprep.mubr.bf16.mxu0 %v4419
    %5009 = vmatmul.mubr.bf16.gmra.mrb[0].mxu0 %v4418
    %v5010 = vpop.f32.mrb[0].mxu0
    %v5011 = vadd.f32 %v4914, %v5010
    %v5012 = vpop.f32.mrb[0].mxu0
    %v5013 = vpop.f32.mrb[0].mxu0
    %v5014 = vadd.f32 %v4917, %v5013
    %v5015 = vpop.f32.mrb[0].mxu0
    %5016 = vmatprep.mubr.bf16.mxu0 %v4447
    %5017 = vmatmul.mubr.bf16.gmra.mrb[0].mxu0 %v4446
    %v5018 = vpop.f32.mrb[0].mxu0
    %v5019 = vadd.f32 %v4922, %v5018
    %v5020 = vpop.f32.mrb[0].mxu0
    %v5021 = vpop.f32.mrb[0].mxu0
    %v5022 = vadd.f32 %v4925, %v5021
    %v5023 = vpop.f32.mrb[0].mxu0
    %5024 = vmatprep.mubr.bf16.mxu0 %v4475
    %5025 = vmatmul.mubr.bf16.gmra.mrb[0].mxu0 %v4474
    %v5026 = vpop.f32.mrb[0].mxu0
    %v5027 = vadd.f32 %v4930, %v5026
    %v5028 = vpop.f32.mrb[0].mxu0
    %v5029 = vpop.f32.mrb[0].mxu0
    %v5030 = vadd.f32 %v4933, %v5029
    %v5031 = vpop.f32.mrb[0].mxu0
    %5032 = vmatprep.mubr.bf16.mxu0 %v4503
    %5033 = vmatmul.mubr.bf16.gmra.mrb[0].mxu0 %v4502
    %v5034 = vpop.f32.mrb[0].mxu0
    %v5035 = vadd.f32 %v4938, %v5034
    %v5036 = vpop.f32.mrb[0].mxu0
    %v5037 = vpop.f32.mrb[0].mxu0
    %v5038 = vadd.f32 %v4941, %v5037
    %v5039 = vpop.f32.mrb[0].mxu0
    %5040 = vdwg.mxu0
    %5041 = vmatprep.subr.bf16.mxu0 0
    %5042 = vmatpush1.bf16.msra.mxu0 %v3214
    %5043 = vmatprep.subr.bf16.mxu0 0
    %5044 = vmatpush1.bf16.msra.mxu0 %v3215
    %5045 = vmatprep.subr.bf16.mxu0 0
    %5046 = vmatpush1.bf16.msra.mxu0 %v3216
    %5047 = vmatprep.subr.bf16.mxu0 0
    %5048 = vmatpush1.bf16.msra.mxu0 %v3217
    %5049 = vmatprep.subr.bf16.mxu0 0
    %5050 = vmatpush1.bf16.msra.mxu0 %v3218
    %5051 = vmatprep.subr.bf16.mxu0 0
    %5052 = vmatpush1.bf16.msra.mxu0 %v3219
    %5053 = vmatprep.subr.bf16.mxu0 0
    %5054 = vmatpush1.bf16.msra.mxu0 %v3220
    %5055 = vmatprep.subr.bf16.mxu0 0
    %5056 = vmatpush1.bf16.msra.mxu0 %v3221
    %5057 = vmatprep.subr.bf16.mxu0 0
    %5058 = vmatpush1.bf16.msra.mxu0 %v3222
    %5059 = vmatprep.subr.bf16.mxu0 0
    %5060 = vmatpush1.bf16.msra.mxu0 %v3223
    %5061 = vmatprep.subr.bf16.mxu0 0
    %5062 = vmatpush1.bf16.msra.mxu0 %v3224
    %5063 = vmatprep.subr.bf16.mxu0 0
    %5064 = vmatpush1.bf16.msra.mxu0 %v3225
    %5065 = vmatprep.subr.bf16.mxu0 0
    %5066 = vmatpush1.bf16.msra.mxu0 %v3226
    %5067 = vmatprep.subr.bf16.mxu0 0
    %5068 = vmatpush1.bf16.msra.mxu0 %v3227
    %5069 = vmatprep.subr.bf16.mxu0 0
    %5070 = vmatpush1.bf16.msra.mxu0 %v3228
    %5071 = vmatprep.subr.bf16.mxu0 0
    %5072 = vmatpush1.bf16.msra.mxu0 %v3229
    %5073 = vmatprep.mubr.bf16.mxu0 %v4309
    %5074 = vmatmul.mubr.bf16.gmra.mrb[0].mxu0 %v4308
    %v5075 = vpop.f32.mrb[0].mxu0
    %v5076 = vadd.f32 %v4979, %v5075
    %v5077 = vpop.f32.mrb[0].mxu0
    %v5078 = vpop.f32.mrb[0].mxu0
    %v5079 = vadd.f32 %v4982, %v5078
    %v5080 = vpop.f32.mrb[0].mxu0
    %5081 = vmatprep.mubr.bf16.mxu0 %v4337
    %5082 = vmatmul.mubr.bf16.gmra.mrb[0].mxu0 %v4336
    %v5083 = vpop.f32.mrb[0].mxu0
    %v5084 = vadd.f32 %v4987, %v5083
    %v5085 = vpop.f32.mrb[0].mxu0
    %v5086 = vpop.f32.mrb[0].mxu0
    %v5087 = vadd.f32 %v4990, %v5086
    %v5088 = vpop.f32.mrb[0].mxu0
    %5089 = vmatprep.mubr.bf16.mxu0 %v4365
    %5090 = vmatmul.mubr.bf16.gmra.mrb[0].mxu0 %v4364
    %v5091 = vpop.f32.mrb[0].mxu0
    %v5092 = vadd.f32 %v4995, %v5091
    %v5093 = vpop.f32.mrb[0].mxu0
    %v5094 = vpop.f32.mrb[0].mxu0
    %v5095 = vadd.f32 %v4998, %v5094
    %v5096 = vpop.f32.mrb[0].mxu0
    %5097 = vmatprep.mubr.bf16.mxu0 %v4393
    %5098 = vmatmul.mubr.bf16.gmra.mrb[0].mxu0 %v4392
    %v5099 = vpop.f32.mrb[0].mxu0
    %v5100 = vadd.f32 %v5003, %v5099
    %v5101 = vpop.f32.mrb[0].mxu0
    %v5102 = vpop.f32.mrb[0].mxu0
    %v5103 = vadd.f32 %v5006, %v5102
    %v5104 = vpop.f32.mrb[0].mxu0
    %5105 = vmatprep.mubr.bf16.mxu0 %v4421
    %5106 = vmatmul.mubr.bf16.gmra.mrb[0].mxu0 %v4420
    %v5107 = vpop.f32.mrb[0].mxu0
    %v5108 = vadd.f32 %v5011, %v5107
    %v5109 = vpop.f32.mrb[0].mxu0
    %v5110 = vpop.f32.mrb[0].mxu0
    %v5111 = vadd.f32 %v5014, %v5110
    %v5112 = vpop.f32.mrb[0].mxu0
    %5113 = vmatprep.mubr.bf16.mxu0 %v4449
    %5114 = vmatmul.mubr.bf16.gmra.mrb[0].mxu0 %v4448
    %v5115 = vpop.f32.mrb[0].mxu0
    %v5116 = vadd.f32 %v5019, %v5115
    %v5117 = vpop.f32.mrb[0].mxu0
    %v5118 = vpop.f32.mrb[0].mxu0
    %v5119 = vadd.f32 %v5022, %v5118
    %v5120 = vpop.f32.mrb[0].mxu0
    %5121 = vmatprep.mubr.bf16.mxu0 %v4477
    %5122 = vmatmul.mubr.bf16.gmra.mrb[0].mxu0 %v4476
    %v5123 = vpop.f32.mrb[0].mxu0
    %v5124 = vadd.f32 %v5027, %v5123
    %v5125 = vpop.f32.mrb[0].mxu0
    %v5126 = vpop.f32.mrb[0].mxu0
    %v5127 = vadd.f32 %v5030, %v5126
    %v5128 = vpop.f32.mrb[0].mxu0
    %5129 = vmatprep.mubr.bf16.mxu0 %v4505
    %5130 = vmatmul.mubr.bf16.gmra.mrb[0].mxu0 %v4504
    %v5131 = vpop.f32.mrb[0].mxu0
    %v5132 = vadd.f32 %v5035, %v5131
    %v5133 = vpop.f32.mrb[0].mxu0
    %v5134 = vpop.f32.mrb[0].mxu0
    %v5135 = vadd.f32 %v5038, %v5134
    %v5136 = vpop.f32.mrb[0].mxu0
    %5137 = vdwg.mxu0
    %5138 = vmatprep.subr.bf16.mxu0 0
    %5139 = vmatpush1.bf16.msra.mxu0 %v3230
    %5140 = vmatprep.subr.bf16.mxu0 0
    %5141 = vmatpush1.bf16.msra.mxu0 %v3231
    %5142 = vmatprep.subr.bf16.mxu0 0
    %5143 = vmatpush1.bf16.msra.mxu0 %v3232
    %5144 = vmatprep.subr.bf16.mxu0 0
    %5145 = vmatpush1.bf16.msra.mxu0 %v3233
    %5146 = vmatprep.subr.bf16.mxu0 0
    %5147 = vmatpush1.bf16.msra.mxu0 %v3234
    %5148 = vmatprep.subr.bf16.mxu0 0
    %5149 = vmatpush1.bf16.msra.mxu0 %v3235
    %5150 = vmatprep.subr.bf16.mxu0 0
    %5151 = vmatpush1.bf16.msra.mxu0 %v3236
    %5152 = vmatprep.subr.bf16.mxu0 0
    %5153 = vmatpush1.bf16.msra.mxu0 %v3237
    %5154 = vmatprep.subr.bf16.mxu0 0
    %5155 = vmatpush1.bf16.msra.mxu0 %v3238
    %5156 = vmatprep.subr.bf16.mxu0 0
    %5157 = vmatpush1.bf16.msra.mxu0 %v3239
    %5158 = vmatprep.subr.bf16.mxu0 0
    %5159 = vmatpush1.bf16.msra.mxu0 %v3240
    %5160 = vmatprep.subr.bf16.mxu0 0
    %5161 = vmatpush1.bf16.msra.mxu0 %v3241
    %5162 = vmatprep.subr.bf16.mxu0 0
    %5163 = vmatpush1.bf16.msra.mxu0 %v3242
    %5164 = vmatprep.subr.bf16.mxu0 0
    %5165 = vmatpush1.bf16.msra.mxu0 %v3243
    %5166 = vmatprep.subr.bf16.mxu0 0
    %5167 = vmatpush1.bf16.msra.mxu0 %v3244
    %5168 = vmatprep.subr.bf16.mxu0 0
    %5169 = vmatpush1.bf16.msra.mxu0 %v3245
    %5170 = vmatprep.mubr.bf16.mxu0 %v4311
    %5171 = vmatmul.mubr.bf16.gmra.mrb[0].mxu0 %v4310
    %v5172 = vpop.f32.mrb[0].mxu0
    %v5173 = vadd.f32 %v5076, %v5172
    %v5174 = vpop.f32.mrb[0].mxu0
    %v5175 = vpop.f32.mrb[0].mxu0
    %v5176 = vadd.f32 %v5079, %v5175
    %v5177 = vpop.f32.mrb[0].mxu0
    %5178 = vmatprep.mubr.bf16.mxu0 %v4339
    %5179 = vmatmul.mubr.bf16.gmra.mrb[0].mxu0 %v4338
    %v5180 = vpop.f32.mrb[0].mxu0
    %v5181 = vadd.f32 %v5084, %v5180
    %v5182 = vpop.f32.mrb[0].mxu0
    %v5183 = vpop.f32.mrb[0].mxu0
    %v5184 = vadd.f32 %v5087, %v5183
    %v5185 = vpop.f32.mrb[0].mxu0
    %5186 = vmatprep.mubr.bf16.mxu0 %v4367
    %5187 = vmatmul.mubr.bf16.gmra.mrb[0].mxu0 %v4366
    %v5188 = vpop.f32.mrb[0].mxu0
    %v5189 = vadd.f32 %v5092, %v5188
    %v5190 = vpop.f32.mrb[0].mxu0
    %v5191 = vpop.f32.mrb[0].mxu0
    %v5192 = vadd.f32 %v5095, %v5191
    %v5193 = vpop.f32.mrb[0].mxu0
    %5194 = vmatprep.mubr.bf16.mxu0 %v4395
    %5195 = vmatmul.mubr.bf16.gmra.mrb[0].mxu0 %v4394
    %v5196 = vpop.f32.mrb[0].mxu0
    %v5197 = vadd.f32 %v5100, %v5196
    %v5198 = vpop.f32.mrb[0].mxu0
    %v5199 = vpop.f32.mrb[0].mxu0
    %v5200 = vadd.f32 %v5103, %v5199
    %v5201 = vpop.f32.mrb[0].mxu0
    %5202 = vmatprep.mubr.bf16.mxu0 %v4423
    %5203 = vmatmul.mubr.bf16.gmra.mrb[0].mxu0 %v4422
    %v5204 = vpop.f32.mrb[0].mxu0
    %v5205 = vadd.f32 %v5108, %v5204
    %v5206 = vpop.f32.mrb[0].mxu0
    %v5207 = vpop.f32.mrb[0].mxu0
    %v5208 = vadd.f32 %v5111, %v5207
    %v5209 = vpop.f32.mrb[0].mxu0
    %5210 = vmatprep.mubr.bf16.mxu0 %v4451
    %5211 = vmatmul.mubr.bf16.gmra.mrb[0].mxu0 %v4450
    %v5212 = vpop.f32.mrb[0].mxu0
    %v5213 = vadd.f32 %v5116, %v5212
    %v5214 = vpop.f32.mrb[0].mxu0
    %v5215 = vpop.f32.mrb[0].mxu0
    %v5216 = vadd.f32 %v5119, %v5215
    %v5217 = vpop.f32.mrb[0].mxu0
    %5218 = vmatprep.mubr.bf16.mxu0 %v4479
    %5219 = vmatmul.mubr.bf16.gmra.mrb[0].mxu0 %v4478
    %v5220 = vpop.f32.mrb[0].mxu0
    %v5221 = vadd.f32 %v5124, %v5220
    %v5222 = vpop.f32.mrb[0].mxu0
    %v5223 = vpop.f32.mrb[0].mxu0
    %v5224 = vadd.f32 %v5127, %v5223
    %v5225 = vpop.f32.mrb[0].mxu0
    %5226 = vmatprep.mubr.bf16.mxu0 %v4507
    %5227 = vmatmul.mubr.bf16.gmra.mrb[0].mxu0 %v4506
    %v5228 = vpop.f32.mrb[0].mxu0
    %v5229 = vadd.f32 %v5132, %v5228
    %v5230 = vpop.f32.mrb[0].mxu0
    %v5231 = vpop.f32.mrb[0].mxu0
    %v5232 = vadd.f32 %v5135, %v5231
    %v5233 = vpop.f32.mrb[0].mxu0
    %5234 = vdwg.mxu0
    %5235 = vmatprep.subr.bf16.mxu0 0
    %5236 = vmatpush1.bf16.msra.mxu0 %v3246
    %5237 = vmatprep.subr.bf16.mxu0 0
    %5238 = vmatpush1.bf16.msra.mxu0 %v3247
    %5239 = vmatprep.subr.bf16.mxu0 0
    %5240 = vmatpush1.bf16.msra.mxu0 %v3248
    %5241 = vmatprep.subr.bf16.mxu0 0
    %5242 = vmatpush1.bf16.msra.mxu0 %v3249
    %5243 = vmatprep.subr.bf16.mxu0 0
    %5244 = vmatpush1.bf16.msra.mxu0 %v3250
    %5245 = vmatprep.subr.bf16.mxu0 0
    %5246 = vmatpush1.bf16.msra.mxu0 %v3251
    %5247 = vmatprep.subr.bf16.mxu0 0
    %5248 = vmatpush1.bf16.msra.mxu0 %v3252
    %5249 = vmatprep.subr.bf16.mxu0 0
    %5250 = vmatpush1.bf16.msra.mxu0 %v3253
    %5251 = vmatprep.subr.bf16.mxu0 0
    %5252 = vmatpush1.bf16.msra.mxu0 %v3254
    %5253 = vmatprep.subr.bf16.mxu0 0
    %5254 = vmatpush1.bf16.msra.mxu0 %v3255
    %5255 = vmatprep.subr.bf16.mxu0 0
    %5256 = vmatpush1.bf16.msra.mxu0 %v3256
    %5257 = vmatprep.subr.bf16.mxu0 0
    %5258 = vmatpush1.bf16.msra.mxu0 %v3257
    %5259 = vmatprep.subr.bf16.mxu0 0
    %5260 = vmatpush1.bf16.msra.mxu0 %v3258
    %5261 = vmatprep.subr.bf16.mxu0 0
    %5262 = vmatpush1.bf16.msra.mxu0 %v3259
    %5263 = vmatprep.subr.bf16.mxu0 0
    %5264 = vmatpush1.bf16.msra.mxu0 %v3260
    %5265 = vmatprep.subr.bf16.mxu0 0
    %5266 = vmatpush1.bf16.msra.mxu0 %v3261
    %5267 = vmatprep.mubr.bf16.mxu0 %v4313
    %5268 = vmatmul.mubr.bf16.gmra.mrb[0].mxu0 %v4312
    %v5269 = vpop.f32.mrb[0].mxu0
    %v5270 = vadd.f32 %v5173, %v5269
    %v5271 = vpop.f32.mrb[0].mxu0
    %v5272 = vpop.f32.mrb[0].mxu0
    %v5273 = vadd.f32 %v5176, %v5272
    %v5274 = vpop.f32.mrb[0].mxu0
    %5275 = vmatprep.mubr.bf16.mxu0 %v4341
    %5276 = vmatmul.mubr.bf16.gmra.mrb[0].mxu0 %v4340
    %v5277 = vpop.f32.mrb[0].mxu0
    %v5278 = vadd.f32 %v5181, %v5277
    %v5279 = vpop.f32.mrb[0].mxu0
    %v5280 = vpop.f32.mrb[0].mxu0
    %v5281 = vadd.f32 %v5184, %v5280
    %v5282 = vpop.f32.mrb[0].mxu0
    %5283 = vmatprep.mubr.bf16.mxu0 %v4369
    %5284 = vmatmul.mubr.bf16.gmra.mrb[0].mxu0 %v4368
    %v5285 = vpop.f32.mrb[0].mxu0
    %v5286 = vadd.f32 %v5189, %v5285
    %v5287 = vpop.f32.mrb[0].mxu0
    %v5288 = vpop.f32.mrb[0].mxu0
    %v5289 = vadd.f32 %v5192, %v5288
    %v5290 = vpop.f32.mrb[0].mxu0
    %5291 = vmatprep.mubr.bf16.mxu0 %v4397
    %5292 = vmatmul.mubr.bf16.gmra.mrb[0].mxu0 %v4396
    %v5293 = vpop.f32.mrb[0].mxu0
    %v5294 = vadd.f32 %v5197, %v5293
    %v5295 = vpop.f32.mrb[0].mxu0
    %v5296 = vpop.f32.mrb[0].mxu0
    %v5297 = vadd.f32 %v5200, %v5296
    %v5298 = vpop.f32.mrb[0].mxu0
    %5299 = vmatprep.mubr.bf16.mxu0 %v4425
    %5300 = vmatmul.mubr.bf16.gmra.mrb[0].mxu0 %v4424
    %v5301 = vpop.f32.mrb[0].mxu0
    %v5302 = vadd.f32 %v5205, %v5301
    %v5303 = vpop.f32.mrb[0].mxu0
    %v5304 = vpop.f32.mrb[0].mxu0
    %v5305 = vadd.f32 %v5208, %v5304
    %v5306 = vpop.f32.mrb[0].mxu0
    %5307 = vmatprep.mubr.bf16.mxu0 %v4453
    %5308 = vmatmul.mubr.bf16.gmra.mrb[0].mxu0 %v4452
    %v5309 = vpop.f32.mrb[0].mxu0
    %v5310 = vadd.f32 %v5213, %v5309
    %v5311 = vpop.f32.mrb[0].mxu0
    %v5312 = vpop.f32.mrb[0].mxu0
    %v5313 = vadd.f32 %v5216, %v5312
    %v5314 = vpop.f32.mrb[0].mxu0
    %5315 = vmatprep.mubr.bf16.mxu0 %v4481
    %5316 = vmatmul.mubr.bf16.gmra.mrb[0].mxu0 %v4480
    %v5317 = vpop.f32.mrb[0].mxu0
    %v5318 = vadd.f32 %v5221, %v5317
    %v5319 = vpop.f32.mrb[0].mxu0
    %v5320 = vpop.f32.mrb[0].mxu0
    %v5321 = vadd.f32 %v5224, %v5320
    %v5322 = vpop.f32.mrb[0].mxu0
    %5323 = vmatprep.mubr.bf16.mxu0 %v4509
    %5324 = vmatmul.mubr.bf16.gmra.mrb[0].mxu0 %v4508
    %v5325 = vpop.f32.mrb[0].mxu0
    %v5326 = vadd.f32 %v5229, %v5325
    %v5327 = vpop.f32.mrb[0].mxu0
    %v5328 = vpop.f32.mrb[0].mxu0
    %v5329 = vadd.f32 %v5232, %v5328
    %v5330 = vpop.f32.mrb[0].mxu0
    %5331 = vdwg.mxu0
    %5332 = vmatprep.subr.bf16.mxu0 0
    %5333 = vmatpush1.bf16.msra.mxu0 %v3262
    %5334 = vmatprep.subr.bf16.mxu0 0
    %5335 = vmatpush1.bf16.msra.mxu0 %v3263
    %5336 = vmatprep.subr.bf16.mxu0 0
    %5337 = vmatpush1.bf16.msra.mxu0 %v3264
    %5338 = vmatprep.subr.bf16.mxu0 0
    %5339 = vmatpush1.bf16.msra.mxu0 %v3265
    %5340 = vmatprep.subr.bf16.mxu0 0
    %5341 = vmatpush1.bf16.msra.mxu0 %v3266
    %5342 = vmatprep.subr.bf16.mxu0 0
    %5343 = vmatpush1.bf16.msra.mxu0 %v3267
    %5344 = vmatprep.subr.bf16.mxu0 0
    %5345 = vmatpush1.bf16.msra.mxu0 %v3268
    %5346 = vmatprep.subr.bf16.mxu0 0
    %5347 = vmatpush1.bf16.msra.mxu0 %v3269
    %5348 = vmatprep.subr.bf16.mxu0 0
    %5349 = vmatpush1.bf16.msra.mxu0 %v3270
    %5350 = vmatprep.subr.bf16.mxu0 0
    %5351 = vmatpush1.bf16.msra.mxu0 %v3271
    %5352 = vmatprep.subr.bf16.mxu0 0
    %5353 = vmatpush1.bf16.msra.mxu0 %v3272
    %5354 = vmatprep.subr.bf16.mxu0 0
    %5355 = vmatpush1.bf16.msra.mxu0 %v3273
    %5356 = vmatprep.subr.bf16.mxu0 0
    %5357 = vmatpush1.bf16.msra.mxu0 %v3274
    %5358 = vmatprep.subr.bf16.mxu0 0
    %5359 = vmatpush1.bf16.msra.mxu0 %v3275
    %5360 = vmatprep.subr.bf16.mxu0 0
    %5361 = vmatpush1.bf16.msra.mxu0 %v3276
    %5362 = vmatprep.subr.bf16.mxu0 0
    %5363 = vmatpush1.bf16.msra.mxu0 %v3277
    %5364 = vmatprep.mubr.bf16.mxu0 %v4315
    %5365 = vmatmul.mubr.bf16.gmra.mrb[0].mxu0 %v4314
    %v5366 = vpop.f32.mrb[0].mxu0
    %v5367 = vadd.f32 %v5270, %v5366
    %v5368 = vpop.f32.mrb[0].mxu0
    %v5369 = vpop.f32.mrb[0].mxu0
    %v5370 = vadd.f32 %v5273, %v5369
    %v5371 = vpop.f32.mrb[0].mxu0
    %5372 = vmatprep.mubr.bf16.mxu0 %v4343
    %5373 = vmatmul.mubr.bf16.gmra.mrb[0].mxu0 %v4342
    %v5374 = vpop.f32.mrb[0].mxu0
    %v5375 = vadd.f32 %v5278, %v5374
    %v5376 = vpop.f32.mrb[0].mxu0
    %v5377 = vpop.f32.mrb[0].mxu0
    %v5378 = vadd.f32 %v5281, %v5377
    %v5379 = vpop.f32.mrb[0].mxu0
    %5380 = vmatprep.mubr.bf16.mxu0 %v4371
    %5381 = vmatmul.mubr.bf16.gmra.mrb[0].mxu0 %v4370
    %v5382 = vpop.f32.mrb[0].mxu0
    %v5383 = vadd.f32 %v5286, %v5382
    %v5384 = vpop.f32.mrb[0].mxu0
    %v5385 = vpop.f32.mrb[0].mxu0
    %v5386 = vadd.f32 %v5289, %v5385
    %v5387 = vpop.f32.mrb[0].mxu0
    %5388 = vmatprep.mubr.bf16.mxu0 %v4399
    %5389 = vmatmul.mubr.bf16.gmra.mrb[0].mxu0 %v4398
    %v5390 = vpop.f32.mrb[0].mxu0
    %v5391 = vadd.f32 %v5294, %v5390
    %v5392 = vpop.f32.mrb[0].mxu0
    %v5393 = vpop.f32.mrb[0].mxu0
    %v5394 = vadd.f32 %v5297, %v5393
    %v5395 = vpop.f32.mrb[0].mxu0
    %5396 = vmatprep.mubr.bf16.mxu0 %v4427
    %5397 = vmatmul.mubr.bf16.gmra.mrb[0].mxu0 %v4426
    %v5398 = vpop.f32.mrb[0].mxu0
    %v5399 = vadd.f32 %v5302, %v5398
    %v5400 = vpop.f32.mrb[0].mxu0
    %v5401 = vpop.f32.mrb[0].mxu0
    %v5402 = vadd.f32 %v5305, %v5401
    %v5403 = vpop.f32.mrb[0].mxu0
    %5404 = vmatprep.mubr.bf16.mxu0 %v4455
    %5405 = vmatmul.mubr.bf16.gmra.mrb[0].mxu0 %v4454
    %v5406 = vpop.f32.mrb[0].mxu0
    %v5407 = vadd.f32 %v5310, %v5406
    %v5408 = vpop.f32.mrb[0].mxu0
    %v5409 = vpop.f32.mrb[0].mxu0
    %v5410 = vadd.f32 %v5313, %v5409
    %v5411 = vpop.f32.mrb[0].mxu0
    %5412 = vmatprep.mubr.bf16.mxu0 %v4483
    %5413 = vmatmul.mubr.bf16.gmra.mrb[0].mxu0 %v4482
    %v5414 = vpop.f32.mrb[0].mxu0
    %v5415 = vadd.f32 %v5318, %v5414
    %v5416 = vpop.f32.mrb[0].mxu0
    %v5417 = vpop.f32.mrb[0].mxu0
    %v5418 = vadd.f32 %v5321, %v5417
    %v5419 = vpop.f32.mrb[0].mxu0
    %5420 = vmatprep.mubr.bf16.mxu0 %v4511
    %5421 = vmatmul.mubr.bf16.gmra.mrb[0].mxu0 %v4510
    %v5422 = vpop.f32.mrb[0].mxu0
    %v5423 = vadd.f32 %v5326, %v5422
    %v5424 = vpop.f32.mrb[0].mxu0
    %v5425 = vpop.f32.mrb[0].mxu0
    %v5426 = vadd.f32 %v5329, %v5425
    %v5427 = vpop.f32.mrb[0].mxu0
    %5428 = vdwg.mxu0
    %5429 = vmatprep.subr.bf16.mxu0 0
    %5430 = vmatpush1.bf16.msra.mxu0 %v3278
    %5431 = vmatprep.subr.bf16.mxu0 0
    %5432 = vmatpush1.bf16.msra.mxu0 %v3279
    %5433 = vmatprep.subr.bf16.mxu0 0
    %5434 = vmatpush1.bf16.msra.mxu0 %v3280
    %5435 = vmatprep.subr.bf16.mxu0 0
    %5436 = vmatpush1.bf16.msra.mxu0 %v3281
    %5437 = vmatprep.subr.bf16.mxu0 0
    %5438 = vmatpush1.bf16.msra.mxu0 %v3282
    %5439 = vmatprep.subr.bf16.mxu0 0
    %5440 = vmatpush1.bf16.msra.mxu0 %v3283
    %5441 = vmatprep.subr.bf16.mxu0 0
    %5442 = vmatpush1.bf16.msra.mxu0 %v3284
    %5443 = vmatprep.subr.bf16.mxu0 0
    %5444 = vmatpush1.bf16.msra.mxu0 %v3285
    %5445 = vmatprep.subr.bf16.mxu0 0
    %5446 = vmatpush1.bf16.msra.mxu0 %v3286
    %5447 = vmatprep.subr.bf16.mxu0 0
    %5448 = vmatpush1.bf16.msra.mxu0 %v3287
    %5449 = vmatprep.subr.bf16.mxu0 0
    %5450 = vmatpush1.bf16.msra.mxu0 %v3288
    %5451 = vmatprep.subr.bf16.mxu0 0
    %5452 = vmatpush1.bf16.msra.mxu0 %v3289
    %5453 = vmatprep.subr.bf16.mxu0 0
    %5454 = vmatpush1.bf16.msra.mxu0 %v3290
    %5455 = vmatprep.subr.bf16.mxu0 0
    %5456 = vmatpush1.bf16.msra.mxu0 %v3291
    %5457 = vmatprep.subr.bf16.mxu0 0
    %5458 = vmatpush1.bf16.msra.mxu0 %v3292
    %5459 = vmatprep.subr.bf16.mxu0 0
    %5460 = vmatpush1.bf16.msra.mxu0 %v3293
    %5461 = vmatprep.mubr.bf16.mxu0 %v4317
    %5462 = vmatmul.mubr.bf16.gmra.mrb[0].mxu0 %v4316
    %v5463 = vpop.f32.mrb[0].mxu0
    %v5464 = vadd.f32 %v5367, %v5463
    %v5465 = vpop.f32.mrb[0].mxu0
    %v5466 = vpop.f32.mrb[0].mxu0
    %v5467 = vadd.f32 %v5370, %v5466
    %v5468 = vpop.f32.mrb[0].mxu0
    %5469 = vmatprep.mubr.bf16.mxu0 %v4345
    %5470 = vmatmul.mubr.bf16.gmra.mrb[0].mxu0 %v4344
    %v5471 = vpop.f32.mrb[0].mxu0
    %v5472 = vadd.f32 %v5375, %v5471
    %v5473 = vpop.f32.mrb[0].mxu0
    %v5474 = vpop.f32.mrb[0].mxu0
    %v5475 = vadd.f32 %v5378, %v5474
    %v5476 = vpop.f32.mrb[0].mxu0
    %5477 = vmatprep.mubr.bf16.mxu0 %v4373
    %5478 = vmatmul.mubr.bf16.gmra.mrb[0].mxu0 %v4372
    %v5479 = vpop.f32.mrb[0].mxu0
    %v5480 = vadd.f32 %v5383, %v5479
    %v5481 = vpop.f32.mrb[0].mxu0
    %v5482 = vpop.f32.mrb[0].mxu0
    %v5483 = vadd.f32 %v5386, %v5482
    %v5484 = vpop.f32.mrb[0].mxu0
    %5485 = vmatprep.mubr.bf16.mxu0 %v4401
    %5486 = vmatmul.mubr.bf16.gmra.mrb[0].mxu0 %v4400
    %v5487 = vpop.f32.mrb[0].mxu0
    %v5488 = vadd.f32 %v5391, %v5487
    %v5489 = vpop.f32.mrb[0].mxu0
    %v5490 = vpop.f32.mrb[0].mxu0
    %v5491 = vadd.f32 %v5394, %v5490
    %v5492 = vpop.f32.mrb[0].mxu0
    %5493 = vmatprep.mubr.bf16.mxu0 %v4429
    %5494 = vmatmul.mubr.bf16.gmra.mrb[0].mxu0 %v4428
    %v5495 = vpop.f32.mrb[0].mxu0
    %v5496 = vadd.f32 %v5399, %v5495
    %v5497 = vpop.f32.mrb[0].mxu0
    %v5498 = vpop.f32.mrb[0].mxu0
    %v5499 = vadd.f32 %v5402, %v5498
    %v5500 = vpop.f32.mrb[0].mxu0
    %5501 = vmatprep.mubr.bf16.mxu0 %v4457
    %5502 = vmatmul.mubr.bf16.gmra.mrb[0].mxu0 %v4456
    %v5503 = vpop.f32.mrb[0].mxu0
    %v5504 = vadd.f32 %v5407, %v5503
    %v5505 = vpop.f32.mrb[0].mxu0
    %v5506 = vpop.f32.mrb[0].mxu0
    %v5507 = vadd.f32 %v5410, %v5506
    %v5508 = vpop.f32.mrb[0].mxu0
    %5509 = vmatprep.mubr.bf16.mxu0 %v4485
    %5510 = vmatmul.mubr.bf16.gmra.mrb[0].mxu0 %v4484
    %v5511 = vpop.f32.mrb[0].mxu0
    %v5512 = vadd.f32 %v5415, %v5511
    %v5513 = vpop.f32.mrb[0].mxu0
    %v5514 = vpop.f32.mrb[0].mxu0
    %v5515 = vadd.f32 %v5418, %v5514
    %v5516 = vpop.f32.mrb[0].mxu0
    %5517 = vmatprep.mubr.bf16.mxu0 %v4513
    %5518 = vmatmul.mubr.bf16.gmra.mrb[0].mxu0 %v4512
    %v5519 = vpop.f32.mrb[0].mxu0
    %v5520 = vadd.f32 %v5423, %v5519
    %v5521 = vpop.f32.mrb[0].mxu0
    %v5522 = vpop.f32.mrb[0].mxu0
    %v5523 = vadd.f32 %v5426, %v5522
    %v5524 = vpop.f32.mrb[0].mxu0
    %5525 = vdwg.mxu0
    %5526 = vmatprep.subr.bf16.mxu0 0
    %5527 = vmatpush1.bf16.msra.mxu0 %v3294
    %5528 = vmatprep.subr.bf16.mxu0 0
    %5529 = vmatpush1.bf16.msra.mxu0 %v3295
    %5530 = vmatprep.subr.bf16.mxu0 0
    %5531 = vmatpush1.bf16.msra.mxu0 %v3296
    %5532 = vmatprep.subr.bf16.mxu0 0
    %5533 = vmatpush1.bf16.msra.mxu0 %v3297
    %5534 = vmatprep.subr.bf16.mxu0 0
    %5535 = vmatpush1.bf16.msra.mxu0 %v3298
    %5536 = vmatprep.subr.bf16.mxu0 0
    %5537 = vmatpush1.bf16.msra.mxu0 %v3299
    %5538 = vmatprep.subr.bf16.mxu0 0
    %5539 = vmatpush1.bf16.msra.mxu0 %v3300
    %5540 = vmatprep.subr.bf16.mxu0 0
    %5541 = vmatpush1.bf16.msra.mxu0 %v3301
    %5542 = vmatprep.subr.bf16.mxu0 0
    %5543 = vmatpush1.bf16.msra.mxu0 %v3302
    %5544 = vmatprep.subr.bf16.mxu0 0
    %5545 = vmatpush1.bf16.msra.mxu0 %v3303
    %5546 = vmatprep.subr.bf16.mxu0 0
    %5547 = vmatpush1.bf16.msra.mxu0 %v3304
    %5548 = vmatprep.subr.bf16.mxu0 0
    %5549 = vmatpush1.bf16.msra.mxu0 %v3305
    %5550 = vmatprep.subr.bf16.mxu0 0
    %5551 = vmatpush1.bf16.msra.mxu0 %v3306
    %5552 = vmatprep.subr.bf16.mxu0 0
    %5553 = vmatpush1.bf16.msra.mxu0 %v3307
    %5554 = vmatprep.subr.bf16.mxu0 0
    %5555 = vmatpush1.bf16.msra.mxu0 %v3308
    %5556 = vmatprep.subr.bf16.mxu0 0
    %5557 = vmatpush1.bf16.msra.mxu0 %v3309
    %5558 = vmatprep.mubr.bf16.mxu0 %v4319
    %5559 = vmatmul.mubr.bf16.gmra.mrb[0].mxu0 %v4318
    %v5560 = vpop.f32.mrb[0].mxu0
    %v5561 = vadd.f32 %v5464, %v5560
    %v5562 = vpop.f32.mrb[0].mxu0
    %v5563 = vpop.f32.mrb[0].mxu0
    %v5564 = vadd.f32 %v5467, %v5563
    %v5565 = vpop.f32.mrb[0].mxu0
    %5566 = vmatprep.mubr.bf16.mxu0 %v4347
    %5567 = vmatmul.mubr.bf16.gmra.mrb[0].mxu0 %v4346
    %v5568 = vpop.f32.mrb[0].mxu0
    %v5569 = vadd.f32 %v5472, %v5568
    %v5570 = vpop.f32.mrb[0].mxu0
    %v5571 = vpop.f32.mrb[0].mxu0
    %v5572 = vadd.f32 %v5475, %v5571
    %v5573 = vpop.f32.mrb[0].mxu0
    %5574 = vmatprep.mubr.bf16.mxu0 %v4375
    %5575 = vmatmul.mubr.bf16.gmra.mrb[0].mxu0 %v4374
    %v5576 = vpop.f32.mrb[0].mxu0
    %v5577 = vadd.f32 %v5480, %v5576
    %v5578 = vpop.f32.mrb[0].mxu0
    %v5579 = vpop.f32.mrb[0].mxu0
    %v5580 = vadd.f32 %v5483, %v5579
    %v5581 = vpop.f32.mrb[0].mxu0
    %5582 = vmatprep.mubr.bf16.mxu0 %v4403
    %5583 = vmatmul.mubr.bf16.gmra.mrb[0].mxu0 %v4402
    %v5584 = vpop.f32.mrb[0].mxu0
    %v5585 = vadd.f32 %v5488, %v5584
    %v5586 = vpop.f32.mrb[0].mxu0
    %v5587 = vpop.f32.mrb[0].mxu0
    %v5588 = vadd.f32 %v5491, %v5587
    %v5589 = vpop.f32.mrb[0].mxu0
    %5590 = vmatprep.mubr.bf16.mxu0 %v4431
    %5591 = vmatmul.mubr.bf16.gmra.mrb[0].mxu0 %v4430
    %v5592 = vpop.f32.mrb[0].mxu0
    %v5593 = vadd.f32 %v5496, %v5592
    %v5594 = vpop.f32.mrb[0].mxu0
    %v5595 = vpop.f32.mrb[0].mxu0
    %v5596 = vadd.f32 %v5499, %v5595
    %v5597 = vpop.f32.mrb[0].mxu0
    %5598 = vmatprep.mubr.bf16.mxu0 %v4459
    %5599 = vmatmul.mubr.bf16.gmra.mrb[0].mxu0 %v4458
    %v5600 = vpop.f32.mrb[0].mxu0
    %v5601 = vadd.f32 %v5504, %v5600
    %v5602 = vpop.f32.mrb[0].mxu0
    %v5603 = vpop.f32.mrb[0].mxu0
    %v5604 = vadd.f32 %v5507, %v5603
    %v5605 = vpop.f32.mrb[0].mxu0
    %5606 = vmatprep.mubr.bf16.mxu0 %v4487
    %5607 = vmatmul.mubr.bf16.gmra.mrb[0].mxu0 %v4486
    %v5608 = vpop.f32.mrb[0].mxu0
    %v5609 = vadd.f32 %v5512, %v5608
    %v5610 = vpop.f32.mrb[0].mxu0
    %v5611 = vpop.f32.mrb[0].mxu0
    %v5612 = vadd.f32 %v5515, %v5611
    %v5613 = vpop.f32.mrb[0].mxu0
    %5614 = vmatprep.mubr.bf16.mxu0 %v4515
    %5615 = vmatmul.mubr.bf16.gmra.mrb[0].mxu0 %v4514
    %v5616 = vpop.f32.mrb[0].mxu0
    %v5617 = vadd.f32 %v5520, %v5616
    %v5618 = vpop.f32.mrb[0].mxu0
    %v5619 = vpop.f32.mrb[0].mxu0
    %v5620 = vadd.f32 %v5523, %v5619
    %v5621 = vpop.f32.mrb[0].mxu0
    %5622 = vdwg.mxu0
    %5623 = vmatprep.subr.bf16.mxu0 0
    %5624 = vmatpush1.bf16.msra.mxu0 %v3310
    %5625 = vmatprep.subr.bf16.mxu0 0
    %5626 = vmatpush1.bf16.msra.mxu0 %v3311
    %5627 = vmatprep.subr.bf16.mxu0 0
    %5628 = vmatpush1.bf16.msra.mxu0 %v3312
    %5629 = vmatprep.subr.bf16.mxu0 0
    %5630 = vmatpush1.bf16.msra.mxu0 %v3313
    %5631 = vmatprep.subr.bf16.mxu0 0
    %5632 = vmatpush1.bf16.msra.mxu0 %v3314
    %5633 = vmatprep.subr.bf16.mxu0 0
    %5634 = vmatpush1.bf16.msra.mxu0 %v3315
    %5635 = vmatprep.subr.bf16.mxu0 0
    %5636 = vmatpush1.bf16.msra.mxu0 %v3316
    %5637 = vmatprep.subr.bf16.mxu0 0
    %5638 = vmatpush1.bf16.msra.mxu0 %v3317
    %5639 = vmatprep.subr.bf16.mxu0 0
    %5640 = vmatpush1.bf16.msra.mxu0 %v3318
    %5641 = vmatprep.subr.bf16.mxu0 0
    %5642 = vmatpush1.bf16.msra.mxu0 %v3319
    %5643 = vmatprep.subr.bf16.mxu0 0
    %5644 = vmatpush1.bf16.msra.mxu0 %v3320
    %5645 = vmatprep.subr.bf16.mxu0 0
    %5646 = vmatpush1.bf16.msra.mxu0 %v3321
    %5647 = vmatprep.subr.bf16.mxu0 0
    %5648 = vmatpush1.bf16.msra.mxu0 %v3322
    %5649 = vmatprep.subr.bf16.mxu0 0
    %5650 = vmatpush1.bf16.msra.mxu0 %v3323
    %5651 = vmatprep.subr.bf16.mxu0 0
    %5652 = vmatpush1.bf16.msra.mxu0 %v3324
    %5653 = vmatprep.subr.bf16.mxu0 0
    %5654 = vmatpush1.bf16.msra.mxu0 %v3325
    %5655 = vmatprep.mubr.bf16.mxu0 %v4321
    %5656 = vmatmul.mubr.bf16.gmra.mrb[0].mxu0 %v4320
    %v5657 = vpop.f32.mrb[0].mxu0
    %v5658 = vadd.f32 %v5561, %v5657
    %v5659 = vpop.f32.mrb[0].mxu0
    %v5660 = vpop.f32.mrb[0].mxu0
    %v5661 = vadd.f32 %v5564, %v5660
    %v5662 = vpop.f32.mrb[0].mxu0
    %5663 = vmatprep.mubr.bf16.mxu0 %v4349
    %5664 = vmatmul.mubr.bf16.gmra.mrb[0].mxu0 %v4348
    %v5665 = vpop.f32.mrb[0].mxu0
    %v5666 = vadd.f32 %v5569, %v5665
    %v5667 = vpop.f32.mrb[0].mxu0
    %v5668 = vpop.f32.mrb[0].mxu0
    %v5669 = vadd.f32 %v5572, %v5668
    %v5670 = vpop.f32.mrb[0].mxu0
    %5671 = vmatprep.mubr.bf16.mxu0 %v4377
    %5672 = vmatmul.mubr.bf16.gmra.mrb[0].mxu0 %v4376
    %v5673 = vpop.f32.mrb[0].mxu0
    %v5674 = vadd.f32 %v5577, %v5673
    %v5675 = vpop.f32.mrb[0].mxu0
    %v5676 = vpop.f32.mrb[0].mxu0
    %v5677 = vadd.f32 %v5580, %v5676
    %v5678 = vpop.f32.mrb[0].mxu0
    %5679 = vmatprep.mubr.bf16.mxu0 %v4405
    %5680 = vmatmul.mubr.bf16.gmra.mrb[0].mxu0 %v4404
    %v5681 = vpop.f32.mrb[0].mxu0
    %v5682 = vadd.f32 %v5585, %v5681
    %v5683 = vpop.f32.mrb[0].mxu0
    %v5684 = vpop.f32.mrb[0].mxu0
    %v5685 = vadd.f32 %v5588, %v5684
    %v5686 = vpop.f32.mrb[0].mxu0
    %5687 = vmatprep.mubr.bf16.mxu0 %v4433
    %5688 = vmatmul.mubr.bf16.gmra.mrb[0].mxu0 %v4432
    %v5689 = vpop.f32.mrb[0].mxu0
    %v5690 = vadd.f32 %v5593, %v5689
    %v5691 = vpop.f32.mrb[0].mxu0
    %v5692 = vpop.f32.mrb[0].mxu0
    %v5693 = vadd.f32 %v5596, %v5692
    %v5694 = vpop.f32.mrb[0].mxu0
    %5695 = vmatprep.mubr.bf16.mxu0 %v4461
    %5696 = vmatmul.mubr.bf16.gmra.mrb[0].mxu0 %v4460
    %v5697 = vpop.f32.mrb[0].mxu0
    %v5698 = vadd.f32 %v5601, %v5697
    %v5699 = vpop.f32.mrb[0].mxu0
    %v5700 = vpop.f32.mrb[0].mxu0
    %v5701 = vadd.f32 %v5604, %v5700
    %v5702 = vpop.f32.mrb[0].mxu0
    %5703 = vmatprep.mubr.bf16.mxu0 %v4489
    %5704 = vmatmul.mubr.bf16.gmra.mrb[0].mxu0 %v4488
    %v5705 = vpop.f32.mrb[0].mxu0
    %v5706 = vadd.f32 %v5609, %v5705
    %v5707 = vpop.f32.mrb[0].mxu0
    %v5708 = vpop.f32.mrb[0].mxu0
    %v5709 = vadd.f32 %v5612, %v5708
    %v5710 = vpop.f32.mrb[0].mxu0
    %5711 = vmatprep.mubr.bf16.mxu0 %v4517
    %5712 = vmatmul.mubr.bf16.gmra.mrb[0].mxu0 %v4516
    %v5713 = vpop.f32.mrb[0].mxu0
    %v5714 = vadd.f32 %v5617, %v5713
    %v5715 = vpop.f32.mrb[0].mxu0
    %v5716 = vpop.f32.mrb[0].mxu0
    %v5717 = vadd.f32 %v5620, %v5716
    %v5718 = vpop.f32.mrb[0].mxu0
    %5719 = vdwg.mxu0
    %5720 = vmatprep.subr.bf16.mxu0 0
    %5721 = vmatpush1.bf16.msra.mxu0 %v3326
    %5722 = vmatprep.subr.bf16.mxu0 0
    %5723 = vmatpush1.bf16.msra.mxu0 %v3327
    %5724 = vmatprep.subr.bf16.mxu0 0
    %5725 = vmatpush1.bf16.msra.mxu0 %v3328
    %5726 = vmatprep.subr.bf16.mxu0 0
    %5727 = vmatpush1.bf16.msra.mxu0 %v3329
    %5728 = vmatprep.subr.bf16.mxu0 0
    %5729 = vmatpush1.bf16.msra.mxu0 %v3330
    %5730 = vmatprep.subr.bf16.mxu0 0
    %5731 = vmatpush1.bf16.msra.mxu0 %v3331
    %5732 = vmatprep.subr.bf16.mxu0 0
    %5733 = vmatpush1.bf16.msra.mxu0 %v3332
    %5734 = vmatprep.subr.bf16.mxu0 0
    %5735 = vmatpush1.bf16.msra.mxu0 %v3333
    %5736 = vmatprep.subr.bf16.mxu0 0
    %5737 = vmatpush1.bf16.msra.mxu0 %v3334
    %5738 = vmatprep.subr.bf16.mxu0 0
    %5739 = vmatpush1.bf16.msra.mxu0 %v3335
    %5740 = vmatprep.subr.bf16.mxu0 0
    %5741 = vmatpush1.bf16.msra.mxu0 %v3336
    %5742 = vmatprep.subr.bf16.mxu0 0
    %5743 = vmatpush1.bf16.msra.mxu0 %v3337
    %5744 = vmatprep.subr.bf16.mxu0 0
    %5745 = vmatpush1.bf16.msra.mxu0 %v3338
    %5746 = vmatprep.subr.bf16.mxu0 0
    %5747 = vmatpush1.bf16.msra.mxu0 %v3339
    %5748 = vmatprep.subr.bf16.mxu0 0
    %5749 = vmatpush1.bf16.msra.mxu0 %v3340
    %5750 = vmatprep.subr.bf16.mxu0 0
    %5751 = vmatpush1.bf16.msra.mxu0 %v3341
    %5752 = vmatprep.mubr.bf16.mxu0 %v4323
    %5753 = vmatmul.mubr.bf16.gmra.mrb[0].mxu0 %v4322
    %v5754 = vpop.f32.mrb[0].mxu0
    %v5755 = vadd.f32 %v5658, %v5754
    %v5756 = vpop.f32.mrb[0].mxu0
    %v5757 = vpop.f32.mrb[0].mxu0
    %v5758 = vadd.f32 %v5661, %v5757
    %v5759 = vpop.f32.mrb[0].mxu0
    %5760 = vmatprep.mubr.bf16.mxu0 %v4351
    %5761 = vmatmul.mubr.bf16.gmra.mrb[0].mxu0 %v4350
    %v5762 = vpop.f32.mrb[0].mxu0
    %v5763 = vadd.f32 %v5666, %v5762
    %v5764 = vpop.f32.mrb[0].mxu0
    %v5765 = vpop.f32.mrb[0].mxu0
    %v5766 = vadd.f32 %v5669, %v5765
    %v5767 = vpop.f32.mrb[0].mxu0
    %5768 = vmatprep.mubr.bf16.mxu0 %v4379
    %5769 = vmatmul.mubr.bf16.gmra.mrb[0].mxu0 %v4378
    %v5770 = vpop.f32.mrb[0].mxu0
    %v5771 = vadd.f32 %v5674, %v5770
    %v5772 = vpop.f32.mrb[0].mxu0
    %v5773 = vpop.f32.mrb[0].mxu0
    %v5774 = vadd.f32 %v5677, %v5773
    %v5775 = vpop.f32.mrb[0].mxu0
    %5776 = vmatprep.mubr.bf16.mxu0 %v4407
    %5777 = vmatmul.mubr.bf16.gmra.mrb[0].mxu0 %v4406
    %v5778 = vpop.f32.mrb[0].mxu0
    %v5779 = vadd.f32 %v5682, %v5778
    %v5780 = vpop.f32.mrb[0].mxu0
    %v5781 = vpop.f32.mrb[0].mxu0
    %v5782 = vadd.f32 %v5685, %v5781
    %v5783 = vpop.f32.mrb[0].mxu0
    %5784 = vmatprep.mubr.bf16.mxu0 %v4435
    %5785 = vmatmul.mubr.bf16.gmra.mrb[0].mxu0 %v4434
    %v5786 = vpop.f32.mrb[0].mxu0
    %v5787 = vadd.f32 %v5690, %v5786
    %v5788 = vpop.f32.mrb[0].mxu0
    %v5789 = vpop.f32.mrb[0].mxu0
    %v5790 = vadd.f32 %v5693, %v5789
    %v5791 = vpop.f32.mrb[0].mxu0
    %5792 = vmatprep.mubr.bf16.mxu0 %v4463
    %5793 = vmatmul.mubr.bf16.gmra.mrb[0].mxu0 %v4462
    %v5794 = vpop.f32.mrb[0].mxu0
    %v5795 = vadd.f32 %v5698, %v5794
    %v5796 = vpop.f32.mrb[0].mxu0
    %v5797 = vpop.f32.mrb[0].mxu0
    %v5798 = vadd.f32 %v5701, %v5797
    %v5799 = vpop.f32.mrb[0].mxu0
    %5800 = vmatprep.mubr.bf16.mxu0 %v4491
    %5801 = vmatmul.mubr.bf16.gmra.mrb[0].mxu0 %v4490
    %v5802 = vpop.f32.mrb[0].mxu0
    %v5803 = vadd.f32 %v5706, %v5802
    %v5804 = vpop.f32.mrb[0].mxu0
    %v5805 = vpop.f32.mrb[0].mxu0
    %v5806 = vadd.f32 %v5709, %v5805
    %v5807 = vpop.f32.mrb[0].mxu0
    %5808 = vmatprep.mubr.bf16.mxu0 %v4519
    %5809 = vmatmul.mubr.bf16.gmra.mrb[0].mxu0 %v4518
    %v5810 = vpop.f32.mrb[0].mxu0
    %v5811 = vadd.f32 %v5714, %v5810
    %v5812 = vpop.f32.mrb[0].mxu0
    %v5813 = vpop.f32.mrb[0].mxu0
    %v5814 = vadd.f32 %v5717, %v5813
    %v5815 = vpop.f32.mrb[0].mxu0
    %5816 = vdwg.mxu0
    %5817 = vmatprep.subr.bf16.mxu0 0
    %5818 = vmatpush1.bf16.msra.mxu0 %v3342
    %5819 = vmatprep.subr.bf16.mxu0 0
    %5820 = vmatpush1.bf16.msra.mxu0 %v3343
    %5821 = vmatprep.subr.bf16.mxu0 0
    %5822 = vmatpush1.bf16.msra.mxu0 %v3344
    %5823 = vmatprep.subr.bf16.mxu0 0
    %5824 = vmatpush1.bf16.msra.mxu0 %v3345
    %5825 = vmatprep.subr.bf16.mxu0 0
    %5826 = vmatpush1.bf16.msra.mxu0 %v3346
    %5827 = vmatprep.subr.bf16.mxu0 0
    %5828 = vmatpush1.bf16.msra.mxu0 %v3347
    %5829 = vmatprep.subr.bf16.mxu0 0
    %5830 = vmatpush1.bf16.msra.mxu0 %v3348
    %5831 = vmatprep.subr.bf16.mxu0 0
    %5832 = vmatpush1.bf16.msra.mxu0 %v3349
    %5833 = vmatprep.subr.bf16.mxu0 0
    %5834 = vmatpush1.bf16.msra.mxu0 %v3350
    %5835 = vmatprep.subr.bf16.mxu0 0
    %5836 = vmatpush1.bf16.msra.mxu0 %v3351
    %5837 = vmatprep.subr.bf16.mxu0 0
    %5838 = vmatpush1.bf16.msra.mxu0 %v3352
    %5839 = vmatprep.subr.bf16.mxu0 0
    %5840 = vmatpush1.bf16.msra.mxu0 %v3353
    %5841 = vmatprep.subr.bf16.mxu0 0
    %5842 = vmatpush1.bf16.msra.mxu0 %v3354
    %5843 = vmatprep.subr.bf16.mxu0 0
    %5844 = vmatpush1.bf16.msra.mxu0 %v3355
    %5845 = vmatprep.subr.bf16.mxu0 0
    %5846 = vmatpush1.bf16.msra.mxu0 %v3356
    %5847 = vmatprep.subr.bf16.mxu0 0
    %5848 = vmatpush1.bf16.msra.mxu0 %v3357
    %5849 = vmatprep.mubr.bf16.mxu0 %v4325
    %5850 = vmatmul.mubr.bf16.gmra.mrb[0].mxu0 %v4324
    %v5851 = vpop.f32.mrb[0].mxu0
    %v5852 = vadd.f32 %v5755, %v5851
    %v5853 = vpop.f32.mrb[0].mxu0
    %v5854 = vpop.f32.mrb[0].mxu0
    %v5855 = vadd.f32 %v5758, %v5854
    %v5856 = vpop.f32.mrb[0].mxu0
    %5857 = vmatprep.mubr.bf16.mxu0 %v4353
    %5858 = vmatmul.mubr.bf16.gmra.mrb[0].mxu0 %v4352
    %v5859 = vpop.f32.mrb[0].mxu0
    %v5860 = vadd.f32 %v5763, %v5859
    %v5861 = vpop.f32.mrb[0].mxu0
    %v5862 = vpop.f32.mrb[0].mxu0
    %v5863 = vadd.f32 %v5766, %v5862
    %v5864 = vpop.f32.mrb[0].mxu0
    %5865 = vmatprep.mubr.bf16.mxu0 %v4381
    %5866 = vmatmul.mubr.bf16.gmra.mrb[0].mxu0 %v4380
    %v5867 = vpop.f32.mrb[0].mxu0
    %v5868 = vadd.f32 %v5771, %v5867
    %v5869 = vpop.f32.mrb[0].mxu0
    %v5870 = vpop.f32.mrb[0].mxu0
    %v5871 = vadd.f32 %v5774, %v5870
    %v5872 = vpop.f32.mrb[0].mxu0
    %5873 = vmatprep.mubr.bf16.mxu0 %v4409
    %5874 = vmatmul.mubr.bf16.gmra.mrb[0].mxu0 %v4408
    %v5875 = vpop.f32.mrb[0].mxu0
    %v5876 = vadd.f32 %v5779, %v5875
    %v5877 = vpop.f32.mrb[0].mxu0
    %v5878 = vpop.f32.mrb[0].mxu0
    %v5879 = vadd.f32 %v5782, %v5878
    %v5880 = vpop.f32.mrb[0].mxu0
    %5881 = vmatprep.mubr.bf16.mxu0 %v4437
    %5882 = vmatmul.mubr.bf16.gmra.mrb[0].mxu0 %v4436
    %v5883 = vpop.f32.mrb[0].mxu0
    %v5884 = vadd.f32 %v5787, %v5883
    %v5885 = vpop.f32.mrb[0].mxu0
    %v5886 = vpop.f32.mrb[0].mxu0
    %v5887 = vadd.f32 %v5790, %v5886
    %v5888 = vpop.f32.mrb[0].mxu0
    %5889 = vmatprep.mubr.bf16.mxu0 %v4465
    %5890 = vmatmul.mubr.bf16.gmra.mrb[0].mxu0 %v4464
    %v5891 = vpop.f32.mrb[0].mxu0
    %v5892 = vadd.f32 %v5795, %v5891
    %v5893 = vpop.f32.mrb[0].mxu0
    %v5894 = vpop.f32.mrb[0].mxu0
    %v5895 = vadd.f32 %v5798, %v5894
    %v5896 = vpop.f32.mrb[0].mxu0
    %5897 = vmatprep.mubr.bf16.mxu0 %v4493
    %5898 = vmatmul.mubr.bf16.gmra.mrb[0].mxu0 %v4492
    %v5899 = vpop.f32.mrb[0].mxu0
    %v5900 = vadd.f32 %v5803, %v5899
    %v5901 = vpop.f32.mrb[0].mxu0
    %v5902 = vpop.f32.mrb[0].mxu0
    %v5903 = vadd.f32 %v5806, %v5902
    %v5904 = vpop.f32.mrb[0].mxu0
    %5905 = vmatprep.mubr.bf16.mxu0 %v4521
    %5906 = vmatmul.mubr.bf16.gmra.mrb[0].mxu0 %v4520
    %v5907 = vpop.f32.mrb[0].mxu0
    %v5908 = vadd.f32 %v5811, %v5907
    %v5909 = vpop.f32.mrb[0].mxu0
    %v5910 = vpop.f32.mrb[0].mxu0
    %v5911 = vadd.f32 %v5814, %v5910
    %v5912 = vpop.f32.mrb[0].mxu0
    %5913 = vdwg.mxu0
    %5914 = vmatprep.subr.bf16.mxu0 0
    %5915 = vmatpush1.bf16.msra.mxu0 %v3358
    %5916 = vmatprep.subr.bf16.mxu0 0
    %5917 = vmatpush1.bf16.msra.mxu0 %v3359
    %5918 = vmatprep.subr.bf16.mxu0 0
    %5919 = vmatpush1.bf16.msra.mxu0 %v3360
    %5920 = vmatprep.subr.bf16.mxu0 0
    %5921 = vmatpush1.bf16.msra.mxu0 %v3361
    %5922 = vmatprep.subr.bf16.mxu0 0
    %5923 = vmatpush1.bf16.msra.mxu0 %v3362
    %5924 = vmatprep.subr.bf16.mxu0 0
    %5925 = vmatpush1.bf16.msra.mxu0 %v3363
    %5926 = vmatprep.subr.bf16.mxu0 0
    %5927 = vmatpush1.bf16.msra.mxu0 %v3364
    %5928 = vmatprep.subr.bf16.mxu0 0
    %5929 = vmatpush1.bf16.msra.mxu0 %v3365
    %5930 = vmatprep.subr.bf16.mxu0 0
    %5931 = vmatpush1.bf16.msra.mxu0 %v3366
    %5932 = vmatprep.subr.bf16.mxu0 0
    %5933 = vmatpush1.bf16.msra.mxu0 %v3367
    %5934 = vmatprep.subr.bf16.mxu0 0
    %5935 = vmatpush1.bf16.msra.mxu0 %v3368
    %5936 = vmatprep.subr.bf16.mxu0 0
    %5937 = vmatpush1.bf16.msra.mxu0 %v3369
    %5938 = vmatprep.subr.bf16.mxu0 0
    %5939 = vmatpush1.bf16.msra.mxu0 %v3370
    %5940 = vmatprep.subr.bf16.mxu0 0
    %5941 = vmatpush1.bf16.msra.mxu0 %v3371
    %5942 = vmatprep.subr.bf16.mxu0 0
    %5943 = vmatpush1.bf16.msra.mxu0 %v3372
    %5944 = vmatprep.subr.bf16.mxu0 0
    %5945 = vmatpush1.bf16.msra.mxu0 %v3373
    %5946 = vmatprep.mubr.bf16.mxu0 %v4327
    %5947 = vmatmul.mubr.bf16.gmra.mrb[0].mxu0 %v4326
    %v5948 = vpop.f32.mrb[0].mxu0
    %v5949 = vadd.f32 %v5852, %v5948
    %v5950 = vpop.f32.mrb[0].mxu0
    %v5951 = vpop.f32.mrb[0].mxu0
    %v5952 = vadd.f32 %v5855, %v5951
    %v5953 = vpop.f32.mrb[0].mxu0
    %5954 = vmatprep.mubr.bf16.mxu0 %v4355
    %5955 = vmatmul.mubr.bf16.gmra.mrb[0].mxu0 %v4354
    %v5956 = vpop.f32.mrb[0].mxu0
    %v5957 = vadd.f32 %v5860, %v5956
    %v5958 = vpop.f32.mrb[0].mxu0
    %v5959 = vpop.f32.mrb[0].mxu0
    %v5960 = vadd.f32 %v5863, %v5959
    %v5961 = vpop.f32.mrb[0].mxu0
    %5962 = vmatprep.mubr.bf16.mxu0 %v4383
    %5963 = vmatmul.mubr.bf16.gmra.mrb[0].mxu0 %v4382
    %v5964 = vpop.f32.mrb[0].mxu0
    %v5965 = vadd.f32 %v5868, %v5964
    %v5966 = vpop.f32.mrb[0].mxu0
    %v5967 = vpop.f32.mrb[0].mxu0
    %v5968 = vadd.f32 %v5871, %v5967
    %v5969 = vpop.f32.mrb[0].mxu0
    %5970 = vmatprep.mubr.bf16.mxu0 %v4411
    %5971 = vmatmul.mubr.bf16.gmra.mrb[0].mxu0 %v4410
    %v5972 = vpop.f32.mrb[0].mxu0
    %v5973 = vadd.f32 %v5876, %v5972
    %v5974 = vpop.f32.mrb[0].mxu0
    %v5975 = vpop.f32.mrb[0].mxu0
    %v5976 = vadd.f32 %v5879, %v5975
    %v5977 = vpop.f32.mrb[0].mxu0
    %5978 = vmatprep.mubr.bf16.mxu0 %v4439
    %5979 = vmatmul.mubr.bf16.gmra.mrb[0].mxu0 %v4438
    %v5980 = vpop.f32.mrb[0].mxu0
    %v5981 = vadd.f32 %v5884, %v5980
    %v5982 = vpop.f32.mrb[0].mxu0
    %v5983 = vpop.f32.mrb[0].mxu0
    %v5984 = vadd.f32 %v5887, %v5983
    %v5985 = vpop.f32.mrb[0].mxu0
    %5986 = vmatprep.mubr.bf16.mxu0 %v4467
    %5987 = vmatmul.mubr.bf16.gmra.mrb[0].mxu0 %v4466
    %v5988 = vpop.f32.mrb[0].mxu0
    %v5989 = vadd.f32 %v5892, %v5988
    %v5990 = vpop.f32.mrb[0].mxu0
    %v5991 = vpop.f32.mrb[0].mxu0
    %v5992 = vadd.f32 %v5895, %v5991
    %v5993 = vpop.f32.mrb[0].mxu0
    %5994 = vmatprep.mubr.bf16.mxu0 %v4495
    %5995 = vmatmul.mubr.bf16.gmra.mrb[0].mxu0 %v4494
    %v5996 = vpop.f32.mrb[0].mxu0
    %v5997 = vadd.f32 %v5900, %v5996
    %v5998 = vpop.f32.mrb[0].mxu0
    %v5999 = vpop.f32.mrb[0].mxu0
    %v6000 = vadd.f32 %v5903, %v5999
    %v6001 = vpop.f32.mrb[0].mxu0
    %6002 = vmatprep.mubr.bf16.mxu0 %v4523
    %6003 = vmatmul.mubr.bf16.gmra.mrb[0].mxu0 %v4522
    %v6004 = vpop.f32.mrb[0].mxu0
    %v6005 = vadd.f32 %v5908, %v6004
    %v6006 = vpop.f32.mrb[0].mxu0
    %v6007 = vpop.f32.mrb[0].mxu0
    %v6008 = vadd.f32 %v5911, %v6007
    %v6009 = vpop.f32.mrb[0].mxu0
    %6010 = vdwg.mxu0
    %6011 = vmatprep.subr.bf16.mxu0 0
    %6012 = vmatpush1.bf16.msra.mxu0 %v3374
    %6013 = vmatprep.subr.bf16.mxu0 0
    %6014 = vmatpush1.bf16.msra.mxu0 %v3375
    %6015 = vmatprep.subr.bf16.mxu0 0
    %6016 = vmatpush1.bf16.msra.mxu0 %v3376
    %6017 = vmatprep.subr.bf16.mxu0 0
    %6018 = vmatpush1.bf16.msra.mxu0 %v3377
    %6019 = vmatprep.subr.bf16.mxu0 0
    %6020 = vmatpush1.bf16.msra.mxu0 %v3378
    %6021 = vmatprep.subr.bf16.mxu0 0
    %6022 = vmatpush1.bf16.msra.mxu0 %v3379
    %6023 = vmatprep.subr.bf16.mxu0 0
    %6024 = vmatpush1.bf16.msra.mxu0 %v3380
    %6025 = vmatprep.subr.bf16.mxu0 0
    %6026 = vmatpush1.bf16.msra.mxu0 %v3381
    %6027 = vmatprep.subr.bf16.mxu0 0
    %6028 = vmatpush1.bf16.msra.mxu0 %v3382
    %6029 = vmatprep.subr.bf16.mxu0 0
    %6030 = vmatpush1.bf16.msra.mxu0 %v3383
    %6031 = vmatprep.subr.bf16.mxu0 0
    %6032 = vmatpush1.bf16.msra.mxu0 %v3384
    %6033 = vmatprep.subr.bf16.mxu0 0
    %6034 = vmatpush1.bf16.msra.mxu0 %v3385
    %6035 = vmatprep.subr.bf16.mxu0 0
    %6036 = vmatpush1.bf16.msra.mxu0 %v3386
    %6037 = vmatprep.subr.bf16.mxu0 0
    %6038 = vmatpush1.bf16.msra.mxu0 %v3387
    %6039 = vmatprep.subr.bf16.mxu0 0
    %6040 = vmatpush1.bf16.msra.mxu0 %v3388
    %6041 = vmatprep.subr.bf16.mxu0 0
    %6042 = vmatpush1.bf16.msra.mxu0 %v3389
    %6043 = vmatprep.mubr.bf16.mxu0 %v4329
    %6044 = vmatmul.mubr.bf16.gmra.mrb[0].mxu0 %v4328
    %v6045 = vpop.f32.mrb[0].mxu0
    %v6046 = vadd.f32 %v5949, %v6045
    %v6047 = vpop.f32.mrb[0].mxu0
    %v6048 = vpop.f32.mrb[0].mxu0
    %v6049 = vadd.f32 %v5952, %v6048
    %v6050 = vpop.f32.mrb[0].mxu0
    %6051 = vmatprep.mubr.bf16.mxu0 %v4357
    %6052 = vmatmul.mubr.bf16.gmra.mrb[0].mxu0 %v4356
    %v6053 = vpop.f32.mrb[0].mxu0
    %v6054 = vadd.f32 %v5957, %v6053
    %v6055 = vpop.f32.mrb[0].mxu0
    %v6056 = vpop.f32.mrb[0].mxu0
    %v6057 = vadd.f32 %v5960, %v6056
    %v6058 = vpop.f32.mrb[0].mxu0
    %6059 = vmatprep.mubr.bf16.mxu0 %v4385
    %6060 = vmatmul.mubr.bf16.gmra.mrb[0].mxu0 %v4384
    %v6061 = vpop.f32.mrb[0].mxu0
    %v6062 = vadd.f32 %v5965, %v6061
    %v6063 = vpop.f32.mrb[0].mxu0
    %v6064 = vpop.f32.mrb[0].mxu0
    %v6065 = vadd.f32 %v5968, %v6064
    %v6066 = vpop.f32.mrb[0].mxu0
    %6067 = vmatprep.mubr.bf16.mxu0 %v4413
    %6068 = vmatmul.mubr.bf16.gmra.mrb[0].mxu0 %v4412
    %v6069 = vpop.f32.mrb[0].mxu0
    %v6070 = vadd.f32 %v5973, %v6069
    %v6071 = vpop.f32.mrb[0].mxu0
    %v6072 = vpop.f32.mrb[0].mxu0
    %v6073 = vadd.f32 %v5976, %v6072
    %v6074 = vpop.f32.mrb[0].mxu0
    %6075 = vmatprep.mubr.bf16.mxu0 %v4441
    %6076 = vmatmul.mubr.bf16.gmra.mrb[0].mxu0 %v4440
    %v6077 = vpop.f32.mrb[0].mxu0
    %v6078 = vadd.f32 %v5981, %v6077
    %v6079 = vpop.f32.mrb[0].mxu0
    %v6080 = vpop.f32.mrb[0].mxu0
    %v6081 = vadd.f32 %v5984, %v6080
    %v6082 = vpop.f32.mrb[0].mxu0
    %6083 = vmatprep.mubr.bf16.mxu0 %v4469
    %6084 = vmatmul.mubr.bf16.gmra.mrb[0].mxu0 %v4468
    %v6085 = vpop.f32.mrb[0].mxu0
    %v6086 = vadd.f32 %v5989, %v6085
    %v6087 = vpop.f32.mrb[0].mxu0
    %v6088 = vpop.f32.mrb[0].mxu0
    %v6089 = vadd.f32 %v5992, %v6088
    %v6090 = vpop.f32.mrb[0].mxu0
    %6091 = vmatprep.mubr.bf16.mxu0 %v4497
    %6092 = vmatmul.mubr.bf16.gmra.mrb[0].mxu0 %v4496
    %v6093 = vpop.f32.mrb[0].mxu0
    %v6094 = vadd.f32 %v5997, %v6093
    %v6095 = vpop.f32.mrb[0].mxu0
    %v6096 = vpop.f32.mrb[0].mxu0
    %v6097 = vadd.f32 %v6000, %v6096
    %v6098 = vpop.f32.mrb[0].mxu0
    %6099 = vmatprep.mubr.bf16.mxu0 %v4525
    %6100 = vmatmul.mubr.bf16.gmra.mrb[0].mxu0 %v4524
    %v6101 = vpop.f32.mrb[0].mxu0
    %v6102 = vadd.f32 %v6005, %v6101
    %v6103 = vpop.f32.mrb[0].mxu0
    %v6104 = vpop.f32.mrb[0].mxu0
    %v6105 = vadd.f32 %v6008, %v6104
    %v6106 = vpop.f32.mrb[0].mxu0
    %6107 = vdwg.mxu0
    %vm6108 = vcmp.gt.f32.partialorder %v6046, 0.0
    %vm6109 = vcmp.gt.f32.partialorder %v6049, 0.0
    %vm6110 = vcmp.gt.f32.partialorder %v6054, 0.0
    %vm6111 = vcmp.gt.f32.partialorder %v6057, 0.0
    %vm6112 = vcmp.gt.f32.partialorder %v6062, 0.0
    %vm6113 = vcmp.gt.f32.partialorder %v6065, 0.0
    %vm6114 = vcmp.gt.f32.partialorder %v6070, 0.0
    %vm6115 = vcmp.gt.f32.partialorder %v6073, 0.0
    %vm6116 = vcmp.gt.f32.partialorder %v6078, 0.0
    %vm6117 = vcmp.gt.f32.partialorder %v6081, 0.0
    %vm6118 = vcmp.gt.f32.partialorder %v6086, 0.0
    %vm6119 = vcmp.gt.f32.partialorder %v6089, 0.0
    %vm6120 = vcmp.gt.f32.partialorder %v6094, 0.0
    %vm6121 = vcmp.gt.f32.partialorder %v6097, 0.0
    %vm6122 = vcmp.gt.f32.partialorder %v6102, 0.0
    %vm6123 = vcmp.gt.f32.partialorder %v6105, 0.0
    %v6124 = vmin.f32 %v6046, 0.0
    %v6125 = vmin.f32 %v6049, 0.0
    %v6126 = vmin.f32 %v6054, 0.0
    %v6127 = vmin.f32 %v6057, 0.0
    %v6128 = vmin.f32 %v6062, 0.0
    %v6129 = vmin.f32 %v6065, 0.0
    %v6130 = vmin.f32 %v6070, 0.0
    %v6131 = vmin.f32 %v6073, 0.0
    %v6132 = vmin.f32 %v6078, 0.0
    %v6133 = vmin.f32 %v6081, 0.0
    %v6134 = vmin.f32 %v6086, 0.0
    %v6135 = vmin.f32 %v6089, 0.0
    %v6136 = vmin.f32 %v6094, 0.0
    %v6137 = vmin.f32 %v6097, 0.0
    %v6138 = vmin.f32 %v6102, 0.0
    %v6139 = vmin.f32 %v6105, 0.0
    %v6140 = vmul.f32 %v6124, 1.442695
    %v6141 = vpow.pop %v6140
    %v6142 = vmul.f32 %v6125, 1.442695
    %v6143 = vpow.pop %v6142
    %v6144 = vmul.f32 %v6126, 1.442695
    %v6145 = vpow.pop %v6144
    %v6146 = vmul.f32 %v6127, 1.442695
    %v6147 = vpow.pop %v6146
    %v6148 = vmul.f32 %v6128, 1.442695
    %v6149 = vpow.pop %v6148
    %v6150 = vmul.f32 %v6129, 1.442695
    %v6151 = vpow.pop %v6150
    %v6152 = vmul.f32 %v6130, 1.442695
    %v6153 = vpow.pop %v6152
    %v6154 = vmul.f32 %v6131, 1.442695
    %v6155 = vpow.pop %v6154
    %v6156 = vmul.f32 %v6132, 1.442695
    %v6157 = vpow.pop %v6156
    %v6158 = vmul.f32 %v6133, 1.442695
    %v6159 = vpow.pop %v6158
    %v6160 = vmul.f32 %v6134, 1.442695
    %v6161 = vpow.pop %v6160
    %v6162 = vmul.f32 %v6135, 1.442695
    %v6163 = vpow.pop %v6162
    %v6164 = vmul.f32 %v6136, 1.442695
    %v6165 = vpow.pop %v6164
    %v6166 = vmul.f32 %v6137, 1.442695
    %v6167 = vpow.pop %v6166
    %v6168 = vmul.f32 %v6138, 1.442695
    %v6169 = vpow.pop %v6168
    %v6170 = vmul.f32 %v6139, 1.442695
    %v6171 = vpow.pop %v6170
    %v6172 = vsub.f32 %v6141, 1.0
    %v6173 = vsub.f32 %v6143, 1.0
    %v6174 = vsub.f32 %v6145, 1.0
    %v6175 = vsub.f32 %v6147, 1.0
    %v6176 = vsub.f32 %v6149, 1.0
    %v6177 = vsub.f32 %v6151, 1.0
    %v6178 = vsub.f32 %v6153, 1.0
    %v6179 = vsub.f32 %v6155, 1.0
    %v6180 = vsub.f32 %v6157, 1.0
    %v6181 = vsub.f32 %v6159, 1.0
    %v6182 = vsub.f32 %v6161, 1.0
    %v6183 = vsub.f32 %v6163, 1.0
    %v6184 = vsub.f32 %v6165, 1.0
    %v6185 = vsub.f32 %v6167, 1.0
    %v6186 = vsub.f32 %v6169, 1.0
    %v6187 = vsub.f32 %v6171, 1.0
    %v6188 = vsel %vm6108, %v6046, %v6172
    %v6189 = vsel %vm6109, %v6049, %v6173
    %v6190 = vsel %vm6110, %v6054, %v6174
    %v6191 = vsel %vm6111, %v6057, %v6175
    %v6192 = vsel %vm6112, %v6062, %v6176
    %v6193 = vsel %vm6113, %v6065, %v6177
    %v6194 = vsel %vm6114, %v6070, %v6178
    %v6195 = vsel %vm6115, %v6073, %v6179
    %v6196 = vsel %vm6116, %v6078, %v6180
    %v6197 = vsel %vm6117, %v6081, %v6181
    %v6198 = vsel %vm6118, %v6086, %v6182
    %v6199 = vsel %vm6119, %v6089, %v6183
    %v6200 = vsel %vm6120, %v6094, %v6184
    %v6201 = vsel %vm6121, %v6097, %v6185
    %v6202 = vsel %vm6122, %v6102, %v6186
    %v6203 = vsel %vm6123, %v6105, %v6187
    %v6204 = vld [vmem:[#allocation8] sm:$0xf]
    %v6205 = vld [vmem:[#allocation8 + $0x4] sm:$0xf]
    %v6206 = vld [vmem:[#allocation8 + $0x8] sm:$0xf]
    %v6207 = vld [vmem:[#allocation8 + $0xc] sm:$0xf]
    %v6208 = vld [vmem:[#allocation8 + $0x10] sm:$0xf]
    %v6209 = vld [vmem:[#allocation8 + $0x14] sm:$0xf]
    %v6210 = vld [vmem:[#allocation8 + $0x18] sm:$0xf]
    %v6211 = vld [vmem:[#allocation8 + $0x1c] sm:$0xf]
    %v6212 = vld [vmem:[#allocation8 + $0x20] sm:$0xf]
    %v6213 = vld [vmem:[#allocation8 + $0x24] sm:$0xf]
    %v6214 = vld [vmem:[#allocation8 + $0x28] sm:$0xf]
    %v6215 = vld [vmem:[#allocation8 + $0x2c] sm:$0xf]
    %v6216 = vld [vmem:[#allocation8 + $0x30] sm:$0xf]
    %v6217 = vld [vmem:[#allocation8 + $0x34] sm:$0xf]
    %v6218 = vld [vmem:[#allocation8 + $0x38] sm:$0xf]
    %v6219 = vld [vmem:[#allocation8 + $0x3c] sm:$0xf]
    %v6220 = vpack.c.bf16 %v6189, %v6188
    %v6221 = vpack.c.bf16 %v6191, %v6190
    %v6222 = vpack.c.bf16 %v6193, %v6192
    %v6223 = vpack.c.bf16 %v6195, %v6194
    %v6224 = vpack.c.bf16 %v6197, %v6196
    %v6225 = vpack.c.bf16 %v6199, %v6198
    %v6226 = vpack.c.bf16 %v6201, %v6200
    %v6227 = vpack.c.bf16 %v6203, %v6202
    %v6228 = vld [vmem:[#allocation10] sm:$0xff]
    %v6229 = vld [vmem:[#allocation10 + $0x8] sm:$0xff]
    %v6230 = vld [vmem:[#allocation10 + $0x10] sm:$0xff]
    %v6231 = vld [vmem:[#allocation10 + $0x18] sm:$0xff]
    %v6232 = vld [vmem:[#allocation10 + $0x20] sm:$0xff]
    %v6233 = vld [vmem:[#allocation10 + $0x28] sm:$0xff]
    %v6234 = vld [vmem:[#allocation10 + $0x30] sm:$0xff]
    %v6235 = vld [vmem:[#allocation10 + $0x38] sm:$0xff]
    %v6236 = vld [vmem:[#allocation10 + $0x40] sm:$0xff]
    %v6237 = vld [vmem:[#allocation10 + $0x48] sm:$0xff]
    %v6238 = vld [vmem:[#allocation10 + $0x50] sm:$0xff]
    %v6239 = vld [vmem:[#allocation10 + $0x58] sm:$0xff]
    %v6240 = vld [vmem:[#allocation10 + $0x60] sm:$0xff]
    %v6241 = vld [vmem:[#allocation10 + $0x68] sm:$0xff]
    %v6242 = vld [vmem:[#allocation10 + $0x70] sm:$0xff]
    %v6243 = vld [vmem:[#allocation10 + $0x78] sm:$0xff]
    %v6260 = vunpack.c.l.b16 %v6204
    %v6261 = vunpack.c.l.b16 %v6205
    %v6262 = vunpack.c.l.b16 %v6206
    %v6263 = vunpack.c.l.b16 %v6207
    %v6264 = vunpack.c.l.b16 %v6208
    %v6265 = vunpack.c.l.b16 %v6209
    %v6266 = vunpack.c.l.b16 %v6210
    %v6267 = vunpack.c.l.b16 %v6211
    %v6268 = vunpack.c.l.b16 %v6212
    %v6269 = vunpack.c.l.b16 %v6213
    %v6270 = vunpack.c.l.b16 %v6214
    %v6271 = vunpack.c.l.b16 %v6215
    %v6272 = vunpack.c.l.b16 %v6216
    %v6273 = vunpack.c.l.b16 %v6217
    %v6274 = vunpack.c.l.b16 %v6218
    %v6275 = vunpack.c.l.b16 %v6219
    %v6276 = vpack.c.b16 %v6261, %v6260
    %v6277 = vpack.c.b16 %v6263, %v6262
    %v6278 = vpack.c.b16 %v6265, %v6264
    %v6279 = vpack.c.b16 %v6267, %v6266
    %v6280 = vpack.c.b16 %v6269, %v6268
    %v6281 = vpack.c.b16 %v6271, %v6270
    %v6282 = vpack.c.b16 %v6273, %v6272
    %v6283 = vpack.c.b16 %v6275, %v6274
    %6292 = vmatprep.subr.bf16.mxu0 0
    %6293 = vmatpush1.bf16.msra.mxu0 %v6220
    %6294 = vmatprep.subr.bf16.mxu0 0
    %6295 = vmatpush1.bf16.msra.mxu0 %v6221
    %6296 = vmatprep.subr.bf16.mxu0 0
    %6297 = vmatpush1.bf16.msra.mxu0 %v6222
    %6298 = vmatprep.subr.bf16.mxu0 0
    %6299 = vmatpush1.bf16.msra.mxu0 %v6223
    %6300 = vmatprep.subr.bf16.mxu0 0
    %6301 = vmatpush1.bf16.msra.mxu0 %v6224
    %6302 = vmatprep.subr.bf16.mxu0 0
    %6303 = vmatpush1.bf16.msra.mxu0 %v6225
    %6304 = vmatprep.subr.bf16.mxu0 0
    %6305 = vmatpush1.bf16.msra.mxu0 %v6226
    %6306 = vmatprep.subr.bf16.mxu0 0
    %6307 = vmatpush1.bf16.msra.mxu0 %v6227
    %6308 = vmatprep.subr.bf16.mxu0 0
    %6309 = vmatpush1.bf16.msra.mxu0 0
    %6310 = vmatprep.subr.bf16.mxu0 0
    %6311 = vmatpush1.bf16.msra.mxu0 0
    %6312 = vmatprep.subr.bf16.mxu0 0
    %6313 = vmatpush1.bf16.msra.mxu0 0
    %6314 = vmatprep.subr.bf16.mxu0 0
    %6315 = vmatpush1.bf16.msra.mxu0 0
    %6316 = vmatprep.subr.bf16.mxu0 0
    %6317 = vmatpush1.bf16.msra.mxu0 0
    %6318 = vmatprep.subr.bf16.mxu0 0
    %6319 = vmatpush1.bf16.msra.mxu0 0
    %6320 = vmatprep.subr.bf16.mxu0 0
    %6321 = vmatpush1.bf16.msra.mxu0 0
    %6322 = vmatprep.subr.bf16.mxu0 0
    %6323 = vmatpush1.bf16.msra.mxu0 0
    %6324 = vmatprep.mubr.bf16.mxu0 0
    %6325 = vmatmul.mubr.bf16.gmra.mrb[0].mxu0 %v6276
    %v6326 = vpop.f32.mrb[0].mxu0
    %v6327 = vadd.f32 %v6228, %v6326
    %v6328 = vpop.f32.mrb[0].mxu0
    %v6329 = vpop.f32.mrb[0].mxu0
    %v6330 = vadd.f32 %v6229, %v6329
    %v6331 = vpop.f32.mrb[0].mxu0
    %6332 = vmatprep.mubr.bf16.mxu0 0
    %6333 = vmatmul.mubr.bf16.gmra.mrb[0].mxu0 %v6277
    %v6334 = vpop.f32.mrb[0].mxu0
    %v6335 = vadd.f32 %v6230, %v6334
    %v6336 = vpop.f32.mrb[0].mxu0
    %v6337 = vpop.f32.mrb[0].mxu0
    %v6338 = vadd.f32 %v6231, %v6337
    %v6339 = vpop.f32.mrb[0].mxu0
    %6340 = vmatprep.mubr.bf16.mxu0 0
    %6341 = vmatmul.mubr.bf16.gmra.mrb[0].mxu0 %v6278
    %v6342 = vpop.f32.mrb[0].mxu0
    %v6343 = vadd.f32 %v6232, %v6342
    %v6344 = vpop.f32.mrb[0].mxu0
    %v6345 = vpop.f32.mrb[0].mxu0
    %v6346 = vadd.f32 %v6233, %v6345
    %v6347 = vpop.f32.mrb[0].mxu0
    %6348 = vmatprep.mubr.bf16.mxu0 0
    %6349 = vmatmul.mubr.bf16.gmra.mrb[0].mxu0 %v6279
    %v6350 = vpop.f32.mrb[0].mxu0
    %v6351 = vadd.f32 %v6234, %v6350
    %v6352 = vpop.f32.mrb[0].mxu0
    %v6353 = vpop.f32.mrb[0].mxu0
    %v6354 = vadd.f32 %v6235, %v6353
    %v6355 = vpop.f32.mrb[0].mxu0
    %6356 = vmatprep.mubr.bf16.mxu0 0
    %6357 = vmatmul.mubr.bf16.gmra.mrb[0].mxu0 %v6280
    %v6358 = vpop.f32.mrb[0].mxu0
    %v6359 = vadd.f32 %v6236, %v6358
    %v6360 = vpop.f32.mrb[0].mxu0
    %v6361 = vpop.f32.mrb[0].mxu0
    %v6362 = vadd.f32 %v6237, %v6361
    %v6363 = vpop.f32.mrb[0].mxu0
    %6364 = vmatprep.mubr.bf16.mxu0 0
    %6365 = vmatmul.mubr.bf16.gmra.mrb[0].mxu0 %v6281
    %v6366 = vpop.f32.mrb[0].mxu0
    %v6367 = vadd.f32 %v6238, %v6366
    %v6368 = vpop.f32.mrb[0].mxu0
    %v6369 = vpop.f32.mrb[0].mxu0
    %v6370 = vadd.f32 %v6239, %v6369
    %v6371 = vpop.f32.mrb[0].mxu0
    %6372 = vmatprep.mubr.bf16.mxu0 0
    %6373 = vmatmul.mubr.bf16.gmra.mrb[0].mxu0 %v6282
    %v6374 = vpop.f32.mrb[0].mxu0
    %v6375 = vadd.f32 %v6240, %v6374
    %v6376 = vpop.f32.mrb[0].mxu0
    %v6377 = vpop.f32.mrb[0].mxu0
    %v6378 = vadd.f32 %v6241, %v6377
    %v6379 = vpop.f32.mrb[0].mxu0
    %6380 = vmatprep.mubr.bf16.mxu0 0
    %6381 = vmatmul.mubr.bf16.gmra.mrb[0].mxu0 %v6283
    %v6382 = vpop.f32.mrb[0].mxu0
    %v6383 = vadd.f32 %v6242, %v6382
    %v6384 = vpop.f32.mrb[0].mxu0
    %v6385 = vpop.f32.mrb[0].mxu0
    %v6386 = vadd.f32 %v6243, %v6385
    %v6387 = vpop.f32.mrb[0].mxu0
    %6388 = vdwg.mxu0
    %6389 = vst [vmem:[#allocation11] sm:$0xff] %v6327
    %6390 = vst [vmem:[#allocation11 + $0x8] sm:$0xff] %v6330
    %6391 = vst [vmem:[#allocation11 + $0x10] sm:$0xff] %v6335
    %6392 = vst [vmem:[#allocation11 + $0x18] sm:$0xff] %v6338
    %6393 = vst [vmem:[#allocation11 + $0x20] sm:$0xff] %v6343
    %6394 = vst [vmem:[#allocation11 + $0x28] sm:$0xff] %v6346
    %6395 = vst [vmem:[#allocation11 + $0x30] sm:$0xff] %v6351
    %6396 = vst [vmem:[#allocation11 + $0x38] sm:$0xff] %v6354
    %6397 = vst [vmem:[#allocation11 + $0x40] sm:$0xff] %v6359
    %6398 = vst [vmem:[#allocation11 + $0x48] sm:$0xff] %v6362
    %6399 = vst [vmem:[#allocation11 + $0x50] sm:$0xff] %v6367
    %6400 = vst [vmem:[#allocation11 + $0x58] sm:$0xff] %v6370
    %6401 = vst [vmem:[#allocation11 + $0x60] sm:$0xff] %v6375
    %6402 = vst [vmem:[#allocation11 + $0x68] sm:$0xff] %v6378
    %6403 = vst [vmem:[#allocation11 + $0x70] sm:$0xff] %v6383
    %6404 = vst [vmem:[#allocation11 + $0x78] sm:$0xff] %v6386
    // Predicated region
    $region53: #{tpu_custom_call.1} parent=1 // pred_check
      _
    $region54: #{tpu_custom_call.1} parent=1 // pred_check_branch
      %6406 = sbr.rel (0) target = $region56
    $region55: #{tpu_custom_call.1} parent=1 // pred_region
      %s6408 = ssub.s32 2048, 2048
      %6409 = vsyncadd [#allocation5], %s6408
      %s6410 = sshll.u32 [#allocation11], 4
      %s6411 = int_to_ptr.vmem [resolvable:$true] %s6410
      %6416 = dma.vmem_to_hbm [thread:$0]  %s6411, 2048, %s6, [#allocation5], 128, 128, 8
    $region56: #{tpu_custom_call.1} parent=1 // pred_fallthru
      _
    // Predicated region
    $region57: #{tpu_custom_call.1} parent=1 // pred_check
      _
    $region58: #{tpu_custom_call.1} parent=1 // pred_check_branch
      %6418 = sbr.rel (0) target = $region60
    $region59: #{tpu_custom_call.1} parent=1 // pred_region
      %6419 = dma.done [#allocation5], 2048
    $region60: #{tpu_custom_call.1} parent=1 // pred_fallthru
      _
    %6420 = vsyncpa [#allocation4], 1
    %6421 = vsyncpa [#allocation9], 1
    %6422 = vsyncpa [#allocation5], 1
    %6423 = vsyncpa [#allocation6], 1

</llo_original>
